<compile_context>
chip_gen: v7x
topology: tpu7x:2x2x1
jax: 0.10.0
libtpu: 0.0.40
codegen_flags: <defaults>
</compile_context>

<pallas_src>
import jax
import jax.numpy as jnp
from jax import lax
from jax.experimental import pallas as pl
from jax.experimental.pallas import tpu as pltpu


# ----------------------------------------------------------------------------
# Fused kernel: one grid step == one image, everything resident in VMEM.
#
# Activation layouts inside the kernel (per image):
#   conv1 out  o1 : (24, 480)  lane = ow*20 + c
#   pooled     s1 : (12, 460)  valid lanes at 40*x + c   (others zero-weighted)
#   conv2 out  o2 : ( 8, 400)  lane = ow*50 + d
#   pooled     s2 : ( 4, 350)  valid lanes at 100*x + d  (others zero-weighted)
# ----------------------------------------------------------------------------
def _lenet_fused_kernel(x_ref, t1_ref, b1_ref, t2_ref, b2_ref,
                        wfc1_ref, bfc1_ref, wfc2_ref, bfc2_ref, out_ref):
    f32 = jnp.float32

    def pool_rows_x2(a, n_out):
        # max over consecutive row pairs via two exact one-hot matmuls (MXU).
        n_in = 2 * n_out
        r = lax.broadcasted_iota(jnp.int32, (n_out, n_in), 0)
        c = lax.broadcasted_iota(jnp.int32, (n_out, n_in), 1)
        sel_even = jnp.where(c == 2 * r, 1.0, 0.0).astype(f32)
        sel_odd = jnp.where(c == 2 * r + 1, 1.0, 0.0).astype(f32)
        return jnp.maximum(
            jnp.dot(sel_even, a, preferred_element_type=f32),
            jnp.dot(sel_odd, a, preferred_element_type=f32))

    def pool_cols_x2(a, ch):
        # layout a[:, w*ch + c]: max over column pairs (2w, 2w+1); the result
        # for pair w lands at lane 2*w*ch + c (remaining lanes are multiplied
        # by zeros in the next layer's packed weights).
        n = a.shape[1]
        return jnp.maximum(a[:, : n - ch], a[:, ch:])

    x = x_ref[0]                                                 # (28, 28)

    # conv1 + bias + ReLU: 5 Toeplitz matmuls (one per kernel row) -> (24, 480)
    o1 = jnp.zeros((24, 480), f32)
    for i in range(5):
        o1 = o1 + jnp.dot(x[i:i + 24, :], t1_ref[i],
                          preferred_element_type=f32)
    o1 = jnp.maximum(o1 + b1_ref[...], 0.0)

    # 2x2 maxpool -> (12, 460); pooled A1[y, x, c] at lane 40*x + c
    s1 = pool_cols_x2(pool_rows_x2(o1, 12), 20)

    # conv2 + bias + ReLU: 5 Toeplitz matmuls -> (8, 400)
    o2 = jnp.zeros((8, 400), f32)
    for i in range(5):
        o2 = o2 + jnp.dot(s1[i:i + 8, :], t2_ref[i],
                          preferred_element_type=f32)
    o2 = jnp.maximum(o2 + b2_ref[...], 0.0)

    # 2x2 maxpool -> (4, 350); pooled A2[y, x, d] at lane 100*x + d
    s2 = pool_cols_x2(pool_rows_x2(o2, 4), 50)

    # fc1 + ReLU: torch's (C, H, W) flatten order is folded into wfc1 packing.
    h = bfc1_ref[...]                                            # (1, 500)
    for y in range(4):
        h = h + jnp.dot(s2[y:y + 1, :], wfc1_ref[y],
                        preferred_element_type=f32)
    h = jnp.maximum(h, 0.0)

    # fc2 -> logits (1, 10)
    logits = (jnp.dot(h, wfc2_ref[...], preferred_element_type=f32)
              + bfc2_ref[...])
    out_ref[0] = logits.astype(out_ref.dtype)


@jax.jit
def lenet_forward(x_nchw, kp):
    """x_nchw: (B, 1, 28, 28) f32; kp: kernel-layout params from prepare_params."""
    B = x_nchw.shape[0]
    x = x_nchw[:, 0, :, :]                                       # Cin == 1
    out = pl.pallas_call(
        _lenet_fused_kernel,
        out_shape=jax.ShapeDtypeStruct((B, 1, 10), jnp.float32),
        grid=(B,),
        in_specs=[
            pl.BlockSpec((1, 28, 28), lambda b: (b, 0, 0)),      # image b
            pl.BlockSpec((5, 28, 480), lambda b: (0, 0, 0)),     # conv1 Toeplitz
            pl.BlockSpec((1, 480), lambda b: (0, 0)),            # conv1 bias (tiled)
            pl.BlockSpec((5, 460, 400), lambda b: (0, 0, 0)),    # conv2 Toeplitz
            pl.BlockSpec((1, 400), lambda b: (0, 0)),            # conv2 bias (tiled)
            pl.BlockSpec((4, 350, 500), lambda b: (0, 0, 0)),    # fc1 packed weight
            pl.BlockSpec((1, 500), lambda b: (0, 0)),            # fc1 bias
            pl.BlockSpec((500, 10), lambda b: (0, 0)),           # fc2 weight (in, out)
            pl.BlockSpec((1, 10), lambda b: (0, 0)),             # fc2 bias
        ],
        out_specs=pl.BlockSpec((1, 1, 10), lambda b: (b, 0, 0)),
        compiler_params=pltpu.CompilerParams(
            dimension_semantics=("parallel",),    # v7x megacore over the batch
            vmem_limit_bytes=32 * 1024 * 1024,    # whole-net weights resident
        ),
    )(x, kp["t1"], kp["b1t"], kp["t2"], kp["b2t"],
      kp["wfc1"], kp["bfc1"], kp["wfc2"], kp["bfc2"])
    return out.reshape(B, 10)


# ----------------------------------------------------------------------------
# One-time host-side weight preparation (torch layouts -> kernel layouts).
# ----------------------------------------------------------------------------
def prepare_params(tp):
    f32 = jnp.float32
    w1 = tp["conv1_w"].astype(f32)      # (20, 1, 5, 5)  OIHW
    w2 = tp["conv2_w"].astype(f32)      # (50, 20, 5, 5) OIHW
    wf1 = tp["fc1_w"].astype(f32)       # (500, 800)     torch: y = x @ W.T + b
    wf2 = tp["fc2_w"].astype(f32)       # (10, 500)

    # conv1 Toeplitz slabs: t1[i, ow + j, ow*20 + c] = w1[c, 0, i, j]
    i_, j_, o_, c_ = jnp.meshgrid(jnp.arange(5), jnp.arange(5),
                                  jnp.arange(24), jnp.arange(20), indexing="ij")
    t1 = jnp.zeros((5, 28, 480), f32).at[i_, o_ + j_, o_ * 20 + c_].set(
        w1[:, 0][c_, i_, j_])

    # conv2 Toeplitz slabs over the sparse pooled-conv1 layout (lane 40x + c):
    #   t2[i, 40*(ow + j) + c, ow*50 + d] = w2[d, c, i, j]; all other rows are
    #   zero, so the "garbage" lanes of the pooled activation contribute 0.
    i_, j_, c_, o_, d_ = jnp.meshgrid(jnp.arange(5), jnp.arange(5),
                                      jnp.arange(20), jnp.arange(8),
                                      jnp.arange(50), indexing="ij")
    t2 = jnp.zeros((5, 460, 400), f32).at[
        i_, 40 * (o_ + j_) + c_, o_ * 50 + d_].set(w2[d_, c_, i_, j_])

    # fc1 packed over the sparse pooled-conv2 layout (lane 100x + d), folding
    # torch's .view(-1, 800) flatten order f = d*16 + y*4 + x.
    y_, x_, d_, n_ = jnp.meshgrid(jnp.arange(4), jnp.arange(4),
                                  jnp.arange(50), jnp.arange(500), indexing="ij")
    wfc1 = jnp.zeros((4, 350, 500), f32).at[y_, 100 * x_ + d_, n_].set(
        wf1[n_, d_ * 16 + y_ * 4 + x_])

    return {
        "t1": t1,
        "b1t": jnp.tile(tp["conv1_b"].astype(f32), 24).reshape(1, 480),
        "t2": t2,
        "b2t": jnp.tile(tp["conv2_b"].astype(f32), 8).reshape(1, 400),
        "wfc1": wfc1,
        "bfc1": tp["fc1_b"].astype(f32).reshape(1, 500),
        "wfc2": wf2.T,                                           # (500, 10)
        "bfc2": tp["fc2_b"].astype(f32).reshape(1, 10),
    }


# ----------------------------------------------------------------------------
# Pure-jnp reference with torch semantics / layouts (no Pallas).
# ----------------------------------------------------------------------------
def lenet_forward_ref(x_nchw, tp):
    hi = lax.Precision.HIGHEST
    dn = ("NCHW", "OIHW", "NCHW")

    def pool(x):
        B, C, H, W = x.shape
        return jnp.max(x.reshape(B, C, H // 2, 2, W // 2, 2), axis=(3, 5))

    y = lax.conv_general_dilated(x_nchw, tp["conv1_w"], (1, 1), "VALID",
                                 dimension_numbers=dn, precision=hi)
    y = pool(jnp.maximum(y + tp["conv1_b"][None, :, None, None], 0.0))
    y = lax.conv_general_dilated(y, tp["conv2_w"], (1, 1), "VALID",
                                 dimension_numbers=dn, precision=hi)
    y = pool(jnp.maximum(y + tp["conv2_b"][None, :, None, None], 0.0))
    y = y.reshape(y.shape[0], 4 * 4 * 50)            # torch .view order (C, H, W)
    y = jnp.maximum(jnp.dot(y, tp["fc1_w"].T, precision=hi) + tp["fc1_b"], 0.0)
    return jnp.dot(y, tp["fc2_w"].T, precision=hi) + tp["fc2_b"]


# ----------------------------------------------------------------------------
# Deterministic synthetic parameters in the original torch layouts.
# ----------------------------------------------------------------------------
def make_torch_params():
    ks = jax.random.split(jax.random.PRNGKey(0), 8)
    f32 = jnp.float32
    return {
        "conv1_w": 0.10 * jax.random.normal(ks[0], (20, 1, 5, 5), f32),
        "conv1_b": 0.10 * jax.random.normal(ks[1], (20,), f32),
        "conv2_w": 0.05 * jax.random.normal(ks[2], (50, 20, 5, 5), f32),
        "conv2_b": 0.05 * jax.random.normal(ks[3], (50,), f32),
        "fc1_w": 0.02 * jax.random.normal(ks[4], (500, 800), f32),
        "fc1_b": 0.02 * jax.random.normal(ks[5], (500,), f32),
        "fc2_w": 0.05 * jax.random.normal(ks[6], (10, 500), f32),
        "fc2_b": 0.05 * jax.random.normal(ks[7], (10,), f32),
    }


if __name__ == "__main__":
    tp = make_torch_params()
    kp = prepare_params(tp)

    # LeNet geometry requires 28x28 single-channel input (4*4*50 flatten).
    x = jax.random.normal(jax.random.PRNGKey(0), (2, 1, 28, 28), jnp.float32)

    out = jax.block_until_ready(lenet_forward(x, kp))
    assert out.shape == (2, 10), out.shape

    ref = jax.block_until_ready(lenet_forward_ref(x, tp))
    max_err = float(jnp.max(jnp.abs(out - ref)))
    assert jnp.allclose(out, ref, atol=2e-2, rtol=2e-2), f"max |diff| = {max_err}"

    print("KERNEL_OK")
</pallas_src>

<mosaic_0001>
module attributes {stable_mosaic.version = 11 : i64} {
  func.func @_lenet_fused_kernel(%arg0: i32, %arg1: memref<1x28x28xf32, #tpu.memory_space<vmem>>, %arg2: memref<5x28x480xf32, #tpu.memory_space<vmem>>, %arg3: memref<1x480xf32, #tpu.memory_space<vmem>>, %arg4: memref<5x460x400xf32, #tpu.memory_space<vmem>>, %arg5: memref<1x400xf32, #tpu.memory_space<vmem>>, %arg6: memref<4x350x500xf32, #tpu.memory_space<vmem>>, %arg7: memref<1x500xf32, #tpu.memory_space<vmem>>, %arg8: memref<500x10xf32, #tpu.memory_space<vmem>>, %arg9: memref<1x10xf32, #tpu.memory_space<vmem>>, %arg10: memref<1x1x10xf32, #tpu.memory_space<vmem>>) attributes {dimension_semantics = [#tpu.dimension_semantics<parallel>], iteration_bounds = array<i64: 2>, scalar_prefetch = 0 : i64, scratch_operands = 0 : i64, tpu.core_type = #tpu.core_type<tc>, window_params = [{transform_indices = @transform_0, window_bounds = array<i64: 1, 28, 28>}, {pipeline_mode = #tpu.pipeline_mode<synchronous>, transform_indices = @transform_1, window_bounds = array<i64: 5, 28, 480>}, {pipeline_mode = #tpu.pipeline_mode<synchronous>, transform_indices = @transform_2, window_bounds = array<i64: 1, 480>}, {pipeline_mode = #tpu.pipeline_mode<synchronous>, transform_indices = @transform_3, window_bounds = array<i64: 5, 460, 400>}, {pipeline_mode = #tpu.pipeline_mode<synchronous>, transform_indices = @transform_4, window_bounds = array<i64: 1, 400>}, {pipeline_mode = #tpu.pipeline_mode<synchronous>, transform_indices = @transform_5, window_bounds = array<i64: 4, 350, 500>}, {pipeline_mode = #tpu.pipeline_mode<synchronous>, transform_indices = @transform_6, window_bounds = array<i64: 1, 500>}, {pipeline_mode = #tpu.pipeline_mode<synchronous>, transform_indices = @transform_7, window_bounds = array<i64: 500, 10>}, {pipeline_mode = #tpu.pipeline_mode<synchronous>, transform_indices = @transform_8, window_bounds = array<i64: 1, 10>}, {transform_indices = @transform_9, window_bounds = array<i64: 1, 1, 10>}]} {
    %c0 = arith.constant 0 : index
    %c0_0 = arith.constant 0 : index
    %c0_1 = arith.constant 0 : index
    %0 = vector.load %arg1[%c0, %c0_0, %c0_1] : memref<1x28x28xf32, #tpu.memory_space<vmem>>, vector<1x28x28xf32>
    %1 = vector.shape_cast %0 : vector<1x28x28xf32> to vector<28x28xf32>
    %cst = arith.constant 0.000000e+00 : f32
    %2 = vector.broadcast %cst : f32 to vector<24x480xf32>
    %3 = vector.extract_strided_slice %1 {offsets = [0, 0], sizes = [24, 28], strides = [1, 1]} : vector<28x28xf32> to vector<24x28xf32>
    %c0_2 = arith.constant 0 : index
    %c0_3 = arith.constant 0 : index
    %c0_4 = arith.constant 0 : index
    %4 = vector.load %arg2[%c0_2, %c0_3, %c0_4] : memref<5x28x480xf32, #tpu.memory_space<vmem>>, vector<1x28x480xf32>
    %5 = vector.shape_cast %4 : vector<1x28x480xf32> to vector<28x480xf32>
    %cst_5 = arith.constant dense<0.000000e+00> : vector<24x480xf32>
    %6 = tpu.matmul %3, %5, %cst_5 {dimension_numbers = #tpu.dot_dimension_numbers<[1], [0], [0], [1], [0, 0, 1, 1], [], []>} : vector<24x28xf32>, vector<28x480xf32>, vector<24x480xf32> -> vector<24x480xf32>
    %7 = arith.addf %2, %6 : vector<24x480xf32>
    %8 = vector.extract_strided_slice %1 {offsets = [1, 0], sizes = [24, 28], strides = [1, 1]} : vector<28x28xf32> to vector<24x28xf32>
    %c1 = arith.constant 1 : index
    %c0_6 = arith.constant 0 : index
    %c0_7 = arith.constant 0 : index
    %9 = vector.load %arg2[%c1, %c0_6, %c0_7] : memref<5x28x480xf32, #tpu.memory_space<vmem>>, vector<1x28x480xf32>
    %10 = vector.shape_cast %9 : vector<1x28x480xf32> to vector<28x480xf32>
    %cst_8 = arith.constant dense<0.000000e+00> : vector<24x480xf32>
    %11 = tpu.matmul %8, %10, %cst_8 {dimension_numbers = #tpu.dot_dimension_numbers<[1], [0], [0], [1], [0, 0, 1, 1], [], []>} : vector<24x28xf32>, vector<28x480xf32>, vector<24x480xf32> -> vector<24x480xf32>
    %12 = arith.addf %7, %11 : vector<24x480xf32>
    %13 = vector.extract_strided_slice %1 {offsets = [2, 0], sizes = [24, 28], strides = [1, 1]} : vector<28x28xf32> to vector<24x28xf32>
    %c2 = arith.constant 2 : index
    %c0_9 = arith.constant 0 : index
    %c0_10 = arith.constant 0 : index
    %14 = vector.load %arg2[%c2, %c0_9, %c0_10] : memref<5x28x480xf32, #tpu.memory_space<vmem>>, vector<1x28x480xf32>
    %15 = vector.shape_cast %14 : vector<1x28x480xf32> to vector<28x480xf32>
    %cst_11 = arith.constant dense<0.000000e+00> : vector<24x480xf32>
    %16 = tpu.matmul %13, %15, %cst_11 {dimension_numbers = #tpu.dot_dimension_numbers<[1], [0], [0], [1], [0, 0, 1, 1], [], []>} : vector<24x28xf32>, vector<28x480xf32>, vector<24x480xf32> -> vector<24x480xf32>
    %17 = arith.addf %12, %16 : vector<24x480xf32>
    %18 = vector.extract_strided_slice %1 {offsets = [3, 0], sizes = [24, 28], strides = [1, 1]} : vector<28x28xf32> to vector<24x28xf32>
    %c3 = arith.constant 3 : index
    %c0_12 = arith.constant 0 : index
    %c0_13 = arith.constant 0 : index
    %19 = vector.load %arg2[%c3, %c0_12, %c0_13] : memref<5x28x480xf32, #tpu.memory_space<vmem>>, vector<1x28x480xf32>
    %20 = vector.shape_cast %19 : vector<1x28x480xf32> to vector<28x480xf32>
    %cst_14 = arith.constant dense<0.000000e+00> : vector<24x480xf32>
    %21 = tpu.matmul %18, %20, %cst_14 {dimension_numbers = #tpu.dot_dimension_numbers<[1], [0], [0], [1], [0, 0, 1, 1], [], []>} : vector<24x28xf32>, vector<28x480xf32>, vector<24x480xf32> -> vector<24x480xf32>
    %22 = arith.addf %17, %21 : vector<24x480xf32>
    %23 = vector.extract_strided_slice %1 {offsets = [4, 0], sizes = [24, 28], strides = [1, 1]} : vector<28x28xf32> to vector<24x28xf32>
    %c4 = arith.constant 4 : index
    %c0_15 = arith.constant 0 : index
    %c0_16 = arith.constant 0 : index
    %24 = vector.load %arg2[%c4, %c0_15, %c0_16] : memref<5x28x480xf32, #tpu.memory_space<vmem>>, vector<1x28x480xf32>
    %25 = vector.shape_cast %24 : vector<1x28x480xf32> to vector<28x480xf32>
    %cst_17 = arith.constant dense<0.000000e+00> : vector<24x480xf32>
    %26 = tpu.matmul %23, %25, %cst_17 {dimension_numbers = #tpu.dot_dimension_numbers<[1], [0], [0], [1], [0, 0, 1, 1], [], []>} : vector<24x28xf32>, vector<28x480xf32>, vector<24x480xf32> -> vector<24x480xf32>
    %27 = arith.addf %22, %26 : vector<24x480xf32>
    %c0_18 = arith.constant 0 : index
    %c0_19 = arith.constant 0 : index
    %28 = vector.load %arg3[%c0_18, %c0_19] : memref<1x480xf32, #tpu.memory_space<vmem>>, vector<1x480xf32>
    %29 = vector.broadcast %28 : vector<1x480xf32> to vector<24x480xf32>
    %30 = arith.addf %27, %29 : vector<24x480xf32>
    %cst_20 = arith.constant 0.000000e+00 : f32
    %31 = vector.broadcast %cst_20 : f32 to vector<24x480xf32>
    %32 = arith.maximumf %30, %31 : vector<24x480xf32>
    %33 = tpu.iota {dimensions = array<i32: 0>} : vector<12x24xi32>
    %34 = tpu.iota {dimensions = array<i32: 1>} : vector<12x24xi32>
    %c2_i32 = arith.constant 2 : i32
    %35 = vector.broadcast %c2_i32 : i32 to vector<12x24xi32>
    %36 = arith.muli %35, %33 : vector<12x24xi32>
    %37 = arith.cmpi eq, %34, %36 : vector<12x24xi32>
    %cst_21 = arith.constant 1.000000e+00 : f32
    %cst_22 = arith.constant 0.000000e+00 : f32
    %38 = vector.broadcast %cst_21 : f32 to vector<12x24xf32>
    %39 = vector.broadcast %cst_22 : f32 to vector<12x24xf32>
    %40 = arith.select %37, %38, %39 : vector<12x24xi1>, vector<12x24xf32>
    %c2_i32_23 = arith.constant 2 : i32
    %41 = vector.broadcast %c2_i32_23 : i32 to vector<12x24xi32>
    %42 = arith.muli %41, %33 : vector<12x24xi32>
    %c1_i32 = arith.constant 1 : i32
    %43 = vector.broadcast %c1_i32 : i32 to vector<12x24xi32>
    %44 = arith.addi %42, %43 : vector<12x24xi32>
    %45 = arith.cmpi eq, %34, %44 : vector<12x24xi32>
    %cst_24 = arith.constant 1.000000e+00 : f32
    %cst_25 = arith.constant 0.000000e+00 : f32
    %46 = vector.broadcast %cst_24 : f32 to vector<12x24xf32>
    %47 = vector.broadcast %cst_25 : f32 to vector<12x24xf32>
    %48 = arith.select %45, %46, %47 : vector<12x24xi1>, vector<12x24xf32>
    %cst_26 = arith.constant dense<0.000000e+00> : vector<12x480xf32>
    %49 = tpu.matmul %40, %32, %cst_26 {dimension_numbers = #tpu.dot_dimension_numbers<[1], [0], [0], [1], [0, 0, 1, 1], [], []>} : vector<12x24xf32>, vector<24x480xf32>, vector<12x480xf32> -> vector<12x480xf32>
    %cst_27 = arith.constant dense<0.000000e+00> : vector<12x480xf32>
    %50 = tpu.matmul %48, %32, %cst_27 {dimension_numbers = #tpu.dot_dimension_numbers<[1], [0], [0], [1], [0, 0, 1, 1], [], []>} : vector<12x24xf32>, vector<24x480xf32>, vector<12x480xf32> -> vector<12x480xf32>
    %51 = arith.maximumf %49, %50 : vector<12x480xf32>
    %52 = vector.extract_strided_slice %51 {offsets = [0, 0], sizes = [12, 460], strides = [1, 1]} : vector<12x480xf32> to vector<12x460xf32>
    %53 = vector.extract_strided_slice %51 {offsets = [0, 20], sizes = [12, 460], strides = [1, 1]} : vector<12x480xf32> to vector<12x460xf32>
    %54 = arith.maximumf %52, %53 : vector<12x460xf32>
    %cst_28 = arith.constant 0.000000e+00 : f32
    %55 = vector.broadcast %cst_28 : f32 to vector<8x400xf32>
    %56 = vector.extract_strided_slice %54 {offsets = [0, 0], sizes = [8, 460], strides = [1, 1]} : vector<12x460xf32> to vector<8x460xf32>
    %c0_29 = arith.constant 0 : index
    %c0_30 = arith.constant 0 : index
    %c0_31 = arith.constant 0 : index
    %57 = vector.load %arg4[%c0_29, %c0_30, %c0_31] : memref<5x460x400xf32, #tpu.memory_space<vmem>>, vector<1x460x400xf32>
    %58 = vector.shape_cast %57 : vector<1x460x400xf32> to vector<460x400xf32>
    %cst_32 = arith.constant dense<0.000000e+00> : vector<8x400xf32>
    %59 = tpu.matmul %56, %58, %cst_32 {dimension_numbers = #tpu.dot_dimension_numbers<[1], [0], [0], [1], [0, 0, 1, 1], [], []>} : vector<8x460xf32>, vector<460x400xf32>, vector<8x400xf32> -> vector<8x400xf32>
    %60 = arith.addf %55, %59 : vector<8x400xf32>
    %61 = vector.extract_strided_slice %54 {offsets = [1, 0], sizes = [8, 460], strides = [1, 1]} : vector<12x460xf32> to vector<8x460xf32>
    %c1_33 = arith.constant 1 : index
    %c0_34 = arith.constant 0 : index
    %c0_35 = arith.constant 0 : index
    %62 = vector.load %arg4[%c1_33, %c0_34, %c0_35] : memref<5x460x400xf32, #tpu.memory_space<vmem>>, vector<1x460x400xf32>
    %63 = vector.shape_cast %62 : vector<1x460x400xf32> to vector<460x400xf32>
    %cst_36 = arith.constant dense<0.000000e+00> : vector<8x400xf32>
    %64 = tpu.matmul %61, %63, %cst_36 {dimension_numbers = #tpu.dot_dimension_numbers<[1], [0], [0], [1], [0, 0, 1, 1], [], []>} : vector<8x460xf32>, vector<460x400xf32>, vector<8x400xf32> -> vector<8x400xf32>
    %65 = arith.addf %60, %64 : vector<8x400xf32>
    %66 = vector.extract_strided_slice %54 {offsets = [2, 0], sizes = [8, 460], strides = [1, 1]} : vector<12x460xf32> to vector<8x460xf32>
    %c2_37 = arith.constant 2 : index
    %c0_38 = arith.constant 0 : index
    %c0_39 = arith.constant 0 : index
    %67 = vector.load %arg4[%c2_37, %c0_38, %c0_39] : memref<5x460x400xf32, #tpu.memory_space<vmem>>, vector<1x460x400xf32>
    %68 = vector.shape_cast %67 : vector<1x460x400xf32> to vector<460x400xf32>
    %cst_40 = arith.constant dense<0.000000e+00> : vector<8x400xf32>
    %69 = tpu.matmul %66, %68, %cst_40 {dimension_numbers = #tpu.dot_dimension_numbers<[1], [0], [0], [1], [0, 0, 1, 1], [], []>} : vector<8x460xf32>, vector<460x400xf32>, vector<8x400xf32> -> vector<8x400xf32>
    %70 = arith.addf %65, %69 : vector<8x400xf32>
    %71 = vector.extract_strided_slice %54 {offsets = [3, 0], sizes = [8, 460], strides = [1, 1]} : vector<12x460xf32> to vector<8x460xf32>
    %c3_41 = arith.constant 3 : index
    %c0_42 = arith.constant 0 : index
    %c0_43 = arith.constant 0 : index
    %72 = vector.load %arg4[%c3_41, %c0_42, %c0_43] : memref<5x460x400xf32, #tpu.memory_space<vmem>>, vector<1x460x400xf32>
    %73 = vector.shape_cast %72 : vector<1x460x400xf32> to vector<460x400xf32>
    %cst_44 = arith.constant dense<0.000000e+00> : vector<8x400xf32>
    %74 = tpu.matmul %71, %73, %cst_44 {dimension_numbers = #tpu.dot_dimension_numbers<[1], [0], [0], [1], [0, 0, 1, 1], [], []>} : vector<8x460xf32>, vector<460x400xf32>, vector<8x400xf32> -> vector<8x400xf32>
    %75 = arith.addf %70, %74 : vector<8x400xf32>
    %76 = vector.extract_strided_slice %54 {offsets = [4, 0], sizes = [8, 460], strides = [1, 1]} : vector<12x460xf32> to vector<8x460xf32>
    %c4_45 = arith.constant 4 : index
    %c0_46 = arith.constant 0 : index
    %c0_47 = arith.constant 0 : index
    %77 = vector.load %arg4[%c4_45, %c0_46, %c0_47] : memref<5x460x400xf32, #tpu.memory_space<vmem>>, vector<1x460x400xf32>
    %78 = vector.shape_cast %77 : vector<1x460x400xf32> to vector<460x400xf32>
    %cst_48 = arith.constant dense<0.000000e+00> : vector<8x400xf32>
    %79 = tpu.matmul %76, %78, %cst_48 {dimension_numbers = #tpu.dot_dimension_numbers<[1], [0], [0], [1], [0, 0, 1, 1], [], []>} : vector<8x460xf32>, vector<460x400xf32>, vector<8x400xf32> -> vector<8x400xf32>
    %80 = arith.addf %75, %79 : vector<8x400xf32>
    %c0_49 = arith.constant 0 : index
    %c0_50 = arith.constant 0 : index
    %81 = vector.load %arg5[%c0_49, %c0_50] : memref<1x400xf32, #tpu.memory_space<vmem>>, vector<1x400xf32>
    %82 = vector.broadcast %81 : vector<1x400xf32> to vector<8x400xf32>
    %83 = arith.addf %80, %82 : vector<8x400xf32>
    %cst_51 = arith.constant 0.000000e+00 : f32
    %84 = vector.broadcast %cst_51 : f32 to vector<8x400xf32>
    %85 = arith.maximumf %83, %84 : vector<8x400xf32>
    %86 = tpu.iota {dimensions = array<i32: 0>} : vector<4x8xi32>
    %87 = tpu.iota {dimensions = array<i32: 1>} : vector<4x8xi32>
    %c2_i32_52 = arith.constant 2 : i32
    %88 = vector.broadcast %c2_i32_52 : i32 to vector<4x8xi32>
    %89 = arith.muli %88, %86 : vector<4x8xi32>
    %90 = arith.cmpi eq, %87, %89 : vector<4x8xi32>
    %cst_53 = arith.constant 1.000000e+00 : f32
    %cst_54 = arith.constant 0.000000e+00 : f32
    %91 = vector.broadcast %cst_53 : f32 to vector<4x8xf32>
    %92 = vector.broadcast %cst_54 : f32 to vector<4x8xf32>
    %93 = arith.select %90, %91, %92 : vector<4x8xi1>, vector<4x8xf32>
    %c2_i32_55 = arith.constant 2 : i32
    %94 = vector.broadcast %c2_i32_55 : i32 to vector<4x8xi32>
    %95 = arith.muli %94, %86 : vector<4x8xi32>
    %c1_i32_56 = arith.constant 1 : i32
    %96 = vector.broadcast %c1_i32_56 : i32 to vector<4x8xi32>
    %97 = arith.addi %95, %96 : vector<4x8xi32>
    %98 = arith.cmpi eq, %87, %97 : vector<4x8xi32>
    %cst_57 = arith.constant 1.000000e+00 : f32
    %cst_58 = arith.constant 0.000000e+00 : f32
    %99 = vector.broadcast %cst_57 : f32 to vector<4x8xf32>
    %100 = vector.broadcast %cst_58 : f32 to vector<4x8xf32>
    %101 = arith.select %98, %99, %100 : vector<4x8xi1>, vector<4x8xf32>
    %cst_59 = arith.constant dense<0.000000e+00> : vector<4x400xf32>
    %102 = tpu.matmul %93, %85, %cst_59 {dimension_numbers = #tpu.dot_dimension_numbers<[1], [0], [0], [1], [0, 0, 1, 1], [], []>} : vector<4x8xf32>, vector<8x400xf32>, vector<4x400xf32> -> vector<4x400xf32>
    %cst_60 = arith.constant dense<0.000000e+00> : vector<4x400xf32>
    %103 = tpu.matmul %101, %85, %cst_60 {dimension_numbers = #tpu.dot_dimension_numbers<[1], [0], [0], [1], [0, 0, 1, 1], [], []>} : vector<4x8xf32>, vector<8x400xf32>, vector<4x400xf32> -> vector<4x400xf32>
    %104 = arith.maximumf %102, %103 : vector<4x400xf32>
    %105 = vector.extract_strided_slice %104 {offsets = [0, 0], sizes = [4, 350], strides = [1, 1]} : vector<4x400xf32> to vector<4x350xf32>
    %106 = vector.extract_strided_slice %104 {offsets = [0, 50], sizes = [4, 350], strides = [1, 1]} : vector<4x400xf32> to vector<4x350xf32>
    %107 = arith.maximumf %105, %106 : vector<4x350xf32>
    %c0_61 = arith.constant 0 : index
    %c0_62 = arith.constant 0 : index
    %108 = vector.load %arg7[%c0_61, %c0_62] : memref<1x500xf32, #tpu.memory_space<vmem>>, vector<1x500xf32>
    %109 = vector.extract_strided_slice %107 {offsets = [0, 0], sizes = [1, 350], strides = [1, 1]} : vector<4x350xf32> to vector<1x350xf32>
    %c0_63 = arith.constant 0 : index
    %c0_64 = arith.constant 0 : index
    %c0_65 = arith.constant 0 : index
    %110 = vector.load %arg6[%c0_63, %c0_64, %c0_65] : memref<4x350x500xf32, #tpu.memory_space<vmem>>, vector<1x350x500xf32>
    %111 = vector.shape_cast %110 : vector<1x350x500xf32> to vector<350x500xf32>
    %cst_66 = arith.constant dense<0.000000e+00> : vector<1x500xf32>
    %112 = tpu.matmul %109, %111, %cst_66 {dimension_numbers = #tpu.dot_dimension_numbers<[1], [0], [0], [1], [0, 0, 1, 1], [], []>} : vector<1x350xf32>, vector<350x500xf32>, vector<1x500xf32> -> vector<1x500xf32>
    %113 = arith.addf %108, %112 : vector<1x500xf32>
    %114 = vector.extract_strided_slice %107 {offsets = [1, 0], sizes = [1, 350], strides = [1, 1]} : vector<4x350xf32> to vector<1x350xf32>
    %c1_67 = arith.constant 1 : index
    %c0_68 = arith.constant 0 : index
    %c0_69 = arith.constant 0 : index
    %115 = vector.load %arg6[%c1_67, %c0_68, %c0_69] : memref<4x350x500xf32, #tpu.memory_space<vmem>>, vector<1x350x500xf32>
    %116 = vector.shape_cast %115 : vector<1x350x500xf32> to vector<350x500xf32>
    %cst_70 = arith.constant dense<0.000000e+00> : vector<1x500xf32>
    %117 = tpu.matmul %114, %116, %cst_70 {dimension_numbers = #tpu.dot_dimension_numbers<[1], [0], [0], [1], [0, 0, 1, 1], [], []>} : vector<1x350xf32>, vector<350x500xf32>, vector<1x500xf32> -> vector<1x500xf32>
    %118 = arith.addf %113, %117 : vector<1x500xf32>
    %119 = vector.extract_strided_slice %107 {offsets = [2, 0], sizes = [1, 350], strides = [1, 1]} : vector<4x350xf32> to vector<1x350xf32>
    %c2_71 = arith.constant 2 : index
    %c0_72 = arith.constant 0 : index
    %c0_73 = arith.constant 0 : index
    %120 = vector.load %arg6[%c2_71, %c0_72, %c0_73] : memref<4x350x500xf32, #tpu.memory_space<vmem>>, vector<1x350x500xf32>
    %121 = vector.shape_cast %120 : vector<1x350x500xf32> to vector<350x500xf32>
    %cst_74 = arith.constant dense<0.000000e+00> : vector<1x500xf32>
    %122 = tpu.matmul %119, %121, %cst_74 {dimension_numbers = #tpu.dot_dimension_numbers<[1], [0], [0], [1], [0, 0, 1, 1], [], []>} : vector<1x350xf32>, vector<350x500xf32>, vector<1x500xf32> -> vector<1x500xf32>
    %123 = arith.addf %118, %122 : vector<1x500xf32>
    %124 = vector.extract_strided_slice %107 {offsets = [3, 0], sizes = [1, 350], strides = [1, 1]} : vector<4x350xf32> to vector<1x350xf32>
    %c3_75 = arith.constant 3 : index
    %c0_76 = arith.constant 0 : index
    %c0_77 = arith.constant 0 : index
    %125 = vector.load %arg6[%c3_75, %c0_76, %c0_77] : memref<4x350x500xf32, #tpu.memory_space<vmem>>, vector<1x350x500xf32>
    %126 = vector.shape_cast %125 : vector<1x350x500xf32> to vector<350x500xf32>
    %cst_78 = arith.constant dense<0.000000e+00> : vector<1x500xf32>
    %127 = tpu.matmul %124, %126, %cst_78 {dimension_numbers = #tpu.dot_dimension_numbers<[1], [0], [0], [1], [0, 0, 1, 1], [], []>} : vector<1x350xf32>, vector<350x500xf32>, vector<1x500xf32> -> vector<1x500xf32>
    %128 = arith.addf %123, %127 : vector<1x500xf32>
    %cst_79 = arith.constant 0.000000e+00 : f32
    %129 = vector.broadcast %cst_79 : f32 to vector<1x500xf32>
    %130 = arith.maximumf %128, %129 : vector<1x500xf32>
    %c0_80 = arith.constant 0 : index
    %c0_81 = arith.constant 0 : index
    %131 = vector.load %arg8[%c0_80, %c0_81] : memref<500x10xf32, #tpu.memory_space<vmem>>, vector<500x10xf32>
    %cst_82 = arith.constant dense<0.000000e+00> : vector<1x10xf32>
    %132 = tpu.matmul %130, %131, %cst_82 {dimension_numbers = #tpu.dot_dimension_numbers<[1], [0], [0], [1], [0, 0, 1, 1], [], []>} : vector<1x500xf32>, vector<500x10xf32>, vector<1x10xf32> -> vector<1x10xf32>
    %c0_83 = arith.constant 0 : index
    %c0_84 = arith.constant 0 : index
    %133 = vector.load %arg9[%c0_83, %c0_84] : memref<1x10xf32, #tpu.memory_space<vmem>>, vector<1x10xf32>
    %134 = arith.addf %132, %133 : vector<1x10xf32>
    %c0_85 = arith.constant 0 : index
    %c0_86 = arith.constant 0 : index
    %c0_87 = arith.constant 0 : index
    %135 = vector.load %arg10[%c0_85, %c0_86, %c0_87] : memref<1x1x10xf32, #tpu.memory_space<vmem>>, vector<1x1x10xf32>
    %136 = vector.shape_cast %135 : vector<1x1x10xf32> to vector<1x10xf32>
    %137 = vector.shape_cast %134 : vector<1x10xf32> to vector<1x1x10xf32>
    tpu.vector_store %arg10[%c0_85, %c0_86, %c0_87], %137 {strides = array<i32>} : memref<1x1x10xf32, #tpu.memory_space<vmem>>, vector<1x1x10xf32>,
    return
  }
  func.func @transform_0(%arg0: i32) -> (i32, i32, i32) {
    %c0_i32 = arith.constant 0 : i32
    %c0_i32_0 = arith.constant 0 : i32
    %c0_i32_1 = arith.constant 0 : i32
    return %arg0, %c0_i32, %c0_i32_0 : i32, i32, i32
  }
  func.func @transform_1(%arg0: i32) -> (i32, i32, i32) {
    %c0_i32 = arith.constant 0 : i32
    %c0_i32_0 = arith.constant 0 : i32
    %c0_i32_1 = arith.constant 0 : i32
    %c0_i32_2 = arith.constant 0 : i32
    return %c0_i32, %c0_i32_0, %c0_i32_1 : i32, i32, i32
  }
  func.func @transform_2(%arg0: i32) -> (i32, i32) {
    %c0_i32 = arith.constant 0 : i32
    %c0_i32_0 = arith.constant 0 : i32
    %c0_i32_1 = arith.constant 0 : i32
    return %c0_i32, %c0_i32_0 : i32, i32
  }
  func.func @transform_3(%arg0: i32) -> (i32, i32, i32) {
    %c0_i32 = arith.constant 0 : i32
    %c0_i32_0 = arith.constant 0 : i32
    %c0_i32_1 = arith.constant 0 : i32
    %c0_i32_2 = arith.constant 0 : i32
    return %c0_i32, %c0_i32_0, %c0_i32_1 : i32, i32, i32
  }
  func.func @transform_4(%arg0: i32) -> (i32, i32) {
    %c0_i32 = arith.constant 0 : i32
    %c0_i32_0 = arith.constant 0 : i32
    %c0_i32_1 = arith.constant 0 : i32
    return %c0_i32, %c0_i32_0 : i32, i32
  }
  func.func @transform_5(%arg0: i32) -> (i32, i32, i32) {
    %c0_i32 = arith.constant 0 : i32
    %c0_i32_0 = arith.constant 0 : i32
    %c0_i32_1 = arith.constant 0 : i32
    %c0_i32_2 = arith.constant 0 : i32
    return %c0_i32, %c0_i32_0, %c0_i32_1 : i32, i32, i32
  }
  func.func @transform_6(%arg0: i32) -> (i32, i32) {
    %c0_i32 = arith.constant 0 : i32
    %c0_i32_0 = arith.constant 0 : i32
    %c0_i32_1 = arith.constant 0 : i32
    return %c0_i32, %c0_i32_0 : i32, i32
  }
  func.func @transform_7(%arg0: i32) -> (i32, i32) {
    %c0_i32 = arith.constant 0 : i32
    %c0_i32_0 = arith.constant 0 : i32
    %c0_i32_1 = arith.constant 0 : i32
    return %c0_i32, %c0_i32_0 : i32, i32
  }
  func.func @transform_8(%arg0: i32) -> (i32, i32) {
    %c0_i32 = arith.constant 0 : i32
    %c0_i32_0 = arith.constant 0 : i32
    %c0_i32_1 = arith.constant 0 : i32
    return %c0_i32, %c0_i32_0 : i32, i32
  }
  func.func @transform_9(%arg0: i32) -> (i32, i32, i32) {
    %c0_i32 = arith.constant 0 : i32
    %c0_i32_0 = arith.constant 0 : i32
    %c0_i32_1 = arith.constant 0 : i32
    return %arg0, %c0_i32, %c0_i32_0 : i32, i32, i32
  }
}

</mosaic_0001>

<llo_original>
// kernel: lenet_forward.1
$region0: #{lenet_forward.1}
  #allocation0 [shape = 'u32[]', space=smem, size = 0x4, offset = 0x4, fixed_abs, tag = 'smem constant byte address 0x4 - core index']
  #allocation1 [shape = 'u32[144,128]{1,0:T(1,128)}', space=vmem, size = 0x12000, scoped, tag = 'internal scratch']
  %s0 = inlined_call_operand.vmem [shape: f32[2,28,28], index: 0, kind: input, shape index: {}]
  %s1 = inlined_call_operand.vmem [shape: f32[5,28,480], index: 1, kind: input, shape index: {}]
  %s2 = inlined_call_operand.vmem [shape: f32[1,480], index: 2, kind: input, shape index: {}]
  %s3 = inlined_call_operand.vmem [shape: f32[5,460,400], index: 3, kind: input, shape index: {}]
  %s4 = inlined_call_operand.vmem [shape: f32[1,400], index: 4, kind: input, shape index: {}]
  %s5 = inlined_call_operand.vmem [shape: f32[4,350,500], index: 5, kind: input, shape index: {}]
  %s6 = inlined_call_operand.vmem [shape: f32[1,500], index: 6, kind: input, shape index: {}]
  %s7 = inlined_call_operand.vmem [shape: f32[500,10], index: 7, kind: input, shape index: {}]
  %s8 = inlined_call_operand.vmem [shape: f32[1,10], index: 8, kind: input, shape index: {}]
  %s9 = inlined_call_operand.hbm [shape: f32[2,1,10], index: 9, kind: output, shape index: {}]
  %s10 = sld [smem:[#allocation0]]
  $region69: #{lenet_forward.1} parent=0
    _
  %s12 = ssub.s32 1, %s10
  %s13 = scalar_select 0, %s12, %s10
  $region1: #{lenet_forward.1} parent=0
    #allocation2 [shape = 'u8[1024]{0}', space=vmem, size = 0x400, scoped, tag = 'output window, operand 0']
    #allocation3 [shape = 's32[2]{0}', space=sflag, size = 0x8, scoped, tag = 'scoped memory for lenet_forward.1']
    %14 = vsyncpa [#allocation3], 0
    %s15 = scalar_lea.sflag [#allocation3], 1
    %16 = vsyncpa %s15, 0
    loop: start=0, step=1, limit=4
    $region2: #{lenet_forward.1} parent=1 // loop_pre_header
      _
    $region3: #{lenet_forward.1} parent=1 // loop_header
      %s18 = sphi 0, %s22
      %p19 = scmp.ge.s32.totalorder %s18, 4
      %s28 = sphi 0, %s30
      %s31 = sphi 0, %s28
      %s32 = sphi 0, %s31
      %s48 = sphi 0, %s32
      %s52 = sphi 0, %s52
      %s54 = sphi 0, %s52
      %s55 = sphi 0, %s54
      %s69 = sphi 0, %s55
      %s73 = sphi 0, %s73
      %s75 = sphi 0, %s73
      %s76 = sphi 0, %s75
      %s90 = sphi 0, %s76
      %s94 = sphi 0, %s94
      %s96 = sphi 0, %s94
      %s97 = sphi 0, %s96
      %s111 = sphi 0, %s97
      %s115 = sphi 0, %s115
      %s117 = sphi 0, %s115
      %s118 = sphi 0, %s117
      %s132 = sphi 0, %s118
      %s136 = sphi 0, %s136
      %s138 = sphi 0, %s136
      %s139 = sphi 0, %s138
      %s153 = sphi 0, %s139
      %s157 = sphi 0, %s157
      %s159 = sphi 0, %s157
      %s160 = sphi 0, %s159
      %s174 = sphi 0, %s160
      %s178 = sphi 0, %s178
      %s180 = sphi 0, %s178
      %s181 = sphi 0, %s180
      %s195 = sphi 0, %s181
      %s199 = sphi 0, %s199
      %s201 = sphi 0, %s199
      %s202 = sphi 0, %s201
      %s216 = sphi 0, %s202
      %s222 = sphi 0, %s224
      %s225 = sphi 0, %s222
      %s226 = sphi 0, %s225
      %s242 = sphi 0, %s226
    $region4: #{lenet_forward.1} parent=1 // loop_header_branch
      %21 = sbr.rel (%p19) target = $region8
    $region5: #{lenet_forward.1} parent=1 // loop_body
      %s23 = ssub.s32 %s18, 1
      %s24 = ssub.s32 %s18, 2
      %s25 = sadd.s32 %s18, 1
      %s26 = ssub.s32 %s18, %s25
      %p27 = scmp.eq.s32.totalorder %s26, 0
      %s29 = sadd.s32 %s28, 1
      %s30 = scalar_select %p27, %s28, %s29
      %p33 = pneg %p27
      %p34 = scmp.eq.s32.totalorder %s18, 1
      %p35 = por %p33, %p34
      %p36 = scmp.ne.s32.totalorder %s28, %s31
      %p37 = scmp.eq.s32.totalorder %s18, 0
      %p38 = por %p36, %p37
      %p39 = scmp.ne.s32.totalorder %s28, %s31
      %p40 = scmp.eq.s32.totalorder %s23, 1
      %p41 = por %p39, %p40
      %p42 = scmp.ne.s32.totalorder %s31, %s32
      %p43 = scmp.eq.s32.totalorder %s23, 0
      %p44 = por %p42, %p43
      %p45 = scmp.ne.s32.totalorder %s31, %s32
      %p46 = scmp.eq.s32.totalorder %s24, 1
      %p47 = por %p45, %p46
      %p49 = scmp.ne.s32.totalorder %s32, %s48
      %p50 = scmp.eq.s32.totalorder %s24, 0
      %p51 = por %p49, %p50
      %s53 = sadd.s32 %s52, 1
      %p56 = scmp.eq.s32.totalorder %s18, 1
      %p57 = scmp.ne.s32.totalorder %s52, %s54
      %p58 = scmp.eq.s32.totalorder %s18, 0
      %p59 = por %p57, %p58
      %p60 = scmp.ne.s32.totalorder %s52, %s54
      %p61 = scmp.eq.s32.totalorder %s23, 1
      %p62 = por %p60, %p61
      %p63 = scmp.ne.s32.totalorder %s54, %s55
      %p64 = scmp.eq.s32.totalorder %s23, 0
      %p65 = por %p63, %p64
      %p66 = scmp.ne.s32.totalorder %s54, %s55
      %p67 = scmp.eq.s32.totalorder %s24, 1
      %p68 = por %p66, %p67
      %p70 = scmp.ne.s32.totalorder %s55, %s69
      %p71 = scmp.eq.s32.totalorder %s24, 0
      %p72 = por %p70, %p71
      %s74 = sadd.s32 %s73, 1
      %p77 = scmp.eq.s32.totalorder %s18, 1
      %p78 = scmp.ne.s32.totalorder %s73, %s75
      %p79 = scmp.eq.s32.totalorder %s18, 0
      %p80 = por %p78, %p79
      %p81 = scmp.ne.s32.totalorder %s73, %s75
      %p82 = scmp.eq.s32.totalorder %s23, 1
      %p83 = por %p81, %p82
      %p84 = scmp.ne.s32.totalorder %s75, %s76
      %p85 = scmp.eq.s32.totalorder %s23, 0
      %p86 = por %p84, %p85
      %p87 = scmp.ne.s32.totalorder %s75, %s76
      %p88 = scmp.eq.s32.totalorder %s24, 1
      %p89 = por %p87, %p88
      %p91 = scmp.ne.s32.totalorder %s76, %s90
      %p92 = scmp.eq.s32.totalorder %s24, 0
      %p93 = por %p91, %p92
      %s95 = sadd.s32 %s94, 1
      %p98 = scmp.eq.s32.totalorder %s18, 1
      %p99 = scmp.ne.s32.totalorder %s94, %s96
      %p100 = scmp.eq.s32.totalorder %s18, 0
      %p101 = por %p99, %p100
      %p102 = scmp.ne.s32.totalorder %s94, %s96
      %p103 = scmp.eq.s32.totalorder %s23, 1
      %p104 = por %p102, %p103
      %p105 = scmp.ne.s32.totalorder %s96, %s97
      %p106 = scmp.eq.s32.totalorder %s23, 0
      %p107 = por %p105, %p106
      %p108 = scmp.ne.s32.totalorder %s96, %s97
      %p109 = scmp.eq.s32.totalorder %s24, 1
      %p110 = por %p108, %p109
      %p112 = scmp.ne.s32.totalorder %s97, %s111
      %p113 = scmp.eq.s32.totalorder %s24, 0
      %p114 = por %p112, %p113
      %s116 = sadd.s32 %s115, 1
      %p119 = scmp.eq.s32.totalorder %s18, 1
      %p120 = scmp.ne.s32.totalorder %s115, %s117
      %p121 = scmp.eq.s32.totalorder %s18, 0
      %p122 = por %p120, %p121
      %p123 = scmp.ne.s32.totalorder %s115, %s117
      %p124 = scmp.eq.s32.totalorder %s23, 1
      %p125 = por %p123, %p124
      %p126 = scmp.ne.s32.totalorder %s117, %s118
      %p127 = scmp.eq.s32.totalorder %s23, 0
      %p128 = por %p126, %p127
      %p129 = scmp.ne.s32.totalorder %s117, %s118
      %p130 = scmp.eq.s32.totalorder %s24, 1
      %p131 = por %p129, %p130
      %p133 = scmp.ne.s32.totalorder %s118, %s132
      %p134 = scmp.eq.s32.totalorder %s24, 0
      %p135 = por %p133, %p134
      %s137 = sadd.s32 %s136, 1
      %p140 = scmp.eq.s32.totalorder %s18, 1
      %p141 = scmp.ne.s32.totalorder %s136, %s138
      %p142 = scmp.eq.s32.totalorder %s18, 0
      %p143 = por %p141, %p142
      %p144 = scmp.ne.s32.totalorder %s136, %s138
      %p145 = scmp.eq.s32.totalorder %s23, 1
      %p146 = por %p144, %p145
      %p147 = scmp.ne.s32.totalorder %s138, %s139
      %p148 = scmp.eq.s32.totalorder %s23, 0
      %p149 = por %p147, %p148
      %p150 = scmp.ne.s32.totalorder %s138, %s139
      %p151 = scmp.eq.s32.totalorder %s24, 1
      %p152 = por %p150, %p151
      %p154 = scmp.ne.s32.totalorder %s139, %s153
      %p155 = scmp.eq.s32.totalorder %s24, 0
      %p156 = por %p154, %p155
      %s158 = sadd.s32 %s157, 1
      %p161 = scmp.eq.s32.totalorder %s18, 1
      %p162 = scmp.ne.s32.totalorder %s157, %s159
      %p163 = scmp.eq.s32.totalorder %s18, 0
      %p164 = por %p162, %p163
      %p165 = scmp.ne.s32.totalorder %s157, %s159
      %p166 = scmp.eq.s32.totalorder %s23, 1
      %p167 = por %p165, %p166
      %p168 = scmp.ne.s32.totalorder %s159, %s160
      %p169 = scmp.eq.s32.totalorder %s23, 0
      %p170 = por %p168, %p169
      %p171 = scmp.ne.s32.totalorder %s159, %s160
      %p172 = scmp.eq.s32.totalorder %s24, 1
      %p173 = por %p171, %p172
      %p175 = scmp.ne.s32.totalorder %s160, %s174
      %p176 = scmp.eq.s32.totalorder %s24, 0
      %p177 = por %p175, %p176
      %s179 = sadd.s32 %s178, 1
      %p182 = scmp.eq.s32.totalorder %s18, 1
      %p183 = scmp.ne.s32.totalorder %s178, %s180
      %p184 = scmp.eq.s32.totalorder %s18, 0
      %p185 = por %p183, %p184
      %p186 = scmp.ne.s32.totalorder %s178, %s180
      %p187 = scmp.eq.s32.totalorder %s23, 1
      %p188 = por %p186, %p187
      %p189 = scmp.ne.s32.totalorder %s180, %s181
      %p190 = scmp.eq.s32.totalorder %s23, 0
      %p191 = por %p189, %p190
      %p192 = scmp.ne.s32.totalorder %s180, %s181
      %p193 = scmp.eq.s32.totalorder %s24, 1
      %p194 = por %p192, %p193
      %p196 = scmp.ne.s32.totalorder %s181, %s195
      %p197 = scmp.eq.s32.totalorder %s24, 0
      %p198 = por %p196, %p197
      %s200 = sadd.s32 %s199, 1
      %p203 = scmp.eq.s32.totalorder %s18, 1
      %p204 = scmp.ne.s32.totalorder %s199, %s201
      %p205 = scmp.eq.s32.totalorder %s18, 0
      %p206 = por %p204, %p205
      %p207 = scmp.ne.s32.totalorder %s199, %s201
      %p208 = scmp.eq.s32.totalorder %s23, 1
      %p209 = por %p207, %p208
      %p210 = scmp.ne.s32.totalorder %s201, %s202
      %p211 = scmp.eq.s32.totalorder %s23, 0
      %p212 = por %p210, %p211
      %p213 = scmp.ne.s32.totalorder %s201, %s202
      %p214 = scmp.eq.s32.totalorder %s24, 1
      %p215 = por %p213, %p214
      %p217 = scmp.ne.s32.totalorder %s202, %s216
      %p218 = scmp.eq.s32.totalorder %s24, 0
      %p219 = por %p217, %p218
      %s220 = ssub.s32 %s18, %s25
      %p221 = scmp.eq.s32.totalorder %s220, 0
      %s223 = sadd.s32 %s222, 1
      %s224 = scalar_select %p221, %s222, %s223
      %p227 = pneg %p221
      %p228 = scmp.eq.s32.totalorder %s18, 1
      %p229 = por %p227, %p228
      %p230 = scmp.ne.s32.totalorder %s222, %s225
      %p231 = scmp.eq.s32.totalorder %s18, 0
      %p232 = por %p230, %p231
      %p233 = scmp.ne.s32.totalorder %s222, %s225
      %p234 = scmp.eq.s32.totalorder %s23, 1
      %p235 = por %p233, %p234
      %p236 = scmp.ne.s32.totalorder %s225, %s226
      %p237 = scmp.eq.s32.totalorder %s23, 0
      %p238 = por %p236, %p237
      %p239 = scmp.ne.s32.totalorder %s225, %s226
      %p240 = scmp.eq.s32.totalorder %s24, 1
      %p241 = por %p239, %p240
      %p243 = scmp.ne.s32.totalorder %s226, %s242
      %p244 = scmp.eq.s32.totalorder %s24, 0
      %p245 = por %p243, %p244
      %p246 = scmp.le.s32.totalorder 1, %s18
      %p247 = scmp.lt.s32.totalorder %s18, 3
      %p248 = pnand %p246, %p247
      %p249 = pneg %p248
      // Predicated region
      $region9: #{lenet_forward.1} parent=5 // pred_check
        _
      $region10: #{lenet_forward.1} parent=5 // pred_check_branch
        %251 = sbr.rel (%p248) target = $region12
      $region11: #{lenet_forward.1} parent=5 // pred_region
        %s252 = ssub.s32 %s18, 1
        // Predicated region
        $region13: #{lenet_forward.1} parent=11 // pred_check
          %p253 = pneg %p65
        $region14: #{lenet_forward.1} parent=11 // pred_check_branch
          %255 = sbr.rel (%p253) target = $region16
        $region15: #{lenet_forward.1} parent=11 // pred_region
          _
        $region16: #{lenet_forward.1} parent=11 // pred_fallthru
          _
        // Predicated region
        $region17: #{lenet_forward.1} parent=11 // pred_check
          %p256 = pneg %p86
        $region18: #{lenet_forward.1} parent=11 // pred_check_branch
          %258 = sbr.rel (%p256) target = $region20
        $region19: #{lenet_forward.1} parent=11 // pred_region
          _
        $region20: #{lenet_forward.1} parent=11 // pred_fallthru
          _
        // Predicated region
        $region21: #{lenet_forward.1} parent=11 // pred_check
          %p259 = pneg %p107
        $region22: #{lenet_forward.1} parent=11 // pred_check_branch
          %261 = sbr.rel (%p259) target = $region24
        $region23: #{lenet_forward.1} parent=11 // pred_region
          _
        $region24: #{lenet_forward.1} parent=11 // pred_fallthru
          _
        // Predicated region
        $region25: #{lenet_forward.1} parent=11 // pred_check
          %p262 = pneg %p128
        $region26: #{lenet_forward.1} parent=11 // pred_check_branch
          %264 = sbr.rel (%p262) target = $region28
        $region27: #{lenet_forward.1} parent=11 // pred_region
          _
        $region28: #{lenet_forward.1} parent=11 // pred_fallthru
          _
        // Predicated region
        $region29: #{lenet_forward.1} parent=11 // pred_check
          %p265 = pneg %p149
        $region30: #{lenet_forward.1} parent=11 // pred_check_branch
          %267 = sbr.rel (%p265) target = $region32
        $region31: #{lenet_forward.1} parent=11 // pred_region
          _
        $region32: #{lenet_forward.1} parent=11 // pred_fallthru
          _
        // Predicated region
        $region33: #{lenet_forward.1} parent=11 // pred_check
          %p268 = pneg %p170
        $region34: #{lenet_forward.1} parent=11 // pred_check_branch
          %270 = sbr.rel (%p268) target = $region36
        $region35: #{lenet_forward.1} parent=11 // pred_region
          _
        $region36: #{lenet_forward.1} parent=11 // pred_fallthru
          _
        // Predicated region
        $region37: #{lenet_forward.1} parent=11 // pred_check
          %p271 = pneg %p191
        $region38: #{lenet_forward.1} parent=11 // pred_check_branch
          %273 = sbr.rel (%p271) target = $region40
        $region39: #{lenet_forward.1} parent=11 // pred_region
          _
        $region40: #{lenet_forward.1} parent=11 // pred_fallthru
          _
        // Predicated region
        $region41: #{lenet_forward.1} parent=11 // pred_check
          %p274 = pneg %p212
        $region42: #{lenet_forward.1} parent=11 // pred_check_branch
          %276 = sbr.rel (%p274) target = $region44
        $region43: #{lenet_forward.1} parent=11 // pred_region
          _
        $region44: #{lenet_forward.1} parent=11 // pred_fallthru
          _
      $region12: #{lenet_forward.1} parent=5 // pred_fallthru
        _
      %p277 = scmp.lt.s32.totalorder %s18, 2
      // Predicated region
      $region45: #{lenet_forward.1} parent=5 // pred_check
        %p278 = pneg %p277
      $region46: #{lenet_forward.1} parent=5 // pred_check_branch
        %280 = sbr.rel (%p278) target = $region48
      $region47: #{lenet_forward.1} parent=5 // pred_region
        // Predicated region
        $region49: #{lenet_forward.1} parent=47 // pred_check
          %p281 = pneg %p38
        $region50: #{lenet_forward.1} parent=47 // pred_check_branch
          %283 = sbr.rel (%p281) target = $region52
        $region51: #{lenet_forward.1} parent=47 // pred_region
          %p284 = scmp.lt.s32.totalorder %s18, 1
          %s285 = scalar_select %p284, %s18, 1
          %s286 = smul.addr %s285, 4
          %s287 = smul.addr %s286, 8
          %s288 = scalar_lea.vmem %s0, %s287
        $region52: #{lenet_forward.1} parent=47 // pred_fallthru
          _
      $region48: #{lenet_forward.1} parent=5 // pred_fallthru
        _
      %p289 = scmp.le.s32.totalorder 1, %s18
      %p290 = scmp.lt.s32.totalorder %s18, 3
      %p291 = pnand %p289, %p290
      %p292 = pneg %p291
      // Predicated region
      $region53: #{lenet_forward.1} parent=5 // pred_check
        _
      $region54: #{lenet_forward.1} parent=5 // pred_check_branch
        %294 = sbr.rel (%p291) target = $region56
      $region55: #{lenet_forward.1} parent=5 // pred_region
        %s295 = ssub.s32 %s18, 1
        %p296 = scmp.lt.s32.totalorder %s23, 1
        %s297 = scalar_select %p296, %s23, 1
        %s298 = smul.addr %s297, 4
        %s299 = smul.addr %s298, 8
        %s300 = scalar_lea.vmem %s0, %s299
        %p301 = pneg %p44
        %p302 = pneg %p41
        %p303 = pneg %p65
        %p304 = pneg %p62
        %p305 = pneg %p86
        %p306 = pneg %p83
        %p307 = pneg %p107
        %p308 = pneg %p104
        %p309 = pneg %p128
        %p310 = pneg %p125
        %p311 = pneg %p149
        %p312 = pneg %p146
        %p313 = pneg %p170
        %p314 = pneg %p167
        %p315 = pneg %p191
        %p316 = pneg %p188
        %p317 = pneg %p212
        %p318 = pneg %p209
        %p319 = pneg %p238
        %p320 = pneg %p235
        %s321 = sand.u32 %s225, 1
        %s322 = scalar_lea.sflag [#allocation3], %s321
        %s323 = sand.u32 %s225, 1
        %s324 = scalar_lea.vmem [#allocation2], %s323
        %p325 = scmp.lt.s32.totalorder %s23, 1
        %s326 = scalar_select %p325, %s23, 1
        %s327 = smul.addr %s326, 4
        %s328 = smul.addr %s327, 8
        %s329 = scalar_lea.vmem %s0, %s328
        %v330 = vld [vmem:[%s329] sm:$0xff]
        %v331 = vld [vmem:[%s329 + $0x8] sm:$0xff]
        %v332 = vld [vmem:[%s329 + $0x10] sm:$0xff]
        %v333 = vld [vmem:[%s329 + $0x18] sm:$0xf]
        %v334 = vld [vmem:[%s1] sm:$0xff]
        %v335 = vld [vmem:[%s1 + $0x8] sm:$0xff]
        %v336 = vld [vmem:[%s1 + $0x10] sm:$0xff]
        %v337 = vld [vmem:[%s1 + $0x18] sm:$0xff]
        %v338 = vld [vmem:[%s1 + $0x20] sm:$0xff]
        %v339 = vld [vmem:[%s1 + $0x28] sm:$0xff]
        %v340 = vld [vmem:[%s1 + $0x30] sm:$0xff]
        %v341 = vld [vmem:[%s1 + $0x38] sm:$0xff]
        %v342 = vld [vmem:[%s1 + $0x40] sm:$0xff]
        %v343 = vld [vmem:[%s1 + $0x48] sm:$0xff]
        %v344 = vld [vmem:[%s1 + $0x50] sm:$0xff]
        %v345 = vld [vmem:[%s1 + $0x58] sm:$0xff]
        %v346 = vld [vmem:[%s1 + $0x60] sm:$0xf]
        %v347 = vld [vmem:[%s1 + $0x68] sm:$0xf]
        %v348 = vld [vmem:[%s1 + $0x70] sm:$0xf]
        %v349 = vld [vmem:[%s1 + $0x78] sm:$0xf]
        %s350 = scalar_lea.vmem %s1, 128
        %v351 = vld [vmem:[%s350] sm:$0xff]
        %v352 = vld [vmem:[%s350 + $0x8] sm:$0xff]
        %v353 = vld [vmem:[%s350 + $0x10] sm:$0xff]
        %v354 = vld [vmem:[%s350 + $0x18] sm:$0xff]
        %v355 = vld [vmem:[%s350 + $0x20] sm:$0xff]
        %v356 = vld [vmem:[%s350 + $0x28] sm:$0xff]
        %v357 = vld [vmem:[%s350 + $0x30] sm:$0xff]
        %v358 = vld [vmem:[%s350 + $0x38] sm:$0xff]
        %v359 = vld [vmem:[%s350 + $0x40] sm:$0xff]
        %v360 = vld [vmem:[%s350 + $0x48] sm:$0xff]
        %v361 = vld [vmem:[%s350 + $0x50] sm:$0xff]
        %v362 = vld [vmem:[%s350 + $0x58] sm:$0xff]
        %v363 = vld [vmem:[%s350 + $0x60] sm:$0xf]
        %v364 = vld [vmem:[%s350 + $0x68] sm:$0xf]
        %v365 = vld [vmem:[%s350 + $0x70] sm:$0xf]
        %v366 = vld [vmem:[%s350 + $0x78] sm:$0xf]
        %vm371 = vcmask 1046528
        %v372 = vrot.slane %v330, 1
        %v373 = vrot.slane %v331, 1
        %v374 = vsel %vm371, %v372, %v373
        %v375 = vrot.slane %v332, 1
        %v376 = vsel %vm371, %v373, %v375
        %v377 = vrot.slane %v333, 1
        %v378 = vsel %vm371, %v375, %v377
        %vm379 = vcmask 228352
        %v380 = vsel %vm379, %v374, 0
        %v382 = vsel %vm379, %v376, 0
        %v384 = vsel %vm379, %v378, 0
        %vm386 = vcmask 1043456
        %v388 = vsel %vm386, %v363, 0
        %v391 = vsel %vm386, %v364, 0
        %v394 = vsel %vm386, %v365, 0
        %v397 = vsel %vm386, %v366, 0
        %399 = vmatprep.subr.mxu0 %v352
        %400 = vmatpush1.msra.mxu0 %v351
        %401 = vmatprep.subr.mxu0 %v356
        %402 = vmatpush1.msra.mxu0 %v355
        %403 = vmatprep.subr.mxu0 %v360
        %404 = vmatpush1.msra.mxu0 %v359
        %405 = vmatprep.subr.mxu0 %v391
        %406 = vmatpush1.msra.mxu0 %v388
        %407 = vmatprep.subr.mxu0 0.0
        %408 = vmatpush1.msra.mxu0 0.0
        %409 = vmatprep.subr.mxu0 0.0
        %410 = vmatpush1.msra.mxu0 0.0
        %411 = vmatprep.subr.mxu0 0.0
        %412 = vmatpush1.msra.mxu0 0.0
        %413 = vmatprep.subr.mxu0 0.0
        %414 = vmatpush1.msra.mxu0 0.0
        %415 = vmatprep.subr.mxu0 0.0
        %416 = vmatpush1.msra.mxu0 0.0
        %417 = vmatprep.subr.mxu0 0.0
        %418 = vmatpush1.msra.mxu0 0.0
        %419 = vmatprep.subr.mxu0 0.0
        %420 = vmatpush1.msra.mxu0 0.0
        %421 = vmatprep.subr.mxu0 0.0
        %422 = vmatpush1.msra.mxu0 0.0
        %423 = vmatprep.subr.mxu0 0.0
        %424 = vmatpush1.msra.mxu0 0.0
        %425 = vmatprep.subr.mxu0 0.0
        %426 = vmatpush1.msra.mxu0 0.0
        %427 = vmatprep.subr.mxu0 0.0
        %428 = vmatpush1.msra.mxu0 0.0
        %429 = vmatprep.subr.mxu0 0.0
        %430 = vmatpush1.msra.mxu0 0.0
        %431 = vmatprep.subr.mxu0 0.0
        %432 = vmatpush1.msra.mxu0 0.0
        %433 = vmatprep.subr.mxu0 0.0
        %434 = vmatpush1.msra.mxu0 0.0
        %435 = vmatprep.subr.mxu0 0.0
        %436 = vmatpush1.msra.mxu0 0.0
        %437 = vmatprep.subr.mxu0 0.0
        %438 = vmatpush1.msra.mxu0 0.0
        %439 = vmatprep.subr.mxu0 0.0
        %440 = vmatpush1.msra.mxu0 0.0
        %441 = vmatprep.subr.mxu0 0.0
        %442 = vmatpush1.msra.mxu0 0.0
        %443 = vmatprep.subr.mxu0 0.0
        %444 = vmatpush1.msra.mxu0 0.0
        %445 = vmatprep.subr.mxu0 0.0
        %446 = vmatpush1.msra.mxu0 0.0
        %447 = vmatprep.subr.mxu0 0.0
        %448 = vmatpush1.msra.mxu0 0.0
        %449 = vmatprep.subr.mxu0 0.0
        %450 = vmatpush1.msra.mxu0 0.0
        %451 = vmatprep.subr.mxu0 0.0
        %452 = vmatpush1.msra.mxu0 0.0
        %453 = vmatprep.subr.mxu0 0.0
        %454 = vmatpush1.msra.mxu0 0.0
        %455 = vmatprep.subr.mxu0 0.0
        %456 = vmatpush1.msra.mxu0 0.0
        %457 = vmatprep.subr.mxu0 0.0
        %458 = vmatpush1.msra.mxu0 0.0
        %459 = vmatprep.subr.mxu0 0.0
        %460 = vmatpush1.msra.mxu0 0.0
        %461 = vmatprep.subr.mxu0 0.0
        %462 = vmatpush1.msra.mxu0 0.0
        %463 = vmatprep.mubr.f32.mxu0 0.0
        %464 = vmatmul.mubr.f32.gmra.mrb[0].mxu0 %v380
        %v465 = vpop.f32.mrb[0].mxu0
        %v466 = vadd.f32 0.0, %v465
        %v467 = vpop.f32.mrb[0].mxu0
        %v468 = vadd.f32 0.0, %v467
        %469 = vmatprep.mubr.f32.mxu0 0.0
        %470 = vmatmul.mubr.f32.gmra.mrb[0].mxu0 %v382
        %v471 = vpop.f32.mrb[0].mxu0
        %v472 = vadd.f32 0.0, %v471
        %v473 = vpop.f32.mrb[0].mxu0
        %v474 = vadd.f32 0.0, %v473
        %475 = vmatprep.mubr.f32.mxu0 0.0
        %476 = vmatmul.mubr.f32.gmra.mrb[0].mxu0 %v384
        %v477 = vpop.f32.mrb[0].mxu0
        %v478 = vadd.f32 0.0, %v477
        %v479 = vpop.f32.mrb[0].mxu0
        %v480 = vadd.f32 0.0, %v479
        %481 = vdwg.mxu0
        %482 = vmatprep.subr.mxu0 %v354
        %483 = vmatpush1.msra.mxu0 %v353
        %484 = vmatprep.subr.mxu0 %v358
        %485 = vmatpush1.msra.mxu0 %v357
        %486 = vmatprep.subr.mxu0 %v362
        %487 = vmatpush1.msra.mxu0 %v361
        %488 = vmatprep.subr.mxu0 %v397
        %489 = vmatpush1.msra.mxu0 %v394
        %490 = vmatprep.subr.mxu0 0.0
        %491 = vmatpush1.msra.mxu0 0.0
        %492 = vmatprep.subr.mxu0 0.0
        %493 = vmatpush1.msra.mxu0 0.0
        %494 = vmatprep.subr.mxu0 0.0
        %495 = vmatpush1.msra.mxu0 0.0
        %496 = vmatprep.subr.mxu0 0.0
        %497 = vmatpush1.msra.mxu0 0.0
        %498 = vmatprep.subr.mxu0 0.0
        %499 = vmatpush1.msra.mxu0 0.0
        %500 = vmatprep.subr.mxu0 0.0
        %501 = vmatpush1.msra.mxu0 0.0
        %502 = vmatprep.subr.mxu0 0.0
        %503 = vmatpush1.msra.mxu0 0.0
        %504 = vmatprep.subr.mxu0 0.0
        %505 = vmatpush1.msra.mxu0 0.0
        %506 = vmatprep.subr.mxu0 0.0
        %507 = vmatpush1.msra.mxu0 0.0
        %508 = vmatprep.subr.mxu0 0.0
        %509 = vmatpush1.msra.mxu0 0.0
        %510 = vmatprep.subr.mxu0 0.0
        %511 = vmatpush1.msra.mxu0 0.0
        %512 = vmatprep.subr.mxu0 0.0
        %513 = vmatpush1.msra.mxu0 0.0
        %514 = vmatprep.subr.mxu0 0.0
        %515 = vmatpush1.msra.mxu0 0.0
        %516 = vmatprep.subr.mxu0 0.0
        %517 = vmatpush1.msra.mxu0 0.0
        %518 = vmatprep.subr.mxu0 0.0
        %519 = vmatpush1.msra.mxu0 0.0
        %520 = vmatprep.subr.mxu0 0.0
        %521 = vmatpush1.msra.mxu0 0.0
        %522 = vmatprep.subr.mxu0 0.0
        %523 = vmatpush1.msra.mxu0 0.0
        %524 = vmatprep.subr.mxu0 0.0
        %525 = vmatpush1.msra.mxu0 0.0
        %526 = vmatprep.subr.mxu0 0.0
        %527 = vmatpush1.msra.mxu0 0.0
        %528 = vmatprep.subr.mxu0 0.0
        %529 = vmatpush1.msra.mxu0 0.0
        %530 = vmatprep.subr.mxu0 0.0
        %531 = vmatpush1.msra.mxu0 0.0
        %532 = vmatprep.subr.mxu0 0.0
        %533 = vmatpush1.msra.mxu0 0.0
        %534 = vmatprep.subr.mxu0 0.0
        %535 = vmatpush1.msra.mxu0 0.0
        %536 = vmatprep.subr.mxu0 0.0
        %537 = vmatpush1.msra.mxu0 0.0
        %538 = vmatprep.subr.mxu0 0.0
        %539 = vmatpush1.msra.mxu0 0.0
        %540 = vmatprep.subr.mxu0 0.0
        %541 = vmatpush1.msra.mxu0 0.0
        %542 = vmatprep.subr.mxu0 0.0
        %543 = vmatpush1.msra.mxu0 0.0
        %544 = vmatprep.subr.mxu0 0.0
        %545 = vmatpush1.msra.mxu0 0.0
        %546 = vmatprep.mubr.f32.mxu0 0.0
        %547 = vmatmul.mubr.f32.gmra.mrb[0].mxu0 %v380
        %v548 = vpop.f32.mrb[0].mxu0
        %v549 = vadd.f32 0.0, %v548
        %v550 = vpop.f32.mrb[0].mxu0
        %v551 = vadd.f32 0.0, %v550
        %552 = vmatprep.mubr.f32.mxu0 0.0
        %553 = vmatmul.mubr.f32.gmra.mrb[0].mxu0 %v382
        %v554 = vpop.f32.mrb[0].mxu0
        %v555 = vadd.f32 0.0, %v554
        %v556 = vpop.f32.mrb[0].mxu0
        %v557 = vadd.f32 0.0, %v556
        %558 = vmatprep.mubr.f32.mxu0 0.0
        %559 = vmatmul.mubr.f32.gmra.mrb[0].mxu0 %v384
        %v560 = vpop.f32.mrb[0].mxu0
        %v561 = vadd.f32 0.0, %v560
        %v562 = vpop.f32.mrb[0].mxu0
        %v563 = vadd.f32 0.0, %v562
        %564 = vdwg.mxu0
        %v565 = vsel %vm379, %v330, 0
        %v567 = vsel %vm379, %v331, 0
        %v569 = vsel %vm379, %v332, 0
        %v572 = vsel %vm386, %v346, 0
        %v575 = vsel %vm386, %v347, 0
        %v578 = vsel %vm386, %v348, 0
        %v581 = vsel %vm386, %v349, 0
        %583 = vmatprep.subr.mxu0 %v335
        %584 = vmatpush1.msra.mxu0 %v334
        %585 = vmatprep.subr.mxu0 %v339
        %586 = vmatpush1.msra.mxu0 %v338
        %587 = vmatprep.subr.mxu0 %v343
        %588 = vmatpush1.msra.mxu0 %v342
        %589 = vmatprep.subr.mxu0 %v575
        %590 = vmatpush1.msra.mxu0 %v572
        %591 = vmatprep.subr.mxu0 0.0
        %592 = vmatpush1.msra.mxu0 0.0
        %593 = vmatprep.subr.mxu0 0.0
        %594 = vmatpush1.msra.mxu0 0.0
        %595 = vmatprep.subr.mxu0 0.0
        %596 = vmatpush1.msra.mxu0 0.0
        %597 = vmatprep.subr.mxu0 0.0
        %598 = vmatpush1.msra.mxu0 0.0
        %599 = vmatprep.subr.mxu0 0.0
        %600 = vmatpush1.msra.mxu0 0.0
        %601 = vmatprep.subr.mxu0 0.0
        %602 = vmatpush1.msra.mxu0 0.0
        %603 = vmatprep.subr.mxu0 0.0
        %604 = vmatpush1.msra.mxu0 0.0
        %605 = vmatprep.subr.mxu0 0.0
        %606 = vmatpush1.msra.mxu0 0.0
        %607 = vmatprep.subr.mxu0 0.0
        %608 = vmatpush1.msra.mxu0 0.0
        %609 = vmatprep.subr.mxu0 0.0
        %610 = vmatpush1.msra.mxu0 0.0
        %611 = vmatprep.subr.mxu0 0.0
        %612 = vmatpush1.msra.mxu0 0.0
        %613 = vmatprep.subr.mxu0 0.0
        %614 = vmatpush1.msra.mxu0 0.0
        %615 = vmatprep.subr.mxu0 0.0
        %616 = vmatpush1.msra.mxu0 0.0
        %617 = vmatprep.subr.mxu0 0.0
        %618 = vmatpush1.msra.mxu0 0.0
        %619 = vmatprep.subr.mxu0 0.0
        %620 = vmatpush1.msra.mxu0 0.0
        %621 = vmatprep.subr.mxu0 0.0
        %622 = vmatpush1.msra.mxu0 0.0
        %623 = vmatprep.subr.mxu0 0.0
        %624 = vmatpush1.msra.mxu0 0.0
        %625 = vmatprep.subr.mxu0 0.0
        %626 = vmatpush1.msra.mxu0 0.0
        %627 = vmatprep.subr.mxu0 0.0
        %628 = vmatpush1.msra.mxu0 0.0
        %629 = vmatprep.subr.mxu0 0.0
        %630 = vmatpush1.msra.mxu0 0.0
        %631 = vmatprep.subr.mxu0 0.0
        %632 = vmatpush1.msra.mxu0 0.0
        %633 = vmatprep.subr.mxu0 0.0
        %634 = vmatpush1.msra.mxu0 0.0
        %635 = vmatprep.subr.mxu0 0.0
        %636 = vmatpush1.msra.mxu0 0.0
        %637 = vmatprep.subr.mxu0 0.0
        %638 = vmatpush1.msra.mxu0 0.0
        %639 = vmatprep.subr.mxu0 0.0
        %640 = vmatpush1.msra.mxu0 0.0
        %641 = vmatprep.subr.mxu0 0.0
        %642 = vmatpush1.msra.mxu0 0.0
        %643 = vmatprep.subr.mxu0 0.0
        %644 = vmatpush1.msra.mxu0 0.0
        %645 = vmatprep.subr.mxu0 0.0
        %646 = vmatpush1.msra.mxu0 0.0
        %647 = vmatprep.mubr.f32.mxu0 0.0
        %648 = vmatmul.mubr.f32.gmra.mrb[0].mxu0 %v565
        %v649 = vpop.f32.mrb[0].mxu0
        %v650 = vadd.f32 %v466, %v649
        %v651 = vpop.f32.mrb[0].mxu0
        %v652 = vadd.f32 %v468, %v651
        %653 = vmatprep.mubr.f32.mxu0 0.0
        %654 = vmatmul.mubr.f32.gmra.mrb[0].mxu0 %v567
        %v655 = vpop.f32.mrb[0].mxu0
        %v656 = vadd.f32 %v472, %v655
        %v657 = vpop.f32.mrb[0].mxu0
        %v658 = vadd.f32 %v474, %v657
        %659 = vmatprep.mubr.f32.mxu0 0.0
        %660 = vmatmul.mubr.f32.gmra.mrb[0].mxu0 %v569
        %v661 = vpop.f32.mrb[0].mxu0
        %v662 = vadd.f32 %v478, %v661
        %v663 = vpop.f32.mrb[0].mxu0
        %v664 = vadd.f32 %v480, %v663
        %665 = vdwg.mxu0
        %666 = vmatprep.subr.mxu0 %v337
        %667 = vmatpush1.msra.mxu0 %v336
        %668 = vmatprep.subr.mxu0 %v341
        %669 = vmatpush1.msra.mxu0 %v340
        %670 = vmatprep.subr.mxu0 %v345
        %671 = vmatpush1.msra.mxu0 %v344
        %672 = vmatprep.subr.mxu0 %v581
        %673 = vmatpush1.msra.mxu0 %v578
        %674 = vmatprep.subr.mxu0 0.0
        %675 = vmatpush1.msra.mxu0 0.0
        %676 = vmatprep.subr.mxu0 0.0
        %677 = vmatpush1.msra.mxu0 0.0
        %678 = vmatprep.subr.mxu0 0.0
        %679 = vmatpush1.msra.mxu0 0.0
        %680 = vmatprep.subr.mxu0 0.0
        %681 = vmatpush1.msra.mxu0 0.0
        %682 = vmatprep.subr.mxu0 0.0
        %683 = vmatpush1.msra.mxu0 0.0
        %684 = vmatprep.subr.mxu0 0.0
        %685 = vmatpush1.msra.mxu0 0.0
        %686 = vmatprep.subr.mxu0 0.0
        %687 = vmatpush1.msra.mxu0 0.0
        %688 = vmatprep.subr.mxu0 0.0
        %689 = vmatpush1.msra.mxu0 0.0
        %690 = vmatprep.subr.mxu0 0.0
        %691 = vmatpush1.msra.mxu0 0.0
        %692 = vmatprep.subr.mxu0 0.0
        %693 = vmatpush1.msra.mxu0 0.0
        %694 = vmatprep.subr.mxu0 0.0
        %695 = vmatpush1.msra.mxu0 0.0
        %696 = vmatprep.subr.mxu0 0.0
        %697 = vmatpush1.msra.mxu0 0.0
        %698 = vmatprep.subr.mxu0 0.0
        %699 = vmatpush1.msra.mxu0 0.0
        %700 = vmatprep.subr.mxu0 0.0
        %701 = vmatpush1.msra.mxu0 0.0
        %702 = vmatprep.subr.mxu0 0.0
        %703 = vmatpush1.msra.mxu0 0.0
        %704 = vmatprep.subr.mxu0 0.0
        %705 = vmatpush1.msra.mxu0 0.0
        %706 = vmatprep.subr.mxu0 0.0
        %707 = vmatpush1.msra.mxu0 0.0
        %708 = vmatprep.subr.mxu0 0.0
        %709 = vmatpush1.msra.mxu0 0.0
        %710 = vmatprep.subr.mxu0 0.0
        %711 = vmatpush1.msra.mxu0 0.0
        %712 = vmatprep.subr.mxu0 0.0
        %713 = vmatpush1.msra.mxu0 0.0
        %714 = vmatprep.subr.mxu0 0.0
        %715 = vmatpush1.msra.mxu0 0.0
        %716 = vmatprep.subr.mxu0 0.0
        %717 = vmatpush1.msra.mxu0 0.0
        %718 = vmatprep.subr.mxu0 0.0
        %719 = vmatpush1.msra.mxu0 0.0
        %720 = vmatprep.subr.mxu0 0.0
        %721 = vmatpush1.msra.mxu0 0.0
        %722 = vmatprep.subr.mxu0 0.0
        %723 = vmatpush1.msra.mxu0 0.0
        %724 = vmatprep.subr.mxu0 0.0
        %725 = vmatpush1.msra.mxu0 0.0
        %726 = vmatprep.subr.mxu0 0.0
        %727 = vmatpush1.msra.mxu0 0.0
        %728 = vmatprep.subr.mxu0 0.0
        %729 = vmatpush1.msra.mxu0 0.0
        %730 = vmatprep.mubr.f32.mxu0 0.0
        %731 = vmatmul.mubr.f32.gmra.mrb[0].mxu0 %v565
        %v732 = vpop.f32.mrb[0].mxu0
        %v733 = vadd.f32 %v549, %v732
        %v734 = vpop.f32.mrb[0].mxu0
        %v735 = vadd.f32 %v551, %v734
        %736 = vmatprep.mubr.f32.mxu0 0.0
        %737 = vmatmul.mubr.f32.gmra.mrb[0].mxu0 %v567
        %v738 = vpop.f32.mrb[0].mxu0
        %v739 = vadd.f32 %v555, %v738
        %v740 = vpop.f32.mrb[0].mxu0
        %v741 = vadd.f32 %v557, %v740
        %742 = vmatprep.mubr.f32.mxu0 0.0
        %743 = vmatmul.mubr.f32.gmra.mrb[0].mxu0 %v569
        %v744 = vpop.f32.mrb[0].mxu0
        %v745 = vadd.f32 %v561, %v744
        %v746 = vpop.f32.mrb[0].mxu0
        %v747 = vadd.f32 %v563, %v746
        %748 = vdwg.mxu0
        %s749 = scalar_lea.vmem %s1, 256
        %v750 = vld [vmem:[%s749] sm:$0xff]
        %v751 = vld [vmem:[%s749 + $0x8] sm:$0xff]
        %v752 = vld [vmem:[%s749 + $0x10] sm:$0xff]
        %v753 = vld [vmem:[%s749 + $0x18] sm:$0xff]
        %v754 = vld [vmem:[%s749 + $0x20] sm:$0xff]
        %v755 = vld [vmem:[%s749 + $0x28] sm:$0xff]
        %v756 = vld [vmem:[%s749 + $0x30] sm:$0xff]
        %v757 = vld [vmem:[%s749 + $0x38] sm:$0xff]
        %v758 = vld [vmem:[%s749 + $0x40] sm:$0xff]
        %v759 = vld [vmem:[%s749 + $0x48] sm:$0xff]
        %v760 = vld [vmem:[%s749 + $0x50] sm:$0xff]
        %v761 = vld [vmem:[%s749 + $0x58] sm:$0xff]
        %v762 = vld [vmem:[%s749 + $0x60] sm:$0xf]
        %v763 = vld [vmem:[%s749 + $0x68] sm:$0xf]
        %v764 = vld [vmem:[%s749 + $0x70] sm:$0xf]
        %v765 = vld [vmem:[%s749 + $0x78] sm:$0xf]
        %vm766 = vcmask 1045504
        %v767 = vrot.slane %v330, 2
        %v768 = vrot.slane %v331, 2
        %v769 = vsel %vm766, %v767, %v768
        %v770 = vrot.slane %v332, 2
        %v771 = vsel %vm766, %v768, %v770
        %v772 = vrot.slane %v333, 2
        %v773 = vsel %vm766, %v770, %v772
        %v774 = vsel %vm379, %v769, 0
        %v776 = vsel %vm379, %v771, 0
        %v778 = vsel %vm379, %v773, 0
        %v781 = vsel %vm386, %v762, 0
        %v784 = vsel %vm386, %v763, 0
        %v787 = vsel %vm386, %v764, 0
        %v790 = vsel %vm386, %v765, 0
        %792 = vmatprep.subr.mxu0 %v751
        %793 = vmatpush1.msra.mxu0 %v750
        %794 = vmatprep.subr.mxu0 %v755
        %795 = vmatpush1.msra.mxu0 %v754
        %796 = vmatprep.subr.mxu0 %v759
        %797 = vmatpush1.msra.mxu0 %v758
        %798 = vmatprep.subr.mxu0 %v784
        %799 = vmatpush1.msra.mxu0 %v781
        %800 = vmatprep.subr.mxu0 0.0
        %801 = vmatpush1.msra.mxu0 0.0
        %802 = vmatprep.subr.mxu0 0.0
        %803 = vmatpush1.msra.mxu0 0.0
        %804 = vmatprep.subr.mxu0 0.0
        %805 = vmatpush1.msra.mxu0 0.0
        %806 = vmatprep.subr.mxu0 0.0
        %807 = vmatpush1.msra.mxu0 0.0
        %808 = vmatprep.subr.mxu0 0.0
        %809 = vmatpush1.msra.mxu0 0.0
        %810 = vmatprep.subr.mxu0 0.0
        %811 = vmatpush1.msra.mxu0 0.0
        %812 = vmatprep.subr.mxu0 0.0
        %813 = vmatpush1.msra.mxu0 0.0
        %814 = vmatprep.subr.mxu0 0.0
        %815 = vmatpush1.msra.mxu0 0.0
        %816 = vmatprep.subr.mxu0 0.0
        %817 = vmatpush1.msra.mxu0 0.0
        %818 = vmatprep.subr.mxu0 0.0
        %819 = vmatpush1.msra.mxu0 0.0
        %820 = vmatprep.subr.mxu0 0.0
        %821 = vmatpush1.msra.mxu0 0.0
        %822 = vmatprep.subr.mxu0 0.0
        %823 = vmatpush1.msra.mxu0 0.0
        %824 = vmatprep.subr.mxu0 0.0
        %825 = vmatpush1.msra.mxu0 0.0
        %826 = vmatprep.subr.mxu0 0.0
        %827 = vmatpush1.msra.mxu0 0.0
        %828 = vmatprep.subr.mxu0 0.0
        %829 = vmatpush1.msra.mxu0 0.0
        %830 = vmatprep.subr.mxu0 0.0
        %831 = vmatpush1.msra.mxu0 0.0
        %832 = vmatprep.subr.mxu0 0.0
        %833 = vmatpush1.msra.mxu0 0.0
        %834 = vmatprep.subr.mxu0 0.0
        %835 = vmatpush1.msra.mxu0 0.0
        %836 = vmatprep.subr.mxu0 0.0
        %837 = vmatpush1.msra.mxu0 0.0
        %838 = vmatprep.subr.mxu0 0.0
        %839 = vmatpush1.msra.mxu0 0.0
        %840 = vmatprep.subr.mxu0 0.0
        %841 = vmatpush1.msra.mxu0 0.0
        %842 = vmatprep.subr.mxu0 0.0
        %843 = vmatpush1.msra.mxu0 0.0
        %844 = vmatprep.subr.mxu0 0.0
        %845 = vmatpush1.msra.mxu0 0.0
        %846 = vmatprep.subr.mxu0 0.0
        %847 = vmatpush1.msra.mxu0 0.0
        %848 = vmatprep.subr.mxu0 0.0
        %849 = vmatpush1.msra.mxu0 0.0
        %850 = vmatprep.subr.mxu0 0.0
        %851 = vmatpush1.msra.mxu0 0.0
        %852 = vmatprep.subr.mxu0 0.0
        %853 = vmatpush1.msra.mxu0 0.0
        %854 = vmatprep.subr.mxu0 0.0
        %855 = vmatpush1.msra.mxu0 0.0
        %856 = vmatprep.mubr.f32.mxu0 0.0
        %857 = vmatmul.mubr.f32.gmra.mrb[0].mxu0 %v774
        %v858 = vpop.f32.mrb[0].mxu0
        %v859 = vadd.f32 0.0, %v858
        %v860 = vpop.f32.mrb[0].mxu0
        %v861 = vadd.f32 0.0, %v860
        %862 = vmatprep.mubr.f32.mxu0 0.0
        %863 = vmatmul.mubr.f32.gmra.mrb[0].mxu0 %v776
        %v864 = vpop.f32.mrb[0].mxu0
        %v865 = vadd.f32 0.0, %v864
        %v866 = vpop.f32.mrb[0].mxu0
        %v867 = vadd.f32 0.0, %v866
        %868 = vmatprep.mubr.f32.mxu0 0.0
        %869 = vmatmul.mubr.f32.gmra.mrb[0].mxu0 %v778
        %v870 = vpop.f32.mrb[0].mxu0
        %v871 = vadd.f32 0.0, %v870
        %v872 = vpop.f32.mrb[0].mxu0
        %v873 = vadd.f32 0.0, %v872
        %874 = vdwg.mxu0
        %875 = vmatprep.subr.mxu0 %v753
        %876 = vmatpush1.msra.mxu0 %v752
        %877 = vmatprep.subr.mxu0 %v757
        %878 = vmatpush1.msra.mxu0 %v756
        %879 = vmatprep.subr.mxu0 %v761
        %880 = vmatpush1.msra.mxu0 %v760
        %881 = vmatprep.subr.mxu0 %v790
        %882 = vmatpush1.msra.mxu0 %v787
        %883 = vmatprep.subr.mxu0 0.0
        %884 = vmatpush1.msra.mxu0 0.0
        %885 = vmatprep.subr.mxu0 0.0
        %886 = vmatpush1.msra.mxu0 0.0
        %887 = vmatprep.subr.mxu0 0.0
        %888 = vmatpush1.msra.mxu0 0.0
        %889 = vmatprep.subr.mxu0 0.0
        %890 = vmatpush1.msra.mxu0 0.0
        %891 = vmatprep.subr.mxu0 0.0
        %892 = vmatpush1.msra.mxu0 0.0
        %893 = vmatprep.subr.mxu0 0.0
        %894 = vmatpush1.msra.mxu0 0.0
        %895 = vmatprep.subr.mxu0 0.0
        %896 = vmatpush1.msra.mxu0 0.0
        %897 = vmatprep.subr.mxu0 0.0
        %898 = vmatpush1.msra.mxu0 0.0
        %899 = vmatprep.subr.mxu0 0.0
        %900 = vmatpush1.msra.mxu0 0.0
        %901 = vmatprep.subr.mxu0 0.0
        %902 = vmatpush1.msra.mxu0 0.0
        %903 = vmatprep.subr.mxu0 0.0
        %904 = vmatpush1.msra.mxu0 0.0
        %905 = vmatprep.subr.mxu0 0.0
        %906 = vmatpush1.msra.mxu0 0.0
        %907 = vmatprep.subr.mxu0 0.0
        %908 = vmatpush1.msra.mxu0 0.0
        %909 = vmatprep.subr.mxu0 0.0
        %910 = vmatpush1.msra.mxu0 0.0
        %911 = vmatprep.subr.mxu0 0.0
        %912 = vmatpush1.msra.mxu0 0.0
        %913 = vmatprep.subr.mxu0 0.0
        %914 = vmatpush1.msra.mxu0 0.0
        %915 = vmatprep.subr.mxu0 0.0
        %916 = vmatpush1.msra.mxu0 0.0
        %917 = vmatprep.subr.mxu0 0.0
        %918 = vmatpush1.msra.mxu0 0.0
        %919 = vmatprep.subr.mxu0 0.0
        %920 = vmatpush1.msra.mxu0 0.0
        %921 = vmatprep.subr.mxu0 0.0
        %922 = vmatpush1.msra.mxu0 0.0
        %923 = vmatprep.subr.mxu0 0.0
        %924 = vmatpush1.msra.mxu0 0.0
        %925 = vmatprep.subr.mxu0 0.0
        %926 = vmatpush1.msra.mxu0 0.0
        %927 = vmatprep.subr.mxu0 0.0
        %928 = vmatpush1.msra.mxu0 0.0
        %929 = vmatprep.subr.mxu0 0.0
        %930 = vmatpush1.msra.mxu0 0.0
        %931 = vmatprep.subr.mxu0 0.0
        %932 = vmatpush1.msra.mxu0 0.0
        %933 = vmatprep.subr.mxu0 0.0
        %934 = vmatpush1.msra.mxu0 0.0
        %935 = vmatprep.subr.mxu0 0.0
        %936 = vmatpush1.msra.mxu0 0.0
        %937 = vmatprep.subr.mxu0 0.0
        %938 = vmatpush1.msra.mxu0 0.0
        %939 = vmatprep.mubr.f32.mxu0 0.0
        %940 = vmatmul.mubr.f32.gmra.mrb[0].mxu0 %v774
        %v941 = vpop.f32.mrb[0].mxu0
        %v942 = vadd.f32 0.0, %v941
        %v943 = vpop.f32.mrb[0].mxu0
        %v944 = vadd.f32 0.0, %v943
        %945 = vmatprep.mubr.f32.mxu0 0.0
        %946 = vmatmul.mubr.f32.gmra.mrb[0].mxu0 %v776
        %v947 = vpop.f32.mrb[0].mxu0
        %v948 = vadd.f32 0.0, %v947
        %v949 = vpop.f32.mrb[0].mxu0
        %v950 = vadd.f32 0.0, %v949
        %951 = vmatprep.mubr.f32.mxu0 0.0
        %952 = vmatmul.mubr.f32.gmra.mrb[0].mxu0 %v778
        %v953 = vpop.f32.mrb[0].mxu0
        %v954 = vadd.f32 0.0, %v953
        %v955 = vpop.f32.mrb[0].mxu0
        %v956 = vadd.f32 0.0, %v955
        %957 = vdwg.mxu0
        %v958 = vadd.f32 %v650, %v859
        %v959 = vadd.f32 %v652, %v861
        %v960 = vadd.f32 %v733, %v942
        %v961 = vadd.f32 %v735, %v944
        %v962 = vadd.f32 %v656, %v865
        %v963 = vadd.f32 %v658, %v867
        %v964 = vadd.f32 %v739, %v948
        %v965 = vadd.f32 %v741, %v950
        %v966 = vadd.f32 %v662, %v871
        %v967 = vadd.f32 %v664, %v873
        %v968 = vadd.f32 %v745, %v954
        %v969 = vadd.f32 %v747, %v956
        %s970 = scalar_lea.vmem %s1, 384
        %v971 = vld [vmem:[%s970] sm:$0xff]
        %v972 = vld [vmem:[%s970 + $0x8] sm:$0xff]
        %v973 = vld [vmem:[%s970 + $0x10] sm:$0xff]
        %v974 = vld [vmem:[%s970 + $0x18] sm:$0xff]
        %v975 = vld [vmem:[%s970 + $0x20] sm:$0xff]
        %v976 = vld [vmem:[%s970 + $0x28] sm:$0xff]
        %v977 = vld [vmem:[%s970 + $0x30] sm:$0xff]
        %v978 = vld [vmem:[%s970 + $0x38] sm:$0xff]
        %v979 = vld [vmem:[%s970 + $0x40] sm:$0xff]
        %v980 = vld [vmem:[%s970 + $0x48] sm:$0xff]
        %v981 = vld [vmem:[%s970 + $0x50] sm:$0xff]
        %v982 = vld [vmem:[%s970 + $0x58] sm:$0xff]
        %v983 = vld [vmem:[%s970 + $0x60] sm:$0xf]
        %v984 = vld [vmem:[%s970 + $0x68] sm:$0xf]
        %v985 = vld [vmem:[%s970 + $0x70] sm:$0xf]
        %v986 = vld [vmem:[%s970 + $0x78] sm:$0xf]
        %vm987 = vcmask 1044480
        %v988 = vrot.slane %v330, 3
        %v989 = vrot.slane %v331, 3
        %v990 = vsel %vm987, %v988, %v989
        %v991 = vrot.slane %v332, 3
        %v992 = vsel %vm987, %v989, %v991
        %v993 = vrot.slane %v333, 3
        %v994 = vsel %vm987, %v991, %v993
        %v995 = vsel %vm379, %v990, 0
        %v997 = vsel %vm379, %v992, 0
        %v999 = vsel %vm379, %v994, 0
        %v1002 = vsel %vm386, %v983, 0
        %v1005 = vsel %vm386, %v984, 0
        %v1008 = vsel %vm386, %v985, 0
        %v1011 = vsel %vm386, %v986, 0
        %1013 = vmatprep.subr.mxu0 %v972
        %1014 = vmatpush1.msra.mxu0 %v971
        %1015 = vmatprep.subr.mxu0 %v976
        %1016 = vmatpush1.msra.mxu0 %v975
        %1017 = vmatprep.subr.mxu0 %v980
        %1018 = vmatpush1.msra.mxu0 %v979
        %1019 = vmatprep.subr.mxu0 %v1005
        %1020 = vmatpush1.msra.mxu0 %v1002
        %1021 = vmatprep.subr.mxu0 0.0
        %1022 = vmatpush1.msra.mxu0 0.0
        %1023 = vmatprep.subr.mxu0 0.0
        %1024 = vmatpush1.msra.mxu0 0.0
        %1025 = vmatprep.subr.mxu0 0.0
        %1026 = vmatpush1.msra.mxu0 0.0
        %1027 = vmatprep.subr.mxu0 0.0
        %1028 = vmatpush1.msra.mxu0 0.0
        %1029 = vmatprep.subr.mxu0 0.0
        %1030 = vmatpush1.msra.mxu0 0.0
        %1031 = vmatprep.subr.mxu0 0.0
        %1032 = vmatpush1.msra.mxu0 0.0
        %1033 = vmatprep.subr.mxu0 0.0
        %1034 = vmatpush1.msra.mxu0 0.0
        %1035 = vmatprep.subr.mxu0 0.0
        %1036 = vmatpush1.msra.mxu0 0.0
        %1037 = vmatprep.subr.mxu0 0.0
        %1038 = vmatpush1.msra.mxu0 0.0
        %1039 = vmatprep.subr.mxu0 0.0
        %1040 = vmatpush1.msra.mxu0 0.0
        %1041 = vmatprep.subr.mxu0 0.0
        %1042 = vmatpush1.msra.mxu0 0.0
        %1043 = vmatprep.subr.mxu0 0.0
        %1044 = vmatpush1.msra.mxu0 0.0
        %1045 = vmatprep.subr.mxu0 0.0
        %1046 = vmatpush1.msra.mxu0 0.0
        %1047 = vmatprep.subr.mxu0 0.0
        %1048 = vmatpush1.msra.mxu0 0.0
        %1049 = vmatprep.subr.mxu0 0.0
        %1050 = vmatpush1.msra.mxu0 0.0
        %1051 = vmatprep.subr.mxu0 0.0
        %1052 = vmatpush1.msra.mxu0 0.0
        %1053 = vmatprep.subr.mxu0 0.0
        %1054 = vmatpush1.msra.mxu0 0.0
        %1055 = vmatprep.subr.mxu0 0.0
        %1056 = vmatpush1.msra.mxu0 0.0
        %1057 = vmatprep.subr.mxu0 0.0
        %1058 = vmatpush1.msra.mxu0 0.0
        %1059 = vmatprep.subr.mxu0 0.0
        %1060 = vmatpush1.msra.mxu0 0.0
        %1061 = vmatprep.subr.mxu0 0.0
        %1062 = vmatpush1.msra.mxu0 0.0
        %1063 = vmatprep.subr.mxu0 0.0
        %1064 = vmatpush1.msra.mxu0 0.0
        %1065 = vmatprep.subr.mxu0 0.0
        %1066 = vmatpush1.msra.mxu0 0.0
        %1067 = vmatprep.subr.mxu0 0.0
        %1068 = vmatpush1.msra.mxu0 0.0
        %1069 = vmatprep.subr.mxu0 0.0
        %1070 = vmatpush1.msra.mxu0 0.0
        %1071 = vmatprep.subr.mxu0 0.0
        %1072 = vmatpush1.msra.mxu0 0.0
        %1073 = vmatprep.subr.mxu0 0.0
        %1074 = vmatpush1.msra.mxu0 0.0
        %1075 = vmatprep.subr.mxu0 0.0
        %1076 = vmatpush1.msra.mxu0 0.0
        %1077 = vmatprep.mubr.f32.mxu0 0.0
        %1078 = vmatmul.mubr.f32.gmra.mrb[0].mxu0 %v995
        %v1079 = vpop.f32.mrb[0].mxu0
        %v1080 = vadd.f32 0.0, %v1079
        %v1081 = vpop.f32.mrb[0].mxu0
        %v1082 = vadd.f32 0.0, %v1081
        %1083 = vmatprep.mubr.f32.mxu0 0.0
        %1084 = vmatmul.mubr.f32.gmra.mrb[0].mxu0 %v997
        %v1085 = vpop.f32.mrb[0].mxu0
        %v1086 = vadd.f32 0.0, %v1085
        %v1087 = vpop.f32.mrb[0].mxu0
        %v1088 = vadd.f32 0.0, %v1087
        %1089 = vmatprep.mubr.f32.mxu0 0.0
        %1090 = vmatmul.mubr.f32.gmra.mrb[0].mxu0 %v999
        %v1091 = vpop.f32.mrb[0].mxu0
        %v1092 = vadd.f32 0.0, %v1091
        %v1093 = vpop.f32.mrb[0].mxu0
        %v1094 = vadd.f32 0.0, %v1093
        %1095 = vdwg.mxu0
        %1096 = vmatprep.subr.mxu0 %v974
        %1097 = vmatpush1.msra.mxu0 %v973
        %1098 = vmatprep.subr.mxu0 %v978
        %1099 = vmatpush1.msra.mxu0 %v977
        %1100 = vmatprep.subr.mxu0 %v982
        %1101 = vmatpush1.msra.mxu0 %v981
        %1102 = vmatprep.subr.mxu0 %v1011
        %1103 = vmatpush1.msra.mxu0 %v1008
        %1104 = vmatprep.subr.mxu0 0.0
        %1105 = vmatpush1.msra.mxu0 0.0
        %1106 = vmatprep.subr.mxu0 0.0
        %1107 = vmatpush1.msra.mxu0 0.0
        %1108 = vmatprep.subr.mxu0 0.0
        %1109 = vmatpush1.msra.mxu0 0.0
        %1110 = vmatprep.subr.mxu0 0.0
        %1111 = vmatpush1.msra.mxu0 0.0
        %1112 = vmatprep.subr.mxu0 0.0
        %1113 = vmatpush1.msra.mxu0 0.0
        %1114 = vmatprep.subr.mxu0 0.0
        %1115 = vmatpush1.msra.mxu0 0.0
        %1116 = vmatprep.subr.mxu0 0.0
        %1117 = vmatpush1.msra.mxu0 0.0
        %1118 = vmatprep.subr.mxu0 0.0
        %1119 = vmatpush1.msra.mxu0 0.0
        %1120 = vmatprep.subr.mxu0 0.0
        %1121 = vmatpush1.msra.mxu0 0.0
        %1122 = vmatprep.subr.mxu0 0.0
        %1123 = vmatpush1.msra.mxu0 0.0
        %1124 = vmatprep.subr.mxu0 0.0
        %1125 = vmatpush1.msra.mxu0 0.0
        %1126 = vmatprep.subr.mxu0 0.0
        %1127 = vmatpush1.msra.mxu0 0.0
        %1128 = vmatprep.subr.mxu0 0.0
        %1129 = vmatpush1.msra.mxu0 0.0
        %1130 = vmatprep.subr.mxu0 0.0
        %1131 = vmatpush1.msra.mxu0 0.0
        %1132 = vmatprep.subr.mxu0 0.0
        %1133 = vmatpush1.msra.mxu0 0.0
        %1134 = vmatprep.subr.mxu0 0.0
        %1135 = vmatpush1.msra.mxu0 0.0
        %1136 = vmatprep.subr.mxu0 0.0
        %1137 = vmatpush1.msra.mxu0 0.0
        %1138 = vmatprep.subr.mxu0 0.0
        %1139 = vmatpush1.msra.mxu0 0.0
        %1140 = vmatprep.subr.mxu0 0.0
        %1141 = vmatpush1.msra.mxu0 0.0
        %1142 = vmatprep.subr.mxu0 0.0
        %1143 = vmatpush1.msra.mxu0 0.0
        %1144 = vmatprep.subr.mxu0 0.0
        %1145 = vmatpush1.msra.mxu0 0.0
        %1146 = vmatprep.subr.mxu0 0.0
        %1147 = vmatpush1.msra.mxu0 0.0
        %1148 = vmatprep.subr.mxu0 0.0
        %1149 = vmatpush1.msra.mxu0 0.0
        %1150 = vmatprep.subr.mxu0 0.0
        %1151 = vmatpush1.msra.mxu0 0.0
        %1152 = vmatprep.subr.mxu0 0.0
        %1153 = vmatpush1.msra.mxu0 0.0
        %1154 = vmatprep.subr.mxu0 0.0
        %1155 = vmatpush1.msra.mxu0 0.0
        %1156 = vmatprep.subr.mxu0 0.0
        %1157 = vmatpush1.msra.mxu0 0.0
        %1158 = vmatprep.subr.mxu0 0.0
        %1159 = vmatpush1.msra.mxu0 0.0
        %1160 = vmatprep.mubr.f32.mxu0 0.0
        %1161 = vmatmul.mubr.f32.gmra.mrb[0].mxu0 %v995
        %v1162 = vpop.f32.mrb[0].mxu0
        %v1163 = vadd.f32 0.0, %v1162
        %v1164 = vpop.f32.mrb[0].mxu0
        %v1165 = vadd.f32 0.0, %v1164
        %1166 = vmatprep.mubr.f32.mxu0 0.0
        %1167 = vmatmul.mubr.f32.gmra.mrb[0].mxu0 %v997
        %v1168 = vpop.f32.mrb[0].mxu0
        %v1169 = vadd.f32 0.0, %v1168
        %v1170 = vpop.f32.mrb[0].mxu0
        %v1171 = vadd.f32 0.0, %v1170
        %1172 = vmatprep.mubr.f32.mxu0 0.0
        %1173 = vmatmul.mubr.f32.gmra.mrb[0].mxu0 %v999
        %v1174 = vpop.f32.mrb[0].mxu0
        %v1175 = vadd.f32 0.0, %v1174
        %v1176 = vpop.f32.mrb[0].mxu0
        %v1177 = vadd.f32 0.0, %v1176
        %1178 = vdwg.mxu0
        %v1179 = vadd.f32 %v958, %v1080
        %v1180 = vadd.f32 %v959, %v1082
        %v1181 = vadd.f32 %v960, %v1163
        %v1182 = vadd.f32 %v961, %v1165
        %v1183 = vadd.f32 %v962, %v1086
        %v1184 = vadd.f32 %v963, %v1088
        %v1185 = vadd.f32 %v964, %v1169
        %v1186 = vadd.f32 %v965, %v1171
        %v1187 = vadd.f32 %v966, %v1092
        %v1188 = vadd.f32 %v967, %v1094
        %v1189 = vadd.f32 %v968, %v1175
        %v1190 = vadd.f32 %v969, %v1177
        %s1191 = scalar_lea.vmem %s1, 512
        %v1192 = vld [vmem:[%s1191] sm:$0xff]
        %v1193 = vld [vmem:[%s1191 + $0x8] sm:$0xff]
        %v1194 = vld [vmem:[%s1191 + $0x10] sm:$0xff]
        %v1195 = vld [vmem:[%s1191 + $0x18] sm:$0xff]
        %v1196 = vld [vmem:[%s1191 + $0x20] sm:$0xff]
        %v1197 = vld [vmem:[%s1191 + $0x28] sm:$0xff]
        %v1198 = vld [vmem:[%s1191 + $0x30] sm:$0xff]
        %v1199 = vld [vmem:[%s1191 + $0x38] sm:$0xff]
        %v1200 = vld [vmem:[%s1191 + $0x40] sm:$0xff]
        %v1201 = vld [vmem:[%s1191 + $0x48] sm:$0xff]
        %v1202 = vld [vmem:[%s1191 + $0x50] sm:$0xff]
        %v1203 = vld [vmem:[%s1191 + $0x58] sm:$0xff]
        %v1204 = vld [vmem:[%s1191 + $0x60] sm:$0xf]
        %v1205 = vld [vmem:[%s1191 + $0x68] sm:$0xf]
        %v1206 = vld [vmem:[%s1191 + $0x70] sm:$0xf]
        %v1207 = vld [vmem:[%s1191 + $0x78] sm:$0xf]
        %v1208 = vrot.slane %v330, 4
        %v1209 = vrot.slane %v331, 4
        %v1210 = vsel %vm386, %v1208, %v1209
        %v1211 = vrot.slane %v332, 4
        %v1212 = vsel %vm386, %v1209, %v1211
        %v1213 = vrot.slane %v333, 4
        %v1214 = vsel %vm386, %v1211, %v1213
        %v1215 = vsel %vm379, %v1210, 0
        %v1217 = vsel %vm379, %v1212, 0
        %v1219 = vsel %vm379, %v1214, 0
        %v1222 = vsel %vm386, %v1204, 0
        %v1225 = vsel %vm386, %v1205, 0
        %v1228 = vsel %vm386, %v1206, 0
        %v1231 = vsel %vm386, %v1207, 0
        %1233 = vmatprep.subr.mxu0 %v1193
        %1234 = vmatpush1.msra.mxu0 %v1192
        %1235 = vmatprep.subr.mxu0 %v1197
        %1236 = vmatpush1.msra.mxu0 %v1196
        %1237 = vmatprep.subr.mxu0 %v1201
        %1238 = vmatpush1.msra.mxu0 %v1200
        %1239 = vmatprep.subr.mxu0 %v1225
        %1240 = vmatpush1.msra.mxu0 %v1222
        %1241 = vmatprep.subr.mxu0 0.0
        %1242 = vmatpush1.msra.mxu0 0.0
        %1243 = vmatprep.subr.mxu0 0.0
        %1244 = vmatpush1.msra.mxu0 0.0
        %1245 = vmatprep.subr.mxu0 0.0
        %1246 = vmatpush1.msra.mxu0 0.0
        %1247 = vmatprep.subr.mxu0 0.0
        %1248 = vmatpush1.msra.mxu0 0.0
        %1249 = vmatprep.subr.mxu0 0.0
        %1250 = vmatpush1.msra.mxu0 0.0
        %1251 = vmatprep.subr.mxu0 0.0
        %1252 = vmatpush1.msra.mxu0 0.0
        %1253 = vmatprep.subr.mxu0 0.0
        %1254 = vmatpush1.msra.mxu0 0.0
        %1255 = vmatprep.subr.mxu0 0.0
        %1256 = vmatpush1.msra.mxu0 0.0
        %1257 = vmatprep.subr.mxu0 0.0
        %1258 = vmatpush1.msra.mxu0 0.0
        %1259 = vmatprep.subr.mxu0 0.0
        %1260 = vmatpush1.msra.mxu0 0.0
        %1261 = vmatprep.subr.mxu0 0.0
        %1262 = vmatpush1.msra.mxu0 0.0
        %1263 = vmatprep.subr.mxu0 0.0
        %1264 = vmatpush1.msra.mxu0 0.0
        %1265 = vmatprep.subr.mxu0 0.0
        %1266 = vmatpush1.msra.mxu0 0.0
        %1267 = vmatprep.subr.mxu0 0.0
        %1268 = vmatpush1.msra.mxu0 0.0
        %1269 = vmatprep.subr.mxu0 0.0
        %1270 = vmatpush1.msra.mxu0 0.0
        %1271 = vmatprep.subr.mxu0 0.0
        %1272 = vmatpush1.msra.mxu0 0.0
        %1273 = vmatprep.subr.mxu0 0.0
        %1274 = vmatpush1.msra.mxu0 0.0
        %1275 = vmatprep.subr.mxu0 0.0
        %1276 = vmatpush1.msra.mxu0 0.0
        %1277 = vmatprep.subr.mxu0 0.0
        %1278 = vmatpush1.msra.mxu0 0.0
        %1279 = vmatprep.subr.mxu0 0.0
        %1280 = vmatpush1.msra.mxu0 0.0
        %1281 = vmatprep.subr.mxu0 0.0
        %1282 = vmatpush1.msra.mxu0 0.0
        %1283 = vmatprep.subr.mxu0 0.0
        %1284 = vmatpush1.msra.mxu0 0.0
        %1285 = vmatprep.subr.mxu0 0.0
        %1286 = vmatpush1.msra.mxu0 0.0
        %1287 = vmatprep.subr.mxu0 0.0
        %1288 = vmatpush1.msra.mxu0 0.0
        %1289 = vmatprep.subr.mxu0 0.0
        %1290 = vmatpush1.msra.mxu0 0.0
        %1291 = vmatprep.subr.mxu0 0.0
        %1292 = vmatpush1.msra.mxu0 0.0
        %1293 = vmatprep.subr.mxu0 0.0
        %1294 = vmatpush1.msra.mxu0 0.0
        %1295 = vmatprep.subr.mxu0 0.0
        %1296 = vmatpush1.msra.mxu0 0.0
        %1297 = vmatprep.mubr.f32.mxu0 0.0
        %1298 = vmatmul.mubr.f32.gmra.mrb[0].mxu0 %v1215
        %v1299 = vpop.f32.mrb[0].mxu0
        %v1300 = vadd.f32 0.0, %v1299
        %v1301 = vpop.f32.mrb[0].mxu0
        %v1302 = vadd.f32 0.0, %v1301
        %1303 = vmatprep.mubr.f32.mxu0 0.0
        %1304 = vmatmul.mubr.f32.gmra.mrb[0].mxu0 %v1217
        %v1305 = vpop.f32.mrb[0].mxu0
        %v1306 = vadd.f32 0.0, %v1305
        %v1307 = vpop.f32.mrb[0].mxu0
        %v1308 = vadd.f32 0.0, %v1307
        %1309 = vmatprep.mubr.f32.mxu0 0.0
        %1310 = vmatmul.mubr.f32.gmra.mrb[0].mxu0 %v1219
        %v1311 = vpop.f32.mrb[0].mxu0
        %v1312 = vadd.f32 0.0, %v1311
        %v1313 = vpop.f32.mrb[0].mxu0
        %v1314 = vadd.f32 0.0, %v1313
        %1315 = vdwg.mxu0
        %1316 = vmatprep.subr.mxu0 %v1195
        %1317 = vmatpush1.msra.mxu0 %v1194
        %1318 = vmatprep.subr.mxu0 %v1199
        %1319 = vmatpush1.msra.mxu0 %v1198
        %1320 = vmatprep.subr.mxu0 %v1203
        %1321 = vmatpush1.msra.mxu0 %v1202
        %1322 = vmatprep.subr.mxu0 %v1231
        %1323 = vmatpush1.msra.mxu0 %v1228
        %1324 = vmatprep.subr.mxu0 0.0
        %1325 = vmatpush1.msra.mxu0 0.0
        %1326 = vmatprep.subr.mxu0 0.0
        %1327 = vmatpush1.msra.mxu0 0.0
        %1328 = vmatprep.subr.mxu0 0.0
        %1329 = vmatpush1.msra.mxu0 0.0
        %1330 = vmatprep.subr.mxu0 0.0
        %1331 = vmatpush1.msra.mxu0 0.0
        %1332 = vmatprep.subr.mxu0 0.0
        %1333 = vmatpush1.msra.mxu0 0.0
        %1334 = vmatprep.subr.mxu0 0.0
        %1335 = vmatpush1.msra.mxu0 0.0
        %1336 = vmatprep.subr.mxu0 0.0
        %1337 = vmatpush1.msra.mxu0 0.0
        %1338 = vmatprep.subr.mxu0 0.0
        %1339 = vmatpush1.msra.mxu0 0.0
        %1340 = vmatprep.subr.mxu0 0.0
        %1341 = vmatpush1.msra.mxu0 0.0
        %1342 = vmatprep.subr.mxu0 0.0
        %1343 = vmatpush1.msra.mxu0 0.0
        %1344 = vmatprep.subr.mxu0 0.0
        %1345 = vmatpush1.msra.mxu0 0.0
        %1346 = vmatprep.subr.mxu0 0.0
        %1347 = vmatpush1.msra.mxu0 0.0
        %1348 = vmatprep.subr.mxu0 0.0
        %1349 = vmatpush1.msra.mxu0 0.0
        %1350 = vmatprep.subr.mxu0 0.0
        %1351 = vmatpush1.msra.mxu0 0.0
        %1352 = vmatprep.subr.mxu0 0.0
        %1353 = vmatpush1.msra.mxu0 0.0
        %1354 = vmatprep.subr.mxu0 0.0
        %1355 = vmatpush1.msra.mxu0 0.0
        %1356 = vmatprep.subr.mxu0 0.0
        %1357 = vmatpush1.msra.mxu0 0.0
        %1358 = vmatprep.subr.mxu0 0.0
        %1359 = vmatpush1.msra.mxu0 0.0
        %1360 = vmatprep.subr.mxu0 0.0
        %1361 = vmatpush1.msra.mxu0 0.0
        %1362 = vmatprep.subr.mxu0 0.0
        %1363 = vmatpush1.msra.mxu0 0.0
        %1364 = vmatprep.subr.mxu0 0.0
        %1365 = vmatpush1.msra.mxu0 0.0
        %1366 = vmatprep.subr.mxu0 0.0
        %1367 = vmatpush1.msra.mxu0 0.0
        %1368 = vmatprep.subr.mxu0 0.0
        %1369 = vmatpush1.msra.mxu0 0.0
        %1370 = vmatprep.subr.mxu0 0.0
        %1371 = vmatpush1.msra.mxu0 0.0
        %1372 = vmatprep.subr.mxu0 0.0
        %1373 = vmatpush1.msra.mxu0 0.0
        %1374 = vmatprep.subr.mxu0 0.0
        %1375 = vmatpush1.msra.mxu0 0.0
        %1376 = vmatprep.subr.mxu0 0.0
        %1377 = vmatpush1.msra.mxu0 0.0
        %1378 = vmatprep.subr.mxu0 0.0
        %1379 = vmatpush1.msra.mxu0 0.0
        %1380 = vmatprep.mubr.f32.mxu0 0.0
        %1381 = vmatmul.mubr.f32.gmra.mrb[0].mxu0 %v1215
        %v1382 = vpop.f32.mrb[0].mxu0
        %v1383 = vadd.f32 0.0, %v1382
        %v1384 = vpop.f32.mrb[0].mxu0
        %v1385 = vadd.f32 0.0, %v1384
        %1386 = vmatprep.mubr.f32.mxu0 0.0
        %1387 = vmatmul.mubr.f32.gmra.mrb[0].mxu0 %v1217
        %v1388 = vpop.f32.mrb[0].mxu0
        %v1389 = vadd.f32 0.0, %v1388
        %v1390 = vpop.f32.mrb[0].mxu0
        %v1391 = vadd.f32 0.0, %v1390
        %1392 = vmatprep.mubr.f32.mxu0 0.0
        %1393 = vmatmul.mubr.f32.gmra.mrb[0].mxu0 %v1219
        %v1394 = vpop.f32.mrb[0].mxu0
        %v1395 = vadd.f32 0.0, %v1394
        %v1396 = vpop.f32.mrb[0].mxu0
        %v1397 = vadd.f32 0.0, %v1396
        %1398 = vdwg.mxu0
        %v1399 = vadd.f32 %v1179, %v1300
        %v1400 = vadd.f32 %v1180, %v1302
        %v1401 = vadd.f32 %v1181, %v1383
        %v1402 = vadd.f32 %v1182, %v1385
        %v1403 = vadd.f32 %v1183, %v1306
        %v1404 = vadd.f32 %v1184, %v1308
        %v1405 = vadd.f32 %v1185, %v1389
        %v1406 = vadd.f32 %v1186, %v1391
        %v1407 = vadd.f32 %v1187, %v1312
        %v1408 = vadd.f32 %v1188, %v1314
        %v1409 = vadd.f32 %v1189, %v1395
        %v1410 = vadd.f32 %v1190, %v1397
        %v1411 = vld [vmem:[%s2] sm:$0xf]
        %v1413 = vlaneseq
        %v1414 = vshrl.u32 %v1413, 7
        %v1415 = vsub.s32 0, %v1414
        %v1416 = vrot.slane %v1411, %v1415
        %v1417 = vlaneseq
        %v1418 = vshrl.u32 %v1417, 7
        %v1419 = vsub.s32 1, %v1418
        %v1420 = vrot.slane %v1411, %v1419
        %v1421 = vlaneseq
        %v1422 = vshrl.u32 %v1421, 7
        %v1423 = vsub.s32 2, %v1422
        %v1424 = vrot.slane %v1411, %v1423
        %v1425 = vlaneseq
        %v1426 = vshrl.u32 %v1425, 7
        %v1427 = vsub.s32 3, %v1426
        %v1428 = vrot.slane %v1411, %v1427
        %v1433 = vadd.f32 %v1399, %v1416
        %v1434 = vadd.f32 %v1400, %v1420
        %v1435 = vadd.f32 %v1401, %v1424
        %v1436 = vadd.f32 %v1402, %v1428
        %v1437 = vadd.f32 %v1403, %v1416
        %v1438 = vadd.f32 %v1404, %v1420
        %v1439 = vadd.f32 %v1405, %v1424
        %v1440 = vadd.f32 %v1406, %v1428
        %v1441 = vadd.f32 %v1407, %v1416
        %v1442 = vadd.f32 %v1408, %v1420
        %v1443 = vadd.f32 %v1409, %v1424
        %v1444 = vadd.f32 %v1410, %v1428
        %v1445 = vmax.f32 %v1433, 0.0
        %v1446 = vmax.f32 %v1434, 0.0
        %v1447 = vmax.f32 %v1435, 0.0
        %v1448 = vmax.f32 %v1436, 0.0
        %v1449 = vmax.f32 %v1437, 0.0
        %v1450 = vmax.f32 %v1438, 0.0
        %v1451 = vmax.f32 %v1439, 0.0
        %v1452 = vmax.f32 %v1440, 0.0
        %v1453 = vmax.f32 %v1441, 0.0
        %v1454 = vmax.f32 %v1442, 0.0
        %v1455 = vmax.f32 %v1443, 0.0
        %v1456 = vmax.f32 %v1444, 0.0
        %v1457 = vlaneseq
        %v1458 = vshrl.u32 %v1457, 7
        %v1459 = vadd.s32 %v1458, 8
        %v1460 = vlaneseq
        %v1461 = vand.u32 %v1460, 127
        %v1462 = vmul.u32 %v1458, 2
        %v1463 = vmul.u32 %v1459, 2
        %vm1464 = vcmp.eq.s32.totalorder %v1461, %v1462
        %vm1465 = vcmp.eq.s32.totalorder %v1461, %v1463
        %v1466 = vsel %vm1464, 1.0, 0.0
        %v1467 = vsel %vm1465, 1.0, 0.0
        %v1468 = vadd.s32 %v1462, 1
        %v1469 = vadd.s32 %v1463, 1
        %vm1470 = vcmp.eq.s32.totalorder %v1461, %v1468
        %vm1471 = vcmp.eq.s32.totalorder %v1461, %v1469
        %v1472 = vsel %vm1470, 1.0, 0.0
        %v1473 = vsel %vm1471, 1.0, 0.0
        %vm1474 = vcmask 195584
        %v1476 = vsel %vm1474, %v1466, 0
        %v1479 = vsel %vm1474, %v1467, 0
        %1481 = vmatprep.subr.mxu0 %v1446
        %1482 = vmatpush1.msra.mxu0 %v1445
        %1483 = vmatprep.subr.mxu0 %v1450
        %1484 = vmatpush1.msra.mxu0 %v1449
        %1485 = vmatprep.subr.mxu0 %v1454
        %1486 = vmatpush1.msra.mxu0 %v1453
        %1487 = vmatprep.subr.mxu0 0.0
        %1488 = vmatpush1.msra.mxu0 0.0
        %1489 = vmatprep.subr.mxu0 0.0
        %1490 = vmatpush1.msra.mxu0 0.0
        %1491 = vmatprep.subr.mxu0 0.0
        %1492 = vmatpush1.msra.mxu0 0.0
        %1493 = vmatprep.subr.mxu0 0.0
        %1494 = vmatpush1.msra.mxu0 0.0
        %1495 = vmatprep.subr.mxu0 0.0
        %1496 = vmatpush1.msra.mxu0 0.0
        %1497 = vmatprep.subr.mxu0 0.0
        %1498 = vmatpush1.msra.mxu0 0.0
        %1499 = vmatprep.subr.mxu0 0.0
        %1500 = vmatpush1.msra.mxu0 0.0
        %1501 = vmatprep.subr.mxu0 0.0
        %1502 = vmatpush1.msra.mxu0 0.0
        %1503 = vmatprep.subr.mxu0 0.0
        %1504 = vmatpush1.msra.mxu0 0.0
        %1505 = vmatprep.subr.mxu0 0.0
        %1506 = vmatpush1.msra.mxu0 0.0
        %1507 = vmatprep.subr.mxu0 0.0
        %1508 = vmatpush1.msra.mxu0 0.0
        %1509 = vmatprep.subr.mxu0 0.0
        %1510 = vmatpush1.msra.mxu0 0.0
        %1511 = vmatprep.subr.mxu0 0.0
        %1512 = vmatpush1.msra.mxu0 0.0
        %1513 = vmatprep.subr.mxu0 0.0
        %1514 = vmatpush1.msra.mxu0 0.0
        %1515 = vmatprep.subr.mxu0 0.0
        %1516 = vmatpush1.msra.mxu0 0.0
        %1517 = vmatprep.subr.mxu0 0.0
        %1518 = vmatpush1.msra.mxu0 0.0
        %1519 = vmatprep.subr.mxu0 0.0
        %1520 = vmatpush1.msra.mxu0 0.0
        %1521 = vmatprep.subr.mxu0 0.0
        %1522 = vmatpush1.msra.mxu0 0.0
        %1523 = vmatprep.subr.mxu0 0.0
        %1524 = vmatpush1.msra.mxu0 0.0
        %1525 = vmatprep.subr.mxu0 0.0
        %1526 = vmatpush1.msra.mxu0 0.0
        %1527 = vmatprep.subr.mxu0 0.0
        %1528 = vmatpush1.msra.mxu0 0.0
        %1529 = vmatprep.subr.mxu0 0.0
        %1530 = vmatpush1.msra.mxu0 0.0
        %1531 = vmatprep.subr.mxu0 0.0
        %1532 = vmatpush1.msra.mxu0 0.0
        %1533 = vmatprep.subr.mxu0 0.0
        %1534 = vmatpush1.msra.mxu0 0.0
        %1535 = vmatprep.subr.mxu0 0.0
        %1536 = vmatpush1.msra.mxu0 0.0
        %1537 = vmatprep.subr.mxu0 0.0
        %1538 = vmatpush1.msra.mxu0 0.0
        %1539 = vmatprep.subr.mxu0 0.0
        %1540 = vmatpush1.msra.mxu0 0.0
        %1541 = vmatprep.subr.mxu0 0.0
        %1542 = vmatpush1.msra.mxu0 0.0
        %1543 = vmatprep.subr.mxu0 0.0
        %1544 = vmatpush1.msra.mxu0 0.0
        %1545 = vmatprep.mubr.f32.mxu0 0.0
        %1546 = vmatmul.mubr.f32.gmra.mrb[0].mxu0 %v1476
        %v1547 = vpop.f32.mrb[0].mxu0
        %v1548 = vadd.f32 0.0, %v1547
        %v1549 = vpop.f32.mrb[0].mxu0
        %v1550 = vadd.f32 0.0, %v1549
        %1551 = vmatprep.mubr.f32.mxu0 0.0
        %1552 = vmatmul.mubr.f32.gmra.mrb[0].mxu0 %v1479
        %v1553 = vpop.f32.mrb[0].mxu0
        %v1554 = vadd.f32 0.0, %v1553
        %v1555 = vpop.f32.mrb[0].mxu0
        %v1556 = vadd.f32 0.0, %v1555
        %1557 = vdwg.mxu0
        %1558 = vmatprep.subr.mxu0 %v1448
        %1559 = vmatpush1.msra.mxu0 %v1447
        %1560 = vmatprep.subr.mxu0 %v1452
        %1561 = vmatpush1.msra.mxu0 %v1451
        %1562 = vmatprep.subr.mxu0 %v1456
        %1563 = vmatpush1.msra.mxu0 %v1455
        %1564 = vmatprep.subr.mxu0 0.0
        %1565 = vmatpush1.msra.mxu0 0.0
        %1566 = vmatprep.subr.mxu0 0.0
        %1567 = vmatpush1.msra.mxu0 0.0
        %1568 = vmatprep.subr.mxu0 0.0
        %1569 = vmatpush1.msra.mxu0 0.0
        %1570 = vmatprep.subr.mxu0 0.0
        %1571 = vmatpush1.msra.mxu0 0.0
        %1572 = vmatprep.subr.mxu0 0.0
        %1573 = vmatpush1.msra.mxu0 0.0
        %1574 = vmatprep.subr.mxu0 0.0
        %1575 = vmatpush1.msra.mxu0 0.0
        %1576 = vmatprep.subr.mxu0 0.0
        %1577 = vmatpush1.msra.mxu0 0.0
        %1578 = vmatprep.subr.mxu0 0.0
        %1579 = vmatpush1.msra.mxu0 0.0
        %1580 = vmatprep.subr.mxu0 0.0
        %1581 = vmatpush1.msra.mxu0 0.0
        %1582 = vmatprep.subr.mxu0 0.0
        %1583 = vmatpush1.msra.mxu0 0.0
        %1584 = vmatprep.subr.mxu0 0.0
        %1585 = vmatpush1.msra.mxu0 0.0
        %1586 = vmatprep.subr.mxu0 0.0
        %1587 = vmatpush1.msra.mxu0 0.0
        %1588 = vmatprep.subr.mxu0 0.0
        %1589 = vmatpush1.msra.mxu0 0.0
        %1590 = vmatprep.subr.mxu0 0.0
        %1591 = vmatpush1.msra.mxu0 0.0
        %1592 = vmatprep.subr.mxu0 0.0
        %1593 = vmatpush1.msra.mxu0 0.0
        %1594 = vmatprep.subr.mxu0 0.0
        %1595 = vmatpush1.msra.mxu0 0.0
        %1596 = vmatprep.subr.mxu0 0.0
        %1597 = vmatpush1.msra.mxu0 0.0
        %1598 = vmatprep.subr.mxu0 0.0
        %1599 = vmatpush1.msra.mxu0 0.0
        %1600 = vmatprep.subr.mxu0 0.0
        %1601 = vmatpush1.msra.mxu0 0.0
        %1602 = vmatprep.subr.mxu0 0.0
        %1603 = vmatpush1.msra.mxu0 0.0
        %1604 = vmatprep.subr.mxu0 0.0
        %1605 = vmatpush1.msra.mxu0 0.0
        %1606 = vmatprep.subr.mxu0 0.0
        %1607 = vmatpush1.msra.mxu0 0.0
        %1608 = vmatprep.subr.mxu0 0.0
        %1609 = vmatpush1.msra.mxu0 0.0
        %1610 = vmatprep.subr.mxu0 0.0
        %1611 = vmatpush1.msra.mxu0 0.0
        %1612 = vmatprep.subr.mxu0 0.0
        %1613 = vmatpush1.msra.mxu0 0.0
        %1614 = vmatprep.subr.mxu0 0.0
        %1615 = vmatpush1.msra.mxu0 0.0
        %1616 = vmatprep.subr.mxu0 0.0
        %1617 = vmatpush1.msra.mxu0 0.0
        %1618 = vmatprep.subr.mxu0 0.0
        %1619 = vmatpush1.msra.mxu0 0.0
        %1620 = vmatprep.subr.mxu0 0.0
        %1621 = vmatpush1.msra.mxu0 0.0
        %1622 = vmatprep.mubr.f32.mxu0 0.0
        %1623 = vmatmul.mubr.f32.gmra.mrb[0].mxu0 %v1476
        %v1624 = vpop.f32.mrb[0].mxu0
        %v1625 = vadd.f32 0.0, %v1624
        %v1626 = vpop.f32.mrb[0].mxu0
        %v1627 = vadd.f32 0.0, %v1626
        %1628 = vmatprep.mubr.f32.mxu0 0.0
        %1629 = vmatmul.mubr.f32.gmra.mrb[0].mxu0 %v1479
        %v1630 = vpop.f32.mrb[0].mxu0
        %v1631 = vadd.f32 0.0, %v1630
        %v1632 = vpop.f32.mrb[0].mxu0
        %v1633 = vadd.f32 0.0, %v1632
        %1634 = vdwg.mxu0
        %v1636 = vsel %vm1474, %v1472, 0
        %v1639 = vsel %vm1474, %v1473, 0
        %1641 = vmatprep.subr.mxu0 %v1446
        %1642 = vmatpush1.msra.mxu0 %v1445
        %1643 = vmatprep.subr.mxu0 %v1450
        %1644 = vmatpush1.msra.mxu0 %v1449
        %1645 = vmatprep.subr.mxu0 %v1454
        %1646 = vmatpush1.msra.mxu0 %v1453
        %1647 = vmatprep.subr.mxu0 0.0
        %1648 = vmatpush1.msra.mxu0 0.0
        %1649 = vmatprep.subr.mxu0 0.0
        %1650 = vmatpush1.msra.mxu0 0.0
        %1651 = vmatprep.subr.mxu0 0.0
        %1652 = vmatpush1.msra.mxu0 0.0
        %1653 = vmatprep.subr.mxu0 0.0
        %1654 = vmatpush1.msra.mxu0 0.0
        %1655 = vmatprep.subr.mxu0 0.0
        %1656 = vmatpush1.msra.mxu0 0.0
        %1657 = vmatprep.subr.mxu0 0.0
        %1658 = vmatpush1.msra.mxu0 0.0
        %1659 = vmatprep.subr.mxu0 0.0
        %1660 = vmatpush1.msra.mxu0 0.0
        %1661 = vmatprep.subr.mxu0 0.0
        %1662 = vmatpush1.msra.mxu0 0.0
        %1663 = vmatprep.subr.mxu0 0.0
        %1664 = vmatpush1.msra.mxu0 0.0
        %1665 = vmatprep.subr.mxu0 0.0
        %1666 = vmatpush1.msra.mxu0 0.0
        %1667 = vmatprep.subr.mxu0 0.0
        %1668 = vmatpush1.msra.mxu0 0.0
        %1669 = vmatprep.subr.mxu0 0.0
        %1670 = vmatpush1.msra.mxu0 0.0
        %1671 = vmatprep.subr.mxu0 0.0
        %1672 = vmatpush1.msra.mxu0 0.0
        %1673 = vmatprep.subr.mxu0 0.0
        %1674 = vmatpush1.msra.mxu0 0.0
        %1675 = vmatprep.subr.mxu0 0.0
        %1676 = vmatpush1.msra.mxu0 0.0
        %1677 = vmatprep.subr.mxu0 0.0
        %1678 = vmatpush1.msra.mxu0 0.0
        %1679 = vmatprep.subr.mxu0 0.0
        %1680 = vmatpush1.msra.mxu0 0.0
        %1681 = vmatprep.subr.mxu0 0.0
        %1682 = vmatpush1.msra.mxu0 0.0
        %1683 = vmatprep.subr.mxu0 0.0
        %1684 = vmatpush1.msra.mxu0 0.0
        %1685 = vmatprep.subr.mxu0 0.0
        %1686 = vmatpush1.msra.mxu0 0.0
        %1687 = vmatprep.subr.mxu0 0.0
        %1688 = vmatpush1.msra.mxu0 0.0
        %1689 = vmatprep.subr.mxu0 0.0
        %1690 = vmatpush1.msra.mxu0 0.0
        %1691 = vmatprep.subr.mxu0 0.0
        %1692 = vmatpush1.msra.mxu0 0.0
        %1693 = vmatprep.subr.mxu0 0.0
        %1694 = vmatpush1.msra.mxu0 0.0
        %1695 = vmatprep.subr.mxu0 0.0
        %1696 = vmatpush1.msra.mxu0 0.0
        %1697 = vmatprep.subr.mxu0 0.0
        %1698 = vmatpush1.msra.mxu0 0.0
        %1699 = vmatprep.subr.mxu0 0.0
        %1700 = vmatpush1.msra.mxu0 0.0
        %1701 = vmatprep.subr.mxu0 0.0
        %1702 = vmatpush1.msra.mxu0 0.0
        %1703 = vmatprep.subr.mxu0 0.0
        %1704 = vmatpush1.msra.mxu0 0.0
        %1705 = vmatprep.mubr.f32.mxu0 0.0
        %1706 = vmatmul.mubr.f32.gmra.mrb[0].mxu0 %v1636
        %v1707 = vpop.f32.mrb[0].mxu0
        %v1708 = vadd.f32 0.0, %v1707
        %v1709 = vpop.f32.mrb[0].mxu0
        %v1710 = vadd.f32 0.0, %v1709
        %1711 = vmatprep.mubr.f32.mxu0 0.0
        %1712 = vmatmul.mubr.f32.gmra.mrb[0].mxu0 %v1639
        %v1713 = vpop.f32.mrb[0].mxu0
        %v1714 = vadd.f32 0.0, %v1713
        %v1715 = vpop.f32.mrb[0].mxu0
        %v1716 = vadd.f32 0.0, %v1715
        %1717 = vdwg.mxu0
        %1718 = vmatprep.subr.mxu0 %v1448
        %1719 = vmatpush1.msra.mxu0 %v1447
        %1720 = vmatprep.subr.mxu0 %v1452
        %1721 = vmatpush1.msra.mxu0 %v1451
        %1722 = vmatprep.subr.mxu0 %v1456
        %1723 = vmatpush1.msra.mxu0 %v1455
        %1724 = vmatprep.subr.mxu0 0.0
        %1725 = vmatpush1.msra.mxu0 0.0
        %1726 = vmatprep.subr.mxu0 0.0
        %1727 = vmatpush1.msra.mxu0 0.0
        %1728 = vmatprep.subr.mxu0 0.0
        %1729 = vmatpush1.msra.mxu0 0.0
        %1730 = vmatprep.subr.mxu0 0.0
        %1731 = vmatpush1.msra.mxu0 0.0
        %1732 = vmatprep.subr.mxu0 0.0
        %1733 = vmatpush1.msra.mxu0 0.0
        %1734 = vmatprep.subr.mxu0 0.0
        %1735 = vmatpush1.msra.mxu0 0.0
        %1736 = vmatprep.subr.mxu0 0.0
        %1737 = vmatpush1.msra.mxu0 0.0
        %1738 = vmatprep.subr.mxu0 0.0
        %1739 = vmatpush1.msra.mxu0 0.0
        %1740 = vmatprep.subr.mxu0 0.0
        %1741 = vmatpush1.msra.mxu0 0.0
        %1742 = vmatprep.subr.mxu0 0.0
        %1743 = vmatpush1.msra.mxu0 0.0
        %1744 = vmatprep.subr.mxu0 0.0
        %1745 = vmatpush1.msra.mxu0 0.0
        %1746 = vmatprep.subr.mxu0 0.0
        %1747 = vmatpush1.msra.mxu0 0.0
        %1748 = vmatprep.subr.mxu0 0.0
        %1749 = vmatpush1.msra.mxu0 0.0
        %1750 = vmatprep.subr.mxu0 0.0
        %1751 = vmatpush1.msra.mxu0 0.0
        %1752 = vmatprep.subr.mxu0 0.0
        %1753 = vmatpush1.msra.mxu0 0.0
        %1754 = vmatprep.subr.mxu0 0.0
        %1755 = vmatpush1.msra.mxu0 0.0
        %1756 = vmatprep.subr.mxu0 0.0
        %1757 = vmatpush1.msra.mxu0 0.0
        %1758 = vmatprep.subr.mxu0 0.0
        %1759 = vmatpush1.msra.mxu0 0.0
        %1760 = vmatprep.subr.mxu0 0.0
        %1761 = vmatpush1.msra.mxu0 0.0
        %1762 = vmatprep.subr.mxu0 0.0
        %1763 = vmatpush1.msra.mxu0 0.0
        %1764 = vmatprep.subr.mxu0 0.0
        %1765 = vmatpush1.msra.mxu0 0.0
        %1766 = vmatprep.subr.mxu0 0.0
        %1767 = vmatpush1.msra.mxu0 0.0
        %1768 = vmatprep.subr.mxu0 0.0
        %1769 = vmatpush1.msra.mxu0 0.0
        %1770 = vmatprep.subr.mxu0 0.0
        %1771 = vmatpush1.msra.mxu0 0.0
        %1772 = vmatprep.subr.mxu0 0.0
        %1773 = vmatpush1.msra.mxu0 0.0
        %1774 = vmatprep.subr.mxu0 0.0
        %1775 = vmatpush1.msra.mxu0 0.0
        %1776 = vmatprep.subr.mxu0 0.0
        %1777 = vmatpush1.msra.mxu0 0.0
        %1778 = vmatprep.subr.mxu0 0.0
        %1779 = vmatpush1.msra.mxu0 0.0
        %1780 = vmatprep.subr.mxu0 0.0
        %1781 = vmatpush1.msra.mxu0 0.0
        %1782 = vmatprep.mubr.f32.mxu0 0.0
        %1783 = vmatmul.mubr.f32.gmra.mrb[0].mxu0 %v1636
        %v1784 = vpop.f32.mrb[0].mxu0
        %v1785 = vadd.f32 0.0, %v1784
        %v1786 = vpop.f32.mrb[0].mxu0
        %v1787 = vadd.f32 0.0, %v1786
        %1788 = vmatprep.mubr.f32.mxu0 0.0
        %1789 = vmatmul.mubr.f32.gmra.mrb[0].mxu0 %v1639
        %v1790 = vpop.f32.mrb[0].mxu0
        %v1791 = vadd.f32 0.0, %v1790
        %v1792 = vpop.f32.mrb[0].mxu0
        %v1793 = vadd.f32 0.0, %v1792
        %1794 = vdwg.mxu0
        %v1795 = vmax.f32 %v1548, %v1708
        %v1796 = vmax.f32 %v1550, %v1710
        %v1797 = vmax.f32 %v1625, %v1785
        %v1798 = vmax.f32 %v1627, %v1787
        %v1799 = vmax.f32 %v1554, %v1714
        %v1800 = vmax.f32 %v1556, %v1716
        %v1801 = vmax.f32 %v1631, %v1791
        %v1802 = vmax.f32 %v1633, %v1793
        %1811 = vrot.lane.b32.xlu0 %v1795, 108
        %v1812 = vpop.permute.xlu0 %1811
        %1813 = vrot.lane.b32.xlu0 %v1796, 108
        %v1814 = vpop.permute.xlu0 %1813
        %1815 = vrot.lane.b32.xlu0 %v1797, 108
        %v1816 = vpop.permute.xlu0 %1815
        %1817 = vrot.lane.b32.xlu0 %v1798, 108
        %v1818 = vpop.permute.xlu0 %1817
        %1819 = vrot.lane.b32.xlu0 %v1799, 108
        %v1820 = vpop.permute.xlu0 %1819
        %1821 = vrot.lane.b32.xlu0 %v1800, 108
        %v1822 = vpop.permute.xlu0 %1821
        %1823 = vrot.lane.b32.xlu0 %v1801, 108
        %v1824 = vpop.permute.xlu0 %1823
        %1825 = vrot.lane.b32.xlu0 %v1802, 108
        %v1826 = vpop.permute.xlu0 %1825
        %vm1827 = vcmask 883712
        %v1828 = vsel %vm1827, %v1812, %v1814
        %v1829 = vsel %vm1827, %v1814, %v1816
        %v1830 = vsel %vm1827, %v1816, %v1818
        %v1831 = vsel %vm1827, %v1820, %v1822
        %v1832 = vsel %vm1827, %v1822, %v1824
        %v1833 = vsel %vm1827, %v1824, %v1826
        %v1842 = vmax.f32 %v1795, %v1828
        %v1843 = vmax.f32 %v1796, %v1829
        %v1844 = vmax.f32 %v1797, %v1830
        %v1845 = vmax.f32 %v1798, %v1818
        %v1846 = vmax.f32 %v1799, %v1831
        %v1847 = vmax.f32 %v1800, %v1832
        %v1848 = vmax.f32 %v1801, %v1833
        %v1849 = vmax.f32 %v1802, %v1826
        %v1850 = vld [vmem:[%s3] sm:$0xff]
        %v1851 = vld [vmem:[%s3 + $0x8] sm:$0xff]
        %v1852 = vld [vmem:[%s3 + $0x10] sm:$0xff]
        %v1853 = vld [vmem:[%s3 + $0x18] sm:$0xff]
        %v1854 = vld [vmem:[%s3 + $0x20] sm:$0xff]
        %v1855 = vld [vmem:[%s3 + $0x28] sm:$0xff]
        %v1856 = vld [vmem:[%s3 + $0x30] sm:$0xff]
        %v1857 = vld [vmem:[%s3 + $0x38] sm:$0xff]
        %v1858 = vld [vmem:[%s3 + $0x40] sm:$0xff]
        %v1859 = vld [vmem:[%s3 + $0x48] sm:$0xff]
        %v1860 = vld [vmem:[%s3 + $0x50] sm:$0xff]
        %v1861 = vld [vmem:[%s3 + $0x58] sm:$0xff]
        %v1862 = vld [vmem:[%s3 + $0x60] sm:$0xff]
        %v1863 = vld [vmem:[%s3 + $0x68] sm:$0xff]
        %v1864 = vld [vmem:[%s3 + $0x70] sm:$0xff]
        %v1865 = vld [vmem:[%s3 + $0x78] sm:$0xff]
        %v1866 = vld [vmem:[%s3 + $0x80] sm:$0xff]
        %v1867 = vld [vmem:[%s3 + $0x88] sm:$0xff]
        %v1868 = vld [vmem:[%s3 + $0x90] sm:$0xff]
        %v1869 = vld [vmem:[%s3 + $0x98] sm:$0xff]
        %v1870 = vld [vmem:[%s3 + $0xa0] sm:$0xff]
        %v1871 = vld [vmem:[%s3 + $0xa8] sm:$0xff]
        %v1872 = vld [vmem:[%s3 + $0xb0] sm:$0xff]
        %v1873 = vld [vmem:[%s3 + $0xb8] sm:$0xff]
        %v1874 = vld [vmem:[%s3 + $0xc0] sm:$0xff]
        %v1875 = vld [vmem:[%s3 + $0xc8] sm:$0xff]
        %v1876 = vld [vmem:[%s3 + $0xd0] sm:$0xff]
        %v1877 = vld [vmem:[%s3 + $0xd8] sm:$0xff]
        %v1878 = vld [vmem:[%s3 + $0xe0] sm:$0xff]
        %v1879 = vld [vmem:[%s3 + $0xe8] sm:$0xff]
        %v1880 = vld [vmem:[%s3 + $0xf0] sm:$0xff]
        %v1881 = vld [vmem:[%s3 + $0xf8] sm:$0xff]
        %v1882 = vld [vmem:[%s3 + $0x100] sm:$0xff]
        %v1883 = vld [vmem:[%s3 + $0x108] sm:$0xff]
        %v1884 = vld [vmem:[%s3 + $0x110] sm:$0xff]
        %v1885 = vld [vmem:[%s3 + $0x118] sm:$0xff]
        %v1886 = vld [vmem:[%s3 + $0x120] sm:$0xff]
        %v1887 = vld [vmem:[%s3 + $0x128] sm:$0xff]
        %v1888 = vld [vmem:[%s3 + $0x130] sm:$0xff]
        %v1889 = vld [vmem:[%s3 + $0x138] sm:$0xff]
        %v1890 = vld [vmem:[%s3 + $0x140] sm:$0xff]
        %v1891 = vld [vmem:[%s3 + $0x148] sm:$0xff]
        %v1892 = vld [vmem:[%s3 + $0x150] sm:$0xff]
        %v1893 = vld [vmem:[%s3 + $0x158] sm:$0xff]
        %v1894 = vld [vmem:[%s3 + $0x160] sm:$0xff]
        %v1895 = vld [vmem:[%s3 + $0x168] sm:$0xff]
        %v1896 = vld [vmem:[%s3 + $0x170] sm:$0xff]
        %v1897 = vld [vmem:[%s3 + $0x178] sm:$0xff]
        %v1898 = vld [vmem:[%s3 + $0x180] sm:$0xff]
        %v1899 = vld [vmem:[%s3 + $0x188] sm:$0xff]
        %v1900 = vld [vmem:[%s3 + $0x190] sm:$0xff]
        %v1901 = vld [vmem:[%s3 + $0x198] sm:$0xff]
        %v1902 = vld [vmem:[%s3 + $0x1a0] sm:$0xff]
        %v1903 = vld [vmem:[%s3 + $0x1a8] sm:$0xff]
        %v1904 = vld [vmem:[%s3 + $0x1b0] sm:$0xff]
        %v1905 = vld [vmem:[%s3 + $0x1b8] sm:$0xff]
        %v1906 = vld [vmem:[%s3 + $0x1c0] sm:$0xff]
        %v1907 = vld [vmem:[%s3 + $0x1c8] sm:$0xff]
        %v1908 = vld [vmem:[%s3 + $0x1d0] sm:$0xff]
        %v1909 = vld [vmem:[%s3 + $0x1d8] sm:$0xff]
        %v1910 = vld [vmem:[%s3 + $0x1e0] sm:$0xff]
        %v1911 = vld [vmem:[%s3 + $0x1e8] sm:$0xff]
        %v1912 = vld [vmem:[%s3 + $0x1f0] sm:$0xff]
        %v1913 = vld [vmem:[%s3 + $0x1f8] sm:$0xff]
        %v1914 = vld [vmem:[%s3 + $0x200] sm:$0xff]
        %v1915 = vld [vmem:[%s3 + $0x208] sm:$0xff]
        %v1916 = vld [vmem:[%s3 + $0x210] sm:$0xff]
        %v1917 = vld [vmem:[%s3 + $0x218] sm:$0xff]
        %v1918 = vld [vmem:[%s3 + $0x220] sm:$0xff]
        %v1919 = vld [vmem:[%s3 + $0x228] sm:$0xff]
        %v1920 = vld [vmem:[%s3 + $0x230] sm:$0xff]
        %v1921 = vld [vmem:[%s3 + $0x238] sm:$0xff]
        %v1922 = vld [vmem:[%s3 + $0x240] sm:$0xff]
        %v1923 = vld [vmem:[%s3 + $0x248] sm:$0xff]
        %v1924 = vld [vmem:[%s3 + $0x250] sm:$0xff]
        %v1925 = vld [vmem:[%s3 + $0x258] sm:$0xff]
        %v1926 = vld [vmem:[%s3 + $0x260] sm:$0xff]
        %v1927 = vld [vmem:[%s3 + $0x268] sm:$0xff]
        %v1928 = vld [vmem:[%s3 + $0x270] sm:$0xff]
        %v1929 = vld [vmem:[%s3 + $0x278] sm:$0xff]
        %v1930 = vld [vmem:[%s3 + $0x280] sm:$0xff]
        %v1931 = vld [vmem:[%s3 + $0x288] sm:$0xff]
        %v1932 = vld [vmem:[%s3 + $0x290] sm:$0xff]
        %v1933 = vld [vmem:[%s3 + $0x298] sm:$0xff]
        %v1934 = vld [vmem:[%s3 + $0x2a0] sm:$0xff]
        %v1935 = vld [vmem:[%s3 + $0x2a8] sm:$0xff]
        %v1936 = vld [vmem:[%s3 + $0x2b0] sm:$0xff]
        %v1937 = vld [vmem:[%s3 + $0x2b8] sm:$0xff]
        %v1938 = vld [vmem:[%s3 + $0x2c0] sm:$0xff]
        %v1939 = vld [vmem:[%s3 + $0x2c8] sm:$0xff]
        %v1940 = vld [vmem:[%s3 + $0x2d0] sm:$0xff]
        %v1941 = vld [vmem:[%s3 + $0x2d8] sm:$0xff]
        %v1942 = vld [vmem:[%s3 + $0x2e0] sm:$0xff]
        %v1943 = vld [vmem:[%s3 + $0x2e8] sm:$0xff]
        %v1944 = vld [vmem:[%s3 + $0x2f0] sm:$0xff]
        %v1945 = vld [vmem:[%s3 + $0x2f8] sm:$0xff]
        %v1946 = vld [vmem:[%s3 + $0x300] sm:$0xff]
        %v1947 = vld [vmem:[%s3 + $0x308] sm:$0xff]
        %v1948 = vld [vmem:[%s3 + $0x310] sm:$0xff]
        %v1949 = vld [vmem:[%s3 + $0x318] sm:$0xff]
        %v1950 = vld [vmem:[%s3 + $0x320] sm:$0xff]
        %v1951 = vld [vmem:[%s3 + $0x328] sm:$0xff]
        %v1952 = vld [vmem:[%s3 + $0x330] sm:$0xff]
        %v1953 = vld [vmem:[%s3 + $0x338] sm:$0xff]
        %v1954 = vld [vmem:[%s3 + $0x340] sm:$0xff]
        %v1955 = vld [vmem:[%s3 + $0x348] sm:$0xff]
        %v1956 = vld [vmem:[%s3 + $0x350] sm:$0xff]
        %v1957 = vld [vmem:[%s3 + $0x358] sm:$0xff]
        %v1958 = vld [vmem:[%s3 + $0x360] sm:$0xff]
        %v1959 = vld [vmem:[%s3 + $0x368] sm:$0xff]
        %v1960 = vld [vmem:[%s3 + $0x370] sm:$0xff]
        %v1961 = vld [vmem:[%s3 + $0x378] sm:$0xff]
        %v1962 = vld [vmem:[%s3 + $0x380] sm:$0xff]
        %v1963 = vld [vmem:[%s3 + $0x388] sm:$0xff]
        %v1964 = vld [vmem:[%s3 + $0x390] sm:$0xff]
        %v1965 = vld [vmem:[%s3 + $0x398] sm:$0xff]
        %v1966 = vld [vmem:[%s3 + $0x3a0] sm:$0xff]
        %v1967 = vld [vmem:[%s3 + $0x3a8] sm:$0xff]
        %v1968 = vld [vmem:[%s3 + $0x3b0] sm:$0xff]
        %v1969 = vld [vmem:[%s3 + $0x3b8] sm:$0xff]
        %v1970 = vld [vmem:[%s3 + $0x3c0] sm:$0xff]
        %v1971 = vld [vmem:[%s3 + $0x3c8] sm:$0xff]
        %v1972 = vld [vmem:[%s3 + $0x3d0] sm:$0xff]
        %v1973 = vld [vmem:[%s3 + $0x3d8] sm:$0xff]
        %v1974 = vld [vmem:[%s3 + $0x3e0] sm:$0xff]
        %v1975 = vld [vmem:[%s3 + $0x3e8] sm:$0xff]
        %v1976 = vld [vmem:[%s3 + $0x3f0] sm:$0xff]
        %v1977 = vld [vmem:[%s3 + $0x3f8] sm:$0xff]
        %v1978 = vld [vmem:[%s3 + $0x400] sm:$0xff]
        %v1979 = vld [vmem:[%s3 + $0x408] sm:$0xff]
        %v1980 = vld [vmem:[%s3 + $0x410] sm:$0xff]
        %v1981 = vld [vmem:[%s3 + $0x418] sm:$0xff]
        %v1982 = vld [vmem:[%s3 + $0x420] sm:$0xff]
        %v1983 = vld [vmem:[%s3 + $0x428] sm:$0xff]
        %v1984 = vld [vmem:[%s3 + $0x430] sm:$0xff]
        %v1985 = vld [vmem:[%s3 + $0x438] sm:$0xff]
        %v1986 = vld [vmem:[%s3 + $0x440] sm:$0xff]
        %v1987 = vld [vmem:[%s3 + $0x448] sm:$0xff]
        %v1988 = vld [vmem:[%s3 + $0x450] sm:$0xff]
        %v1989 = vld [vmem:[%s3 + $0x458] sm:$0xff]
        %v1990 = vld [vmem:[%s3 + $0x460] sm:$0xff]
        %v1991 = vld [vmem:[%s3 + $0x468] sm:$0xff]
        %v1992 = vld [vmem:[%s3 + $0x470] sm:$0xff]
        %v1993 = vld [vmem:[%s3 + $0x478] sm:$0xff]
        %v1994 = vld [vmem:[%s3 + $0x480] sm:$0xff]
        %v1995 = vld [vmem:[%s3 + $0x488] sm:$0xff]
        %v1996 = vld [vmem:[%s3 + $0x490] sm:$0xff]
        %v1997 = vld [vmem:[%s3 + $0x498] sm:$0xff]
        %v1998 = vld [vmem:[%s3 + $0x4a0] sm:$0xff]
        %v1999 = vld [vmem:[%s3 + $0x4a8] sm:$0xff]
        %v2000 = vld [vmem:[%s3 + $0x4b0] sm:$0xff]
        %v2001 = vld [vmem:[%s3 + $0x4b8] sm:$0xff]
        %v2002 = vld [vmem:[%s3 + $0x4c0] sm:$0xff]
        %v2003 = vld [vmem:[%s3 + $0x4c8] sm:$0xff]
        %v2004 = vld [vmem:[%s3 + $0x4d0] sm:$0xff]
        %v2005 = vld [vmem:[%s3 + $0x4d8] sm:$0xff]
        %v2006 = vld [vmem:[%s3 + $0x4e0] sm:$0xff]
        %v2007 = vld [vmem:[%s3 + $0x4e8] sm:$0xff]
        %v2008 = vld [vmem:[%s3 + $0x4f0] sm:$0xff]
        %v2009 = vld [vmem:[%s3 + $0x4f8] sm:$0xff]
        %v2010 = vld [vmem:[%s3 + $0x500] sm:$0xff]
        %v2011 = vld [vmem:[%s3 + $0x508] sm:$0xff]
        %v2012 = vld [vmem:[%s3 + $0x510] sm:$0xff]
        %v2013 = vld [vmem:[%s3 + $0x518] sm:$0xff]
        %v2014 = vld [vmem:[%s3 + $0x520] sm:$0xff]
        %v2015 = vld [vmem:[%s3 + $0x528] sm:$0xff]
        %v2016 = vld [vmem:[%s3 + $0x530] sm:$0xff]
        %v2017 = vld [vmem:[%s3 + $0x538] sm:$0xff]
        %v2018 = vld [vmem:[%s3 + $0x540] sm:$0xff]
        %v2019 = vld [vmem:[%s3 + $0x548] sm:$0xff]
        %v2020 = vld [vmem:[%s3 + $0x550] sm:$0xff]
        %v2021 = vld [vmem:[%s3 + $0x558] sm:$0xff]
        %v2022 = vld [vmem:[%s3 + $0x560] sm:$0xff]
        %v2023 = vld [vmem:[%s3 + $0x568] sm:$0xff]
        %v2024 = vld [vmem:[%s3 + $0x570] sm:$0xff]
        %v2025 = vld [vmem:[%s3 + $0x578] sm:$0xff]
        %v2026 = vld [vmem:[%s3 + $0x580] sm:$0xff]
        %v2027 = vld [vmem:[%s3 + $0x588] sm:$0xff]
        %v2028 = vld [vmem:[%s3 + $0x590] sm:$0xff]
        %v2029 = vld [vmem:[%s3 + $0x598] sm:$0xff]
        %v2030 = vld [vmem:[%s3 + $0x5a0] sm:$0xff]
        %v2031 = vld [vmem:[%s3 + $0x5a8] sm:$0xff]
        %v2032 = vld [vmem:[%s3 + $0x5b0] sm:$0xff]
        %v2033 = vld [vmem:[%s3 + $0x5b8] sm:$0xff]
        %v2034 = vld [vmem:[%s3 + $0x5c0] sm:$0xff]
        %v2035 = vld [vmem:[%s3 + $0x5c8] sm:$0xff]
        %v2036 = vld [vmem:[%s3 + $0x5d0] sm:$0xff]
        %v2037 = vld [vmem:[%s3 + $0x5d8] sm:$0xff]
        %v2038 = vld [vmem:[%s3 + $0x5e0] sm:$0xff]
        %v2039 = vld [vmem:[%s3 + $0x5e8] sm:$0xff]
        %v2040 = vld [vmem:[%s3 + $0x5f0] sm:$0xff]
        %v2041 = vld [vmem:[%s3 + $0x5f8] sm:$0xff]
        %v2042 = vld [vmem:[%s3 + $0x600] sm:$0xff]
        %v2043 = vld [vmem:[%s3 + $0x608] sm:$0xff]
        %v2044 = vld [vmem:[%s3 + $0x610] sm:$0xff]
        %v2045 = vld [vmem:[%s3 + $0x618] sm:$0xff]
        %v2046 = vld [vmem:[%s3 + $0x620] sm:$0xff]
        %v2047 = vld [vmem:[%s3 + $0x628] sm:$0xff]
        %v2048 = vld [vmem:[%s3 + $0x630] sm:$0xff]
        %v2049 = vld [vmem:[%s3 + $0x638] sm:$0xff]
        %v2050 = vld [vmem:[%s3 + $0x640] sm:$0xff]
        %v2051 = vld [vmem:[%s3 + $0x648] sm:$0xff]
        %v2052 = vld [vmem:[%s3 + $0x650] sm:$0xff]
        %v2053 = vld [vmem:[%s3 + $0x658] sm:$0xff]
        %v2054 = vld [vmem:[%s3 + $0x660] sm:$0xff]
        %v2055 = vld [vmem:[%s3 + $0x668] sm:$0xff]
        %v2056 = vld [vmem:[%s3 + $0x670] sm:$0xff]
        %v2057 = vld [vmem:[%s3 + $0x678] sm:$0xff]
        %v2058 = vld [vmem:[%s3 + $0x680] sm:$0xff]
        %v2059 = vld [vmem:[%s3 + $0x688] sm:$0xff]
        %v2060 = vld [vmem:[%s3 + $0x690] sm:$0xff]
        %v2061 = vld [vmem:[%s3 + $0x698] sm:$0xff]
        %v2062 = vld [vmem:[%s3 + $0x6a0] sm:$0xff]
        %v2063 = vld [vmem:[%s3 + $0x6a8] sm:$0xff]
        %v2064 = vld [vmem:[%s3 + $0x6b0] sm:$0xff]
        %v2065 = vld [vmem:[%s3 + $0x6b8] sm:$0xff]
        %v2066 = vld [vmem:[%s3 + $0x6c0] sm:$0xff]
        %v2067 = vld [vmem:[%s3 + $0x6c8] sm:$0xff]
        %v2068 = vld [vmem:[%s3 + $0x6d0] sm:$0xff]
        %v2069 = vld [vmem:[%s3 + $0x6d8] sm:$0xff]
        %v2070 = vld [vmem:[%s3 + $0x6e0] sm:$0xff]
        %v2071 = vld [vmem:[%s3 + $0x6e8] sm:$0xff]
        %v2072 = vld [vmem:[%s3 + $0x6f0] sm:$0xff]
        %v2073 = vld [vmem:[%s3 + $0x6f8] sm:$0xff]
        %v2074 = vld [vmem:[%s3 + $0x700] sm:$0xff]
        %v2075 = vld [vmem:[%s3 + $0x708] sm:$0xff]
        %v2076 = vld [vmem:[%s3 + $0x710] sm:$0xff]
        %v2077 = vld [vmem:[%s3 + $0x718] sm:$0xff]
        %v2078 = vld [vmem:[%s3 + $0x720] sm:$0xf]
        %v2079 = vld [vmem:[%s3 + $0x728] sm:$0xf]
        %v2080 = vld [vmem:[%s3 + $0x730] sm:$0xf]
        %v2081 = vld [vmem:[%s3 + $0x738] sm:$0xf]
        %s2082 = scalar_lea.vmem %s3, 1856
        %v2083 = vld [vmem:[%s2082] sm:$0xff]
        %v2084 = vld [vmem:[%s2082 + $0x8] sm:$0xff]
        %v2085 = vld [vmem:[%s2082 + $0x10] sm:$0xff]
        %v2086 = vld [vmem:[%s2082 + $0x18] sm:$0xff]
        %v2087 = vld [vmem:[%s2082 + $0x20] sm:$0xff]
        %v2088 = vld [vmem:[%s2082 + $0x28] sm:$0xff]
        %v2089 = vld [vmem:[%s2082 + $0x30] sm:$0xff]
        %v2090 = vld [vmem:[%s2082 + $0x38] sm:$0xff]
        %v2091 = vld [vmem:[%s2082 + $0x40] sm:$0xff]
        %v2092 = vld [vmem:[%s2082 + $0x48] sm:$0xff]
        %v2093 = vld [vmem:[%s2082 + $0x50] sm:$0xff]
        %v2094 = vld [vmem:[%s2082 + $0x58] sm:$0xff]
        %v2095 = vld [vmem:[%s2082 + $0x60] sm:$0xff]
        %v2096 = vld [vmem:[%s2082 + $0x68] sm:$0xff]
        %v2097 = vld [vmem:[%s2082 + $0x70] sm:$0xff]
        %v2098 = vld [vmem:[%s2082 + $0x78] sm:$0xff]
        %v2099 = vld [vmem:[%s2082 + $0x80] sm:$0xff]
        %v2100 = vld [vmem:[%s2082 + $0x88] sm:$0xff]
        %v2101 = vld [vmem:[%s2082 + $0x90] sm:$0xff]
        %v2102 = vld [vmem:[%s2082 + $0x98] sm:$0xff]
        %v2103 = vld [vmem:[%s2082 + $0xa0] sm:$0xff]
        %v2104 = vld [vmem:[%s2082 + $0xa8] sm:$0xff]
        %v2105 = vld [vmem:[%s2082 + $0xb0] sm:$0xff]
        %v2106 = vld [vmem:[%s2082 + $0xb8] sm:$0xff]
        %v2107 = vld [vmem:[%s2082 + $0xc0] sm:$0xff]
        %v2108 = vld [vmem:[%s2082 + $0xc8] sm:$0xff]
        %v2109 = vld [vmem:[%s2082 + $0xd0] sm:$0xff]
        %v2110 = vld [vmem:[%s2082 + $0xd8] sm:$0xff]
        %v2111 = vld [vmem:[%s2082 + $0xe0] sm:$0xff]
        %v2112 = vld [vmem:[%s2082 + $0xe8] sm:$0xff]
        %v2113 = vld [vmem:[%s2082 + $0xf0] sm:$0xff]
        %v2114 = vld [vmem:[%s2082 + $0xf8] sm:$0xff]
        %v2115 = vld [vmem:[%s2082 + $0x100] sm:$0xff]
        %v2116 = vld [vmem:[%s2082 + $0x108] sm:$0xff]
        %v2117 = vld [vmem:[%s2082 + $0x110] sm:$0xff]
        %v2118 = vld [vmem:[%s2082 + $0x118] sm:$0xff]
        %v2119 = vld [vmem:[%s2082 + $0x120] sm:$0xff]
        %v2120 = vld [vmem:[%s2082 + $0x128] sm:$0xff]
        %v2121 = vld [vmem:[%s2082 + $0x130] sm:$0xff]
        %v2122 = vld [vmem:[%s2082 + $0x138] sm:$0xff]
        %v2123 = vld [vmem:[%s2082 + $0x140] sm:$0xff]
        %v2124 = vld [vmem:[%s2082 + $0x148] sm:$0xff]
        %v2125 = vld [vmem:[%s2082 + $0x150] sm:$0xff]
        %v2126 = vld [vmem:[%s2082 + $0x158] sm:$0xff]
        %v2127 = vld [vmem:[%s2082 + $0x160] sm:$0xff]
        %v2128 = vld [vmem:[%s2082 + $0x168] sm:$0xff]
        %v2129 = vld [vmem:[%s2082 + $0x170] sm:$0xff]
        %v2130 = vld [vmem:[%s2082 + $0x178] sm:$0xff]
        %v2131 = vld [vmem:[%s2082 + $0x180] sm:$0xff]
        %v2132 = vld [vmem:[%s2082 + $0x188] sm:$0xff]
        %v2133 = vld [vmem:[%s2082 + $0x190] sm:$0xff]
        %v2134 = vld [vmem:[%s2082 + $0x198] sm:$0xff]
        %v2135 = vld [vmem:[%s2082 + $0x1a0] sm:$0xff]
        %v2136 = vld [vmem:[%s2082 + $0x1a8] sm:$0xff]
        %v2137 = vld [vmem:[%s2082 + $0x1b0] sm:$0xff]
        %v2138 = vld [vmem:[%s2082 + $0x1b8] sm:$0xff]
        %v2139 = vld [vmem:[%s2082 + $0x1c0] sm:$0xff]
        %v2140 = vld [vmem:[%s2082 + $0x1c8] sm:$0xff]
        %v2141 = vld [vmem:[%s2082 + $0x1d0] sm:$0xff]
        %v2142 = vld [vmem:[%s2082 + $0x1d8] sm:$0xff]
        %v2143 = vld [vmem:[%s2082 + $0x1e0] sm:$0xff]
        %v2144 = vld [vmem:[%s2082 + $0x1e8] sm:$0xff]
        %v2145 = vld [vmem:[%s2082 + $0x1f0] sm:$0xff]
        %v2146 = vld [vmem:[%s2082 + $0x1f8] sm:$0xff]
        %v2147 = vld [vmem:[%s2082 + $0x200] sm:$0xff]
        %v2148 = vld [vmem:[%s2082 + $0x208] sm:$0xff]
        %v2149 = vld [vmem:[%s2082 + $0x210] sm:$0xff]
        %v2150 = vld [vmem:[%s2082 + $0x218] sm:$0xff]
        %v2151 = vld [vmem:[%s2082 + $0x220] sm:$0xff]
        %v2152 = vld [vmem:[%s2082 + $0x228] sm:$0xff]
        %v2153 = vld [vmem:[%s2082 + $0x230] sm:$0xff]
        %v2154 = vld [vmem:[%s2082 + $0x238] sm:$0xff]
        %v2155 = vld [vmem:[%s2082 + $0x240] sm:$0xff]
        %v2156 = vld [vmem:[%s2082 + $0x248] sm:$0xff]
        %v2157 = vld [vmem:[%s2082 + $0x250] sm:$0xff]
        %v2158 = vld [vmem:[%s2082 + $0x258] sm:$0xff]
        %v2159 = vld [vmem:[%s2082 + $0x260] sm:$0xff]
        %v2160 = vld [vmem:[%s2082 + $0x268] sm:$0xff]
        %v2161 = vld [vmem:[%s2082 + $0x270] sm:$0xff]
        %v2162 = vld [vmem:[%s2082 + $0x278] sm:$0xff]
        %v2163 = vld [vmem:[%s2082 + $0x280] sm:$0xff]
        %v2164 = vld [vmem:[%s2082 + $0x288] sm:$0xff]
        %v2165 = vld [vmem:[%s2082 + $0x290] sm:$0xff]
        %v2166 = vld [vmem:[%s2082 + $0x298] sm:$0xff]
        %v2167 = vld [vmem:[%s2082 + $0x2a0] sm:$0xff]
        %v2168 = vld [vmem:[%s2082 + $0x2a8] sm:$0xff]
        %v2169 = vld [vmem:[%s2082 + $0x2b0] sm:$0xff]
        %v2170 = vld [vmem:[%s2082 + $0x2b8] sm:$0xff]
        %v2171 = vld [vmem:[%s2082 + $0x2c0] sm:$0xff]
        %v2172 = vld [vmem:[%s2082 + $0x2c8] sm:$0xff]
        %v2173 = vld [vmem:[%s2082 + $0x2d0] sm:$0xff]
        %v2174 = vld [vmem:[%s2082 + $0x2d8] sm:$0xff]
        %v2175 = vld [vmem:[%s2082 + $0x2e0] sm:$0xff]
        %v2176 = vld [vmem:[%s2082 + $0x2e8] sm:$0xff]
        %v2177 = vld [vmem:[%s2082 + $0x2f0] sm:$0xff]
        %v2178 = vld [vmem:[%s2082 + $0x2f8] sm:$0xff]
        %v2179 = vld [vmem:[%s2082 + $0x300] sm:$0xff]
        %v2180 = vld [vmem:[%s2082 + $0x308] sm:$0xff]
        %v2181 = vld [vmem:[%s2082 + $0x310] sm:$0xff]
        %v2182 = vld [vmem:[%s2082 + $0x318] sm:$0xff]
        %v2183 = vld [vmem:[%s2082 + $0x320] sm:$0xff]
        %v2184 = vld [vmem:[%s2082 + $0x328] sm:$0xff]
        %v2185 = vld [vmem:[%s2082 + $0x330] sm:$0xff]
        %v2186 = vld [vmem:[%s2082 + $0x338] sm:$0xff]
        %v2187 = vld [vmem:[%s2082 + $0x340] sm:$0xff]
        %v2188 = vld [vmem:[%s2082 + $0x348] sm:$0xff]
        %v2189 = vld [vmem:[%s2082 + $0x350] sm:$0xff]
        %v2190 = vld [vmem:[%s2082 + $0x358] sm:$0xff]
        %v2191 = vld [vmem:[%s2082 + $0x360] sm:$0xff]
        %v2192 = vld [vmem:[%s2082 + $0x368] sm:$0xff]
        %v2193 = vld [vmem:[%s2082 + $0x370] sm:$0xff]
        %v2194 = vld [vmem:[%s2082 + $0x378] sm:$0xff]
        %v2195 = vld [vmem:[%s2082 + $0x380] sm:$0xff]
        %v2196 = vld [vmem:[%s2082 + $0x388] sm:$0xff]
        %v2197 = vld [vmem:[%s2082 + $0x390] sm:$0xff]
        %v2198 = vld [vmem:[%s2082 + $0x398] sm:$0xff]
        %v2199 = vld [vmem:[%s2082 + $0x3a0] sm:$0xff]
        %v2200 = vld [vmem:[%s2082 + $0x3a8] sm:$0xff]
        %v2201 = vld [vmem:[%s2082 + $0x3b0] sm:$0xff]
        %v2202 = vld [vmem:[%s2082 + $0x3b8] sm:$0xff]
        %v2203 = vld [vmem:[%s2082 + $0x3c0] sm:$0xff]
        %v2204 = vld [vmem:[%s2082 + $0x3c8] sm:$0xff]
        %v2205 = vld [vmem:[%s2082 + $0x3d0] sm:$0xff]
        %v2206 = vld [vmem:[%s2082 + $0x3d8] sm:$0xff]
        %v2207 = vld [vmem:[%s2082 + $0x3e0] sm:$0xff]
        %v2208 = vld [vmem:[%s2082 + $0x3e8] sm:$0xff]
        %v2209 = vld [vmem:[%s2082 + $0x3f0] sm:$0xff]
        %v2210 = vld [vmem:[%s2082 + $0x3f8] sm:$0xff]
        %v2211 = vld [vmem:[%s2082 + $0x400] sm:$0xff]
        %v2212 = vld [vmem:[%s2082 + $0x408] sm:$0xff]
        %v2213 = vld [vmem:[%s2082 + $0x410] sm:$0xff]
        %v2214 = vld [vmem:[%s2082 + $0x418] sm:$0xff]
        %v2215 = vld [vmem:[%s2082 + $0x420] sm:$0xff]
        %v2216 = vld [vmem:[%s2082 + $0x428] sm:$0xff]
        %v2217 = vld [vmem:[%s2082 + $0x430] sm:$0xff]
        %v2218 = vld [vmem:[%s2082 + $0x438] sm:$0xff]
        %v2219 = vld [vmem:[%s2082 + $0x440] sm:$0xff]
        %v2220 = vld [vmem:[%s2082 + $0x448] sm:$0xff]
        %v2221 = vld [vmem:[%s2082 + $0x450] sm:$0xff]
        %v2222 = vld [vmem:[%s2082 + $0x458] sm:$0xff]
        %v2223 = vld [vmem:[%s2082 + $0x460] sm:$0xff]
        %v2224 = vld [vmem:[%s2082 + $0x468] sm:$0xff]
        %v2225 = vld [vmem:[%s2082 + $0x470] sm:$0xff]
        %v2226 = vld [vmem:[%s2082 + $0x478] sm:$0xff]
        %v2227 = vld [vmem:[%s2082 + $0x480] sm:$0xff]
        %v2228 = vld [vmem:[%s2082 + $0x488] sm:$0xff]
        %v2229 = vld [vmem:[%s2082 + $0x490] sm:$0xff]
        %v2230 = vld [vmem:[%s2082 + $0x498] sm:$0xff]
        %v2231 = vld [vmem:[%s2082 + $0x4a0] sm:$0xff]
        %v2232 = vld [vmem:[%s2082 + $0x4a8] sm:$0xff]
        %v2233 = vld [vmem:[%s2082 + $0x4b0] sm:$0xff]
        %v2234 = vld [vmem:[%s2082 + $0x4b8] sm:$0xff]
        %v2235 = vld [vmem:[%s2082 + $0x4c0] sm:$0xff]
        %v2236 = vld [vmem:[%s2082 + $0x4c8] sm:$0xff]
        %v2237 = vld [vmem:[%s2082 + $0x4d0] sm:$0xff]
        %v2238 = vld [vmem:[%s2082 + $0x4d8] sm:$0xff]
        %v2239 = vld [vmem:[%s2082 + $0x4e0] sm:$0xff]
        %v2240 = vld [vmem:[%s2082 + $0x4e8] sm:$0xff]
        %v2241 = vld [vmem:[%s2082 + $0x4f0] sm:$0xff]
        %v2242 = vld [vmem:[%s2082 + $0x4f8] sm:$0xff]
        %v2243 = vld [vmem:[%s2082 + $0x500] sm:$0xff]
        %v2244 = vld [vmem:[%s2082 + $0x508] sm:$0xff]
        %v2245 = vld [vmem:[%s2082 + $0x510] sm:$0xff]
        %v2246 = vld [vmem:[%s2082 + $0x518] sm:$0xff]
        %v2247 = vld [vmem:[%s2082 + $0x520] sm:$0xff]
        %v2248 = vld [vmem:[%s2082 + $0x528] sm:$0xff]
        %v2249 = vld [vmem:[%s2082 + $0x530] sm:$0xff]
        %v2250 = vld [vmem:[%s2082 + $0x538] sm:$0xff]
        %v2251 = vld [vmem:[%s2082 + $0x540] sm:$0xff]
        %v2252 = vld [vmem:[%s2082 + $0x548] sm:$0xff]
        %v2253 = vld [vmem:[%s2082 + $0x550] sm:$0xff]
        %v2254 = vld [vmem:[%s2082 + $0x558] sm:$0xff]
        %v2255 = vld [vmem:[%s2082 + $0x560] sm:$0xff]
        %v2256 = vld [vmem:[%s2082 + $0x568] sm:$0xff]
        %v2257 = vld [vmem:[%s2082 + $0x570] sm:$0xff]
        %v2258 = vld [vmem:[%s2082 + $0x578] sm:$0xff]
        %v2259 = vld [vmem:[%s2082 + $0x580] sm:$0xff]
        %v2260 = vld [vmem:[%s2082 + $0x588] sm:$0xff]
        %v2261 = vld [vmem:[%s2082 + $0x590] sm:$0xff]
        %v2262 = vld [vmem:[%s2082 + $0x598] sm:$0xff]
        %v2263 = vld [vmem:[%s2082 + $0x5a0] sm:$0xff]
        %v2264 = vld [vmem:[%s2082 + $0x5a8] sm:$0xff]
        %v2265 = vld [vmem:[%s2082 + $0x5b0] sm:$0xff]
        %v2266 = vld [vmem:[%s2082 + $0x5b8] sm:$0xff]
        %v2267 = vld [vmem:[%s2082 + $0x5c0] sm:$0xff]
        %v2268 = vld [vmem:[%s2082 + $0x5c8] sm:$0xff]
        %v2269 = vld [vmem:[%s2082 + $0x5d0] sm:$0xff]
        %v2270 = vld [vmem:[%s2082 + $0x5d8] sm:$0xff]
        %v2271 = vld [vmem:[%s2082 + $0x5e0] sm:$0xff]
        %v2272 = vld [vmem:[%s2082 + $0x5e8] sm:$0xff]
        %v2273 = vld [vmem:[%s2082 + $0x5f0] sm:$0xff]
        %v2274 = vld [vmem:[%s2082 + $0x5f8] sm:$0xff]
        %v2275 = vld [vmem:[%s2082 + $0x600] sm:$0xff]
        %v2276 = vld [vmem:[%s2082 + $0x608] sm:$0xff]
        %v2277 = vld [vmem:[%s2082 + $0x610] sm:$0xff]
        %v2278 = vld [vmem:[%s2082 + $0x618] sm:$0xff]
        %v2279 = vld [vmem:[%s2082 + $0x620] sm:$0xff]
        %v2280 = vld [vmem:[%s2082 + $0x628] sm:$0xff]
        %v2281 = vld [vmem:[%s2082 + $0x630] sm:$0xff]
        %v2282 = vld [vmem:[%s2082 + $0x638] sm:$0xff]
        %v2283 = vld [vmem:[%s2082 + $0x640] sm:$0xff]
        %v2284 = vld [vmem:[%s2082 + $0x648] sm:$0xff]
        %v2285 = vld [vmem:[%s2082 + $0x650] sm:$0xff]
        %v2286 = vld [vmem:[%s2082 + $0x658] sm:$0xff]
        %v2287 = vld [vmem:[%s2082 + $0x660] sm:$0xff]
        %v2288 = vld [vmem:[%s2082 + $0x668] sm:$0xff]
        %v2289 = vld [vmem:[%s2082 + $0x670] sm:$0xff]
        %v2290 = vld [vmem:[%s2082 + $0x678] sm:$0xff]
        %v2291 = vld [vmem:[%s2082 + $0x680] sm:$0xff]
        %v2292 = vld [vmem:[%s2082 + $0x688] sm:$0xff]
        %v2293 = vld [vmem:[%s2082 + $0x690] sm:$0xff]
        %v2294 = vld [vmem:[%s2082 + $0x698] sm:$0xff]
        %v2295 = vld [vmem:[%s2082 + $0x6a0] sm:$0xff]
        %v2296 = vld [vmem:[%s2082 + $0x6a8] sm:$0xff]
        %v2297 = vld [vmem:[%s2082 + $0x6b0] sm:$0xff]
        %v2298 = vld [vmem:[%s2082 + $0x6b8] sm:$0xff]
        %v2299 = vld [vmem:[%s2082 + $0x6c0] sm:$0xff]
        %v2300 = vld [vmem:[%s2082 + $0x6c8] sm:$0xff]
        %v2301 = vld [vmem:[%s2082 + $0x6d0] sm:$0xff]
        %v2302 = vld [vmem:[%s2082 + $0x6d8] sm:$0xff]
        %v2303 = vld [vmem:[%s2082 + $0x6e0] sm:$0xff]
        %v2304 = vld [vmem:[%s2082 + $0x6e8] sm:$0xff]
        %v2305 = vld [vmem:[%s2082 + $0x6f0] sm:$0xff]
        %v2306 = vld [vmem:[%s2082 + $0x6f8] sm:$0xff]
        %v2307 = vld [vmem:[%s2082 + $0x700] sm:$0xff]
        %v2308 = vld [vmem:[%s2082 + $0x708] sm:$0xff]
        %v2309 = vld [vmem:[%s2082 + $0x710] sm:$0xff]
        %v2310 = vld [vmem:[%s2082 + $0x718] sm:$0xff]
        %v2311 = vld [vmem:[%s2082 + $0x720] sm:$0xf]
        %v2312 = vld [vmem:[%s2082 + $0x728] sm:$0xf]
        %v2313 = vld [vmem:[%s2082 + $0x730] sm:$0xf]
        %v2314 = vld [vmem:[%s2082 + $0x738] sm:$0xf]
        %v2323 = vrot.slane %v1842, 1
        %v2324 = vrot.slane %v1846, 1
        %v2325 = vsel %vm371, %v2323, %v2324
        %v2326 = vrot.slane %v1843, 1
        %v2327 = vrot.slane %v1847, 1
        %v2328 = vsel %vm371, %v2326, %v2327
        %v2329 = vrot.slane %v1844, 1
        %v2330 = vrot.slane %v1848, 1
        %v2331 = vsel %vm371, %v2329, %v2330
        %v2332 = vrot.slane %v1845, 1
        %v2333 = vrot.slane %v1849, 1
        %v2334 = vsel %vm371, %v2332, %v2333
        %vm2338 = vcmask 621568
        %v2339 = vsel %vm2338, %v2334, 0
        %v2342 = vsel %vm386, %v2311, 0
        %v2345 = vsel %vm386, %v2312, 0
        %v2348 = vsel %vm386, %v2313, 0
        %v2351 = vsel %vm386, %v2314, 0
        %2353 = vmatprep.subr.mxu0 %v2084
        %2354 = vmatpush1.msra.mxu0 %v2083
        %2355 = vmatprep.subr.mxu0 %v2088
        %2356 = vmatpush1.msra.mxu0 %v2087
        %2357 = vmatprep.subr.mxu0 %v2092
        %2358 = vmatpush1.msra.mxu0 %v2091
        %2359 = vmatprep.subr.mxu0 %v2096
        %2360 = vmatpush1.msra.mxu0 %v2095
        %2361 = vmatprep.subr.mxu0 %v2100
        %2362 = vmatpush1.msra.mxu0 %v2099
        %2363 = vmatprep.subr.mxu0 %v2104
        %2364 = vmatpush1.msra.mxu0 %v2103
        %2365 = vmatprep.subr.mxu0 %v2108
        %2366 = vmatpush1.msra.mxu0 %v2107
        %2367 = vmatprep.subr.mxu0 %v2112
        %2368 = vmatpush1.msra.mxu0 %v2111
        %2369 = vmatprep.subr.mxu0 %v2116
        %2370 = vmatpush1.msra.mxu0 %v2115
        %2371 = vmatprep.subr.mxu0 %v2120
        %2372 = vmatpush1.msra.mxu0 %v2119
        %2373 = vmatprep.subr.mxu0 %v2124
        %2374 = vmatpush1.msra.mxu0 %v2123
        %2375 = vmatprep.subr.mxu0 %v2128
        %2376 = vmatpush1.msra.mxu0 %v2127
        %2377 = vmatprep.subr.mxu0 %v2132
        %2378 = vmatpush1.msra.mxu0 %v2131
        %2379 = vmatprep.subr.mxu0 %v2136
        %2380 = vmatpush1.msra.mxu0 %v2135
        %2381 = vmatprep.subr.mxu0 %v2140
        %2382 = vmatpush1.msra.mxu0 %v2139
        %2383 = vmatprep.subr.mxu0 %v2144
        %2384 = vmatpush1.msra.mxu0 %v2143
        %2385 = vmatprep.subr.mxu0 %v2148
        %2386 = vmatpush1.msra.mxu0 %v2147
        %2387 = vmatprep.subr.mxu0 %v2152
        %2388 = vmatpush1.msra.mxu0 %v2151
        %2389 = vmatprep.subr.mxu0 %v2156
        %2390 = vmatpush1.msra.mxu0 %v2155
        %2391 = vmatprep.subr.mxu0 %v2160
        %2392 = vmatpush1.msra.mxu0 %v2159
        %2393 = vmatprep.subr.mxu0 %v2164
        %2394 = vmatpush1.msra.mxu0 %v2163
        %2395 = vmatprep.subr.mxu0 %v2168
        %2396 = vmatpush1.msra.mxu0 %v2167
        %2397 = vmatprep.subr.mxu0 %v2172
        %2398 = vmatpush1.msra.mxu0 %v2171
        %2399 = vmatprep.subr.mxu0 %v2176
        %2400 = vmatpush1.msra.mxu0 %v2175
        %2401 = vmatprep.subr.mxu0 %v2180
        %2402 = vmatpush1.msra.mxu0 %v2179
        %2403 = vmatprep.subr.mxu0 %v2184
        %2404 = vmatpush1.msra.mxu0 %v2183
        %2405 = vmatprep.subr.mxu0 %v2188
        %2406 = vmatpush1.msra.mxu0 %v2187
        %2407 = vmatprep.subr.mxu0 %v2192
        %2408 = vmatpush1.msra.mxu0 %v2191
        %2409 = vmatprep.subr.mxu0 %v2196
        %2410 = vmatpush1.msra.mxu0 %v2195
        %2411 = vmatprep.subr.mxu0 %v2200
        %2412 = vmatpush1.msra.mxu0 %v2199
        %2413 = vmatprep.subr.mxu0 %v2204
        %2414 = vmatpush1.msra.mxu0 %v2203
        %2415 = vmatprep.subr.mxu0 %v2208
        %2416 = vmatpush1.msra.mxu0 %v2207
        %2417 = vmatprep.mubr.f32.mxu0 %v2328
        %2418 = vmatmul.mubr.f32.gmra.mrb[0].mxu0 %v2325
        %v2419 = vpop.f32.mrb[0].mxu0
        %v2420 = vadd.f32 0.0, %v2419
        %v2421 = vpop.f32.mrb[0].mxu0
        %v2422 = vadd.f32 0.0, %v2421
        %2423 = vdwg.mxu0
        %2424 = vmatprep.subr.mxu0 %v2212
        %2425 = vmatpush1.msra.mxu0 %v2211
        %2426 = vmatprep.subr.mxu0 %v2216
        %2427 = vmatpush1.msra.mxu0 %v2215
        %2428 = vmatprep.subr.mxu0 %v2220
        %2429 = vmatpush1.msra.mxu0 %v2219
        %2430 = vmatprep.subr.mxu0 %v2224
        %2431 = vmatpush1.msra.mxu0 %v2223
        %2432 = vmatprep.subr.mxu0 %v2228
        %2433 = vmatpush1.msra.mxu0 %v2227
        %2434 = vmatprep.subr.mxu0 %v2232
        %2435 = vmatpush1.msra.mxu0 %v2231
        %2436 = vmatprep.subr.mxu0 %v2236
        %2437 = vmatpush1.msra.mxu0 %v2235
        %2438 = vmatprep.subr.mxu0 %v2240
        %2439 = vmatpush1.msra.mxu0 %v2239
        %2440 = vmatprep.subr.mxu0 %v2244
        %2441 = vmatpush1.msra.mxu0 %v2243
        %2442 = vmatprep.subr.mxu0 %v2248
        %2443 = vmatpush1.msra.mxu0 %v2247
        %2444 = vmatprep.subr.mxu0 %v2252
        %2445 = vmatpush1.msra.mxu0 %v2251
        %2446 = vmatprep.subr.mxu0 %v2256
        %2447 = vmatpush1.msra.mxu0 %v2255
        %2448 = vmatprep.subr.mxu0 %v2260
        %2449 = vmatpush1.msra.mxu0 %v2259
        %2450 = vmatprep.subr.mxu0 %v2264
        %2451 = vmatpush1.msra.mxu0 %v2263
        %2452 = vmatprep.subr.mxu0 %v2268
        %2453 = vmatpush1.msra.mxu0 %v2267
        %2454 = vmatprep.subr.mxu0 %v2272
        %2455 = vmatpush1.msra.mxu0 %v2271
        %2456 = vmatprep.subr.mxu0 %v2276
        %2457 = vmatpush1.msra.mxu0 %v2275
        %2458 = vmatprep.subr.mxu0 %v2280
        %2459 = vmatpush1.msra.mxu0 %v2279
        %2460 = vmatprep.subr.mxu0 %v2284
        %2461 = vmatpush1.msra.mxu0 %v2283
        %2462 = vmatprep.subr.mxu0 %v2288
        %2463 = vmatpush1.msra.mxu0 %v2287
        %2464 = vmatprep.subr.mxu0 %v2292
        %2465 = vmatpush1.msra.mxu0 %v2291
        %2466 = vmatprep.subr.mxu0 %v2296
        %2467 = vmatpush1.msra.mxu0 %v2295
        %2468 = vmatprep.subr.mxu0 %v2300
        %2469 = vmatpush1.msra.mxu0 %v2299
        %2470 = vmatprep.subr.mxu0 %v2304
        %2471 = vmatpush1.msra.mxu0 %v2303
        %2472 = vmatprep.subr.mxu0 %v2308
        %2473 = vmatpush1.msra.mxu0 %v2307
        %2474 = vmatprep.subr.mxu0 %v2345
        %2475 = vmatpush1.msra.mxu0 %v2342
        %2476 = vmatprep.subr.mxu0 0.0
        %2477 = vmatpush1.msra.mxu0 0.0
        %2478 = vmatprep.subr.mxu0 0.0
        %2479 = vmatpush1.msra.mxu0 0.0
        %2480 = vmatprep.subr.mxu0 0.0
        %2481 = vmatpush1.msra.mxu0 0.0
        %2482 = vmatprep.subr.mxu0 0.0
        %2483 = vmatpush1.msra.mxu0 0.0
        %2484 = vmatprep.subr.mxu0 0.0
        %2485 = vmatpush1.msra.mxu0 0.0
        %2486 = vmatprep.subr.mxu0 0.0
        %2487 = vmatpush1.msra.mxu0 0.0
        %2488 = vmatprep.mubr.f32.mxu0 %v2339
        %2489 = vmatmul.mubr.f32.gmra.mrb[0].mxu0 %v2331
        %v2490 = vpop.f32.mrb[0].mxu0
        %v2491 = vadd.f32 %v2420, %v2490
        %v2492 = vpop.f32.mrb[0].mxu0
        %v2493 = vadd.f32 %v2422, %v2492
        %2494 = vdwg.mxu0
        %2495 = vmatprep.subr.mxu0 %v2086
        %2496 = vmatpush1.msra.mxu0 %v2085
        %2497 = vmatprep.subr.mxu0 %v2090
        %2498 = vmatpush1.msra.mxu0 %v2089
        %2499 = vmatprep.subr.mxu0 %v2094
        %2500 = vmatpush1.msra.mxu0 %v2093
        %2501 = vmatprep.subr.mxu0 %v2098
        %2502 = vmatpush1.msra.mxu0 %v2097
        %2503 = vmatprep.subr.mxu0 %v2102
        %2504 = vmatpush1.msra.mxu0 %v2101
        %2505 = vmatprep.subr.mxu0 %v2106
        %2506 = vmatpush1.msra.mxu0 %v2105
        %2507 = vmatprep.subr.mxu0 %v2110
        %2508 = vmatpush1.msra.mxu0 %v2109
        %2509 = vmatprep.subr.mxu0 %v2114
        %2510 = vmatpush1.msra.mxu0 %v2113
        %2511 = vmatprep.subr.mxu0 %v2118
        %2512 = vmatpush1.msra.mxu0 %v2117
        %2513 = vmatprep.subr.mxu0 %v2122
        %2514 = vmatpush1.msra.mxu0 %v2121
        %2515 = vmatprep.subr.mxu0 %v2126
        %2516 = vmatpush1.msra.mxu0 %v2125
        %2517 = vmatprep.subr.mxu0 %v2130
        %2518 = vmatpush1.msra.mxu0 %v2129
        %2519 = vmatprep.subr.mxu0 %v2134
        %2520 = vmatpush1.msra.mxu0 %v2133
        %2521 = vmatprep.subr.mxu0 %v2138
        %2522 = vmatpush1.msra.mxu0 %v2137
        %2523 = vmatprep.subr.mxu0 %v2142
        %2524 = vmatpush1.msra.mxu0 %v2141
        %2525 = vmatprep.subr.mxu0 %v2146
        %2526 = vmatpush1.msra.mxu0 %v2145
        %2527 = vmatprep.subr.mxu0 %v2150
        %2528 = vmatpush1.msra.mxu0 %v2149
        %2529 = vmatprep.subr.mxu0 %v2154
        %2530 = vmatpush1.msra.mxu0 %v2153
        %2531 = vmatprep.subr.mxu0 %v2158
        %2532 = vmatpush1.msra.mxu0 %v2157
        %2533 = vmatprep.subr.mxu0 %v2162
        %2534 = vmatpush1.msra.mxu0 %v2161
        %2535 = vmatprep.subr.mxu0 %v2166
        %2536 = vmatpush1.msra.mxu0 %v2165
        %2537 = vmatprep.subr.mxu0 %v2170
        %2538 = vmatpush1.msra.mxu0 %v2169
        %2539 = vmatprep.subr.mxu0 %v2174
        %2540 = vmatpush1.msra.mxu0 %v2173
        %2541 = vmatprep.subr.mxu0 %v2178
        %2542 = vmatpush1.msra.mxu0 %v2177
        %2543 = vmatprep.subr.mxu0 %v2182
        %2544 = vmatpush1.msra.mxu0 %v2181
        %2545 = vmatprep.subr.mxu0 %v2186
        %2546 = vmatpush1.msra.mxu0 %v2185
        %2547 = vmatprep.subr.mxu0 %v2190
        %2548 = vmatpush1.msra.mxu0 %v2189
        %2549 = vmatprep.subr.mxu0 %v2194
        %2550 = vmatpush1.msra.mxu0 %v2193
        %2551 = vmatprep.subr.mxu0 %v2198
        %2552 = vmatpush1.msra.mxu0 %v2197
        %2553 = vmatprep.subr.mxu0 %v2202
        %2554 = vmatpush1.msra.mxu0 %v2201
        %2555 = vmatprep.subr.mxu0 %v2206
        %2556 = vmatpush1.msra.mxu0 %v2205
        %2557 = vmatprep.subr.mxu0 %v2210
        %2558 = vmatpush1.msra.mxu0 %v2209
        %2559 = vmatprep.mubr.f32.mxu0 %v2328
        %2560 = vmatmul.mubr.f32.gmra.mrb[0].mxu0 %v2325
        %v2561 = vpop.f32.mrb[0].mxu0
        %v2562 = vadd.f32 0.0, %v2561
        %v2563 = vpop.f32.mrb[0].mxu0
        %v2564 = vadd.f32 0.0, %v2563
        %2565 = vdwg.mxu0
        %2566 = vmatprep.subr.mxu0 %v2214
        %2567 = vmatpush1.msra.mxu0 %v2213
        %2568 = vmatprep.subr.mxu0 %v2218
        %2569 = vmatpush1.msra.mxu0 %v2217
        %2570 = vmatprep.subr.mxu0 %v2222
        %2571 = vmatpush1.msra.mxu0 %v2221
        %2572 = vmatprep.subr.mxu0 %v2226
        %2573 = vmatpush1.msra.mxu0 %v2225
        %2574 = vmatprep.subr.mxu0 %v2230
        %2575 = vmatpush1.msra.mxu0 %v2229
        %2576 = vmatprep.subr.mxu0 %v2234
        %2577 = vmatpush1.msra.mxu0 %v2233
        %2578 = vmatprep.subr.mxu0 %v2238
        %2579 = vmatpush1.msra.mxu0 %v2237
        %2580 = vmatprep.subr.mxu0 %v2242
        %2581 = vmatpush1.msra.mxu0 %v2241
        %2582 = vmatprep.subr.mxu0 %v2246
        %2583 = vmatpush1.msra.mxu0 %v2245
        %2584 = vmatprep.subr.mxu0 %v2250
        %2585 = vmatpush1.msra.mxu0 %v2249
        %2586 = vmatprep.subr.mxu0 %v2254
        %2587 = vmatpush1.msra.mxu0 %v2253
        %2588 = vmatprep.subr.mxu0 %v2258
        %2589 = vmatpush1.msra.mxu0 %v2257
        %2590 = vmatprep.subr.mxu0 %v2262
        %2591 = vmatpush1.msra.mxu0 %v2261
        %2592 = vmatprep.subr.mxu0 %v2266
        %2593 = vmatpush1.msra.mxu0 %v2265
        %2594 = vmatprep.subr.mxu0 %v2270
        %2595 = vmatpush1.msra.mxu0 %v2269
        %2596 = vmatprep.subr.mxu0 %v2274
        %2597 = vmatpush1.msra.mxu0 %v2273
        %2598 = vmatprep.subr.mxu0 %v2278
        %2599 = vmatpush1.msra.mxu0 %v2277
        %2600 = vmatprep.subr.mxu0 %v2282
        %2601 = vmatpush1.msra.mxu0 %v2281
        %2602 = vmatprep.subr.mxu0 %v2286
        %2603 = vmatpush1.msra.mxu0 %v2285
        %2604 = vmatprep.subr.mxu0 %v2290
        %2605 = vmatpush1.msra.mxu0 %v2289
        %2606 = vmatprep.subr.mxu0 %v2294
        %2607 = vmatpush1.msra.mxu0 %v2293
        %2608 = vmatprep.subr.mxu0 %v2298
        %2609 = vmatpush1.msra.mxu0 %v2297
        %2610 = vmatprep.subr.mxu0 %v2302
        %2611 = vmatpush1.msra.mxu0 %v2301
        %2612 = vmatprep.subr.mxu0 %v2306
        %2613 = vmatpush1.msra.mxu0 %v2305
        %2614 = vmatprep.subr.mxu0 %v2310
        %2615 = vmatpush1.msra.mxu0 %v2309
        %2616 = vmatprep.subr.mxu0 %v2351
        %2617 = vmatpush1.msra.mxu0 %v2348
        %2618 = vmatprep.subr.mxu0 0.0
        %2619 = vmatpush1.msra.mxu0 0.0
        %2620 = vmatprep.subr.mxu0 0.0
        %2621 = vmatpush1.msra.mxu0 0.0
        %2622 = vmatprep.subr.mxu0 0.0
        %2623 = vmatpush1.msra.mxu0 0.0
        %2624 = vmatprep.subr.mxu0 0.0
        %2625 = vmatpush1.msra.mxu0 0.0
        %2626 = vmatprep.subr.mxu0 0.0
        %2627 = vmatpush1.msra.mxu0 0.0
        %2628 = vmatprep.subr.mxu0 0.0
        %2629 = vmatpush1.msra.mxu0 0.0
        %2630 = vmatprep.mubr.f32.mxu0 %v2339
        %2631 = vmatmul.mubr.f32.gmra.mrb[0].mxu0 %v2331
        %v2632 = vpop.f32.mrb[0].mxu0
        %v2633 = vadd.f32 %v2562, %v2632
        %v2634 = vpop.f32.mrb[0].mxu0
        %v2635 = vadd.f32 %v2564, %v2634
        %2636 = vdwg.mxu0
        %v2637 = vsel %vm2338, %v1845, 0
        %v2640 = vsel %vm386, %v2078, 0
        %v2643 = vsel %vm386, %v2079, 0
        %v2646 = vsel %vm386, %v2080, 0
        %v2649 = vsel %vm386, %v2081, 0
        %2651 = vmatprep.subr.mxu0 %v1851
        %2652 = vmatpush1.msra.mxu0 %v1850
        %2653 = vmatprep.subr.mxu0 %v1855
        %2654 = vmatpush1.msra.mxu0 %v1854
        %2655 = vmatprep.subr.mxu0 %v1859
        %2656 = vmatpush1.msra.mxu0 %v1858
        %2657 = vmatprep.subr.mxu0 %v1863
        %2658 = vmatpush1.msra.mxu0 %v1862
        %2659 = vmatprep.subr.mxu0 %v1867
        %2660 = vmatpush1.msra.mxu0 %v1866
        %2661 = vmatprep.subr.mxu0 %v1871
        %2662 = vmatpush1.msra.mxu0 %v1870
        %2663 = vmatprep.subr.mxu0 %v1875
        %2664 = vmatpush1.msra.mxu0 %v1874
        %2665 = vmatprep.subr.mxu0 %v1879
        %2666 = vmatpush1.msra.mxu0 %v1878
        %2667 = vmatprep.subr.mxu0 %v1883
        %2668 = vmatpush1.msra.mxu0 %v1882
        %2669 = vmatprep.subr.mxu0 %v1887
        %2670 = vmatpush1.msra.mxu0 %v1886
        %2671 = vmatprep.subr.mxu0 %v1891
        %2672 = vmatpush1.msra.mxu0 %v1890
        %2673 = vmatprep.subr.mxu0 %v1895
        %2674 = vmatpush1.msra.mxu0 %v1894
        %2675 = vmatprep.subr.mxu0 %v1899
        %2676 = vmatpush1.msra.mxu0 %v1898
        %2677 = vmatprep.subr.mxu0 %v1903
        %2678 = vmatpush1.msra.mxu0 %v1902
        %2679 = vmatprep.subr.mxu0 %v1907
        %2680 = vmatpush1.msra.mxu0 %v1906
        %2681 = vmatprep.subr.mxu0 %v1911
        %2682 = vmatpush1.msra.mxu0 %v1910
        %2683 = vmatprep.subr.mxu0 %v1915
        %2684 = vmatpush1.msra.mxu0 %v1914
        %2685 = vmatprep.subr.mxu0 %v1919
        %2686 = vmatpush1.msra.mxu0 %v1918
        %2687 = vmatprep.subr.mxu0 %v1923
        %2688 = vmatpush1.msra.mxu0 %v1922
        %2689 = vmatprep.subr.mxu0 %v1927
        %2690 = vmatpush1.msra.mxu0 %v1926
        %2691 = vmatprep.subr.mxu0 %v1931
        %2692 = vmatpush1.msra.mxu0 %v1930
        %2693 = vmatprep.subr.mxu0 %v1935
        %2694 = vmatpush1.msra.mxu0 %v1934
        %2695 = vmatprep.subr.mxu0 %v1939
        %2696 = vmatpush1.msra.mxu0 %v1938
        %2697 = vmatprep.subr.mxu0 %v1943
        %2698 = vmatpush1.msra.mxu0 %v1942
        %2699 = vmatprep.subr.mxu0 %v1947
        %2700 = vmatpush1.msra.mxu0 %v1946
        %2701 = vmatprep.subr.mxu0 %v1951
        %2702 = vmatpush1.msra.mxu0 %v1950
        %2703 = vmatprep.subr.mxu0 %v1955
        %2704 = vmatpush1.msra.mxu0 %v1954
        %2705 = vmatprep.subr.mxu0 %v1959
        %2706 = vmatpush1.msra.mxu0 %v1958
        %2707 = vmatprep.subr.mxu0 %v1963
        %2708 = vmatpush1.msra.mxu0 %v1962
        %2709 = vmatprep.subr.mxu0 %v1967
        %2710 = vmatpush1.msra.mxu0 %v1966
        %2711 = vmatprep.subr.mxu0 %v1971
        %2712 = vmatpush1.msra.mxu0 %v1970
        %2713 = vmatprep.subr.mxu0 %v1975
        %2714 = vmatpush1.msra.mxu0 %v1974
        %2715 = vmatprep.mubr.f32.mxu0 %v1843
        %2716 = vmatmul.mubr.f32.gmra.mrb[0].mxu0 %v1842
        %v2717 = vpop.f32.mrb[0].mxu0
        %v2718 = vadd.f32 %v2491, %v2717
        %v2719 = vpop.f32.mrb[0].mxu0
        %v2720 = vadd.f32 %v2493, %v2719
        %2721 = vdwg.mxu0
        %2722 = vmatprep.subr.mxu0 %v1979
        %2723 = vmatpush1.msra.mxu0 %v1978
        %2724 = vmatprep.subr.mxu0 %v1983
        %2725 = vmatpush1.msra.mxu0 %v1982
        %2726 = vmatprep.subr.mxu0 %v1987
        %2727 = vmatpush1.msra.mxu0 %v1986
        %2728 = vmatprep.subr.mxu0 %v1991
        %2729 = vmatpush1.msra.mxu0 %v1990
        %2730 = vmatprep.subr.mxu0 %v1995
        %2731 = vmatpush1.msra.mxu0 %v1994
        %2732 = vmatprep.subr.mxu0 %v1999
        %2733 = vmatpush1.msra.mxu0 %v1998
        %2734 = vmatprep.subr.mxu0 %v2003
        %2735 = vmatpush1.msra.mxu0 %v2002
        %2736 = vmatprep.subr.mxu0 %v2007
        %2737 = vmatpush1.msra.mxu0 %v2006
        %2738 = vmatprep.subr.mxu0 %v2011
        %2739 = vmatpush1.msra.mxu0 %v2010
        %2740 = vmatprep.subr.mxu0 %v2015
        %2741 = vmatpush1.msra.mxu0 %v2014
        %2742 = vmatprep.subr.mxu0 %v2019
        %2743 = vmatpush1.msra.mxu0 %v2018
        %2744 = vmatprep.subr.mxu0 %v2023
        %2745 = vmatpush1.msra.mxu0 %v2022
        %2746 = vmatprep.subr.mxu0 %v2027
        %2747 = vmatpush1.msra.mxu0 %v2026
        %2748 = vmatprep.subr.mxu0 %v2031
        %2749 = vmatpush1.msra.mxu0 %v2030
        %2750 = vmatprep.subr.mxu0 %v2035
        %2751 = vmatpush1.msra.mxu0 %v2034
        %2752 = vmatprep.subr.mxu0 %v2039
        %2753 = vmatpush1.msra.mxu0 %v2038
        %2754 = vmatprep.subr.mxu0 %v2043
        %2755 = vmatpush1.msra.mxu0 %v2042
        %2756 = vmatprep.subr.mxu0 %v2047
        %2757 = vmatpush1.msra.mxu0 %v2046
        %2758 = vmatprep.subr.mxu0 %v2051
        %2759 = vmatpush1.msra.mxu0 %v2050
        %2760 = vmatprep.subr.mxu0 %v2055
        %2761 = vmatpush1.msra.mxu0 %v2054
        %2762 = vmatprep.subr.mxu0 %v2059
        %2763 = vmatpush1.msra.mxu0 %v2058
        %2764 = vmatprep.subr.mxu0 %v2063
        %2765 = vmatpush1.msra.mxu0 %v2062
        %2766 = vmatprep.subr.mxu0 %v2067
        %2767 = vmatpush1.msra.mxu0 %v2066
        %2768 = vmatprep.subr.mxu0 %v2071
        %2769 = vmatpush1.msra.mxu0 %v2070
        %2770 = vmatprep.subr.mxu0 %v2075
        %2771 = vmatpush1.msra.mxu0 %v2074
        %2772 = vmatprep.subr.mxu0 %v2643
        %2773 = vmatpush1.msra.mxu0 %v2640
        %2774 = vmatprep.subr.mxu0 0.0
        %2775 = vmatpush1.msra.mxu0 0.0
        %2776 = vmatprep.subr.mxu0 0.0
        %2777 = vmatpush1.msra.mxu0 0.0
        %2778 = vmatprep.subr.mxu0 0.0
        %2779 = vmatpush1.msra.mxu0 0.0
        %2780 = vmatprep.subr.mxu0 0.0
        %2781 = vmatpush1.msra.mxu0 0.0
        %2782 = vmatprep.subr.mxu0 0.0
        %2783 = vmatpush1.msra.mxu0 0.0
        %2784 = vmatprep.subr.mxu0 0.0
        %2785 = vmatpush1.msra.mxu0 0.0
        %2786 = vmatprep.mubr.f32.mxu0 %v2637
        %2787 = vmatmul.mubr.f32.gmra.mrb[0].mxu0 %v1844
        %v2788 = vpop.f32.mrb[0].mxu0
        %v2789 = vadd.f32 %v2718, %v2788
        %v2790 = vpop.f32.mrb[0].mxu0
        %v2791 = vadd.f32 %v2720, %v2790
        %2792 = vdwg.mxu0
        %2793 = vmatprep.subr.mxu0 %v1853
        %2794 = vmatpush1.msra.mxu0 %v1852
        %2795 = vmatprep.subr.mxu0 %v1857
        %2796 = vmatpush1.msra.mxu0 %v1856
        %2797 = vmatprep.subr.mxu0 %v1861
        %2798 = vmatpush1.msra.mxu0 %v1860
        %2799 = vmatprep.subr.mxu0 %v1865
        %2800 = vmatpush1.msra.mxu0 %v1864
        %2801 = vmatprep.subr.mxu0 %v1869
        %2802 = vmatpush1.msra.mxu0 %v1868
        %2803 = vmatprep.subr.mxu0 %v1873
        %2804 = vmatpush1.msra.mxu0 %v1872
        %2805 = vmatprep.subr.mxu0 %v1877
        %2806 = vmatpush1.msra.mxu0 %v1876
        %2807 = vmatprep.subr.mxu0 %v1881
        %2808 = vmatpush1.msra.mxu0 %v1880
        %2809 = vmatprep.subr.mxu0 %v1885
        %2810 = vmatpush1.msra.mxu0 %v1884
        %2811 = vmatprep.subr.mxu0 %v1889
        %2812 = vmatpush1.msra.mxu0 %v1888
        %2813 = vmatprep.subr.mxu0 %v1893
        %2814 = vmatpush1.msra.mxu0 %v1892
        %2815 = vmatprep.subr.mxu0 %v1897
        %2816 = vmatpush1.msra.mxu0 %v1896
        %2817 = vmatprep.subr.mxu0 %v1901
        %2818 = vmatpush1.msra.mxu0 %v1900
        %2819 = vmatprep.subr.mxu0 %v1905
        %2820 = vmatpush1.msra.mxu0 %v1904
        %2821 = vmatprep.subr.mxu0 %v1909
        %2822 = vmatpush1.msra.mxu0 %v1908
        %2823 = vmatprep.subr.mxu0 %v1913
        %2824 = vmatpush1.msra.mxu0 %v1912
        %2825 = vmatprep.subr.mxu0 %v1917
        %2826 = vmatpush1.msra.mxu0 %v1916
        %2827 = vmatprep.subr.mxu0 %v1921
        %2828 = vmatpush1.msra.mxu0 %v1920
        %2829 = vmatprep.subr.mxu0 %v1925
        %2830 = vmatpush1.msra.mxu0 %v1924
        %2831 = vmatprep.subr.mxu0 %v1929
        %2832 = vmatpush1.msra.mxu0 %v1928
        %2833 = vmatprep.subr.mxu0 %v1933
        %2834 = vmatpush1.msra.mxu0 %v1932
        %2835 = vmatprep.subr.mxu0 %v1937
        %2836 = vmatpush1.msra.mxu0 %v1936
        %2837 = vmatprep.subr.mxu0 %v1941
        %2838 = vmatpush1.msra.mxu0 %v1940
        %2839 = vmatprep.subr.mxu0 %v1945
        %2840 = vmatpush1.msra.mxu0 %v1944
        %2841 = vmatprep.subr.mxu0 %v1949
        %2842 = vmatpush1.msra.mxu0 %v1948
        %2843 = vmatprep.subr.mxu0 %v1953
        %2844 = vmatpush1.msra.mxu0 %v1952
        %2845 = vmatprep.subr.mxu0 %v1957
        %2846 = vmatpush1.msra.mxu0 %v1956
        %2847 = vmatprep.subr.mxu0 %v1961
        %2848 = vmatpush1.msra.mxu0 %v1960
        %2849 = vmatprep.subr.mxu0 %v1965
        %2850 = vmatpush1.msra.mxu0 %v1964
        %2851 = vmatprep.subr.mxu0 %v1969
        %2852 = vmatpush1.msra.mxu0 %v1968
        %2853 = vmatprep.subr.mxu0 %v1973
        %2854 = vmatpush1.msra.mxu0 %v1972
        %2855 = vmatprep.subr.mxu0 %v1977
        %2856 = vmatpush1.msra.mxu0 %v1976
        %2857 = vmatprep.mubr.f32.mxu0 %v1843
        %2858 = vmatmul.mubr.f32.gmra.mrb[0].mxu0 %v1842
        %v2859 = vpop.f32.mrb[0].mxu0
        %v2860 = vadd.f32 %v2633, %v2859
        %v2861 = vpop.f32.mrb[0].mxu0
        %v2862 = vadd.f32 %v2635, %v2861
        %2863 = vdwg.mxu0
        %2864 = vmatprep.subr.mxu0 %v1981
        %2865 = vmatpush1.msra.mxu0 %v1980
        %2866 = vmatprep.subr.mxu0 %v1985
        %2867 = vmatpush1.msra.mxu0 %v1984
        %2868 = vmatprep.subr.mxu0 %v1989
        %2869 = vmatpush1.msra.mxu0 %v1988
        %2870 = vmatprep.subr.mxu0 %v1993
        %2871 = vmatpush1.msra.mxu0 %v1992
        %2872 = vmatprep.subr.mxu0 %v1997
        %2873 = vmatpush1.msra.mxu0 %v1996
        %2874 = vmatprep.subr.mxu0 %v2001
        %2875 = vmatpush1.msra.mxu0 %v2000
        %2876 = vmatprep.subr.mxu0 %v2005
        %2877 = vmatpush1.msra.mxu0 %v2004
        %2878 = vmatprep.subr.mxu0 %v2009
        %2879 = vmatpush1.msra.mxu0 %v2008
        %2880 = vmatprep.subr.mxu0 %v2013
        %2881 = vmatpush1.msra.mxu0 %v2012
        %2882 = vmatprep.subr.mxu0 %v2017
        %2883 = vmatpush1.msra.mxu0 %v2016
        %2884 = vmatprep.subr.mxu0 %v2021
        %2885 = vmatpush1.msra.mxu0 %v2020
        %2886 = vmatprep.subr.mxu0 %v2025
        %2887 = vmatpush1.msra.mxu0 %v2024
        %2888 = vmatprep.subr.mxu0 %v2029
        %2889 = vmatpush1.msra.mxu0 %v2028
        %2890 = vmatprep.subr.mxu0 %v2033
        %2891 = vmatpush1.msra.mxu0 %v2032
        %2892 = vmatprep.subr.mxu0 %v2037
        %2893 = vmatpush1.msra.mxu0 %v2036
        %2894 = vmatprep.subr.mxu0 %v2041
        %2895 = vmatpush1.msra.mxu0 %v2040
        %2896 = vmatprep.subr.mxu0 %v2045
        %2897 = vmatpush1.msra.mxu0 %v2044
        %2898 = vmatprep.subr.mxu0 %v2049
        %2899 = vmatpush1.msra.mxu0 %v2048
        %2900 = vmatprep.subr.mxu0 %v2053
        %2901 = vmatpush1.msra.mxu0 %v2052
        %2902 = vmatprep.subr.mxu0 %v2057
        %2903 = vmatpush1.msra.mxu0 %v2056
        %2904 = vmatprep.subr.mxu0 %v2061
        %2905 = vmatpush1.msra.mxu0 %v2060
        %2906 = vmatprep.subr.mxu0 %v2065
        %2907 = vmatpush1.msra.mxu0 %v2064
        %2908 = vmatprep.subr.mxu0 %v2069
        %2909 = vmatpush1.msra.mxu0 %v2068
        %2910 = vmatprep.subr.mxu0 %v2073
        %2911 = vmatpush1.msra.mxu0 %v2072
        %2912 = vmatprep.subr.mxu0 %v2077
        %2913 = vmatpush1.msra.mxu0 %v2076
        %2914 = vmatprep.subr.mxu0 %v2649
        %2915 = vmatpush1.msra.mxu0 %v2646
        %2916 = vmatprep.subr.mxu0 0.0
        %2917 = vmatpush1.msra.mxu0 0.0
        %2918 = vmatprep.subr.mxu0 0.0
        %2919 = vmatpush1.msra.mxu0 0.0
        %2920 = vmatprep.subr.mxu0 0.0
        %2921 = vmatpush1.msra.mxu0 0.0
        %2922 = vmatprep.subr.mxu0 0.0
        %2923 = vmatpush1.msra.mxu0 0.0
        %2924 = vmatprep.subr.mxu0 0.0
        %2925 = vmatpush1.msra.mxu0 0.0
        %2926 = vmatprep.subr.mxu0 0.0
        %2927 = vmatpush1.msra.mxu0 0.0
        %2928 = vmatprep.mubr.f32.mxu0 %v2637
        %2929 = vmatmul.mubr.f32.gmra.mrb[0].mxu0 %v1844
        %v2930 = vpop.f32.mrb[0].mxu0
        %v2931 = vadd.f32 %v2860, %v2930
        %v2932 = vpop.f32.mrb[0].mxu0
        %v2933 = vadd.f32 %v2862, %v2932
        %2934 = vdwg.mxu0
        %s2935 = scalar_lea.vmem %s3, 3712
        %v2936 = vld [vmem:[%s2935] sm:$0xff]
        %v2937 = vld [vmem:[%s2935 + $0x8] sm:$0xff]
        %v2938 = vld [vmem:[%s2935 + $0x10] sm:$0xff]
        %v2939 = vld [vmem:[%s2935 + $0x18] sm:$0xff]
        %v2940 = vld [vmem:[%s2935 + $0x20] sm:$0xff]
        %v2941 = vld [vmem:[%s2935 + $0x28] sm:$0xff]
        %v2942 = vld [vmem:[%s2935 + $0x30] sm:$0xff]
        %v2943 = vld [vmem:[%s2935 + $0x38] sm:$0xff]
        %v2944 = vld [vmem:[%s2935 + $0x40] sm:$0xff]
        %v2945 = vld [vmem:[%s2935 + $0x48] sm:$0xff]
        %v2946 = vld [vmem:[%s2935 + $0x50] sm:$0xff]
        %v2947 = vld [vmem:[%s2935 + $0x58] sm:$0xff]
        %v2948 = vld [vmem:[%s2935 + $0x60] sm:$0xff]
        %v2949 = vld [vmem:[%s2935 + $0x68] sm:$0xff]
        %v2950 = vld [vmem:[%s2935 + $0x70] sm:$0xff]
        %v2951 = vld [vmem:[%s2935 + $0x78] sm:$0xff]
        %v2952 = vld [vmem:[%s2935 + $0x80] sm:$0xff]
        %v2953 = vld [vmem:[%s2935 + $0x88] sm:$0xff]
        %v2954 = vld [vmem:[%s2935 + $0x90] sm:$0xff]
        %v2955 = vld [vmem:[%s2935 + $0x98] sm:$0xff]
        %v2956 = vld [vmem:[%s2935 + $0xa0] sm:$0xff]
        %v2957 = vld [vmem:[%s2935 + $0xa8] sm:$0xff]
        %v2958 = vld [vmem:[%s2935 + $0xb0] sm:$0xff]
        %v2959 = vld [vmem:[%s2935 + $0xb8] sm:$0xff]
        %v2960 = vld [vmem:[%s2935 + $0xc0] sm:$0xff]
        %v2961 = vld [vmem:[%s2935 + $0xc8] sm:$0xff]
        %v2962 = vld [vmem:[%s2935 + $0xd0] sm:$0xff]
        %v2963 = vld [vmem:[%s2935 + $0xd8] sm:$0xff]
        %v2964 = vld [vmem:[%s2935 + $0xe0] sm:$0xff]
        %v2965 = vld [vmem:[%s2935 + $0xe8] sm:$0xff]
        %v2966 = vld [vmem:[%s2935 + $0xf0] sm:$0xff]
        %v2967 = vld [vmem:[%s2935 + $0xf8] sm:$0xff]
        %v2968 = vld [vmem:[%s2935 + $0x100] sm:$0xff]
        %v2969 = vld [vmem:[%s2935 + $0x108] sm:$0xff]
        %v2970 = vld [vmem:[%s2935 + $0x110] sm:$0xff]
        %v2971 = vld [vmem:[%s2935 + $0x118] sm:$0xff]
        %v2972 = vld [vmem:[%s2935 + $0x120] sm:$0xff]
        %v2973 = vld [vmem:[%s2935 + $0x128] sm:$0xff]
        %v2974 = vld [vmem:[%s2935 + $0x130] sm:$0xff]
        %v2975 = vld [vmem:[%s2935 + $0x138] sm:$0xff]
        %v2976 = vld [vmem:[%s2935 + $0x140] sm:$0xff]
        %v2977 = vld [vmem:[%s2935 + $0x148] sm:$0xff]
        %v2978 = vld [vmem:[%s2935 + $0x150] sm:$0xff]
        %v2979 = vld [vmem:[%s2935 + $0x158] sm:$0xff]
        %v2980 = vld [vmem:[%s2935 + $0x160] sm:$0xff]
        %v2981 = vld [vmem:[%s2935 + $0x168] sm:$0xff]
        %v2982 = vld [vmem:[%s2935 + $0x170] sm:$0xff]
        %v2983 = vld [vmem:[%s2935 + $0x178] sm:$0xff]
        %v2984 = vld [vmem:[%s2935 + $0x180] sm:$0xff]
        %v2985 = vld [vmem:[%s2935 + $0x188] sm:$0xff]
        %v2986 = vld [vmem:[%s2935 + $0x190] sm:$0xff]
        %v2987 = vld [vmem:[%s2935 + $0x198] sm:$0xff]
        %v2988 = vld [vmem:[%s2935 + $0x1a0] sm:$0xff]
        %v2989 = vld [vmem:[%s2935 + $0x1a8] sm:$0xff]
        %v2990 = vld [vmem:[%s2935 + $0x1b0] sm:$0xff]
        %v2991 = vld [vmem:[%s2935 + $0x1b8] sm:$0xff]
        %v2992 = vld [vmem:[%s2935 + $0x1c0] sm:$0xff]
        %v2993 = vld [vmem:[%s2935 + $0x1c8] sm:$0xff]
        %v2994 = vld [vmem:[%s2935 + $0x1d0] sm:$0xff]
        %v2995 = vld [vmem:[%s2935 + $0x1d8] sm:$0xff]
        %v2996 = vld [vmem:[%s2935 + $0x1e0] sm:$0xff]
        %v2997 = vld [vmem:[%s2935 + $0x1e8] sm:$0xff]
        %v2998 = vld [vmem:[%s2935 + $0x1f0] sm:$0xff]
        %v2999 = vld [vmem:[%s2935 + $0x1f8] sm:$0xff]
        %v3000 = vld [vmem:[%s2935 + $0x200] sm:$0xff]
        %v3001 = vld [vmem:[%s2935 + $0x208] sm:$0xff]
        %v3002 = vld [vmem:[%s2935 + $0x210] sm:$0xff]
        %v3003 = vld [vmem:[%s2935 + $0x218] sm:$0xff]
        %v3004 = vld [vmem:[%s2935 + $0x220] sm:$0xff]
        %v3005 = vld [vmem:[%s2935 + $0x228] sm:$0xff]
        %v3006 = vld [vmem:[%s2935 + $0x230] sm:$0xff]
        %v3007 = vld [vmem:[%s2935 + $0x238] sm:$0xff]
        %v3008 = vld [vmem:[%s2935 + $0x240] sm:$0xff]
        %v3009 = vld [vmem:[%s2935 + $0x248] sm:$0xff]
        %v3010 = vld [vmem:[%s2935 + $0x250] sm:$0xff]
        %v3011 = vld [vmem:[%s2935 + $0x258] sm:$0xff]
        %v3012 = vld [vmem:[%s2935 + $0x260] sm:$0xff]
        %v3013 = vld [vmem:[%s2935 + $0x268] sm:$0xff]
        %v3014 = vld [vmem:[%s2935 + $0x270] sm:$0xff]
        %v3015 = vld [vmem:[%s2935 + $0x278] sm:$0xff]
        %v3016 = vld [vmem:[%s2935 + $0x280] sm:$0xff]
        %v3017 = vld [vmem:[%s2935 + $0x288] sm:$0xff]
        %v3018 = vld [vmem:[%s2935 + $0x290] sm:$0xff]
        %v3019 = vld [vmem:[%s2935 + $0x298] sm:$0xff]
        %v3020 = vld [vmem:[%s2935 + $0x2a0] sm:$0xff]
        %v3021 = vld [vmem:[%s2935 + $0x2a8] sm:$0xff]
        %v3022 = vld [vmem:[%s2935 + $0x2b0] sm:$0xff]
        %v3023 = vld [vmem:[%s2935 + $0x2b8] sm:$0xff]
        %v3024 = vld [vmem:[%s2935 + $0x2c0] sm:$0xff]
        %v3025 = vld [vmem:[%s2935 + $0x2c8] sm:$0xff]
        %v3026 = vld [vmem:[%s2935 + $0x2d0] sm:$0xff]
        %v3027 = vld [vmem:[%s2935 + $0x2d8] sm:$0xff]
        %v3028 = vld [vmem:[%s2935 + $0x2e0] sm:$0xff]
        %v3029 = vld [vmem:[%s2935 + $0x2e8] sm:$0xff]
        %v3030 = vld [vmem:[%s2935 + $0x2f0] sm:$0xff]
        %v3031 = vld [vmem:[%s2935 + $0x2f8] sm:$0xff]
        %v3032 = vld [vmem:[%s2935 + $0x300] sm:$0xff]
        %v3033 = vld [vmem:[%s2935 + $0x308] sm:$0xff]
        %v3034 = vld [vmem:[%s2935 + $0x310] sm:$0xff]
        %v3035 = vld [vmem:[%s2935 + $0x318] sm:$0xff]
        %v3036 = vld [vmem:[%s2935 + $0x320] sm:$0xff]
        %v3037 = vld [vmem:[%s2935 + $0x328] sm:$0xff]
        %v3038 = vld [vmem:[%s2935 + $0x330] sm:$0xff]
        %v3039 = vld [vmem:[%s2935 + $0x338] sm:$0xff]
        %v3040 = vld [vmem:[%s2935 + $0x340] sm:$0xff]
        %v3041 = vld [vmem:[%s2935 + $0x348] sm:$0xff]
        %v3042 = vld [vmem:[%s2935 + $0x350] sm:$0xff]
        %v3043 = vld [vmem:[%s2935 + $0x358] sm:$0xff]
        %v3044 = vld [vmem:[%s2935 + $0x360] sm:$0xff]
        %v3045 = vld [vmem:[%s2935 + $0x368] sm:$0xff]
        %v3046 = vld [vmem:[%s2935 + $0x370] sm:$0xff]
        %v3047 = vld [vmem:[%s2935 + $0x378] sm:$0xff]
        %v3048 = vld [vmem:[%s2935 + $0x380] sm:$0xff]
        %v3049 = vld [vmem:[%s2935 + $0x388] sm:$0xff]
        %v3050 = vld [vmem:[%s2935 + $0x390] sm:$0xff]
        %v3051 = vld [vmem:[%s2935 + $0x398] sm:$0xff]
        %v3052 = vld [vmem:[%s2935 + $0x3a0] sm:$0xff]
        %v3053 = vld [vmem:[%s2935 + $0x3a8] sm:$0xff]
        %v3054 = vld [vmem:[%s2935 + $0x3b0] sm:$0xff]
        %v3055 = vld [vmem:[%s2935 + $0x3b8] sm:$0xff]
        %v3056 = vld [vmem:[%s2935 + $0x3c0] sm:$0xff]
        %v3057 = vld [vmem:[%s2935 + $0x3c8] sm:$0xff]
        %v3058 = vld [vmem:[%s2935 + $0x3d0] sm:$0xff]
        %v3059 = vld [vmem:[%s2935 + $0x3d8] sm:$0xff]
        %v3060 = vld [vmem:[%s2935 + $0x3e0] sm:$0xff]
        %v3061 = vld [vmem:[%s2935 + $0x3e8] sm:$0xff]
        %v3062 = vld [vmem:[%s2935 + $0x3f0] sm:$0xff]
        %v3063 = vld [vmem:[%s2935 + $0x3f8] sm:$0xff]
        %v3064 = vld [vmem:[%s2935 + $0x400] sm:$0xff]
        %v3065 = vld [vmem:[%s2935 + $0x408] sm:$0xff]
        %v3066 = vld [vmem:[%s2935 + $0x410] sm:$0xff]
        %v3067 = vld [vmem:[%s2935 + $0x418] sm:$0xff]
        %v3068 = vld [vmem:[%s2935 + $0x420] sm:$0xff]
        %v3069 = vld [vmem:[%s2935 + $0x428] sm:$0xff]
        %v3070 = vld [vmem:[%s2935 + $0x430] sm:$0xff]
        %v3071 = vld [vmem:[%s2935 + $0x438] sm:$0xff]
        %v3072 = vld [vmem:[%s2935 + $0x440] sm:$0xff]
        %v3073 = vld [vmem:[%s2935 + $0x448] sm:$0xff]
        %v3074 = vld [vmem:[%s2935 + $0x450] sm:$0xff]
        %v3075 = vld [vmem:[%s2935 + $0x458] sm:$0xff]
        %v3076 = vld [vmem:[%s2935 + $0x460] sm:$0xff]
        %v3077 = vld [vmem:[%s2935 + $0x468] sm:$0xff]
        %v3078 = vld [vmem:[%s2935 + $0x470] sm:$0xff]
        %v3079 = vld [vmem:[%s2935 + $0x478] sm:$0xff]
        %v3080 = vld [vmem:[%s2935 + $0x480] sm:$0xff]
        %v3081 = vld [vmem:[%s2935 + $0x488] sm:$0xff]
        %v3082 = vld [vmem:[%s2935 + $0x490] sm:$0xff]
        %v3083 = vld [vmem:[%s2935 + $0x498] sm:$0xff]
        %v3084 = vld [vmem:[%s2935 + $0x4a0] sm:$0xff]
        %v3085 = vld [vmem:[%s2935 + $0x4a8] sm:$0xff]
        %v3086 = vld [vmem:[%s2935 + $0x4b0] sm:$0xff]
        %v3087 = vld [vmem:[%s2935 + $0x4b8] sm:$0xff]
        %v3088 = vld [vmem:[%s2935 + $0x4c0] sm:$0xff]
        %v3089 = vld [vmem:[%s2935 + $0x4c8] sm:$0xff]
        %v3090 = vld [vmem:[%s2935 + $0x4d0] sm:$0xff]
        %v3091 = vld [vmem:[%s2935 + $0x4d8] sm:$0xff]
        %v3092 = vld [vmem:[%s2935 + $0x4e0] sm:$0xff]
        %v3093 = vld [vmem:[%s2935 + $0x4e8] sm:$0xff]
        %v3094 = vld [vmem:[%s2935 + $0x4f0] sm:$0xff]
        %v3095 = vld [vmem:[%s2935 + $0x4f8] sm:$0xff]
        %v3096 = vld [vmem:[%s2935 + $0x500] sm:$0xff]
        %v3097 = vld [vmem:[%s2935 + $0x508] sm:$0xff]
        %v3098 = vld [vmem:[%s2935 + $0x510] sm:$0xff]
        %v3099 = vld [vmem:[%s2935 + $0x518] sm:$0xff]
        %v3100 = vld [vmem:[%s2935 + $0x520] sm:$0xff]
        %v3101 = vld [vmem:[%s2935 + $0x528] sm:$0xff]
        %v3102 = vld [vmem:[%s2935 + $0x530] sm:$0xff]
        %v3103 = vld [vmem:[%s2935 + $0x538] sm:$0xff]
        %v3104 = vld [vmem:[%s2935 + $0x540] sm:$0xff]
        %v3105 = vld [vmem:[%s2935 + $0x548] sm:$0xff]
        %v3106 = vld [vmem:[%s2935 + $0x550] sm:$0xff]
        %v3107 = vld [vmem:[%s2935 + $0x558] sm:$0xff]
        %v3108 = vld [vmem:[%s2935 + $0x560] sm:$0xff]
        %v3109 = vld [vmem:[%s2935 + $0x568] sm:$0xff]
        %v3110 = vld [vmem:[%s2935 + $0x570] sm:$0xff]
        %v3111 = vld [vmem:[%s2935 + $0x578] sm:$0xff]
        %v3112 = vld [vmem:[%s2935 + $0x580] sm:$0xff]
        %v3113 = vld [vmem:[%s2935 + $0x588] sm:$0xff]
        %v3114 = vld [vmem:[%s2935 + $0x590] sm:$0xff]
        %v3115 = vld [vmem:[%s2935 + $0x598] sm:$0xff]
        %v3116 = vld [vmem:[%s2935 + $0x5a0] sm:$0xff]
        %v3117 = vld [vmem:[%s2935 + $0x5a8] sm:$0xff]
        %v3118 = vld [vmem:[%s2935 + $0x5b0] sm:$0xff]
        %v3119 = vld [vmem:[%s2935 + $0x5b8] sm:$0xff]
        %v3120 = vld [vmem:[%s2935 + $0x5c0] sm:$0xff]
        %v3121 = vld [vmem:[%s2935 + $0x5c8] sm:$0xff]
        %v3122 = vld [vmem:[%s2935 + $0x5d0] sm:$0xff]
        %v3123 = vld [vmem:[%s2935 + $0x5d8] sm:$0xff]
        %v3124 = vld [vmem:[%s2935 + $0x5e0] sm:$0xff]
        %v3125 = vld [vmem:[%s2935 + $0x5e8] sm:$0xff]
        %v3126 = vld [vmem:[%s2935 + $0x5f0] sm:$0xff]
        %v3127 = vld [vmem:[%s2935 + $0x5f8] sm:$0xff]
        %v3128 = vld [vmem:[%s2935 + $0x600] sm:$0xff]
        %v3129 = vld [vmem:[%s2935 + $0x608] sm:$0xff]
        %v3130 = vld [vmem:[%s2935 + $0x610] sm:$0xff]
        %v3131 = vld [vmem:[%s2935 + $0x618] sm:$0xff]
        %v3132 = vld [vmem:[%s2935 + $0x620] sm:$0xff]
        %v3133 = vld [vmem:[%s2935 + $0x628] sm:$0xff]
        %v3134 = vld [vmem:[%s2935 + $0x630] sm:$0xff]
        %v3135 = vld [vmem:[%s2935 + $0x638] sm:$0xff]
        %v3136 = vld [vmem:[%s2935 + $0x640] sm:$0xff]
        %v3137 = vld [vmem:[%s2935 + $0x648] sm:$0xff]
        %v3138 = vld [vmem:[%s2935 + $0x650] sm:$0xff]
        %v3139 = vld [vmem:[%s2935 + $0x658] sm:$0xff]
        %v3140 = vld [vmem:[%s2935 + $0x660] sm:$0xff]
        %v3141 = vld [vmem:[%s2935 + $0x668] sm:$0xff]
        %v3142 = vld [vmem:[%s2935 + $0x670] sm:$0xff]
        %v3143 = vld [vmem:[%s2935 + $0x678] sm:$0xff]
        %v3144 = vld [vmem:[%s2935 + $0x680] sm:$0xff]
        %v3145 = vld [vmem:[%s2935 + $0x688] sm:$0xff]
        %v3146 = vld [vmem:[%s2935 + $0x690] sm:$0xff]
        %v3147 = vld [vmem:[%s2935 + $0x698] sm:$0xff]
        %v3148 = vld [vmem:[%s2935 + $0x6a0] sm:$0xff]
        %v3149 = vld [vmem:[%s2935 + $0x6a8] sm:$0xff]
        %v3150 = vld [vmem:[%s2935 + $0x6b0] sm:$0xff]
        %v3151 = vld [vmem:[%s2935 + $0x6b8] sm:$0xff]
        %v3152 = vld [vmem:[%s2935 + $0x6c0] sm:$0xff]
        %v3153 = vld [vmem:[%s2935 + $0x6c8] sm:$0xff]
        %v3154 = vld [vmem:[%s2935 + $0x6d0] sm:$0xff]
        %v3155 = vld [vmem:[%s2935 + $0x6d8] sm:$0xff]
        %v3156 = vld [vmem:[%s2935 + $0x6e0] sm:$0xff]
        %v3157 = vld [vmem:[%s2935 + $0x6e8] sm:$0xff]
        %v3158 = vld [vmem:[%s2935 + $0x6f0] sm:$0xff]
        %v3159 = vld [vmem:[%s2935 + $0x6f8] sm:$0xff]
        %v3160 = vld [vmem:[%s2935 + $0x700] sm:$0xff]
        %v3161 = vld [vmem:[%s2935 + $0x708] sm:$0xff]
        %v3162 = vld [vmem:[%s2935 + $0x710] sm:$0xff]
        %v3163 = vld [vmem:[%s2935 + $0x718] sm:$0xff]
        %v3164 = vld [vmem:[%s2935 + $0x720] sm:$0xf]
        %v3165 = vld [vmem:[%s2935 + $0x728] sm:$0xf]
        %v3166 = vld [vmem:[%s2935 + $0x730] sm:$0xf]
        %v3167 = vld [vmem:[%s2935 + $0x738] sm:$0xf]
        %v3168 = vrot.slane %v1842, 2
        %v3169 = vrot.slane %v1846, 2
        %v3170 = vsel %vm766, %v3168, %v3169
        %v3171 = vrot.slane %v1843, 2
        %v3172 = vrot.slane %v1847, 2
        %v3173 = vsel %vm766, %v3171, %v3172
        %v3174 = vrot.slane %v1844, 2
        %v3175 = vrot.slane %v1848, 2
        %v3176 = vsel %vm766, %v3174, %v3175
        %v3177 = vrot.slane %v1845, 2
        %v3178 = vrot.slane %v1849, 2
        %v3179 = vsel %vm766, %v3177, %v3178
        %v3183 = vsel %vm2338, %v3179, 0
        %v3186 = vsel %vm386, %v3164, 0
        %v3189 = vsel %vm386, %v3165, 0
        %v3192 = vsel %vm386, %v3166, 0
        %v3195 = vsel %vm386, %v3167, 0
        %3197 = vmatprep.subr.mxu0 %v2937
        %3198 = vmatpush1.msra.mxu0 %v2936
        %3199 = vmatprep.subr.mxu0 %v2941
        %3200 = vmatpush1.msra.mxu0 %v2940
        %3201 = vmatprep.subr.mxu0 %v2945
        %3202 = vmatpush1.msra.mxu0 %v2944
        %3203 = vmatprep.subr.mxu0 %v2949
        %3204 = vmatpush1.msra.mxu0 %v2948
        %3205 = vmatprep.subr.mxu0 %v2953
        %3206 = vmatpush1.msra.mxu0 %v2952
        %3207 = vmatprep.subr.mxu0 %v2957
        %3208 = vmatpush1.msra.mxu0 %v2956
        %3209 = vmatprep.subr.mxu0 %v2961
        %3210 = vmatpush1.msra.mxu0 %v2960
        %3211 = vmatprep.subr.mxu0 %v2965
        %3212 = vmatpush1.msra.mxu0 %v2964
        %3213 = vmatprep.subr.mxu0 %v2969
        %3214 = vmatpush1.msra.mxu0 %v2968
        %3215 = vmatprep.subr.mxu0 %v2973
        %3216 = vmatpush1.msra.mxu0 %v2972
        %3217 = vmatprep.subr.mxu0 %v2977
        %3218 = vmatpush1.msra.mxu0 %v2976
        %3219 = vmatprep.subr.mxu0 %v2981
        %3220 = vmatpush1.msra.mxu0 %v2980
        %3221 = vmatprep.subr.mxu0 %v2985
        %3222 = vmatpush1.msra.mxu0 %v2984
        %3223 = vmatprep.subr.mxu0 %v2989
        %3224 = vmatpush1.msra.mxu0 %v2988
        %3225 = vmatprep.subr.mxu0 %v2993
        %3226 = vmatpush1.msra.mxu0 %v2992
        %3227 = vmatprep.subr.mxu0 %v2997
        %3228 = vmatpush1.msra.mxu0 %v2996
        %3229 = vmatprep.subr.mxu0 %v3001
        %3230 = vmatpush1.msra.mxu0 %v3000
        %3231 = vmatprep.subr.mxu0 %v3005
        %3232 = vmatpush1.msra.mxu0 %v3004
        %3233 = vmatprep.subr.mxu0 %v3009
        %3234 = vmatpush1.msra.mxu0 %v3008
        %3235 = vmatprep.subr.mxu0 %v3013
        %3236 = vmatpush1.msra.mxu0 %v3012
        %3237 = vmatprep.subr.mxu0 %v3017
        %3238 = vmatpush1.msra.mxu0 %v3016
        %3239 = vmatprep.subr.mxu0 %v3021
        %3240 = vmatpush1.msra.mxu0 %v3020
        %3241 = vmatprep.subr.mxu0 %v3025
        %3242 = vmatpush1.msra.mxu0 %v3024
        %3243 = vmatprep.subr.mxu0 %v3029
        %3244 = vmatpush1.msra.mxu0 %v3028
        %3245 = vmatprep.subr.mxu0 %v3033
        %3246 = vmatpush1.msra.mxu0 %v3032
        %3247 = vmatprep.subr.mxu0 %v3037
        %3248 = vmatpush1.msra.mxu0 %v3036
        %3249 = vmatprep.subr.mxu0 %v3041
        %3250 = vmatpush1.msra.mxu0 %v3040
        %3251 = vmatprep.subr.mxu0 %v3045
        %3252 = vmatpush1.msra.mxu0 %v3044
        %3253 = vmatprep.subr.mxu0 %v3049
        %3254 = vmatpush1.msra.mxu0 %v3048
        %3255 = vmatprep.subr.mxu0 %v3053
        %3256 = vmatpush1.msra.mxu0 %v3052
        %3257 = vmatprep.subr.mxu0 %v3057
        %3258 = vmatpush1.msra.mxu0 %v3056
        %3259 = vmatprep.subr.mxu0 %v3061
        %3260 = vmatpush1.msra.mxu0 %v3060
        %3261 = vmatprep.mubr.f32.mxu0 %v3173
        %3262 = vmatmul.mubr.f32.gmra.mrb[0].mxu0 %v3170
        %v3263 = vpop.f32.mrb[0].mxu0
        %v3264 = vadd.f32 0.0, %v3263
        %v3265 = vpop.f32.mrb[0].mxu0
        %v3266 = vadd.f32 0.0, %v3265
        %3267 = vdwg.mxu0
        %3268 = vmatprep.subr.mxu0 %v3065
        %3269 = vmatpush1.msra.mxu0 %v3064
        %3270 = vmatprep.subr.mxu0 %v3069
        %3271 = vmatpush1.msra.mxu0 %v3068
        %3272 = vmatprep.subr.mxu0 %v3073
        %3273 = vmatpush1.msra.mxu0 %v3072
        %3274 = vmatprep.subr.mxu0 %v3077
        %3275 = vmatpush1.msra.mxu0 %v3076
        %3276 = vmatprep.subr.mxu0 %v3081
        %3277 = vmatpush1.msra.mxu0 %v3080
        %3278 = vmatprep.subr.mxu0 %v3085
        %3279 = vmatpush1.msra.mxu0 %v3084
        %3280 = vmatprep.subr.mxu0 %v3089
        %3281 = vmatpush1.msra.mxu0 %v3088
        %3282 = vmatprep.subr.mxu0 %v3093
        %3283 = vmatpush1.msra.mxu0 %v3092
        %3284 = vmatprep.subr.mxu0 %v3097
        %3285 = vmatpush1.msra.mxu0 %v3096
        %3286 = vmatprep.subr.mxu0 %v3101
        %3287 = vmatpush1.msra.mxu0 %v3100
        %3288 = vmatprep.subr.mxu0 %v3105
        %3289 = vmatpush1.msra.mxu0 %v3104
        %3290 = vmatprep.subr.mxu0 %v3109
        %3291 = vmatpush1.msra.mxu0 %v3108
        %3292 = vmatprep.subr.mxu0 %v3113
        %3293 = vmatpush1.msra.mxu0 %v3112
        %3294 = vmatprep.subr.mxu0 %v3117
        %3295 = vmatpush1.msra.mxu0 %v3116
        %3296 = vmatprep.subr.mxu0 %v3121
        %3297 = vmatpush1.msra.mxu0 %v3120
        %3298 = vmatprep.subr.mxu0 %v3125
        %3299 = vmatpush1.msra.mxu0 %v3124
        %3300 = vmatprep.subr.mxu0 %v3129
        %3301 = vmatpush1.msra.mxu0 %v3128
        %3302 = vmatprep.subr.mxu0 %v3133
        %3303 = vmatpush1.msra.mxu0 %v3132
        %3304 = vmatprep.subr.mxu0 %v3137
        %3305 = vmatpush1.msra.mxu0 %v3136
        %3306 = vmatprep.subr.mxu0 %v3141
        %3307 = vmatpush1.msra.mxu0 %v3140
        %3308 = vmatprep.subr.mxu0 %v3145
        %3309 = vmatpush1.msra.mxu0 %v3144
        %3310 = vmatprep.subr.mxu0 %v3149
        %3311 = vmatpush1.msra.mxu0 %v3148
        %3312 = vmatprep.subr.mxu0 %v3153
        %3313 = vmatpush1.msra.mxu0 %v3152
        %3314 = vmatprep.subr.mxu0 %v3157
        %3315 = vmatpush1.msra.mxu0 %v3156
        %3316 = vmatprep.subr.mxu0 %v3161
        %3317 = vmatpush1.msra.mxu0 %v3160
        %3318 = vmatprep.subr.mxu0 %v3189
        %3319 = vmatpush1.msra.mxu0 %v3186
        %3320 = vmatprep.subr.mxu0 0.0
        %3321 = vmatpush1.msra.mxu0 0.0
        %3322 = vmatprep.subr.mxu0 0.0
        %3323 = vmatpush1.msra.mxu0 0.0
        %3324 = vmatprep.subr.mxu0 0.0
        %3325 = vmatpush1.msra.mxu0 0.0
        %3326 = vmatprep.subr.mxu0 0.0
        %3327 = vmatpush1.msra.mxu0 0.0
        %3328 = vmatprep.subr.mxu0 0.0
        %3329 = vmatpush1.msra.mxu0 0.0
        %3330 = vmatprep.subr.mxu0 0.0
        %3331 = vmatpush1.msra.mxu0 0.0
        %3332 = vmatprep.mubr.f32.mxu0 %v3183
        %3333 = vmatmul.mubr.f32.gmra.mrb[0].mxu0 %v3176
        %v3334 = vpop.f32.mrb[0].mxu0
        %v3335 = vadd.f32 %v3264, %v3334
        %v3336 = vpop.f32.mrb[0].mxu0
        %v3337 = vadd.f32 %v3266, %v3336
        %3338 = vdwg.mxu0
        %3339 = vmatprep.subr.mxu0 %v2939
        %3340 = vmatpush1.msra.mxu0 %v2938
        %3341 = vmatprep.subr.mxu0 %v2943
        %3342 = vmatpush1.msra.mxu0 %v2942
        %3343 = vmatprep.subr.mxu0 %v2947
        %3344 = vmatpush1.msra.mxu0 %v2946
        %3345 = vmatprep.subr.mxu0 %v2951
        %3346 = vmatpush1.msra.mxu0 %v2950
        %3347 = vmatprep.subr.mxu0 %v2955
        %3348 = vmatpush1.msra.mxu0 %v2954
        %3349 = vmatprep.subr.mxu0 %v2959
        %3350 = vmatpush1.msra.mxu0 %v2958
        %3351 = vmatprep.subr.mxu0 %v2963
        %3352 = vmatpush1.msra.mxu0 %v2962
        %3353 = vmatprep.subr.mxu0 %v2967
        %3354 = vmatpush1.msra.mxu0 %v2966
        %3355 = vmatprep.subr.mxu0 %v2971
        %3356 = vmatpush1.msra.mxu0 %v2970
        %3357 = vmatprep.subr.mxu0 %v2975
        %3358 = vmatpush1.msra.mxu0 %v2974
        %3359 = vmatprep.subr.mxu0 %v2979
        %3360 = vmatpush1.msra.mxu0 %v2978
        %3361 = vmatprep.subr.mxu0 %v2983
        %3362 = vmatpush1.msra.mxu0 %v2982
        %3363 = vmatprep.subr.mxu0 %v2987
        %3364 = vmatpush1.msra.mxu0 %v2986
        %3365 = vmatprep.subr.mxu0 %v2991
        %3366 = vmatpush1.msra.mxu0 %v2990
        %3367 = vmatprep.subr.mxu0 %v2995
        %3368 = vmatpush1.msra.mxu0 %v2994
        %3369 = vmatprep.subr.mxu0 %v2999
        %3370 = vmatpush1.msra.mxu0 %v2998
        %3371 = vmatprep.subr.mxu0 %v3003
        %3372 = vmatpush1.msra.mxu0 %v3002
        %3373 = vmatprep.subr.mxu0 %v3007
        %3374 = vmatpush1.msra.mxu0 %v3006
        %3375 = vmatprep.subr.mxu0 %v3011
        %3376 = vmatpush1.msra.mxu0 %v3010
        %3377 = vmatprep.subr.mxu0 %v3015
        %3378 = vmatpush1.msra.mxu0 %v3014
        %3379 = vmatprep.subr.mxu0 %v3019
        %3380 = vmatpush1.msra.mxu0 %v3018
        %3381 = vmatprep.subr.mxu0 %v3023
        %3382 = vmatpush1.msra.mxu0 %v3022
        %3383 = vmatprep.subr.mxu0 %v3027
        %3384 = vmatpush1.msra.mxu0 %v3026
        %3385 = vmatprep.subr.mxu0 %v3031
        %3386 = vmatpush1.msra.mxu0 %v3030
        %3387 = vmatprep.subr.mxu0 %v3035
        %3388 = vmatpush1.msra.mxu0 %v3034
        %3389 = vmatprep.subr.mxu0 %v3039
        %3390 = vmatpush1.msra.mxu0 %v3038
        %3391 = vmatprep.subr.mxu0 %v3043
        %3392 = vmatpush1.msra.mxu0 %v3042
        %3393 = vmatprep.subr.mxu0 %v3047
        %3394 = vmatpush1.msra.mxu0 %v3046
        %3395 = vmatprep.subr.mxu0 %v3051
        %3396 = vmatpush1.msra.mxu0 %v3050
        %3397 = vmatprep.subr.mxu0 %v3055
        %3398 = vmatpush1.msra.mxu0 %v3054
        %3399 = vmatprep.subr.mxu0 %v3059
        %3400 = vmatpush1.msra.mxu0 %v3058
        %3401 = vmatprep.subr.mxu0 %v3063
        %3402 = vmatpush1.msra.mxu0 %v3062
        %3403 = vmatprep.mubr.f32.mxu0 %v3173
        %3404 = vmatmul.mubr.f32.gmra.mrb[0].mxu0 %v3170
        %v3405 = vpop.f32.mrb[0].mxu0
        %v3406 = vadd.f32 0.0, %v3405
        %v3407 = vpop.f32.mrb[0].mxu0
        %v3408 = vadd.f32 0.0, %v3407
        %3409 = vdwg.mxu0
        %3410 = vmatprep.subr.mxu0 %v3067
        %3411 = vmatpush1.msra.mxu0 %v3066
        %3412 = vmatprep.subr.mxu0 %v3071
        %3413 = vmatpush1.msra.mxu0 %v3070
        %3414 = vmatprep.subr.mxu0 %v3075
        %3415 = vmatpush1.msra.mxu0 %v3074
        %3416 = vmatprep.subr.mxu0 %v3079
        %3417 = vmatpush1.msra.mxu0 %v3078
        %3418 = vmatprep.subr.mxu0 %v3083
        %3419 = vmatpush1.msra.mxu0 %v3082
        %3420 = vmatprep.subr.mxu0 %v3087
        %3421 = vmatpush1.msra.mxu0 %v3086
        %3422 = vmatprep.subr.mxu0 %v3091
        %3423 = vmatpush1.msra.mxu0 %v3090
        %3424 = vmatprep.subr.mxu0 %v3095
        %3425 = vmatpush1.msra.mxu0 %v3094
        %3426 = vmatprep.subr.mxu0 %v3099
        %3427 = vmatpush1.msra.mxu0 %v3098
        %3428 = vmatprep.subr.mxu0 %v3103
        %3429 = vmatpush1.msra.mxu0 %v3102
        %3430 = vmatprep.subr.mxu0 %v3107
        %3431 = vmatpush1.msra.mxu0 %v3106
        %3432 = vmatprep.subr.mxu0 %v3111
        %3433 = vmatpush1.msra.mxu0 %v3110
        %3434 = vmatprep.subr.mxu0 %v3115
        %3435 = vmatpush1.msra.mxu0 %v3114
        %3436 = vmatprep.subr.mxu0 %v3119
        %3437 = vmatpush1.msra.mxu0 %v3118
        %3438 = vmatprep.subr.mxu0 %v3123
        %3439 = vmatpush1.msra.mxu0 %v3122
        %3440 = vmatprep.subr.mxu0 %v3127
        %3441 = vmatpush1.msra.mxu0 %v3126
        %3442 = vmatprep.subr.mxu0 %v3131
        %3443 = vmatpush1.msra.mxu0 %v3130
        %3444 = vmatprep.subr.mxu0 %v3135
        %3445 = vmatpush1.msra.mxu0 %v3134
        %3446 = vmatprep.subr.mxu0 %v3139
        %3447 = vmatpush1.msra.mxu0 %v3138
        %3448 = vmatprep.subr.mxu0 %v3143
        %3449 = vmatpush1.msra.mxu0 %v3142
        %3450 = vmatprep.subr.mxu0 %v3147
        %3451 = vmatpush1.msra.mxu0 %v3146
        %3452 = vmatprep.subr.mxu0 %v3151
        %3453 = vmatpush1.msra.mxu0 %v3150
        %3454 = vmatprep.subr.mxu0 %v3155
        %3455 = vmatpush1.msra.mxu0 %v3154
        %3456 = vmatprep.subr.mxu0 %v3159
        %3457 = vmatpush1.msra.mxu0 %v3158
        %3458 = vmatprep.subr.mxu0 %v3163
        %3459 = vmatpush1.msra.mxu0 %v3162
        %3460 = vmatprep.subr.mxu0 %v3195
        %3461 = vmatpush1.msra.mxu0 %v3192
        %3462 = vmatprep.subr.mxu0 0.0
        %3463 = vmatpush1.msra.mxu0 0.0
        %3464 = vmatprep.subr.mxu0 0.0
        %3465 = vmatpush1.msra.mxu0 0.0
        %3466 = vmatprep.subr.mxu0 0.0
        %3467 = vmatpush1.msra.mxu0 0.0
        %3468 = vmatprep.subr.mxu0 0.0
        %3469 = vmatpush1.msra.mxu0 0.0
        %3470 = vmatprep.subr.mxu0 0.0
        %3471 = vmatpush1.msra.mxu0 0.0
        %3472 = vmatprep.subr.mxu0 0.0
        %3473 = vmatpush1.msra.mxu0 0.0
        %3474 = vmatprep.mubr.f32.mxu0 %v3183
        %3475 = vmatmul.mubr.f32.gmra.mrb[0].mxu0 %v3176
        %v3476 = vpop.f32.mrb[0].mxu0
        %v3477 = vadd.f32 %v3406, %v3476
        %v3478 = vpop.f32.mrb[0].mxu0
        %v3479 = vadd.f32 %v3408, %v3478
        %3480 = vdwg.mxu0
        %v3481 = vadd.f32 %v2789, %v3335
        %v3482 = vadd.f32 %v2791, %v3337
        %v3483 = vadd.f32 %v2931, %v3477
        %v3484 = vadd.f32 %v2933, %v3479
        %s3485 = scalar_lea.vmem %s3, 5568
        %v3486 = vld [vmem:[%s3485] sm:$0xff]
        %v3487 = vld [vmem:[%s3485 + $0x8] sm:$0xff]
        %v3488 = vld [vmem:[%s3485 + $0x10] sm:$0xff]
        %v3489 = vld [vmem:[%s3485 + $0x18] sm:$0xff]
        %v3490 = vld [vmem:[%s3485 + $0x20] sm:$0xff]
        %v3491 = vld [vmem:[%s3485 + $0x28] sm:$0xff]
        %v3492 = vld [vmem:[%s3485 + $0x30] sm:$0xff]
        %v3493 = vld [vmem:[%s3485 + $0x38] sm:$0xff]
        %v3494 = vld [vmem:[%s3485 + $0x40] sm:$0xff]
        %v3495 = vld [vmem:[%s3485 + $0x48] sm:$0xff]
        %v3496 = vld [vmem:[%s3485 + $0x50] sm:$0xff]
        %v3497 = vld [vmem:[%s3485 + $0x58] sm:$0xff]
        %v3498 = vld [vmem:[%s3485 + $0x60] sm:$0xff]
        %v3499 = vld [vmem:[%s3485 + $0x68] sm:$0xff]
        %v3500 = vld [vmem:[%s3485 + $0x70] sm:$0xff]
        %v3501 = vld [vmem:[%s3485 + $0x78] sm:$0xff]
        %v3502 = vld [vmem:[%s3485 + $0x80] sm:$0xff]
        %v3503 = vld [vmem:[%s3485 + $0x88] sm:$0xff]
        %v3504 = vld [vmem:[%s3485 + $0x90] sm:$0xff]
        %v3505 = vld [vmem:[%s3485 + $0x98] sm:$0xff]
        %v3506 = vld [vmem:[%s3485 + $0xa0] sm:$0xff]
        %v3507 = vld [vmem:[%s3485 + $0xa8] sm:$0xff]
        %v3508 = vld [vmem:[%s3485 + $0xb0] sm:$0xff]
        %v3509 = vld [vmem:[%s3485 + $0xb8] sm:$0xff]
        %v3510 = vld [vmem:[%s3485 + $0xc0] sm:$0xff]
        %v3511 = vld [vmem:[%s3485 + $0xc8] sm:$0xff]
        %v3512 = vld [vmem:[%s3485 + $0xd0] sm:$0xff]
        %v3513 = vld [vmem:[%s3485 + $0xd8] sm:$0xff]
        %v3514 = vld [vmem:[%s3485 + $0xe0] sm:$0xff]
        %v3515 = vld [vmem:[%s3485 + $0xe8] sm:$0xff]
        %v3516 = vld [vmem:[%s3485 + $0xf0] sm:$0xff]
        %v3517 = vld [vmem:[%s3485 + $0xf8] sm:$0xff]
        %v3518 = vld [vmem:[%s3485 + $0x100] sm:$0xff]
        %v3519 = vld [vmem:[%s3485 + $0x108] sm:$0xff]
        %v3520 = vld [vmem:[%s3485 + $0x110] sm:$0xff]
        %v3521 = vld [vmem:[%s3485 + $0x118] sm:$0xff]
        %v3522 = vld [vmem:[%s3485 + $0x120] sm:$0xff]
        %v3523 = vld [vmem:[%s3485 + $0x128] sm:$0xff]
        %v3524 = vld [vmem:[%s3485 + $0x130] sm:$0xff]
        %v3525 = vld [vmem:[%s3485 + $0x138] sm:$0xff]
        %v3526 = vld [vmem:[%s3485 + $0x140] sm:$0xff]
        %v3527 = vld [vmem:[%s3485 + $0x148] sm:$0xff]
        %v3528 = vld [vmem:[%s3485 + $0x150] sm:$0xff]
        %v3529 = vld [vmem:[%s3485 + $0x158] sm:$0xff]
        %v3530 = vld [vmem:[%s3485 + $0x160] sm:$0xff]
        %v3531 = vld [vmem:[%s3485 + $0x168] sm:$0xff]
        %v3532 = vld [vmem:[%s3485 + $0x170] sm:$0xff]
        %v3533 = vld [vmem:[%s3485 + $0x178] sm:$0xff]
        %v3534 = vld [vmem:[%s3485 + $0x180] sm:$0xff]
        %v3535 = vld [vmem:[%s3485 + $0x188] sm:$0xff]
        %v3536 = vld [vmem:[%s3485 + $0x190] sm:$0xff]
        %v3537 = vld [vmem:[%s3485 + $0x198] sm:$0xff]
        %v3538 = vld [vmem:[%s3485 + $0x1a0] sm:$0xff]
        %v3539 = vld [vmem:[%s3485 + $0x1a8] sm:$0xff]
        %v3540 = vld [vmem:[%s3485 + $0x1b0] sm:$0xff]
        %v3541 = vld [vmem:[%s3485 + $0x1b8] sm:$0xff]
        %v3542 = vld [vmem:[%s3485 + $0x1c0] sm:$0xff]
        %v3543 = vld [vmem:[%s3485 + $0x1c8] sm:$0xff]
        %v3544 = vld [vmem:[%s3485 + $0x1d0] sm:$0xff]
        %v3545 = vld [vmem:[%s3485 + $0x1d8] sm:$0xff]
        %v3546 = vld [vmem:[%s3485 + $0x1e0] sm:$0xff]
        %v3547 = vld [vmem:[%s3485 + $0x1e8] sm:$0xff]
        %v3548 = vld [vmem:[%s3485 + $0x1f0] sm:$0xff]
        %v3549 = vld [vmem:[%s3485 + $0x1f8] sm:$0xff]
        %v3550 = vld [vmem:[%s3485 + $0x200] sm:$0xff]
        %v3551 = vld [vmem:[%s3485 + $0x208] sm:$0xff]
        %v3552 = vld [vmem:[%s3485 + $0x210] sm:$0xff]
        %v3553 = vld [vmem:[%s3485 + $0x218] sm:$0xff]
        %v3554 = vld [vmem:[%s3485 + $0x220] sm:$0xff]
        %v3555 = vld [vmem:[%s3485 + $0x228] sm:$0xff]
        %v3556 = vld [vmem:[%s3485 + $0x230] sm:$0xff]
        %v3557 = vld [vmem:[%s3485 + $0x238] sm:$0xff]
        %v3558 = vld [vmem:[%s3485 + $0x240] sm:$0xff]
        %v3559 = vld [vmem:[%s3485 + $0x248] sm:$0xff]
        %v3560 = vld [vmem:[%s3485 + $0x250] sm:$0xff]
        %v3561 = vld [vmem:[%s3485 + $0x258] sm:$0xff]
        %v3562 = vld [vmem:[%s3485 + $0x260] sm:$0xff]
        %v3563 = vld [vmem:[%s3485 + $0x268] sm:$0xff]
        %v3564 = vld [vmem:[%s3485 + $0x270] sm:$0xff]
        %v3565 = vld [vmem:[%s3485 + $0x278] sm:$0xff]
        %v3566 = vld [vmem:[%s3485 + $0x280] sm:$0xff]
        %v3567 = vld [vmem:[%s3485 + $0x288] sm:$0xff]
        %v3568 = vld [vmem:[%s3485 + $0x290] sm:$0xff]
        %v3569 = vld [vmem:[%s3485 + $0x298] sm:$0xff]
        %v3570 = vld [vmem:[%s3485 + $0x2a0] sm:$0xff]
        %v3571 = vld [vmem:[%s3485 + $0x2a8] sm:$0xff]
        %v3572 = vld [vmem:[%s3485 + $0x2b0] sm:$0xff]
        %v3573 = vld [vmem:[%s3485 + $0x2b8] sm:$0xff]
        %v3574 = vld [vmem:[%s3485 + $0x2c0] sm:$0xff]
        %v3575 = vld [vmem:[%s3485 + $0x2c8] sm:$0xff]
        %v3576 = vld [vmem:[%s3485 + $0x2d0] sm:$0xff]
        %v3577 = vld [vmem:[%s3485 + $0x2d8] sm:$0xff]
        %v3578 = vld [vmem:[%s3485 + $0x2e0] sm:$0xff]
        %v3579 = vld [vmem:[%s3485 + $0x2e8] sm:$0xff]
        %v3580 = vld [vmem:[%s3485 + $0x2f0] sm:$0xff]
        %v3581 = vld [vmem:[%s3485 + $0x2f8] sm:$0xff]
        %v3582 = vld [vmem:[%s3485 + $0x300] sm:$0xff]
        %v3583 = vld [vmem:[%s3485 + $0x308] sm:$0xff]
        %v3584 = vld [vmem:[%s3485 + $0x310] sm:$0xff]
        %v3585 = vld [vmem:[%s3485 + $0x318] sm:$0xff]
        %v3586 = vld [vmem:[%s3485 + $0x320] sm:$0xff]
        %v3587 = vld [vmem:[%s3485 + $0x328] sm:$0xff]
        %v3588 = vld [vmem:[%s3485 + $0x330] sm:$0xff]
        %v3589 = vld [vmem:[%s3485 + $0x338] sm:$0xff]
        %v3590 = vld [vmem:[%s3485 + $0x340] sm:$0xff]
        %v3591 = vld [vmem:[%s3485 + $0x348] sm:$0xff]
        %v3592 = vld [vmem:[%s3485 + $0x350] sm:$0xff]
        %v3593 = vld [vmem:[%s3485 + $0x358] sm:$0xff]
        %v3594 = vld [vmem:[%s3485 + $0x360] sm:$0xff]
        %v3595 = vld [vmem:[%s3485 + $0x368] sm:$0xff]
        %v3596 = vld [vmem:[%s3485 + $0x370] sm:$0xff]
        %v3597 = vld [vmem:[%s3485 + $0x378] sm:$0xff]
        %v3598 = vld [vmem:[%s3485 + $0x380] sm:$0xff]
        %v3599 = vld [vmem:[%s3485 + $0x388] sm:$0xff]
        %v3600 = vld [vmem:[%s3485 + $0x390] sm:$0xff]
        %v3601 = vld [vmem:[%s3485 + $0x398] sm:$0xff]
        %v3602 = vld [vmem:[%s3485 + $0x3a0] sm:$0xff]
        %v3603 = vld [vmem:[%s3485 + $0x3a8] sm:$0xff]
        %v3604 = vld [vmem:[%s3485 + $0x3b0] sm:$0xff]
        %v3605 = vld [vmem:[%s3485 + $0x3b8] sm:$0xff]
        %v3606 = vld [vmem:[%s3485 + $0x3c0] sm:$0xff]
        %v3607 = vld [vmem:[%s3485 + $0x3c8] sm:$0xff]
        %v3608 = vld [vmem:[%s3485 + $0x3d0] sm:$0xff]
        %v3609 = vld [vmem:[%s3485 + $0x3d8] sm:$0xff]
        %v3610 = vld [vmem:[%s3485 + $0x3e0] sm:$0xff]
        %v3611 = vld [vmem:[%s3485 + $0x3e8] sm:$0xff]
        %v3612 = vld [vmem:[%s3485 + $0x3f0] sm:$0xff]
        %v3613 = vld [vmem:[%s3485 + $0x3f8] sm:$0xff]
        %v3614 = vld [vmem:[%s3485 + $0x400] sm:$0xff]
        %v3615 = vld [vmem:[%s3485 + $0x408] sm:$0xff]
        %v3616 = vld [vmem:[%s3485 + $0x410] sm:$0xff]
        %v3617 = vld [vmem:[%s3485 + $0x418] sm:$0xff]
        %v3618 = vld [vmem:[%s3485 + $0x420] sm:$0xff]
        %v3619 = vld [vmem:[%s3485 + $0x428] sm:$0xff]
        %v3620 = vld [vmem:[%s3485 + $0x430] sm:$0xff]
        %v3621 = vld [vmem:[%s3485 + $0x438] sm:$0xff]
        %v3622 = vld [vmem:[%s3485 + $0x440] sm:$0xff]
        %v3623 = vld [vmem:[%s3485 + $0x448] sm:$0xff]
        %v3624 = vld [vmem:[%s3485 + $0x450] sm:$0xff]
        %v3625 = vld [vmem:[%s3485 + $0x458] sm:$0xff]
        %v3626 = vld [vmem:[%s3485 + $0x460] sm:$0xff]
        %v3627 = vld [vmem:[%s3485 + $0x468] sm:$0xff]
        %v3628 = vld [vmem:[%s3485 + $0x470] sm:$0xff]
        %v3629 = vld [vmem:[%s3485 + $0x478] sm:$0xff]
        %v3630 = vld [vmem:[%s3485 + $0x480] sm:$0xff]
        %v3631 = vld [vmem:[%s3485 + $0x488] sm:$0xff]
        %v3632 = vld [vmem:[%s3485 + $0x490] sm:$0xff]
        %v3633 = vld [vmem:[%s3485 + $0x498] sm:$0xff]
        %v3634 = vld [vmem:[%s3485 + $0x4a0] sm:$0xff]
        %v3635 = vld [vmem:[%s3485 + $0x4a8] sm:$0xff]
        %v3636 = vld [vmem:[%s3485 + $0x4b0] sm:$0xff]
        %v3637 = vld [vmem:[%s3485 + $0x4b8] sm:$0xff]
        %v3638 = vld [vmem:[%s3485 + $0x4c0] sm:$0xff]
        %v3639 = vld [vmem:[%s3485 + $0x4c8] sm:$0xff]
        %v3640 = vld [vmem:[%s3485 + $0x4d0] sm:$0xff]
        %v3641 = vld [vmem:[%s3485 + $0x4d8] sm:$0xff]
        %v3642 = vld [vmem:[%s3485 + $0x4e0] sm:$0xff]
        %v3643 = vld [vmem:[%s3485 + $0x4e8] sm:$0xff]
        %v3644 = vld [vmem:[%s3485 + $0x4f0] sm:$0xff]
        %v3645 = vld [vmem:[%s3485 + $0x4f8] sm:$0xff]
        %v3646 = vld [vmem:[%s3485 + $0x500] sm:$0xff]
        %v3647 = vld [vmem:[%s3485 + $0x508] sm:$0xff]
        %v3648 = vld [vmem:[%s3485 + $0x510] sm:$0xff]
        %v3649 = vld [vmem:[%s3485 + $0x518] sm:$0xff]
        %v3650 = vld [vmem:[%s3485 + $0x520] sm:$0xff]
        %v3651 = vld [vmem:[%s3485 + $0x528] sm:$0xff]
        %v3652 = vld [vmem:[%s3485 + $0x530] sm:$0xff]
        %v3653 = vld [vmem:[%s3485 + $0x538] sm:$0xff]
        %v3654 = vld [vmem:[%s3485 + $0x540] sm:$0xff]
        %v3655 = vld [vmem:[%s3485 + $0x548] sm:$0xff]
        %v3656 = vld [vmem:[%s3485 + $0x550] sm:$0xff]
        %v3657 = vld [vmem:[%s3485 + $0x558] sm:$0xff]
        %v3658 = vld [vmem:[%s3485 + $0x560] sm:$0xff]
        %v3659 = vld [vmem:[%s3485 + $0x568] sm:$0xff]
        %v3660 = vld [vmem:[%s3485 + $0x570] sm:$0xff]
        %v3661 = vld [vmem:[%s3485 + $0x578] sm:$0xff]
        %v3662 = vld [vmem:[%s3485 + $0x580] sm:$0xff]
        %v3663 = vld [vmem:[%s3485 + $0x588] sm:$0xff]
        %v3664 = vld [vmem:[%s3485 + $0x590] sm:$0xff]
        %v3665 = vld [vmem:[%s3485 + $0x598] sm:$0xff]
        %v3666 = vld [vmem:[%s3485 + $0x5a0] sm:$0xff]
        %v3667 = vld [vmem:[%s3485 + $0x5a8] sm:$0xff]
        %v3668 = vld [vmem:[%s3485 + $0x5b0] sm:$0xff]
        %v3669 = vld [vmem:[%s3485 + $0x5b8] sm:$0xff]
        %v3670 = vld [vmem:[%s3485 + $0x5c0] sm:$0xff]
        %v3671 = vld [vmem:[%s3485 + $0x5c8] sm:$0xff]
        %v3672 = vld [vmem:[%s3485 + $0x5d0] sm:$0xff]
        %v3673 = vld [vmem:[%s3485 + $0x5d8] sm:$0xff]
        %v3674 = vld [vmem:[%s3485 + $0x5e0] sm:$0xff]
        %v3675 = vld [vmem:[%s3485 + $0x5e8] sm:$0xff]
        %v3676 = vld [vmem:[%s3485 + $0x5f0] sm:$0xff]
        %v3677 = vld [vmem:[%s3485 + $0x5f8] sm:$0xff]
        %v3678 = vld [vmem:[%s3485 + $0x600] sm:$0xff]
        %v3679 = vld [vmem:[%s3485 + $0x608] sm:$0xff]
        %v3680 = vld [vmem:[%s3485 + $0x610] sm:$0xff]
        %v3681 = vld [vmem:[%s3485 + $0x618] sm:$0xff]
        %v3682 = vld [vmem:[%s3485 + $0x620] sm:$0xff]
        %v3683 = vld [vmem:[%s3485 + $0x628] sm:$0xff]
        %v3684 = vld [vmem:[%s3485 + $0x630] sm:$0xff]
        %v3685 = vld [vmem:[%s3485 + $0x638] sm:$0xff]
        %v3686 = vld [vmem:[%s3485 + $0x640] sm:$0xff]
        %v3687 = vld [vmem:[%s3485 + $0x648] sm:$0xff]
        %v3688 = vld [vmem:[%s3485 + $0x650] sm:$0xff]
        %v3689 = vld [vmem:[%s3485 + $0x658] sm:$0xff]
        %v3690 = vld [vmem:[%s3485 + $0x660] sm:$0xff]
        %v3691 = vld [vmem:[%s3485 + $0x668] sm:$0xff]
        %v3692 = vld [vmem:[%s3485 + $0x670] sm:$0xff]
        %v3693 = vld [vmem:[%s3485 + $0x678] sm:$0xff]
        %v3694 = vld [vmem:[%s3485 + $0x680] sm:$0xff]
        %v3695 = vld [vmem:[%s3485 + $0x688] sm:$0xff]
        %v3696 = vld [vmem:[%s3485 + $0x690] sm:$0xff]
        %v3697 = vld [vmem:[%s3485 + $0x698] sm:$0xff]
        %v3698 = vld [vmem:[%s3485 + $0x6a0] sm:$0xff]
        %v3699 = vld [vmem:[%s3485 + $0x6a8] sm:$0xff]
        %v3700 = vld [vmem:[%s3485 + $0x6b0] sm:$0xff]
        %v3701 = vld [vmem:[%s3485 + $0x6b8] sm:$0xff]
        %v3702 = vld [vmem:[%s3485 + $0x6c0] sm:$0xff]
        %v3703 = vld [vmem:[%s3485 + $0x6c8] sm:$0xff]
        %v3704 = vld [vmem:[%s3485 + $0x6d0] sm:$0xff]
        %v3705 = vld [vmem:[%s3485 + $0x6d8] sm:$0xff]
        %v3706 = vld [vmem:[%s3485 + $0x6e0] sm:$0xff]
        %v3707 = vld [vmem:[%s3485 + $0x6e8] sm:$0xff]
        %v3708 = vld [vmem:[%s3485 + $0x6f0] sm:$0xff]
        %v3709 = vld [vmem:[%s3485 + $0x6f8] sm:$0xff]
        %v3710 = vld [vmem:[%s3485 + $0x700] sm:$0xff]
        %v3711 = vld [vmem:[%s3485 + $0x708] sm:$0xff]
        %v3712 = vld [vmem:[%s3485 + $0x710] sm:$0xff]
        %v3713 = vld [vmem:[%s3485 + $0x718] sm:$0xff]
        %v3714 = vld [vmem:[%s3485 + $0x720] sm:$0xf]
        %v3715 = vld [vmem:[%s3485 + $0x728] sm:$0xf]
        %v3716 = vld [vmem:[%s3485 + $0x730] sm:$0xf]
        %v3717 = vld [vmem:[%s3485 + $0x738] sm:$0xf]
        %v3718 = vrot.slane %v1842, 3
        %v3719 = vrot.slane %v1846, 3
        %v3720 = vsel %vm987, %v3718, %v3719
        %v3721 = vrot.slane %v1843, 3
        %v3722 = vrot.slane %v1847, 3
        %v3723 = vsel %vm987, %v3721, %v3722
        %v3724 = vrot.slane %v1844, 3
        %v3725 = vrot.slane %v1848, 3
        %v3726 = vsel %vm987, %v3724, %v3725
        %v3727 = vrot.slane %v1845, 3
        %v3728 = vrot.slane %v1849, 3
        %v3729 = vsel %vm987, %v3727, %v3728
        %v3733 = vsel %vm2338, %v3729, 0
        %v3736 = vsel %vm386, %v3714, 0
        %v3739 = vsel %vm386, %v3715, 0
        %v3742 = vsel %vm386, %v3716, 0
        %v3745 = vsel %vm386, %v3717, 0
        %3747 = vmatprep.subr.mxu0 %v3487
        %3748 = vmatpush1.msra.mxu0 %v3486
        %3749 = vmatprep.subr.mxu0 %v3491
        %3750 = vmatpush1.msra.mxu0 %v3490
        %3751 = vmatprep.subr.mxu0 %v3495
        %3752 = vmatpush1.msra.mxu0 %v3494
        %3753 = vmatprep.subr.mxu0 %v3499
        %3754 = vmatpush1.msra.mxu0 %v3498
        %3755 = vmatprep.subr.mxu0 %v3503
        %3756 = vmatpush1.msra.mxu0 %v3502
        %3757 = vmatprep.subr.mxu0 %v3507
        %3758 = vmatpush1.msra.mxu0 %v3506
        %3759 = vmatprep.subr.mxu0 %v3511
        %3760 = vmatpush1.msra.mxu0 %v3510
        %3761 = vmatprep.subr.mxu0 %v3515
        %3762 = vmatpush1.msra.mxu0 %v3514
        %3763 = vmatprep.subr.mxu0 %v3519
        %3764 = vmatpush1.msra.mxu0 %v3518
        %3765 = vmatprep.subr.mxu0 %v3523
        %3766 = vmatpush1.msra.mxu0 %v3522
        %3767 = vmatprep.subr.mxu0 %v3527
        %3768 = vmatpush1.msra.mxu0 %v3526
        %3769 = vmatprep.subr.mxu0 %v3531
        %3770 = vmatpush1.msra.mxu0 %v3530
        %3771 = vmatprep.subr.mxu0 %v3535
        %3772 = vmatpush1.msra.mxu0 %v3534
        %3773 = vmatprep.subr.mxu0 %v3539
        %3774 = vmatpush1.msra.mxu0 %v3538
        %3775 = vmatprep.subr.mxu0 %v3543
        %3776 = vmatpush1.msra.mxu0 %v3542
        %3777 = vmatprep.subr.mxu0 %v3547
        %3778 = vmatpush1.msra.mxu0 %v3546
        %3779 = vmatprep.subr.mxu0 %v3551
        %3780 = vmatpush1.msra.mxu0 %v3550
        %3781 = vmatprep.subr.mxu0 %v3555
        %3782 = vmatpush1.msra.mxu0 %v3554
        %3783 = vmatprep.subr.mxu0 %v3559
        %3784 = vmatpush1.msra.mxu0 %v3558
        %3785 = vmatprep.subr.mxu0 %v3563
        %3786 = vmatpush1.msra.mxu0 %v3562
        %3787 = vmatprep.subr.mxu0 %v3567
        %3788 = vmatpush1.msra.mxu0 %v3566
        %3789 = vmatprep.subr.mxu0 %v3571
        %3790 = vmatpush1.msra.mxu0 %v3570
        %3791 = vmatprep.subr.mxu0 %v3575
        %3792 = vmatpush1.msra.mxu0 %v3574
        %3793 = vmatprep.subr.mxu0 %v3579
        %3794 = vmatpush1.msra.mxu0 %v3578
        %3795 = vmatprep.subr.mxu0 %v3583
        %3796 = vmatpush1.msra.mxu0 %v3582
        %3797 = vmatprep.subr.mxu0 %v3587
        %3798 = vmatpush1.msra.mxu0 %v3586
        %3799 = vmatprep.subr.mxu0 %v3591
        %3800 = vmatpush1.msra.mxu0 %v3590
        %3801 = vmatprep.subr.mxu0 %v3595
        %3802 = vmatpush1.msra.mxu0 %v3594
        %3803 = vmatprep.subr.mxu0 %v3599
        %3804 = vmatpush1.msra.mxu0 %v3598
        %3805 = vmatprep.subr.mxu0 %v3603
        %3806 = vmatpush1.msra.mxu0 %v3602
        %3807 = vmatprep.subr.mxu0 %v3607
        %3808 = vmatpush1.msra.mxu0 %v3606
        %3809 = vmatprep.subr.mxu0 %v3611
        %3810 = vmatpush1.msra.mxu0 %v3610
        %3811 = vmatprep.mubr.f32.mxu0 %v3723
        %3812 = vmatmul.mubr.f32.gmra.mrb[0].mxu0 %v3720
        %v3813 = vpop.f32.mrb[0].mxu0
        %v3814 = vadd.f32 0.0, %v3813
        %v3815 = vpop.f32.mrb[0].mxu0
        %v3816 = vadd.f32 0.0, %v3815
        %3817 = vdwg.mxu0
        %3818 = vmatprep.subr.mxu0 %v3615
        %3819 = vmatpush1.msra.mxu0 %v3614
        %3820 = vmatprep.subr.mxu0 %v3619
        %3821 = vmatpush1.msra.mxu0 %v3618
        %3822 = vmatprep.subr.mxu0 %v3623
        %3823 = vmatpush1.msra.mxu0 %v3622
        %3824 = vmatprep.subr.mxu0 %v3627
        %3825 = vmatpush1.msra.mxu0 %v3626
        %3826 = vmatprep.subr.mxu0 %v3631
        %3827 = vmatpush1.msra.mxu0 %v3630
        %3828 = vmatprep.subr.mxu0 %v3635
        %3829 = vmatpush1.msra.mxu0 %v3634
        %3830 = vmatprep.subr.mxu0 %v3639
        %3831 = vmatpush1.msra.mxu0 %v3638
        %3832 = vmatprep.subr.mxu0 %v3643
        %3833 = vmatpush1.msra.mxu0 %v3642
        %3834 = vmatprep.subr.mxu0 %v3647
        %3835 = vmatpush1.msra.mxu0 %v3646
        %3836 = vmatprep.subr.mxu0 %v3651
        %3837 = vmatpush1.msra.mxu0 %v3650
        %3838 = vmatprep.subr.mxu0 %v3655
        %3839 = vmatpush1.msra.mxu0 %v3654
        %3840 = vmatprep.subr.mxu0 %v3659
        %3841 = vmatpush1.msra.mxu0 %v3658
        %3842 = vmatprep.subr.mxu0 %v3663
        %3843 = vmatpush1.msra.mxu0 %v3662
        %3844 = vmatprep.subr.mxu0 %v3667
        %3845 = vmatpush1.msra.mxu0 %v3666
        %3846 = vmatprep.subr.mxu0 %v3671
        %3847 = vmatpush1.msra.mxu0 %v3670
        %3848 = vmatprep.subr.mxu0 %v3675
        %3849 = vmatpush1.msra.mxu0 %v3674
        %3850 = vmatprep.subr.mxu0 %v3679
        %3851 = vmatpush1.msra.mxu0 %v3678
        %3852 = vmatprep.subr.mxu0 %v3683
        %3853 = vmatpush1.msra.mxu0 %v3682
        %3854 = vmatprep.subr.mxu0 %v3687
        %3855 = vmatpush1.msra.mxu0 %v3686
        %3856 = vmatprep.subr.mxu0 %v3691
        %3857 = vmatpush1.msra.mxu0 %v3690
        %3858 = vmatprep.subr.mxu0 %v3695
        %3859 = vmatpush1.msra.mxu0 %v3694
        %3860 = vmatprep.subr.mxu0 %v3699
        %3861 = vmatpush1.msra.mxu0 %v3698
        %3862 = vmatprep.subr.mxu0 %v3703
        %3863 = vmatpush1.msra.mxu0 %v3702
        %3864 = vmatprep.subr.mxu0 %v3707
        %3865 = vmatpush1.msra.mxu0 %v3706
        %3866 = vmatprep.subr.mxu0 %v3711
        %3867 = vmatpush1.msra.mxu0 %v3710
        %3868 = vmatprep.subr.mxu0 %v3739
        %3869 = vmatpush1.msra.mxu0 %v3736
        %3870 = vmatprep.subr.mxu0 0.0
        %3871 = vmatpush1.msra.mxu0 0.0
        %3872 = vmatprep.subr.mxu0 0.0
        %3873 = vmatpush1.msra.mxu0 0.0
        %3874 = vmatprep.subr.mxu0 0.0
        %3875 = vmatpush1.msra.mxu0 0.0
        %3876 = vmatprep.subr.mxu0 0.0
        %3877 = vmatpush1.msra.mxu0 0.0
        %3878 = vmatprep.subr.mxu0 0.0
        %3879 = vmatpush1.msra.mxu0 0.0
        %3880 = vmatprep.subr.mxu0 0.0
        %3881 = vmatpush1.msra.mxu0 0.0
        %3882 = vmatprep.mubr.f32.mxu0 %v3733
        %3883 = vmatmul.mubr.f32.gmra.mrb[0].mxu0 %v3726
        %v3884 = vpop.f32.mrb[0].mxu0
        %v3885 = vadd.f32 %v3814, %v3884
        %v3886 = vpop.f32.mrb[0].mxu0
        %v3887 = vadd.f32 %v3816, %v3886
        %3888 = vdwg.mxu0
        %3889 = vmatprep.subr.mxu0 %v3489
        %3890 = vmatpush1.msra.mxu0 %v3488
        %3891 = vmatprep.subr.mxu0 %v3493
        %3892 = vmatpush1.msra.mxu0 %v3492
        %3893 = vmatprep.subr.mxu0 %v3497
        %3894 = vmatpush1.msra.mxu0 %v3496
        %3895 = vmatprep.subr.mxu0 %v3501
        %3896 = vmatpush1.msra.mxu0 %v3500
        %3897 = vmatprep.subr.mxu0 %v3505
        %3898 = vmatpush1.msra.mxu0 %v3504
        %3899 = vmatprep.subr.mxu0 %v3509
        %3900 = vmatpush1.msra.mxu0 %v3508
        %3901 = vmatprep.subr.mxu0 %v3513
        %3902 = vmatpush1.msra.mxu0 %v3512
        %3903 = vmatprep.subr.mxu0 %v3517
        %3904 = vmatpush1.msra.mxu0 %v3516
        %3905 = vmatprep.subr.mxu0 %v3521
        %3906 = vmatpush1.msra.mxu0 %v3520
        %3907 = vmatprep.subr.mxu0 %v3525
        %3908 = vmatpush1.msra.mxu0 %v3524
        %3909 = vmatprep.subr.mxu0 %v3529
        %3910 = vmatpush1.msra.mxu0 %v3528
        %3911 = vmatprep.subr.mxu0 %v3533
        %3912 = vmatpush1.msra.mxu0 %v3532
        %3913 = vmatprep.subr.mxu0 %v3537
        %3914 = vmatpush1.msra.mxu0 %v3536
        %3915 = vmatprep.subr.mxu0 %v3541
        %3916 = vmatpush1.msra.mxu0 %v3540
        %3917 = vmatprep.subr.mxu0 %v3545
        %3918 = vmatpush1.msra.mxu0 %v3544
        %3919 = vmatprep.subr.mxu0 %v3549
        %3920 = vmatpush1.msra.mxu0 %v3548
        %3921 = vmatprep.subr.mxu0 %v3553
        %3922 = vmatpush1.msra.mxu0 %v3552
        %3923 = vmatprep.subr.mxu0 %v3557
        %3924 = vmatpush1.msra.mxu0 %v3556
        %3925 = vmatprep.subr.mxu0 %v3561
        %3926 = vmatpush1.msra.mxu0 %v3560
        %3927 = vmatprep.subr.mxu0 %v3565
        %3928 = vmatpush1.msra.mxu0 %v3564
        %3929 = vmatprep.subr.mxu0 %v3569
        %3930 = vmatpush1.msra.mxu0 %v3568
        %3931 = vmatprep.subr.mxu0 %v3573
        %3932 = vmatpush1.msra.mxu0 %v3572
        %3933 = vmatprep.subr.mxu0 %v3577
        %3934 = vmatpush1.msra.mxu0 %v3576
        %3935 = vmatprep.subr.mxu0 %v3581
        %3936 = vmatpush1.msra.mxu0 %v3580
        %3937 = vmatprep.subr.mxu0 %v3585
        %3938 = vmatpush1.msra.mxu0 %v3584
        %3939 = vmatprep.subr.mxu0 %v3589
        %3940 = vmatpush1.msra.mxu0 %v3588
        %3941 = vmatprep.subr.mxu0 %v3593
        %3942 = vmatpush1.msra.mxu0 %v3592
        %3943 = vmatprep.subr.mxu0 %v3597
        %3944 = vmatpush1.msra.mxu0 %v3596
        %3945 = vmatprep.subr.mxu0 %v3601
        %3946 = vmatpush1.msra.mxu0 %v3600
        %3947 = vmatprep.subr.mxu0 %v3605
        %3948 = vmatpush1.msra.mxu0 %v3604
        %3949 = vmatprep.subr.mxu0 %v3609
        %3950 = vmatpush1.msra.mxu0 %v3608
        %3951 = vmatprep.subr.mxu0 %v3613
        %3952 = vmatpush1.msra.mxu0 %v3612
        %3953 = vmatprep.mubr.f32.mxu0 %v3723
        %3954 = vmatmul.mubr.f32.gmra.mrb[0].mxu0 %v3720
        %v3955 = vpop.f32.mrb[0].mxu0
        %v3956 = vadd.f32 0.0, %v3955
        %v3957 = vpop.f32.mrb[0].mxu0
        %v3958 = vadd.f32 0.0, %v3957
        %3959 = vdwg.mxu0
        %3960 = vmatprep.subr.mxu0 %v3617
        %3961 = vmatpush1.msra.mxu0 %v3616
        %3962 = vmatprep.subr.mxu0 %v3621
        %3963 = vmatpush1.msra.mxu0 %v3620
        %3964 = vmatprep.subr.mxu0 %v3625
        %3965 = vmatpush1.msra.mxu0 %v3624
        %3966 = vmatprep.subr.mxu0 %v3629
        %3967 = vmatpush1.msra.mxu0 %v3628
        %3968 = vmatprep.subr.mxu0 %v3633
        %3969 = vmatpush1.msra.mxu0 %v3632
        %3970 = vmatprep.subr.mxu0 %v3637
        %3971 = vmatpush1.msra.mxu0 %v3636
        %3972 = vmatprep.subr.mxu0 %v3641
        %3973 = vmatpush1.msra.mxu0 %v3640
        %3974 = vmatprep.subr.mxu0 %v3645
        %3975 = vmatpush1.msra.mxu0 %v3644
        %3976 = vmatprep.subr.mxu0 %v3649
        %3977 = vmatpush1.msra.mxu0 %v3648
        %3978 = vmatprep.subr.mxu0 %v3653
        %3979 = vmatpush1.msra.mxu0 %v3652
        %3980 = vmatprep.subr.mxu0 %v3657
        %3981 = vmatpush1.msra.mxu0 %v3656
        %3982 = vmatprep.subr.mxu0 %v3661
        %3983 = vmatpush1.msra.mxu0 %v3660
        %3984 = vmatprep.subr.mxu0 %v3665
        %3985 = vmatpush1.msra.mxu0 %v3664
        %3986 = vmatprep.subr.mxu0 %v3669
        %3987 = vmatpush1.msra.mxu0 %v3668
        %3988 = vmatprep.subr.mxu0 %v3673
        %3989 = vmatpush1.msra.mxu0 %v3672
        %3990 = vmatprep.subr.mxu0 %v3677
        %3991 = vmatpush1.msra.mxu0 %v3676
        %3992 = vmatprep.subr.mxu0 %v3681
        %3993 = vmatpush1.msra.mxu0 %v3680
        %3994 = vmatprep.subr.mxu0 %v3685
        %3995 = vmatpush1.msra.mxu0 %v3684
        %3996 = vmatprep.subr.mxu0 %v3689
        %3997 = vmatpush1.msra.mxu0 %v3688
        %3998 = vmatprep.subr.mxu0 %v3693
        %3999 = vmatpush1.msra.mxu0 %v3692
        %4000 = vmatprep.subr.mxu0 %v3697
        %4001 = vmatpush1.msra.mxu0 %v3696
        %4002 = vmatprep.subr.mxu0 %v3701
        %4003 = vmatpush1.msra.mxu0 %v3700
        %4004 = vmatprep.subr.mxu0 %v3705
        %4005 = vmatpush1.msra.mxu0 %v3704
        %4006 = vmatprep.subr.mxu0 %v3709
        %4007 = vmatpush1.msra.mxu0 %v3708
        %4008 = vmatprep.subr.mxu0 %v3713
        %4009 = vmatpush1.msra.mxu0 %v3712
        %4010 = vmatprep.subr.mxu0 %v3745
        %4011 = vmatpush1.msra.mxu0 %v3742
        %4012 = vmatprep.subr.mxu0 0.0
        %4013 = vmatpush1.msra.mxu0 0.0
        %4014 = vmatprep.subr.mxu0 0.0
        %4015 = vmatpush1.msra.mxu0 0.0
        %4016 = vmatprep.subr.mxu0 0.0
        %4017 = vmatpush1.msra.mxu0 0.0
        %4018 = vmatprep.subr.mxu0 0.0
        %4019 = vmatpush1.msra.mxu0 0.0
        %4020 = vmatprep.subr.mxu0 0.0
        %4021 = vmatpush1.msra.mxu0 0.0
        %4022 = vmatprep.subr.mxu0 0.0
        %4023 = vmatpush1.msra.mxu0 0.0
        %4024 = vmatprep.mubr.f32.mxu0 %v3733
        %4025 = vmatmul.mubr.f32.gmra.mrb[0].mxu0 %v3726
        %v4026 = vpop.f32.mrb[0].mxu0
        %v4027 = vadd.f32 %v3956, %v4026
        %v4028 = vpop.f32.mrb[0].mxu0
        %v4029 = vadd.f32 %v3958, %v4028
        %4030 = vdwg.mxu0
        %v4031 = vadd.f32 %v3481, %v3885
        %v4032 = vadd.f32 %v3482, %v3887
        %v4033 = vadd.f32 %v3483, %v4027
        %v4034 = vadd.f32 %v3484, %v4029
        %s4035 = scalar_lea.vmem %s3, 7424
        %v4036 = vld [vmem:[%s4035] sm:$0xff]
        %v4037 = vld [vmem:[%s4035 + $0x8] sm:$0xff]
        %v4038 = vld [vmem:[%s4035 + $0x10] sm:$0xff]
        %v4039 = vld [vmem:[%s4035 + $0x18] sm:$0xff]
        %v4040 = vld [vmem:[%s4035 + $0x20] sm:$0xff]
        %v4041 = vld [vmem:[%s4035 + $0x28] sm:$0xff]
        %v4042 = vld [vmem:[%s4035 + $0x30] sm:$0xff]
        %v4043 = vld [vmem:[%s4035 + $0x38] sm:$0xff]
        %v4044 = vld [vmem:[%s4035 + $0x40] sm:$0xff]
        %v4045 = vld [vmem:[%s4035 + $0x48] sm:$0xff]
        %v4046 = vld [vmem:[%s4035 + $0x50] sm:$0xff]
        %v4047 = vld [vmem:[%s4035 + $0x58] sm:$0xff]
        %v4048 = vld [vmem:[%s4035 + $0x60] sm:$0xff]
        %v4049 = vld [vmem:[%s4035 + $0x68] sm:$0xff]
        %v4050 = vld [vmem:[%s4035 + $0x70] sm:$0xff]
        %v4051 = vld [vmem:[%s4035 + $0x78] sm:$0xff]
        %v4052 = vld [vmem:[%s4035 + $0x80] sm:$0xff]
        %v4053 = vld [vmem:[%s4035 + $0x88] sm:$0xff]
        %v4054 = vld [vmem:[%s4035 + $0x90] sm:$0xff]
        %v4055 = vld [vmem:[%s4035 + $0x98] sm:$0xff]
        %v4056 = vld [vmem:[%s4035 + $0xa0] sm:$0xff]
        %v4057 = vld [vmem:[%s4035 + $0xa8] sm:$0xff]
        %v4058 = vld [vmem:[%s4035 + $0xb0] sm:$0xff]
        %v4059 = vld [vmem:[%s4035 + $0xb8] sm:$0xff]
        %v4060 = vld [vmem:[%s4035 + $0xc0] sm:$0xff]
        %v4061 = vld [vmem:[%s4035 + $0xc8] sm:$0xff]
        %v4062 = vld [vmem:[%s4035 + $0xd0] sm:$0xff]
        %v4063 = vld [vmem:[%s4035 + $0xd8] sm:$0xff]
        %v4064 = vld [vmem:[%s4035 + $0xe0] sm:$0xff]
        %v4065 = vld [vmem:[%s4035 + $0xe8] sm:$0xff]
        %v4066 = vld [vmem:[%s4035 + $0xf0] sm:$0xff]
        %v4067 = vld [vmem:[%s4035 + $0xf8] sm:$0xff]
        %v4068 = vld [vmem:[%s4035 + $0x100] sm:$0xff]
        %v4069 = vld [vmem:[%s4035 + $0x108] sm:$0xff]
        %v4070 = vld [vmem:[%s4035 + $0x110] sm:$0xff]
        %v4071 = vld [vmem:[%s4035 + $0x118] sm:$0xff]
        %v4072 = vld [vmem:[%s4035 + $0x120] sm:$0xff]
        %v4073 = vld [vmem:[%s4035 + $0x128] sm:$0xff]
        %v4074 = vld [vmem:[%s4035 + $0x130] sm:$0xff]
        %v4075 = vld [vmem:[%s4035 + $0x138] sm:$0xff]
        %v4076 = vld [vmem:[%s4035 + $0x140] sm:$0xff]
        %v4077 = vld [vmem:[%s4035 + $0x148] sm:$0xff]
        %v4078 = vld [vmem:[%s4035 + $0x150] sm:$0xff]
        %v4079 = vld [vmem:[%s4035 + $0x158] sm:$0xff]
        %v4080 = vld [vmem:[%s4035 + $0x160] sm:$0xff]
        %v4081 = vld [vmem:[%s4035 + $0x168] sm:$0xff]
        %v4082 = vld [vmem:[%s4035 + $0x170] sm:$0xff]
        %v4083 = vld [vmem:[%s4035 + $0x178] sm:$0xff]
        %v4084 = vld [vmem:[%s4035 + $0x180] sm:$0xff]
        %v4085 = vld [vmem:[%s4035 + $0x188] sm:$0xff]
        %v4086 = vld [vmem:[%s4035 + $0x190] sm:$0xff]
        %v4087 = vld [vmem:[%s4035 + $0x198] sm:$0xff]
        %v4088 = vld [vmem:[%s4035 + $0x1a0] sm:$0xff]
        %v4089 = vld [vmem:[%s4035 + $0x1a8] sm:$0xff]
        %v4090 = vld [vmem:[%s4035 + $0x1b0] sm:$0xff]
        %v4091 = vld [vmem:[%s4035 + $0x1b8] sm:$0xff]
        %v4092 = vld [vmem:[%s4035 + $0x1c0] sm:$0xff]
        %v4093 = vld [vmem:[%s4035 + $0x1c8] sm:$0xff]
        %v4094 = vld [vmem:[%s4035 + $0x1d0] sm:$0xff]
        %v4095 = vld [vmem:[%s4035 + $0x1d8] sm:$0xff]
        %v4096 = vld [vmem:[%s4035 + $0x1e0] sm:$0xff]
        %v4097 = vld [vmem:[%s4035 + $0x1e8] sm:$0xff]
        %v4098 = vld [vmem:[%s4035 + $0x1f0] sm:$0xff]
        %v4099 = vld [vmem:[%s4035 + $0x1f8] sm:$0xff]
        %v4100 = vld [vmem:[%s4035 + $0x200] sm:$0xff]
        %v4101 = vld [vmem:[%s4035 + $0x208] sm:$0xff]
        %v4102 = vld [vmem:[%s4035 + $0x210] sm:$0xff]
        %v4103 = vld [vmem:[%s4035 + $0x218] sm:$0xff]
        %v4104 = vld [vmem:[%s4035 + $0x220] sm:$0xff]
        %v4105 = vld [vmem:[%s4035 + $0x228] sm:$0xff]
        %v4106 = vld [vmem:[%s4035 + $0x230] sm:$0xff]
        %v4107 = vld [vmem:[%s4035 + $0x238] sm:$0xff]
        %v4108 = vld [vmem:[%s4035 + $0x240] sm:$0xff]
        %v4109 = vld [vmem:[%s4035 + $0x248] sm:$0xff]
        %v4110 = vld [vmem:[%s4035 + $0x250] sm:$0xff]
        %v4111 = vld [vmem:[%s4035 + $0x258] sm:$0xff]
        %v4112 = vld [vmem:[%s4035 + $0x260] sm:$0xff]
        %v4113 = vld [vmem:[%s4035 + $0x268] sm:$0xff]
        %v4114 = vld [vmem:[%s4035 + $0x270] sm:$0xff]
        %v4115 = vld [vmem:[%s4035 + $0x278] sm:$0xff]
        %v4116 = vld [vmem:[%s4035 + $0x280] sm:$0xff]
        %v4117 = vld [vmem:[%s4035 + $0x288] sm:$0xff]
        %v4118 = vld [vmem:[%s4035 + $0x290] sm:$0xff]
        %v4119 = vld [vmem:[%s4035 + $0x298] sm:$0xff]
        %v4120 = vld [vmem:[%s4035 + $0x2a0] sm:$0xff]
        %v4121 = vld [vmem:[%s4035 + $0x2a8] sm:$0xff]
        %v4122 = vld [vmem:[%s4035 + $0x2b0] sm:$0xff]
        %v4123 = vld [vmem:[%s4035 + $0x2b8] sm:$0xff]
        %v4124 = vld [vmem:[%s4035 + $0x2c0] sm:$0xff]
        %v4125 = vld [vmem:[%s4035 + $0x2c8] sm:$0xff]
        %v4126 = vld [vmem:[%s4035 + $0x2d0] sm:$0xff]
        %v4127 = vld [vmem:[%s4035 + $0x2d8] sm:$0xff]
        %v4128 = vld [vmem:[%s4035 + $0x2e0] sm:$0xff]
        %v4129 = vld [vmem:[%s4035 + $0x2e8] sm:$0xff]
        %v4130 = vld [vmem:[%s4035 + $0x2f0] sm:$0xff]
        %v4131 = vld [vmem:[%s4035 + $0x2f8] sm:$0xff]
        %v4132 = vld [vmem:[%s4035 + $0x300] sm:$0xff]
        %v4133 = vld [vmem:[%s4035 + $0x308] sm:$0xff]
        %v4134 = vld [vmem:[%s4035 + $0x310] sm:$0xff]
        %v4135 = vld [vmem:[%s4035 + $0x318] sm:$0xff]
        %v4136 = vld [vmem:[%s4035 + $0x320] sm:$0xff]
        %v4137 = vld [vmem:[%s4035 + $0x328] sm:$0xff]
        %v4138 = vld [vmem:[%s4035 + $0x330] sm:$0xff]
        %v4139 = vld [vmem:[%s4035 + $0x338] sm:$0xff]
        %v4140 = vld [vmem:[%s4035 + $0x340] sm:$0xff]
        %v4141 = vld [vmem:[%s4035 + $0x348] sm:$0xff]
        %v4142 = vld [vmem:[%s4035 + $0x350] sm:$0xff]
        %v4143 = vld [vmem:[%s4035 + $0x358] sm:$0xff]
        %v4144 = vld [vmem:[%s4035 + $0x360] sm:$0xff]
        %v4145 = vld [vmem:[%s4035 + $0x368] sm:$0xff]
        %v4146 = vld [vmem:[%s4035 + $0x370] sm:$0xff]
        %v4147 = vld [vmem:[%s4035 + $0x378] sm:$0xff]
        %v4148 = vld [vmem:[%s4035 + $0x380] sm:$0xff]
        %v4149 = vld [vmem:[%s4035 + $0x388] sm:$0xff]
        %v4150 = vld [vmem:[%s4035 + $0x390] sm:$0xff]
        %v4151 = vld [vmem:[%s4035 + $0x398] sm:$0xff]
        %v4152 = vld [vmem:[%s4035 + $0x3a0] sm:$0xff]
        %v4153 = vld [vmem:[%s4035 + $0x3a8] sm:$0xff]
        %v4154 = vld [vmem:[%s4035 + $0x3b0] sm:$0xff]
        %v4155 = vld [vmem:[%s4035 + $0x3b8] sm:$0xff]
        %v4156 = vld [vmem:[%s4035 + $0x3c0] sm:$0xff]
        %v4157 = vld [vmem:[%s4035 + $0x3c8] sm:$0xff]
        %v4158 = vld [vmem:[%s4035 + $0x3d0] sm:$0xff]
        %v4159 = vld [vmem:[%s4035 + $0x3d8] sm:$0xff]
        %v4160 = vld [vmem:[%s4035 + $0x3e0] sm:$0xff]
        %v4161 = vld [vmem:[%s4035 + $0x3e8] sm:$0xff]
        %v4162 = vld [vmem:[%s4035 + $0x3f0] sm:$0xff]
        %v4163 = vld [vmem:[%s4035 + $0x3f8] sm:$0xff]
        %v4164 = vld [vmem:[%s4035 + $0x400] sm:$0xff]
        %v4165 = vld [vmem:[%s4035 + $0x408] sm:$0xff]
        %v4166 = vld [vmem:[%s4035 + $0x410] sm:$0xff]
        %v4167 = vld [vmem:[%s4035 + $0x418] sm:$0xff]
        %v4168 = vld [vmem:[%s4035 + $0x420] sm:$0xff]
        %v4169 = vld [vmem:[%s4035 + $0x428] sm:$0xff]
        %v4170 = vld [vmem:[%s4035 + $0x430] sm:$0xff]
        %v4171 = vld [vmem:[%s4035 + $0x438] sm:$0xff]
        %v4172 = vld [vmem:[%s4035 + $0x440] sm:$0xff]
        %v4173 = vld [vmem:[%s4035 + $0x448] sm:$0xff]
        %v4174 = vld [vmem:[%s4035 + $0x450] sm:$0xff]
        %v4175 = vld [vmem:[%s4035 + $0x458] sm:$0xff]
        %v4176 = vld [vmem:[%s4035 + $0x460] sm:$0xff]
        %v4177 = vld [vmem:[%s4035 + $0x468] sm:$0xff]
        %v4178 = vld [vmem:[%s4035 + $0x470] sm:$0xff]
        %v4179 = vld [vmem:[%s4035 + $0x478] sm:$0xff]
        %v4180 = vld [vmem:[%s4035 + $0x480] sm:$0xff]
        %v4181 = vld [vmem:[%s4035 + $0x488] sm:$0xff]
        %v4182 = vld [vmem:[%s4035 + $0x490] sm:$0xff]
        %v4183 = vld [vmem:[%s4035 + $0x498] sm:$0xff]
        %v4184 = vld [vmem:[%s4035 + $0x4a0] sm:$0xff]
        %v4185 = vld [vmem:[%s4035 + $0x4a8] sm:$0xff]
        %v4186 = vld [vmem:[%s4035 + $0x4b0] sm:$0xff]
        %v4187 = vld [vmem:[%s4035 + $0x4b8] sm:$0xff]
        %v4188 = vld [vmem:[%s4035 + $0x4c0] sm:$0xff]
        %v4189 = vld [vmem:[%s4035 + $0x4c8] sm:$0xff]
        %v4190 = vld [vmem:[%s4035 + $0x4d0] sm:$0xff]
        %v4191 = vld [vmem:[%s4035 + $0x4d8] sm:$0xff]
        %v4192 = vld [vmem:[%s4035 + $0x4e0] sm:$0xff]
        %v4193 = vld [vmem:[%s4035 + $0x4e8] sm:$0xff]
        %v4194 = vld [vmem:[%s4035 + $0x4f0] sm:$0xff]
        %v4195 = vld [vmem:[%s4035 + $0x4f8] sm:$0xff]
        %v4196 = vld [vmem:[%s4035 + $0x500] sm:$0xff]
        %v4197 = vld [vmem:[%s4035 + $0x508] sm:$0xff]
        %v4198 = vld [vmem:[%s4035 + $0x510] sm:$0xff]
        %v4199 = vld [vmem:[%s4035 + $0x518] sm:$0xff]
        %v4200 = vld [vmem:[%s4035 + $0x520] sm:$0xff]
        %v4201 = vld [vmem:[%s4035 + $0x528] sm:$0xff]
        %v4202 = vld [vmem:[%s4035 + $0x530] sm:$0xff]
        %v4203 = vld [vmem:[%s4035 + $0x538] sm:$0xff]
        %v4204 = vld [vmem:[%s4035 + $0x540] sm:$0xff]
        %v4205 = vld [vmem:[%s4035 + $0x548] sm:$0xff]
        %v4206 = vld [vmem:[%s4035 + $0x550] sm:$0xff]
        %v4207 = vld [vmem:[%s4035 + $0x558] sm:$0xff]
        %v4208 = vld [vmem:[%s4035 + $0x560] sm:$0xff]
        %v4209 = vld [vmem:[%s4035 + $0x568] sm:$0xff]
        %v4210 = vld [vmem:[%s4035 + $0x570] sm:$0xff]
        %v4211 = vld [vmem:[%s4035 + $0x578] sm:$0xff]
        %v4212 = vld [vmem:[%s4035 + $0x580] sm:$0xff]
        %v4213 = vld [vmem:[%s4035 + $0x588] sm:$0xff]
        %v4214 = vld [vmem:[%s4035 + $0x590] sm:$0xff]
        %v4215 = vld [vmem:[%s4035 + $0x598] sm:$0xff]
        %v4216 = vld [vmem:[%s4035 + $0x5a0] sm:$0xff]
        %v4217 = vld [vmem:[%s4035 + $0x5a8] sm:$0xff]
        %v4218 = vld [vmem:[%s4035 + $0x5b0] sm:$0xff]
        %v4219 = vld [vmem:[%s4035 + $0x5b8] sm:$0xff]
        %v4220 = vld [vmem:[%s4035 + $0x5c0] sm:$0xff]
        %v4221 = vld [vmem:[%s4035 + $0x5c8] sm:$0xff]
        %v4222 = vld [vmem:[%s4035 + $0x5d0] sm:$0xff]
        %v4223 = vld [vmem:[%s4035 + $0x5d8] sm:$0xff]
        %v4224 = vld [vmem:[%s4035 + $0x5e0] sm:$0xff]
        %v4225 = vld [vmem:[%s4035 + $0x5e8] sm:$0xff]
        %v4226 = vld [vmem:[%s4035 + $0x5f0] sm:$0xff]
        %v4227 = vld [vmem:[%s4035 + $0x5f8] sm:$0xff]
        %v4228 = vld [vmem:[%s4035 + $0x600] sm:$0xff]
        %v4229 = vld [vmem:[%s4035 + $0x608] sm:$0xff]
        %v4230 = vld [vmem:[%s4035 + $0x610] sm:$0xff]
        %v4231 = vld [vmem:[%s4035 + $0x618] sm:$0xff]
        %v4232 = vld [vmem:[%s4035 + $0x620] sm:$0xff]
        %v4233 = vld [vmem:[%s4035 + $0x628] sm:$0xff]
        %v4234 = vld [vmem:[%s4035 + $0x630] sm:$0xff]
        %v4235 = vld [vmem:[%s4035 + $0x638] sm:$0xff]
        %v4236 = vld [vmem:[%s4035 + $0x640] sm:$0xff]
        %v4237 = vld [vmem:[%s4035 + $0x648] sm:$0xff]
        %v4238 = vld [vmem:[%s4035 + $0x650] sm:$0xff]
        %v4239 = vld [vmem:[%s4035 + $0x658] sm:$0xff]
        %v4240 = vld [vmem:[%s4035 + $0x660] sm:$0xff]
        %v4241 = vld [vmem:[%s4035 + $0x668] sm:$0xff]
        %v4242 = vld [vmem:[%s4035 + $0x670] sm:$0xff]
        %v4243 = vld [vmem:[%s4035 + $0x678] sm:$0xff]
        %v4244 = vld [vmem:[%s4035 + $0x680] sm:$0xff]
        %v4245 = vld [vmem:[%s4035 + $0x688] sm:$0xff]
        %v4246 = vld [vmem:[%s4035 + $0x690] sm:$0xff]
        %v4247 = vld [vmem:[%s4035 + $0x698] sm:$0xff]
        %v4248 = vld [vmem:[%s4035 + $0x6a0] sm:$0xff]
        %v4249 = vld [vmem:[%s4035 + $0x6a8] sm:$0xff]
        %v4250 = vld [vmem:[%s4035 + $0x6b0] sm:$0xff]
        %v4251 = vld [vmem:[%s4035 + $0x6b8] sm:$0xff]
        %v4252 = vld [vmem:[%s4035 + $0x6c0] sm:$0xff]
        %v4253 = vld [vmem:[%s4035 + $0x6c8] sm:$0xff]
        %v4254 = vld [vmem:[%s4035 + $0x6d0] sm:$0xff]
        %v4255 = vld [vmem:[%s4035 + $0x6d8] sm:$0xff]
        %v4256 = vld [vmem:[%s4035 + $0x6e0] sm:$0xff]
        %v4257 = vld [vmem:[%s4035 + $0x6e8] sm:$0xff]
        %v4258 = vld [vmem:[%s4035 + $0x6f0] sm:$0xff]
        %v4259 = vld [vmem:[%s4035 + $0x6f8] sm:$0xff]
        %v4260 = vld [vmem:[%s4035 + $0x700] sm:$0xff]
        %v4261 = vld [vmem:[%s4035 + $0x708] sm:$0xff]
        %v4262 = vld [vmem:[%s4035 + $0x710] sm:$0xff]
        %v4263 = vld [vmem:[%s4035 + $0x718] sm:$0xff]
        %v4264 = vld [vmem:[%s4035 + $0x720] sm:$0xf]
        %v4265 = vld [vmem:[%s4035 + $0x728] sm:$0xf]
        %v4266 = vld [vmem:[%s4035 + $0x730] sm:$0xf]
        %v4267 = vld [vmem:[%s4035 + $0x738] sm:$0xf]
        %v4268 = vrot.slane %v1842, 4
        %v4269 = vrot.slane %v1846, 4
        %v4270 = vsel %vm386, %v4268, %v4269
        %v4271 = vrot.slane %v1843, 4
        %v4272 = vrot.slane %v1847, 4
        %v4273 = vsel %vm386, %v4271, %v4272
        %v4274 = vrot.slane %v1844, 4
        %v4275 = vrot.slane %v1848, 4
        %v4276 = vsel %vm386, %v4274, %v4275
        %v4277 = vrot.slane %v1845, 4
        %v4278 = vrot.slane %v1849, 4
        %v4279 = vsel %vm386, %v4277, %v4278
        %v4283 = vsel %vm2338, %v4279, 0
        %v4286 = vsel %vm386, %v4264, 0
        %v4289 = vsel %vm386, %v4265, 0
        %v4292 = vsel %vm386, %v4266, 0
        %v4295 = vsel %vm386, %v4267, 0
        %4297 = vmatprep.subr.mxu0 %v4037
        %4298 = vmatpush1.msra.mxu0 %v4036
        %4299 = vmatprep.subr.mxu0 %v4041
        %4300 = vmatpush1.msra.mxu0 %v4040
        %4301 = vmatprep.subr.mxu0 %v4045
        %4302 = vmatpush1.msra.mxu0 %v4044
        %4303 = vmatprep.subr.mxu0 %v4049
        %4304 = vmatpush1.msra.mxu0 %v4048
        %4305 = vmatprep.subr.mxu0 %v4053
        %4306 = vmatpush1.msra.mxu0 %v4052
        %4307 = vmatprep.subr.mxu0 %v4057
        %4308 = vmatpush1.msra.mxu0 %v4056
        %4309 = vmatprep.subr.mxu0 %v4061
        %4310 = vmatpush1.msra.mxu0 %v4060
        %4311 = vmatprep.subr.mxu0 %v4065
        %4312 = vmatpush1.msra.mxu0 %v4064
        %4313 = vmatprep.subr.mxu0 %v4069
        %4314 = vmatpush1.msra.mxu0 %v4068
        %4315 = vmatprep.subr.mxu0 %v4073
        %4316 = vmatpush1.msra.mxu0 %v4072
        %4317 = vmatprep.subr.mxu0 %v4077
        %4318 = vmatpush1.msra.mxu0 %v4076
        %4319 = vmatprep.subr.mxu0 %v4081
        %4320 = vmatpush1.msra.mxu0 %v4080
        %4321 = vmatprep.subr.mxu0 %v4085
        %4322 = vmatpush1.msra.mxu0 %v4084
        %4323 = vmatprep.subr.mxu0 %v4089
        %4324 = vmatpush1.msra.mxu0 %v4088
        %4325 = vmatprep.subr.mxu0 %v4093
        %4326 = vmatpush1.msra.mxu0 %v4092
        %4327 = vmatprep.subr.mxu0 %v4097
        %4328 = vmatpush1.msra.mxu0 %v4096
        %4329 = vmatprep.subr.mxu0 %v4101
        %4330 = vmatpush1.msra.mxu0 %v4100
        %4331 = vmatprep.subr.mxu0 %v4105
        %4332 = vmatpush1.msra.mxu0 %v4104
        %4333 = vmatprep.subr.mxu0 %v4109
        %4334 = vmatpush1.msra.mxu0 %v4108
        %4335 = vmatprep.subr.mxu0 %v4113
        %4336 = vmatpush1.msra.mxu0 %v4112
        %4337 = vmatprep.subr.mxu0 %v4117
        %4338 = vmatpush1.msra.mxu0 %v4116
        %4339 = vmatprep.subr.mxu0 %v4121
        %4340 = vmatpush1.msra.mxu0 %v4120
        %4341 = vmatprep.subr.mxu0 %v4125
        %4342 = vmatpush1.msra.mxu0 %v4124
        %4343 = vmatprep.subr.mxu0 %v4129
        %4344 = vmatpush1.msra.mxu0 %v4128
        %4345 = vmatprep.subr.mxu0 %v4133
        %4346 = vmatpush1.msra.mxu0 %v4132
        %4347 = vmatprep.subr.mxu0 %v4137
        %4348 = vmatpush1.msra.mxu0 %v4136
        %4349 = vmatprep.subr.mxu0 %v4141
        %4350 = vmatpush1.msra.mxu0 %v4140
        %4351 = vmatprep.subr.mxu0 %v4145
        %4352 = vmatpush1.msra.mxu0 %v4144
        %4353 = vmatprep.subr.mxu0 %v4149
        %4354 = vmatpush1.msra.mxu0 %v4148
        %4355 = vmatprep.subr.mxu0 %v4153
        %4356 = vmatpush1.msra.mxu0 %v4152
        %4357 = vmatprep.subr.mxu0 %v4157
        %4358 = vmatpush1.msra.mxu0 %v4156
        %4359 = vmatprep.subr.mxu0 %v4161
        %4360 = vmatpush1.msra.mxu0 %v4160
        %4361 = vmatprep.mubr.f32.mxu0 %v4273
        %4362 = vmatmul.mubr.f32.gmra.mrb[0].mxu0 %v4270
        %v4363 = vpop.f32.mrb[0].mxu0
        %v4364 = vadd.f32 0.0, %v4363
        %v4365 = vpop.f32.mrb[0].mxu0
        %v4366 = vadd.f32 0.0, %v4365
        %4367 = vdwg.mxu0
        %4368 = vmatprep.subr.mxu0 %v4165
        %4369 = vmatpush1.msra.mxu0 %v4164
        %4370 = vmatprep.subr.mxu0 %v4169
        %4371 = vmatpush1.msra.mxu0 %v4168
        %4372 = vmatprep.subr.mxu0 %v4173
        %4373 = vmatpush1.msra.mxu0 %v4172
        %4374 = vmatprep.subr.mxu0 %v4177
        %4375 = vmatpush1.msra.mxu0 %v4176
        %4376 = vmatprep.subr.mxu0 %v4181
        %4377 = vmatpush1.msra.mxu0 %v4180
        %4378 = vmatprep.subr.mxu0 %v4185
        %4379 = vmatpush1.msra.mxu0 %v4184
        %4380 = vmatprep.subr.mxu0 %v4189
        %4381 = vmatpush1.msra.mxu0 %v4188
        %4382 = vmatprep.subr.mxu0 %v4193
        %4383 = vmatpush1.msra.mxu0 %v4192
        %4384 = vmatprep.subr.mxu0 %v4197
        %4385 = vmatpush1.msra.mxu0 %v4196
        %4386 = vmatprep.subr.mxu0 %v4201
        %4387 = vmatpush1.msra.mxu0 %v4200
        %4388 = vmatprep.subr.mxu0 %v4205
        %4389 = vmatpush1.msra.mxu0 %v4204
        %4390 = vmatprep.subr.mxu0 %v4209
        %4391 = vmatpush1.msra.mxu0 %v4208
        %4392 = vmatprep.subr.mxu0 %v4213
        %4393 = vmatpush1.msra.mxu0 %v4212
        %4394 = vmatprep.subr.mxu0 %v4217
        %4395 = vmatpush1.msra.mxu0 %v4216
        %4396 = vmatprep.subr.mxu0 %v4221
        %4397 = vmatpush1.msra.mxu0 %v4220
        %4398 = vmatprep.subr.mxu0 %v4225
        %4399 = vmatpush1.msra.mxu0 %v4224
        %4400 = vmatprep.subr.mxu0 %v4229
        %4401 = vmatpush1.msra.mxu0 %v4228
        %4402 = vmatprep.subr.mxu0 %v4233
        %4403 = vmatpush1.msra.mxu0 %v4232
        %4404 = vmatprep.subr.mxu0 %v4237
        %4405 = vmatpush1.msra.mxu0 %v4236
        %4406 = vmatprep.subr.mxu0 %v4241
        %4407 = vmatpush1.msra.mxu0 %v4240
        %4408 = vmatprep.subr.mxu0 %v4245
        %4409 = vmatpush1.msra.mxu0 %v4244
        %4410 = vmatprep.subr.mxu0 %v4249
        %4411 = vmatpush1.msra.mxu0 %v4248
        %4412 = vmatprep.subr.mxu0 %v4253
        %4413 = vmatpush1.msra.mxu0 %v4252
        %4414 = vmatprep.subr.mxu0 %v4257
        %4415 = vmatpush1.msra.mxu0 %v4256
        %4416 = vmatprep.subr.mxu0 %v4261
        %4417 = vmatpush1.msra.mxu0 %v4260
        %4418 = vmatprep.subr.mxu0 %v4289
        %4419 = vmatpush1.msra.mxu0 %v4286
        %4420 = vmatprep.subr.mxu0 0.0
        %4421 = vmatpush1.msra.mxu0 0.0
        %4422 = vmatprep.subr.mxu0 0.0
        %4423 = vmatpush1.msra.mxu0 0.0
        %4424 = vmatprep.subr.mxu0 0.0
        %4425 = vmatpush1.msra.mxu0 0.0
        %4426 = vmatprep.subr.mxu0 0.0
        %4427 = vmatpush1.msra.mxu0 0.0
        %4428 = vmatprep.subr.mxu0 0.0
        %4429 = vmatpush1.msra.mxu0 0.0
        %4430 = vmatprep.subr.mxu0 0.0
        %4431 = vmatpush1.msra.mxu0 0.0
        %4432 = vmatprep.mubr.f32.mxu0 %v4283
        %4433 = vmatmul.mubr.f32.gmra.mrb[0].mxu0 %v4276
        %v4434 = vpop.f32.mrb[0].mxu0
        %v4435 = vadd.f32 %v4364, %v4434
        %v4436 = vpop.f32.mrb[0].mxu0
        %v4437 = vadd.f32 %v4366, %v4436
        %4438 = vdwg.mxu0
        %4439 = vmatprep.subr.mxu0 %v4039
        %4440 = vmatpush1.msra.mxu0 %v4038
        %4441 = vmatprep.subr.mxu0 %v4043
        %4442 = vmatpush1.msra.mxu0 %v4042
        %4443 = vmatprep.subr.mxu0 %v4047
        %4444 = vmatpush1.msra.mxu0 %v4046
        %4445 = vmatprep.subr.mxu0 %v4051
        %4446 = vmatpush1.msra.mxu0 %v4050
        %4447 = vmatprep.subr.mxu0 %v4055
        %4448 = vmatpush1.msra.mxu0 %v4054
        %4449 = vmatprep.subr.mxu0 %v4059
        %4450 = vmatpush1.msra.mxu0 %v4058
        %4451 = vmatprep.subr.mxu0 %v4063
        %4452 = vmatpush1.msra.mxu0 %v4062
        %4453 = vmatprep.subr.mxu0 %v4067
        %4454 = vmatpush1.msra.mxu0 %v4066
        %4455 = vmatprep.subr.mxu0 %v4071
        %4456 = vmatpush1.msra.mxu0 %v4070
        %4457 = vmatprep.subr.mxu0 %v4075
        %4458 = vmatpush1.msra.mxu0 %v4074
        %4459 = vmatprep.subr.mxu0 %v4079
        %4460 = vmatpush1.msra.mxu0 %v4078
        %4461 = vmatprep.subr.mxu0 %v4083
        %4462 = vmatpush1.msra.mxu0 %v4082
        %4463 = vmatprep.subr.mxu0 %v4087
        %4464 = vmatpush1.msra.mxu0 %v4086
        %4465 = vmatprep.subr.mxu0 %v4091
        %4466 = vmatpush1.msra.mxu0 %v4090
        %4467 = vmatprep.subr.mxu0 %v4095
        %4468 = vmatpush1.msra.mxu0 %v4094
        %4469 = vmatprep.subr.mxu0 %v4099
        %4470 = vmatpush1.msra.mxu0 %v4098
        %4471 = vmatprep.subr.mxu0 %v4103
        %4472 = vmatpush1.msra.mxu0 %v4102
        %4473 = vmatprep.subr.mxu0 %v4107
        %4474 = vmatpush1.msra.mxu0 %v4106
        %4475 = vmatprep.subr.mxu0 %v4111
        %4476 = vmatpush1.msra.mxu0 %v4110
        %4477 = vmatprep.subr.mxu0 %v4115
        %4478 = vmatpush1.msra.mxu0 %v4114
        %4479 = vmatprep.subr.mxu0 %v4119
        %4480 = vmatpush1.msra.mxu0 %v4118
        %4481 = vmatprep.subr.mxu0 %v4123
        %4482 = vmatpush1.msra.mxu0 %v4122
        %4483 = vmatprep.subr.mxu0 %v4127
        %4484 = vmatpush1.msra.mxu0 %v4126
        %4485 = vmatprep.subr.mxu0 %v4131
        %4486 = vmatpush1.msra.mxu0 %v4130
        %4487 = vmatprep.subr.mxu0 %v4135
        %4488 = vmatpush1.msra.mxu0 %v4134
        %4489 = vmatprep.subr.mxu0 %v4139
        %4490 = vmatpush1.msra.mxu0 %v4138
        %4491 = vmatprep.subr.mxu0 %v4143
        %4492 = vmatpush1.msra.mxu0 %v4142
        %4493 = vmatprep.subr.mxu0 %v4147
        %4494 = vmatpush1.msra.mxu0 %v4146
        %4495 = vmatprep.subr.mxu0 %v4151
        %4496 = vmatpush1.msra.mxu0 %v4150
        %4497 = vmatprep.subr.mxu0 %v4155
        %4498 = vmatpush1.msra.mxu0 %v4154
        %4499 = vmatprep.subr.mxu0 %v4159
        %4500 = vmatpush1.msra.mxu0 %v4158
        %4501 = vmatprep.subr.mxu0 %v4163
        %4502 = vmatpush1.msra.mxu0 %v4162
        %4503 = vmatprep.mubr.f32.mxu0 %v4273
        %4504 = vmatmul.mubr.f32.gmra.mrb[0].mxu0 %v4270
        %v4505 = vpop.f32.mrb[0].mxu0
        %v4506 = vadd.f32 0.0, %v4505
        %v4507 = vpop.f32.mrb[0].mxu0
        %v4508 = vadd.f32 0.0, %v4507
        %4509 = vdwg.mxu0
        %4510 = vmatprep.subr.mxu0 %v4167
        %4511 = vmatpush1.msra.mxu0 %v4166
        %4512 = vmatprep.subr.mxu0 %v4171
        %4513 = vmatpush1.msra.mxu0 %v4170
        %4514 = vmatprep.subr.mxu0 %v4175
        %4515 = vmatpush1.msra.mxu0 %v4174
        %4516 = vmatprep.subr.mxu0 %v4179
        %4517 = vmatpush1.msra.mxu0 %v4178
        %4518 = vmatprep.subr.mxu0 %v4183
        %4519 = vmatpush1.msra.mxu0 %v4182
        %4520 = vmatprep.subr.mxu0 %v4187
        %4521 = vmatpush1.msra.mxu0 %v4186
        %4522 = vmatprep.subr.mxu0 %v4191
        %4523 = vmatpush1.msra.mxu0 %v4190
        %4524 = vmatprep.subr.mxu0 %v4195
        %4525 = vmatpush1.msra.mxu0 %v4194
        %4526 = vmatprep.subr.mxu0 %v4199
        %4527 = vmatpush1.msra.mxu0 %v4198
        %4528 = vmatprep.subr.mxu0 %v4203
        %4529 = vmatpush1.msra.mxu0 %v4202
        %4530 = vmatprep.subr.mxu0 %v4207
        %4531 = vmatpush1.msra.mxu0 %v4206
        %4532 = vmatprep.subr.mxu0 %v4211
        %4533 = vmatpush1.msra.mxu0 %v4210
        %4534 = vmatprep.subr.mxu0 %v4215
        %4535 = vmatpush1.msra.mxu0 %v4214
        %4536 = vmatprep.subr.mxu0 %v4219
        %4537 = vmatpush1.msra.mxu0 %v4218
        %4538 = vmatprep.subr.mxu0 %v4223
        %4539 = vmatpush1.msra.mxu0 %v4222
        %4540 = vmatprep.subr.mxu0 %v4227
        %4541 = vmatpush1.msra.mxu0 %v4226
        %4542 = vmatprep.subr.mxu0 %v4231
        %4543 = vmatpush1.msra.mxu0 %v4230
        %4544 = vmatprep.subr.mxu0 %v4235
        %4545 = vmatpush1.msra.mxu0 %v4234
        %4546 = vmatprep.subr.mxu0 %v4239
        %4547 = vmatpush1.msra.mxu0 %v4238
        %4548 = vmatprep.subr.mxu0 %v4243
        %4549 = vmatpush1.msra.mxu0 %v4242
        %4550 = vmatprep.subr.mxu0 %v4247
        %4551 = vmatpush1.msra.mxu0 %v4246
        %4552 = vmatprep.subr.mxu0 %v4251
        %4553 = vmatpush1.msra.mxu0 %v4250
        %4554 = vmatprep.subr.mxu0 %v4255
        %4555 = vmatpush1.msra.mxu0 %v4254
        %4556 = vmatprep.subr.mxu0 %v4259
        %4557 = vmatpush1.msra.mxu0 %v4258
        %4558 = vmatprep.subr.mxu0 %v4263
        %4559 = vmatpush1.msra.mxu0 %v4262
        %4560 = vmatprep.subr.mxu0 %v4295
        %4561 = vmatpush1.msra.mxu0 %v4292
        %4562 = vmatprep.subr.mxu0 0.0
        %4563 = vmatpush1.msra.mxu0 0.0
        %4564 = vmatprep.subr.mxu0 0.0
        %4565 = vmatpush1.msra.mxu0 0.0
        %4566 = vmatprep.subr.mxu0 0.0
        %4567 = vmatpush1.msra.mxu0 0.0
        %4568 = vmatprep.subr.mxu0 0.0
        %4569 = vmatpush1.msra.mxu0 0.0
        %4570 = vmatprep.subr.mxu0 0.0
        %4571 = vmatpush1.msra.mxu0 0.0
        %4572 = vmatprep.subr.mxu0 0.0
        %4573 = vmatpush1.msra.mxu0 0.0
        %4574 = vmatprep.mubr.f32.mxu0 %v4283
        %4575 = vmatmul.mubr.f32.gmra.mrb[0].mxu0 %v4276
        %v4576 = vpop.f32.mrb[0].mxu0
        %v4577 = vadd.f32 %v4506, %v4576
        %v4578 = vpop.f32.mrb[0].mxu0
        %v4579 = vadd.f32 %v4508, %v4578
        %4580 = vdwg.mxu0
        %v4581 = vadd.f32 %v4031, %v4435
        %v4582 = vadd.f32 %v4032, %v4437
        %v4583 = vadd.f32 %v4033, %v4577
        %v4584 = vadd.f32 %v4034, %v4579
        %v4585 = vld [vmem:[%s4] sm:$0xf]
        %v4587 = vlaneseq
        %v4588 = vshrl.u32 %v4587, 7
        %v4589 = vsub.s32 0, %v4588
        %v4590 = vrot.slane %v4585, %v4589
        %v4591 = vlaneseq
        %v4592 = vshrl.u32 %v4591, 7
        %v4593 = vsub.s32 1, %v4592
        %v4594 = vrot.slane %v4585, %v4593
        %v4595 = vlaneseq
        %v4596 = vshrl.u32 %v4595, 7
        %v4597 = vsub.s32 2, %v4596
        %v4598 = vrot.slane %v4585, %v4597
        %v4599 = vlaneseq
        %v4600 = vshrl.u32 %v4599, 7
        %v4601 = vsub.s32 3, %v4600
        %v4602 = vrot.slane %v4585, %v4601
        %v4607 = vadd.f32 %v4581, %v4590
        %v4608 = vadd.f32 %v4582, %v4594
        %v4609 = vadd.f32 %v4583, %v4598
        %v4610 = vadd.f32 %v4584, %v4602
        %v4611 = vmax.f32 %v4607, 0.0
        %v4612 = vmax.f32 %v4608, 0.0
        %v4613 = vmax.f32 %v4609, 0.0
        %v4614 = vmax.f32 %v4610, 0.0
        %vm4615 = vcmask 64512
        %v4616 = vsel %vm4615, %v1466, 0
        %4618 = vmatprep.subr.mxu0 %v4612
        %4619 = vmatpush1.msra.mxu0 %v4611
        %4620 = vmatprep.subr.mxu0 0.0
        %4621 = vmatpush1.msra.mxu0 0.0
        %4622 = vmatprep.subr.mxu0 0.0
        %4623 = vmatpush1.msra.mxu0 0.0
        %4624 = vmatprep.subr.mxu0 0.0
        %4625 = vmatpush1.msra.mxu0 0.0
        %4626 = vmatprep.subr.mxu0 0.0
        %4627 = vmatpush1.msra.mxu0 0.0
        %4628 = vmatprep.subr.mxu0 0.0
        %4629 = vmatpush1.msra.mxu0 0.0
        %4630 = vmatprep.subr.mxu0 0.0
        %4631 = vmatpush1.msra.mxu0 0.0
        %4632 = vmatprep.subr.mxu0 0.0
        %4633 = vmatpush1.msra.mxu0 0.0
        %4634 = vmatprep.subr.mxu0 0.0
        %4635 = vmatpush1.msra.mxu0 0.0
        %4636 = vmatprep.subr.mxu0 0.0
        %4637 = vmatpush1.msra.mxu0 0.0
        %4638 = vmatprep.subr.mxu0 0.0
        %4639 = vmatpush1.msra.mxu0 0.0
        %4640 = vmatprep.subr.mxu0 0.0
        %4641 = vmatpush1.msra.mxu0 0.0
        %4642 = vmatprep.subr.mxu0 0.0
        %4643 = vmatpush1.msra.mxu0 0.0
        %4644 = vmatprep.subr.mxu0 0.0
        %4645 = vmatpush1.msra.mxu0 0.0
        %4646 = vmatprep.subr.mxu0 0.0
        %4647 = vmatpush1.msra.mxu0 0.0
        %4648 = vmatprep.subr.mxu0 0.0
        %4649 = vmatpush1.msra.mxu0 0.0
        %4650 = vmatprep.subr.mxu0 0.0
        %4651 = vmatpush1.msra.mxu0 0.0
        %4652 = vmatprep.subr.mxu0 0.0
        %4653 = vmatpush1.msra.mxu0 0.0
        %4654 = vmatprep.subr.mxu0 0.0
        %4655 = vmatpush1.msra.mxu0 0.0
        %4656 = vmatprep.subr.mxu0 0.0
        %4657 = vmatpush1.msra.mxu0 0.0
        %4658 = vmatprep.subr.mxu0 0.0
        %4659 = vmatpush1.msra.mxu0 0.0
        %4660 = vmatprep.subr.mxu0 0.0
        %4661 = vmatpush1.msra.mxu0 0.0
        %4662 = vmatprep.subr.mxu0 0.0
        %4663 = vmatpush1.msra.mxu0 0.0
        %4664 = vmatprep.subr.mxu0 0.0
        %4665 = vmatpush1.msra.mxu0 0.0
        %4666 = vmatprep.subr.mxu0 0.0
        %4667 = vmatpush1.msra.mxu0 0.0
        %4668 = vmatprep.subr.mxu0 0.0
        %4669 = vmatpush1.msra.mxu0 0.0
        %4670 = vmatprep.subr.mxu0 0.0
        %4671 = vmatpush1.msra.mxu0 0.0
        %4672 = vmatprep.subr.mxu0 0.0
        %4673 = vmatpush1.msra.mxu0 0.0
        %4674 = vmatprep.subr.mxu0 0.0
        %4675 = vmatpush1.msra.mxu0 0.0
        %4676 = vmatprep.subr.mxu0 0.0
        %4677 = vmatpush1.msra.mxu0 0.0
        %4678 = vmatprep.subr.mxu0 0.0
        %4679 = vmatpush1.msra.mxu0 0.0
        %4680 = vmatprep.subr.mxu0 0.0
        %4681 = vmatpush1.msra.mxu0 0.0
        %4682 = vmatprep.mubr.f32.mxu0 0.0
        %4683 = vmatmul.mubr.f32.gmra.mrb[0].mxu0 %v4616
        %v4684 = vpop.f32.mrb[0].mxu0
        %v4685 = vadd.f32 0.0, %v4684
        %v4686 = vpop.f32.mrb[0].mxu0
        %v4687 = vadd.f32 0.0, %v4686
        %4688 = vdwg.mxu0
        %4689 = vmatprep.subr.mxu0 %v4614
        %4690 = vmatpush1.msra.mxu0 %v4613
        %4691 = vmatprep.subr.mxu0 0.0
        %4692 = vmatpush1.msra.mxu0 0.0
        %4693 = vmatprep.subr.mxu0 0.0
        %4694 = vmatpush1.msra.mxu0 0.0
        %4695 = vmatprep.subr.mxu0 0.0
        %4696 = vmatpush1.msra.mxu0 0.0
        %4697 = vmatprep.subr.mxu0 0.0
        %4698 = vmatpush1.msra.mxu0 0.0
        %4699 = vmatprep.subr.mxu0 0.0
        %4700 = vmatpush1.msra.mxu0 0.0
        %4701 = vmatprep.subr.mxu0 0.0
        %4702 = vmatpush1.msra.mxu0 0.0
        %4703 = vmatprep.subr.mxu0 0.0
        %4704 = vmatpush1.msra.mxu0 0.0
        %4705 = vmatprep.subr.mxu0 0.0
        %4706 = vmatpush1.msra.mxu0 0.0
        %4707 = vmatprep.subr.mxu0 0.0
        %4708 = vmatpush1.msra.mxu0 0.0
        %4709 = vmatprep.subr.mxu0 0.0
        %4710 = vmatpush1.msra.mxu0 0.0
        %4711 = vmatprep.subr.mxu0 0.0
        %4712 = vmatpush1.msra.mxu0 0.0
        %4713 = vmatprep.subr.mxu0 0.0
        %4714 = vmatpush1.msra.mxu0 0.0
        %4715 = vmatprep.subr.mxu0 0.0
        %4716 = vmatpush1.msra.mxu0 0.0
        %4717 = vmatprep.subr.mxu0 0.0
        %4718 = vmatpush1.msra.mxu0 0.0
        %4719 = vmatprep.subr.mxu0 0.0
        %4720 = vmatpush1.msra.mxu0 0.0
        %4721 = vmatprep.subr.mxu0 0.0
        %4722 = vmatpush1.msra.mxu0 0.0
        %4723 = vmatprep.subr.mxu0 0.0
        %4724 = vmatpush1.msra.mxu0 0.0
        %4725 = vmatprep.subr.mxu0 0.0
        %4726 = vmatpush1.msra.mxu0 0.0
        %4727 = vmatprep.subr.mxu0 0.0
        %4728 = vmatpush1.msra.mxu0 0.0
        %4729 = vmatprep.subr.mxu0 0.0
        %4730 = vmatpush1.msra.mxu0 0.0
        %4731 = vmatprep.subr.mxu0 0.0
        %4732 = vmatpush1.msra.mxu0 0.0
        %4733 = vmatprep.subr.mxu0 0.0
        %4734 = vmatpush1.msra.mxu0 0.0
        %4735 = vmatprep.subr.mxu0 0.0
        %4736 = vmatpush1.msra.mxu0 0.0
        %4737 = vmatprep.subr.mxu0 0.0
        %4738 = vmatpush1.msra.mxu0 0.0
        %4739 = vmatprep.subr.mxu0 0.0
        %4740 = vmatpush1.msra.mxu0 0.0
        %4741 = vmatprep.subr.mxu0 0.0
        %4742 = vmatpush1.msra.mxu0 0.0
        %4743 = vmatprep.subr.mxu0 0.0
        %4744 = vmatpush1.msra.mxu0 0.0
        %4745 = vmatprep.subr.mxu0 0.0
        %4746 = vmatpush1.msra.mxu0 0.0
        %4747 = vmatprep.subr.mxu0 0.0
        %4748 = vmatpush1.msra.mxu0 0.0
        %4749 = vmatprep.subr.mxu0 0.0
        %4750 = vmatpush1.msra.mxu0 0.0
        %4751 = vmatprep.subr.mxu0 0.0
        %4752 = vmatpush1.msra.mxu0 0.0
        %4753 = vmatprep.mubr.f32.mxu0 0.0
        %4754 = vmatmul.mubr.f32.gmra.mrb[0].mxu0 %v4616
        %v4755 = vpop.f32.mrb[0].mxu0
        %v4756 = vadd.f32 0.0, %v4755
        %v4757 = vpop.f32.mrb[0].mxu0
        %v4758 = vadd.f32 0.0, %v4757
        %4759 = vdwg.mxu0
        %v4760 = vsel %vm4615, %v1472, 0
        %4762 = vmatprep.subr.mxu0 %v4612
        %4763 = vmatpush1.msra.mxu0 %v4611
        %4764 = vmatprep.subr.mxu0 0.0
        %4765 = vmatpush1.msra.mxu0 0.0
        %4766 = vmatprep.subr.mxu0 0.0
        %4767 = vmatpush1.msra.mxu0 0.0
        %4768 = vmatprep.subr.mxu0 0.0
        %4769 = vmatpush1.msra.mxu0 0.0
        %4770 = vmatprep.subr.mxu0 0.0
        %4771 = vmatpush1.msra.mxu0 0.0
        %4772 = vmatprep.subr.mxu0 0.0
        %4773 = vmatpush1.msra.mxu0 0.0
        %4774 = vmatprep.subr.mxu0 0.0
        %4775 = vmatpush1.msra.mxu0 0.0
        %4776 = vmatprep.subr.mxu0 0.0
        %4777 = vmatpush1.msra.mxu0 0.0
        %4778 = vmatprep.subr.mxu0 0.0
        %4779 = vmatpush1.msra.mxu0 0.0
        %4780 = vmatprep.subr.mxu0 0.0
        %4781 = vmatpush1.msra.mxu0 0.0
        %4782 = vmatprep.subr.mxu0 0.0
        %4783 = vmatpush1.msra.mxu0 0.0
        %4784 = vmatprep.subr.mxu0 0.0
        %4785 = vmatpush1.msra.mxu0 0.0
        %4786 = vmatprep.subr.mxu0 0.0
        %4787 = vmatpush1.msra.mxu0 0.0
        %4788 = vmatprep.subr.mxu0 0.0
        %4789 = vmatpush1.msra.mxu0 0.0
        %4790 = vmatprep.subr.mxu0 0.0
        %4791 = vmatpush1.msra.mxu0 0.0
        %4792 = vmatprep.subr.mxu0 0.0
        %4793 = vmatpush1.msra.mxu0 0.0
        %4794 = vmatprep.subr.mxu0 0.0
        %4795 = vmatpush1.msra.mxu0 0.0
        %4796 = vmatprep.subr.mxu0 0.0
        %4797 = vmatpush1.msra.mxu0 0.0
        %4798 = vmatprep.subr.mxu0 0.0
        %4799 = vmatpush1.msra.mxu0 0.0
        %4800 = vmatprep.subr.mxu0 0.0
        %4801 = vmatpush1.msra.mxu0 0.0
        %4802 = vmatprep.subr.mxu0 0.0
        %4803 = vmatpush1.msra.mxu0 0.0
        %4804 = vmatprep.subr.mxu0 0.0
        %4805 = vmatpush1.msra.mxu0 0.0
        %4806 = vmatprep.subr.mxu0 0.0
        %4807 = vmatpush1.msra.mxu0 0.0
        %4808 = vmatprep.subr.mxu0 0.0
        %4809 = vmatpush1.msra.mxu0 0.0
        %4810 = vmatprep.subr.mxu0 0.0
        %4811 = vmatpush1.msra.mxu0 0.0
        %4812 = vmatprep.subr.mxu0 0.0
        %4813 = vmatpush1.msra.mxu0 0.0
        %4814 = vmatprep.subr.mxu0 0.0
        %4815 = vmatpush1.msra.mxu0 0.0
        %4816 = vmatprep.subr.mxu0 0.0
        %4817 = vmatpush1.msra.mxu0 0.0
        %4818 = vmatprep.subr.mxu0 0.0
        %4819 = vmatpush1.msra.mxu0 0.0
        %4820 = vmatprep.subr.mxu0 0.0
        %4821 = vmatpush1.msra.mxu0 0.0
        %4822 = vmatprep.subr.mxu0 0.0
        %4823 = vmatpush1.msra.mxu0 0.0
        %4824 = vmatprep.subr.mxu0 0.0
        %4825 = vmatpush1.msra.mxu0 0.0
        %4826 = vmatprep.mubr.f32.mxu0 0.0
        %4827 = vmatmul.mubr.f32.gmra.mrb[0].mxu0 %v4760
        %v4828 = vpop.f32.mrb[0].mxu0
        %v4829 = vadd.f32 0.0, %v4828
        %v4830 = vpop.f32.mrb[0].mxu0
        %v4831 = vadd.f32 0.0, %v4830
        %4832 = vdwg.mxu0
        %4833 = vmatprep.subr.mxu0 %v4614
        %4834 = vmatpush1.msra.mxu0 %v4613
        %4835 = vmatprep.subr.mxu0 0.0
        %4836 = vmatpush1.msra.mxu0 0.0
        %4837 = vmatprep.subr.mxu0 0.0
        %4838 = vmatpush1.msra.mxu0 0.0
        %4839 = vmatprep.subr.mxu0 0.0
        %4840 = vmatpush1.msra.mxu0 0.0
        %4841 = vmatprep.subr.mxu0 0.0
        %4842 = vmatpush1.msra.mxu0 0.0
        %4843 = vmatprep.subr.mxu0 0.0
        %4844 = vmatpush1.msra.mxu0 0.0
        %4845 = vmatprep.subr.mxu0 0.0
        %4846 = vmatpush1.msra.mxu0 0.0
        %4847 = vmatprep.subr.mxu0 0.0
        %4848 = vmatpush1.msra.mxu0 0.0
        %4849 = vmatprep.subr.mxu0 0.0
        %4850 = vmatpush1.msra.mxu0 0.0
        %4851 = vmatprep.subr.mxu0 0.0
        %4852 = vmatpush1.msra.mxu0 0.0
        %4853 = vmatprep.subr.mxu0 0.0
        %4854 = vmatpush1.msra.mxu0 0.0
        %4855 = vmatprep.subr.mxu0 0.0
        %4856 = vmatpush1.msra.mxu0 0.0
        %4857 = vmatprep.subr.mxu0 0.0
        %4858 = vmatpush1.msra.mxu0 0.0
        %4859 = vmatprep.subr.mxu0 0.0
        %4860 = vmatpush1.msra.mxu0 0.0
        %4861 = vmatprep.subr.mxu0 0.0
        %4862 = vmatpush1.msra.mxu0 0.0
        %4863 = vmatprep.subr.mxu0 0.0
        %4864 = vmatpush1.msra.mxu0 0.0
        %4865 = vmatprep.subr.mxu0 0.0
        %4866 = vmatpush1.msra.mxu0 0.0
        %4867 = vmatprep.subr.mxu0 0.0
        %4868 = vmatpush1.msra.mxu0 0.0
        %4869 = vmatprep.subr.mxu0 0.0
        %4870 = vmatpush1.msra.mxu0 0.0
        %4871 = vmatprep.subr.mxu0 0.0
        %4872 = vmatpush1.msra.mxu0 0.0
        %4873 = vmatprep.subr.mxu0 0.0
        %4874 = vmatpush1.msra.mxu0 0.0
        %4875 = vmatprep.subr.mxu0 0.0
        %4876 = vmatpush1.msra.mxu0 0.0
        %4877 = vmatprep.subr.mxu0 0.0
        %4878 = vmatpush1.msra.mxu0 0.0
        %4879 = vmatprep.subr.mxu0 0.0
        %4880 = vmatpush1.msra.mxu0 0.0
        %4881 = vmatprep.subr.mxu0 0.0
        %4882 = vmatpush1.msra.mxu0 0.0
        %4883 = vmatprep.subr.mxu0 0.0
        %4884 = vmatpush1.msra.mxu0 0.0
        %4885 = vmatprep.subr.mxu0 0.0
        %4886 = vmatpush1.msra.mxu0 0.0
        %4887 = vmatprep.subr.mxu0 0.0
        %4888 = vmatpush1.msra.mxu0 0.0
        %4889 = vmatprep.subr.mxu0 0.0
        %4890 = vmatpush1.msra.mxu0 0.0
        %4891 = vmatprep.subr.mxu0 0.0
        %4892 = vmatpush1.msra.mxu0 0.0
        %4893 = vmatprep.subr.mxu0 0.0
        %4894 = vmatpush1.msra.mxu0 0.0
        %4895 = vmatprep.subr.mxu0 0.0
        %4896 = vmatpush1.msra.mxu0 0.0
        %4897 = vmatprep.mubr.f32.mxu0 0.0
        %4898 = vmatmul.mubr.f32.gmra.mrb[0].mxu0 %v4760
        %v4899 = vpop.f32.mrb[0].mxu0
        %v4900 = vadd.f32 0.0, %v4899
        %v4901 = vpop.f32.mrb[0].mxu0
        %v4902 = vadd.f32 0.0, %v4901
        %4903 = vdwg.mxu0
        %v4904 = vmax.f32 %v4685, %v4829
        %v4905 = vmax.f32 %v4687, %v4831
        %v4906 = vmax.f32 %v4756, %v4900
        %v4907 = vmax.f32 %v4758, %v4902
        %4912 = vrot.lane.b32.xlu0 %v4904, 78
        %v4913 = vpop.permute.xlu0 %4912
        %4914 = vrot.lane.b32.xlu0 %v4905, 78
        %v4915 = vpop.permute.xlu0 %4914
        %4916 = vrot.lane.b32.xlu0 %v4906, 78
        %v4917 = vpop.permute.xlu0 %4916
        %4918 = vrot.lane.b32.xlu0 %v4907, 78
        %v4919 = vpop.permute.xlu0 %4918
        %vm4920 = vcmask 637952
        %v4921 = vsel %vm4920, %v4913, %v4915
        %v4922 = vsel %vm4920, %v4915, %v4917
        %v4923 = vsel %vm4920, %v4917, %v4919
        %v4927 = vmax.f32 %v4904, %v4921
        %v4928 = vmax.f32 %v4905, %v4922
        %v4929 = vmax.f32 %v4906, %v4923
        %v4930 = vld [vmem:[%s6] sm:$0xf]
        %v4931 = vld [vmem:[%s5] sm:$0xff]
        %v4932 = vld [vmem:[%s5 + $0x8] sm:$0xff]
        %v4933 = vld [vmem:[%s5 + $0x10] sm:$0xff]
        %v4934 = vld [vmem:[%s5 + $0x18] sm:$0xff]
        %v4935 = vld [vmem:[%s5 + $0x20] sm:$0xff]
        %v4936 = vld [vmem:[%s5 + $0x28] sm:$0xff]
        %v4937 = vld [vmem:[%s5 + $0x30] sm:$0xff]
        %v4938 = vld [vmem:[%s5 + $0x38] sm:$0xff]
        %v4939 = vld [vmem:[%s5 + $0x40] sm:$0xff]
        %v4940 = vld [vmem:[%s5 + $0x48] sm:$0xff]
        %v4941 = vld [vmem:[%s5 + $0x50] sm:$0xff]
        %v4942 = vld [vmem:[%s5 + $0x58] sm:$0xff]
        %v4943 = vld [vmem:[%s5 + $0x60] sm:$0xff]
        %v4944 = vld [vmem:[%s5 + $0x68] sm:$0xff]
        %v4945 = vld [vmem:[%s5 + $0x70] sm:$0xff]
        %v4946 = vld [vmem:[%s5 + $0x78] sm:$0xff]
        %v4947 = vld [vmem:[%s5 + $0x80] sm:$0xff]
        %v4948 = vld [vmem:[%s5 + $0x88] sm:$0xff]
        %v4949 = vld [vmem:[%s5 + $0x90] sm:$0xff]
        %v4950 = vld [vmem:[%s5 + $0x98] sm:$0xff]
        %v4951 = vld [vmem:[%s5 + $0xa0] sm:$0xff]
        %v4952 = vld [vmem:[%s5 + $0xa8] sm:$0xff]
        %v4953 = vld [vmem:[%s5 + $0xb0] sm:$0xff]
        %v4954 = vld [vmem:[%s5 + $0xb8] sm:$0xff]
        %v4955 = vld [vmem:[%s5 + $0xc0] sm:$0xff]
        %v4956 = vld [vmem:[%s5 + $0xc8] sm:$0xff]
        %v4957 = vld [vmem:[%s5 + $0xd0] sm:$0xff]
        %v4958 = vld [vmem:[%s5 + $0xd8] sm:$0xff]
        %v4959 = vld [vmem:[%s5 + $0xe0] sm:$0xff]
        %v4960 = vld [vmem:[%s5 + $0xe8] sm:$0xff]
        %v4961 = vld [vmem:[%s5 + $0xf0] sm:$0xff]
        %v4962 = vld [vmem:[%s5 + $0xf8] sm:$0xff]
        %v4963 = vld [vmem:[%s5 + $0x100] sm:$0xff]
        %v4964 = vld [vmem:[%s5 + $0x108] sm:$0xff]
        %v4965 = vld [vmem:[%s5 + $0x110] sm:$0xff]
        %v4966 = vld [vmem:[%s5 + $0x118] sm:$0xff]
        %v4967 = vld [vmem:[%s5 + $0x120] sm:$0xff]
        %v4968 = vld [vmem:[%s5 + $0x128] sm:$0xff]
        %v4969 = vld [vmem:[%s5 + $0x130] sm:$0xff]
        %v4970 = vld [vmem:[%s5 + $0x138] sm:$0xff]
        %v4971 = vld [vmem:[%s5 + $0x140] sm:$0xff]
        %v4972 = vld [vmem:[%s5 + $0x148] sm:$0xff]
        %v4973 = vld [vmem:[%s5 + $0x150] sm:$0xff]
        %v4974 = vld [vmem:[%s5 + $0x158] sm:$0xff]
        %v4975 = vld [vmem:[%s5 + $0x160] sm:$0xff]
        %v4976 = vld [vmem:[%s5 + $0x168] sm:$0xff]
        %v4977 = vld [vmem:[%s5 + $0x170] sm:$0xff]
        %v4978 = vld [vmem:[%s5 + $0x178] sm:$0xff]
        %v4979 = vld [vmem:[%s5 + $0x180] sm:$0xff]
        %v4980 = vld [vmem:[%s5 + $0x188] sm:$0xff]
        %v4981 = vld [vmem:[%s5 + $0x190] sm:$0xff]
        %v4982 = vld [vmem:[%s5 + $0x198] sm:$0xff]
        %v4983 = vld [vmem:[%s5 + $0x1a0] sm:$0xff]
        %v4984 = vld [vmem:[%s5 + $0x1a8] sm:$0xff]
        %v4985 = vld [vmem:[%s5 + $0x1b0] sm:$0xff]
        %v4986 = vld [vmem:[%s5 + $0x1b8] sm:$0xff]
        %v4987 = vld [vmem:[%s5 + $0x1c0] sm:$0xff]
        %v4988 = vld [vmem:[%s5 + $0x1c8] sm:$0xff]
        %v4989 = vld [vmem:[%s5 + $0x1d0] sm:$0xff]
        %v4990 = vld [vmem:[%s5 + $0x1d8] sm:$0xff]
        %v4991 = vld [vmem:[%s5 + $0x1e0] sm:$0xff]
        %v4992 = vld [vmem:[%s5 + $0x1e8] sm:$0xff]
        %v4993 = vld [vmem:[%s5 + $0x1f0] sm:$0xff]
        %v4994 = vld [vmem:[%s5 + $0x1f8] sm:$0xff]
        %v4995 = vld [vmem:[%s5 + $0x200] sm:$0xff]
        %v4996 = vld [vmem:[%s5 + $0x208] sm:$0xff]
        %v4997 = vld [vmem:[%s5 + $0x210] sm:$0xff]
        %v4998 = vld [vmem:[%s5 + $0x218] sm:$0xff]
        %v4999 = vld [vmem:[%s5 + $0x220] sm:$0xff]
        %v5000 = vld [vmem:[%s5 + $0x228] sm:$0xff]
        %v5001 = vld [vmem:[%s5 + $0x230] sm:$0xff]
        %v5002 = vld [vmem:[%s5 + $0x238] sm:$0xff]
        %v5003 = vld [vmem:[%s5 + $0x240] sm:$0xff]
        %v5004 = vld [vmem:[%s5 + $0x248] sm:$0xff]
        %v5005 = vld [vmem:[%s5 + $0x250] sm:$0xff]
        %v5006 = vld [vmem:[%s5 + $0x258] sm:$0xff]
        %v5007 = vld [vmem:[%s5 + $0x260] sm:$0xff]
        %v5008 = vld [vmem:[%s5 + $0x268] sm:$0xff]
        %v5009 = vld [vmem:[%s5 + $0x270] sm:$0xff]
        %v5010 = vld [vmem:[%s5 + $0x278] sm:$0xff]
        %v5011 = vld [vmem:[%s5 + $0x280] sm:$0xff]
        %v5012 = vld [vmem:[%s5 + $0x288] sm:$0xff]
        %v5013 = vld [vmem:[%s5 + $0x290] sm:$0xff]
        %v5014 = vld [vmem:[%s5 + $0x298] sm:$0xff]
        %v5015 = vld [vmem:[%s5 + $0x2a0] sm:$0xff]
        %v5016 = vld [vmem:[%s5 + $0x2a8] sm:$0xff]
        %v5017 = vld [vmem:[%s5 + $0x2b0] sm:$0xff]
        %v5018 = vld [vmem:[%s5 + $0x2b8] sm:$0xff]
        %v5019 = vld [vmem:[%s5 + $0x2c0] sm:$0xff]
        %v5020 = vld [vmem:[%s5 + $0x2c8] sm:$0xff]
        %v5021 = vld [vmem:[%s5 + $0x2d0] sm:$0xff]
        %v5022 = vld [vmem:[%s5 + $0x2d8] sm:$0xff]
        %v5023 = vld [vmem:[%s5 + $0x2e0] sm:$0xff]
        %v5024 = vld [vmem:[%s5 + $0x2e8] sm:$0xff]
        %v5025 = vld [vmem:[%s5 + $0x2f0] sm:$0xff]
        %v5026 = vld [vmem:[%s5 + $0x2f8] sm:$0xff]
        %v5027 = vld [vmem:[%s5 + $0x300] sm:$0xff]
        %v5028 = vld [vmem:[%s5 + $0x308] sm:$0xff]
        %v5029 = vld [vmem:[%s5 + $0x310] sm:$0xff]
        %v5030 = vld [vmem:[%s5 + $0x318] sm:$0xff]
        %v5031 = vld [vmem:[%s5 + $0x320] sm:$0xff]
        %v5032 = vld [vmem:[%s5 + $0x328] sm:$0xff]
        %v5033 = vld [vmem:[%s5 + $0x330] sm:$0xff]
        %v5034 = vld [vmem:[%s5 + $0x338] sm:$0xff]
        %v5035 = vld [vmem:[%s5 + $0x340] sm:$0xff]
        %v5036 = vld [vmem:[%s5 + $0x348] sm:$0xff]
        %v5037 = vld [vmem:[%s5 + $0x350] sm:$0xff]
        %v5038 = vld [vmem:[%s5 + $0x358] sm:$0xff]
        %v5039 = vld [vmem:[%s5 + $0x360] sm:$0xff]
        %v5040 = vld [vmem:[%s5 + $0x368] sm:$0xff]
        %v5041 = vld [vmem:[%s5 + $0x370] sm:$0xff]
        %v5042 = vld [vmem:[%s5 + $0x378] sm:$0xff]
        %v5043 = vld [vmem:[%s5 + $0x380] sm:$0xff]
        %v5044 = vld [vmem:[%s5 + $0x388] sm:$0xff]
        %v5045 = vld [vmem:[%s5 + $0x390] sm:$0xff]
        %v5046 = vld [vmem:[%s5 + $0x398] sm:$0xff]
        %v5047 = vld [vmem:[%s5 + $0x3a0] sm:$0xff]
        %v5048 = vld [vmem:[%s5 + $0x3a8] sm:$0xff]
        %v5049 = vld [vmem:[%s5 + $0x3b0] sm:$0xff]
        %v5050 = vld [vmem:[%s5 + $0x3b8] sm:$0xff]
        %v5051 = vld [vmem:[%s5 + $0x3c0] sm:$0xff]
        %v5052 = vld [vmem:[%s5 + $0x3c8] sm:$0xff]
        %v5053 = vld [vmem:[%s5 + $0x3d0] sm:$0xff]
        %v5054 = vld [vmem:[%s5 + $0x3d8] sm:$0xff]
        %v5055 = vld [vmem:[%s5 + $0x3e0] sm:$0xff]
        %v5056 = vld [vmem:[%s5 + $0x3e8] sm:$0xff]
        %v5057 = vld [vmem:[%s5 + $0x3f0] sm:$0xff]
        %v5058 = vld [vmem:[%s5 + $0x3f8] sm:$0xff]
        %v5059 = vld [vmem:[%s5 + $0x400] sm:$0xff]
        %v5060 = vld [vmem:[%s5 + $0x408] sm:$0xff]
        %v5061 = vld [vmem:[%s5 + $0x410] sm:$0xff]
        %v5062 = vld [vmem:[%s5 + $0x418] sm:$0xff]
        %v5063 = vld [vmem:[%s5 + $0x420] sm:$0xff]
        %v5064 = vld [vmem:[%s5 + $0x428] sm:$0xff]
        %v5065 = vld [vmem:[%s5 + $0x430] sm:$0xff]
        %v5066 = vld [vmem:[%s5 + $0x438] sm:$0xff]
        %v5067 = vld [vmem:[%s5 + $0x440] sm:$0xff]
        %v5068 = vld [vmem:[%s5 + $0x448] sm:$0xff]
        %v5069 = vld [vmem:[%s5 + $0x450] sm:$0xff]
        %v5070 = vld [vmem:[%s5 + $0x458] sm:$0xff]
        %v5071 = vld [vmem:[%s5 + $0x460] sm:$0xff]
        %v5072 = vld [vmem:[%s5 + $0x468] sm:$0xff]
        %v5073 = vld [vmem:[%s5 + $0x470] sm:$0xff]
        %v5074 = vld [vmem:[%s5 + $0x478] sm:$0xff]
        %v5075 = vld [vmem:[%s5 + $0x480] sm:$0xff]
        %v5076 = vld [vmem:[%s5 + $0x488] sm:$0xff]
        %v5077 = vld [vmem:[%s5 + $0x490] sm:$0xff]
        %v5078 = vld [vmem:[%s5 + $0x498] sm:$0xff]
        %v5079 = vld [vmem:[%s5 + $0x4a0] sm:$0xff]
        %v5080 = vld [vmem:[%s5 + $0x4a8] sm:$0xff]
        %v5081 = vld [vmem:[%s5 + $0x4b0] sm:$0xff]
        %v5082 = vld [vmem:[%s5 + $0x4b8] sm:$0xff]
        %v5083 = vld [vmem:[%s5 + $0x4c0] sm:$0xff]
        %v5084 = vld [vmem:[%s5 + $0x4c8] sm:$0xff]
        %v5085 = vld [vmem:[%s5 + $0x4d0] sm:$0xff]
        %v5086 = vld [vmem:[%s5 + $0x4d8] sm:$0xff]
        %v5087 = vld [vmem:[%s5 + $0x4e0] sm:$0xff]
        %v5088 = vld [vmem:[%s5 + $0x4e8] sm:$0xff]
        %v5089 = vld [vmem:[%s5 + $0x4f0] sm:$0xff]
        %v5090 = vld [vmem:[%s5 + $0x4f8] sm:$0xff]
        %v5091 = vld [vmem:[%s5 + $0x500] sm:$0xff]
        %v5092 = vld [vmem:[%s5 + $0x508] sm:$0xff]
        %v5093 = vld [vmem:[%s5 + $0x510] sm:$0xff]
        %v5094 = vld [vmem:[%s5 + $0x518] sm:$0xff]
        %v5095 = vld [vmem:[%s5 + $0x520] sm:$0xff]
        %v5096 = vld [vmem:[%s5 + $0x528] sm:$0xff]
        %v5097 = vld [vmem:[%s5 + $0x530] sm:$0xff]
        %v5098 = vld [vmem:[%s5 + $0x538] sm:$0xff]
        %v5099 = vld [vmem:[%s5 + $0x540] sm:$0xff]
        %v5100 = vld [vmem:[%s5 + $0x548] sm:$0xff]
        %v5101 = vld [vmem:[%s5 + $0x550] sm:$0xff]
        %v5102 = vld [vmem:[%s5 + $0x558] sm:$0xff]
        %v5103 = vld [vmem:[%s5 + $0x560] sm:$0x3f]
        %v5104 = vld [vmem:[%s5 + $0x568] sm:$0x3f]
        %v5105 = vld [vmem:[%s5 + $0x570] sm:$0x3f]
        %v5106 = vld [vmem:[%s5 + $0x578] sm:$0x3f]
        %vm5107 = vcmask 769024
        %v5109 = vsel %vm5107, %v4929, 0
        %v5112 = vsel %vm766, %v5103, 0
        %v5115 = vsel %vm766, %v5104, 0
        %v5118 = vsel %vm766, %v5105, 0
        %v5121 = vsel %vm766, %v5106, 0
        %5123 = vmatprep.subr.mxu0 %v4932
        %5124 = vmatpush1.msra.mxu0 %v4931
        %5125 = vmatprep.subr.mxu0 %v4936
        %5126 = vmatpush1.msra.mxu0 %v4935
        %5127 = vmatprep.subr.mxu0 %v4940
        %5128 = vmatpush1.msra.mxu0 %v4939
        %5129 = vmatprep.subr.mxu0 %v4944
        %5130 = vmatpush1.msra.mxu0 %v4943
        %5131 = vmatprep.subr.mxu0 %v4948
        %5132 = vmatpush1.msra.mxu0 %v4947
        %5133 = vmatprep.subr.mxu0 %v4952
        %5134 = vmatpush1.msra.mxu0 %v4951
        %5135 = vmatprep.subr.mxu0 %v4956
        %5136 = vmatpush1.msra.mxu0 %v4955
        %5137 = vmatprep.subr.mxu0 %v4960
        %5138 = vmatpush1.msra.mxu0 %v4959
        %5139 = vmatprep.subr.mxu0 %v4964
        %5140 = vmatpush1.msra.mxu0 %v4963
        %5141 = vmatprep.subr.mxu0 %v4968
        %5142 = vmatpush1.msra.mxu0 %v4967
        %5143 = vmatprep.subr.mxu0 %v4972
        %5144 = vmatpush1.msra.mxu0 %v4971
        %5145 = vmatprep.subr.mxu0 %v4976
        %5146 = vmatpush1.msra.mxu0 %v4975
        %5147 = vmatprep.subr.mxu0 %v4980
        %5148 = vmatpush1.msra.mxu0 %v4979
        %5149 = vmatprep.subr.mxu0 %v4984
        %5150 = vmatpush1.msra.mxu0 %v4983
        %5151 = vmatprep.subr.mxu0 %v4988
        %5152 = vmatpush1.msra.mxu0 %v4987
        %5153 = vmatprep.subr.mxu0 %v4992
        %5154 = vmatpush1.msra.mxu0 %v4991
        %5155 = vmatprep.subr.mxu0 %v4996
        %5156 = vmatpush1.msra.mxu0 %v4995
        %5157 = vmatprep.subr.mxu0 %v5000
        %5158 = vmatpush1.msra.mxu0 %v4999
        %5159 = vmatprep.subr.mxu0 %v5004
        %5160 = vmatpush1.msra.mxu0 %v5003
        %5161 = vmatprep.subr.mxu0 %v5008
        %5162 = vmatpush1.msra.mxu0 %v5007
        %5163 = vmatprep.subr.mxu0 %v5012
        %5164 = vmatpush1.msra.mxu0 %v5011
        %5165 = vmatprep.subr.mxu0 %v5016
        %5166 = vmatpush1.msra.mxu0 %v5015
        %5167 = vmatprep.subr.mxu0 %v5020
        %5168 = vmatpush1.msra.mxu0 %v5019
        %5169 = vmatprep.subr.mxu0 %v5024
        %5170 = vmatpush1.msra.mxu0 %v5023
        %5171 = vmatprep.subr.mxu0 %v5028
        %5172 = vmatpush1.msra.mxu0 %v5027
        %5173 = vmatprep.subr.mxu0 %v5032
        %5174 = vmatpush1.msra.mxu0 %v5031
        %5175 = vmatprep.subr.mxu0 %v5036
        %5176 = vmatpush1.msra.mxu0 %v5035
        %5177 = vmatprep.subr.mxu0 %v5040
        %5178 = vmatpush1.msra.mxu0 %v5039
        %5179 = vmatprep.subr.mxu0 %v5044
        %5180 = vmatpush1.msra.mxu0 %v5043
        %5181 = vmatprep.subr.mxu0 %v5048
        %5182 = vmatpush1.msra.mxu0 %v5047
        %5183 = vmatprep.subr.mxu0 %v5052
        %5184 = vmatpush1.msra.mxu0 %v5051
        %5185 = vmatprep.subr.mxu0 %v5056
        %5186 = vmatpush1.msra.mxu0 %v5055
        %5187 = vmatprep.mubr.f32.mxu0 %v4928
        %5188 = vmatmul.mubr.f32.gmra.mrb[0].mxu0 %v4927
        %v5189 = vpop.f32.mrb[0].mxu0
        %v5190 = vadd.f32 0.0, %v5189
        %v5191 = vpop.f32.mrb[0].mxu0
        %v5192 = vadd.f32 0.0, %v5191
        %5193 = vdwg.mxu0
        %5194 = vmatprep.subr.mxu0 %v5060
        %5195 = vmatpush1.msra.mxu0 %v5059
        %5196 = vmatprep.subr.mxu0 %v5064
        %5197 = vmatpush1.msra.mxu0 %v5063
        %5198 = vmatprep.subr.mxu0 %v5068
        %5199 = vmatpush1.msra.mxu0 %v5067
        %5200 = vmatprep.subr.mxu0 %v5072
        %5201 = vmatpush1.msra.mxu0 %v5071
        %5202 = vmatprep.subr.mxu0 %v5076
        %5203 = vmatpush1.msra.mxu0 %v5075
        %5204 = vmatprep.subr.mxu0 %v5080
        %5205 = vmatpush1.msra.mxu0 %v5079
        %5206 = vmatprep.subr.mxu0 %v5084
        %5207 = vmatpush1.msra.mxu0 %v5083
        %5208 = vmatprep.subr.mxu0 %v5088
        %5209 = vmatpush1.msra.mxu0 %v5087
        %5210 = vmatprep.subr.mxu0 %v5092
        %5211 = vmatpush1.msra.mxu0 %v5091
        %5212 = vmatprep.subr.mxu0 %v5096
        %5213 = vmatpush1.msra.mxu0 %v5095
        %5214 = vmatprep.subr.mxu0 %v5100
        %5215 = vmatpush1.msra.mxu0 %v5099
        %5216 = vmatprep.subr.mxu0 %v5115
        %5217 = vmatpush1.msra.mxu0 %v5112
        %5218 = vmatprep.subr.mxu0 0.0
        %5219 = vmatpush1.msra.mxu0 0.0
        %5220 = vmatprep.subr.mxu0 0.0
        %5221 = vmatpush1.msra.mxu0 0.0
        %5222 = vmatprep.subr.mxu0 0.0
        %5223 = vmatpush1.msra.mxu0 0.0
        %5224 = vmatprep.subr.mxu0 0.0
        %5225 = vmatpush1.msra.mxu0 0.0
        %5226 = vmatprep.subr.mxu0 0.0
        %5227 = vmatpush1.msra.mxu0 0.0
        %5228 = vmatprep.subr.mxu0 0.0
        %5229 = vmatpush1.msra.mxu0 0.0
        %5230 = vmatprep.subr.mxu0 0.0
        %5231 = vmatpush1.msra.mxu0 0.0
        %5232 = vmatprep.subr.mxu0 0.0
        %5233 = vmatpush1.msra.mxu0 0.0
        %5234 = vmatprep.subr.mxu0 0.0
        %5235 = vmatpush1.msra.mxu0 0.0
        %5236 = vmatprep.subr.mxu0 0.0
        %5237 = vmatpush1.msra.mxu0 0.0
        %5238 = vmatprep.subr.mxu0 0.0
        %5239 = vmatpush1.msra.mxu0 0.0
        %5240 = vmatprep.subr.mxu0 0.0
        %5241 = vmatpush1.msra.mxu0 0.0
        %5242 = vmatprep.subr.mxu0 0.0
        %5243 = vmatpush1.msra.mxu0 0.0
        %5244 = vmatprep.subr.mxu0 0.0
        %5245 = vmatpush1.msra.mxu0 0.0
        %5246 = vmatprep.subr.mxu0 0.0
        %5247 = vmatpush1.msra.mxu0 0.0
        %5248 = vmatprep.subr.mxu0 0.0
        %5249 = vmatpush1.msra.mxu0 0.0
        %5250 = vmatprep.subr.mxu0 0.0
        %5251 = vmatpush1.msra.mxu0 0.0
        %5252 = vmatprep.subr.mxu0 0.0
        %5253 = vmatpush1.msra.mxu0 0.0
        %5254 = vmatprep.subr.mxu0 0.0
        %5255 = vmatpush1.msra.mxu0 0.0
        %5256 = vmatprep.subr.mxu0 0.0
        %5257 = vmatpush1.msra.mxu0 0.0
        %5258 = vmatprep.mubr.f32.mxu0 0.0
        %5259 = vmatmul.mubr.f32.gmra.mrb[0].mxu0 %v5109
        %v5260 = vpop.f32.mrb[0].mxu0
        %v5261 = vadd.f32 %v5190, %v5260
        %v5262 = vpop.f32.mrb[0].mxu0
        %v5263 = vadd.f32 %v5192, %v5262
        %5264 = vdwg.mxu0
        %5265 = vmatprep.subr.mxu0 %v4934
        %5266 = vmatpush1.msra.mxu0 %v4933
        %5267 = vmatprep.subr.mxu0 %v4938
        %5268 = vmatpush1.msra.mxu0 %v4937
        %5269 = vmatprep.subr.mxu0 %v4942
        %5270 = vmatpush1.msra.mxu0 %v4941
        %5271 = vmatprep.subr.mxu0 %v4946
        %5272 = vmatpush1.msra.mxu0 %v4945
        %5273 = vmatprep.subr.mxu0 %v4950
        %5274 = vmatpush1.msra.mxu0 %v4949
        %5275 = vmatprep.subr.mxu0 %v4954
        %5276 = vmatpush1.msra.mxu0 %v4953
        %5277 = vmatprep.subr.mxu0 %v4958
        %5278 = vmatpush1.msra.mxu0 %v4957
        %5279 = vmatprep.subr.mxu0 %v4962
        %5280 = vmatpush1.msra.mxu0 %v4961
        %5281 = vmatprep.subr.mxu0 %v4966
        %5282 = vmatpush1.msra.mxu0 %v4965
        %5283 = vmatprep.subr.mxu0 %v4970
        %5284 = vmatpush1.msra.mxu0 %v4969
        %5285 = vmatprep.subr.mxu0 %v4974
        %5286 = vmatpush1.msra.mxu0 %v4973
        %5287 = vmatprep.subr.mxu0 %v4978
        %5288 = vmatpush1.msra.mxu0 %v4977
        %5289 = vmatprep.subr.mxu0 %v4982
        %5290 = vmatpush1.msra.mxu0 %v4981
        %5291 = vmatprep.subr.mxu0 %v4986
        %5292 = vmatpush1.msra.mxu0 %v4985
        %5293 = vmatprep.subr.mxu0 %v4990
        %5294 = vmatpush1.msra.mxu0 %v4989
        %5295 = vmatprep.subr.mxu0 %v4994
        %5296 = vmatpush1.msra.mxu0 %v4993
        %5297 = vmatprep.subr.mxu0 %v4998
        %5298 = vmatpush1.msra.mxu0 %v4997
        %5299 = vmatprep.subr.mxu0 %v5002
        %5300 = vmatpush1.msra.mxu0 %v5001
        %5301 = vmatprep.subr.mxu0 %v5006
        %5302 = vmatpush1.msra.mxu0 %v5005
        %5303 = vmatprep.subr.mxu0 %v5010
        %5304 = vmatpush1.msra.mxu0 %v5009
        %5305 = vmatprep.subr.mxu0 %v5014
        %5306 = vmatpush1.msra.mxu0 %v5013
        %5307 = vmatprep.subr.mxu0 %v5018
        %5308 = vmatpush1.msra.mxu0 %v5017
        %5309 = vmatprep.subr.mxu0 %v5022
        %5310 = vmatpush1.msra.mxu0 %v5021
        %5311 = vmatprep.subr.mxu0 %v5026
        %5312 = vmatpush1.msra.mxu0 %v5025
        %5313 = vmatprep.subr.mxu0 %v5030
        %5314 = vmatpush1.msra.mxu0 %v5029
        %5315 = vmatprep.subr.mxu0 %v5034
        %5316 = vmatpush1.msra.mxu0 %v5033
        %5317 = vmatprep.subr.mxu0 %v5038
        %5318 = vmatpush1.msra.mxu0 %v5037
        %5319 = vmatprep.subr.mxu0 %v5042
        %5320 = vmatpush1.msra.mxu0 %v5041
        %5321 = vmatprep.subr.mxu0 %v5046
        %5322 = vmatpush1.msra.mxu0 %v5045
        %5323 = vmatprep.subr.mxu0 %v5050
        %5324 = vmatpush1.msra.mxu0 %v5049
        %5325 = vmatprep.subr.mxu0 %v5054
        %5326 = vmatpush1.msra.mxu0 %v5053
        %5327 = vmatprep.subr.mxu0 %v5058
        %5328 = vmatpush1.msra.mxu0 %v5057
        %5329 = vmatprep.mubr.f32.mxu0 %v4928
        %5330 = vmatmul.mubr.f32.gmra.mrb[0].mxu0 %v4927
        %v5331 = vpop.f32.mrb[0].mxu0
        %v5332 = vadd.f32 0.0, %v5331
        %v5333 = vpop.f32.mrb[0].mxu0
        %v5334 = vadd.f32 0.0, %v5333
        %5335 = vdwg.mxu0
        %5336 = vmatprep.subr.mxu0 %v5062
        %5337 = vmatpush1.msra.mxu0 %v5061
        %5338 = vmatprep.subr.mxu0 %v5066
        %5339 = vmatpush1.msra.mxu0 %v5065
        %5340 = vmatprep.subr.mxu0 %v5070
        %5341 = vmatpush1.msra.mxu0 %v5069
        %5342 = vmatprep.subr.mxu0 %v5074
        %5343 = vmatpush1.msra.mxu0 %v5073
        %5344 = vmatprep.subr.mxu0 %v5078
        %5345 = vmatpush1.msra.mxu0 %v5077
        %5346 = vmatprep.subr.mxu0 %v5082
        %5347 = vmatpush1.msra.mxu0 %v5081
        %5348 = vmatprep.subr.mxu0 %v5086
        %5349 = vmatpush1.msra.mxu0 %v5085
        %5350 = vmatprep.subr.mxu0 %v5090
        %5351 = vmatpush1.msra.mxu0 %v5089
        %5352 = vmatprep.subr.mxu0 %v5094
        %5353 = vmatpush1.msra.mxu0 %v5093
        %5354 = vmatprep.subr.mxu0 %v5098
        %5355 = vmatpush1.msra.mxu0 %v5097
        %5356 = vmatprep.subr.mxu0 %v5102
        %5357 = vmatpush1.msra.mxu0 %v5101
        %5358 = vmatprep.subr.mxu0 %v5121
        %5359 = vmatpush1.msra.mxu0 %v5118
        %5360 = vmatprep.subr.mxu0 0.0
        %5361 = vmatpush1.msra.mxu0 0.0
        %5362 = vmatprep.subr.mxu0 0.0
        %5363 = vmatpush1.msra.mxu0 0.0
        %5364 = vmatprep.subr.mxu0 0.0
        %5365 = vmatpush1.msra.mxu0 0.0
        %5366 = vmatprep.subr.mxu0 0.0
        %5367 = vmatpush1.msra.mxu0 0.0
        %5368 = vmatprep.subr.mxu0 0.0
        %5369 = vmatpush1.msra.mxu0 0.0
        %5370 = vmatprep.subr.mxu0 0.0
        %5371 = vmatpush1.msra.mxu0 0.0
        %5372 = vmatprep.subr.mxu0 0.0
        %5373 = vmatpush1.msra.mxu0 0.0
        %5374 = vmatprep.subr.mxu0 0.0
        %5375 = vmatpush1.msra.mxu0 0.0
        %5376 = vmatprep.subr.mxu0 0.0
        %5377 = vmatpush1.msra.mxu0 0.0
        %5378 = vmatprep.subr.mxu0 0.0
        %5379 = vmatpush1.msra.mxu0 0.0
        %5380 = vmatprep.subr.mxu0 0.0
        %5381 = vmatpush1.msra.mxu0 0.0
        %5382 = vmatprep.subr.mxu0 0.0
        %5383 = vmatpush1.msra.mxu0 0.0
        %5384 = vmatprep.subr.mxu0 0.0
        %5385 = vmatpush1.msra.mxu0 0.0
        %5386 = vmatprep.subr.mxu0 0.0
        %5387 = vmatpush1.msra.mxu0 0.0
        %5388 = vmatprep.subr.mxu0 0.0
        %5389 = vmatpush1.msra.mxu0 0.0
        %5390 = vmatprep.subr.mxu0 0.0
        %5391 = vmatpush1.msra.mxu0 0.0
        %5392 = vmatprep.subr.mxu0 0.0
        %5393 = vmatpush1.msra.mxu0 0.0
        %5394 = vmatprep.subr.mxu0 0.0
        %5395 = vmatpush1.msra.mxu0 0.0
        %5396 = vmatprep.subr.mxu0 0.0
        %5397 = vmatpush1.msra.mxu0 0.0
        %5398 = vmatprep.subr.mxu0 0.0
        %5399 = vmatpush1.msra.mxu0 0.0
        %5400 = vmatprep.mubr.f32.mxu0 0.0
        %5401 = vmatmul.mubr.f32.gmra.mrb[0].mxu0 %v5109
        %v5402 = vpop.f32.mrb[0].mxu0
        %v5403 = vadd.f32 %v5332, %v5402
        %v5404 = vpop.f32.mrb[0].mxu0
        %v5405 = vadd.f32 %v5334, %v5404
        %5406 = vdwg.mxu0
        %v5411 = vcombine.low %v5261, %v5263
        %v5412 = vcombine.low %v5403, %v5405
        %v5414 = vunpack.c.l.s4 1966171168
        %v5415 = vunpack.c.0.s8 %v5414
        %v5416 = vlaneseq
        %v5417 = vshrl.u32 %v5416, 7
        %v5418 = vsub.s32 %v5415, %v5417
        %v5419 = vrot.slane %v5411, %v5418
        %v5421 = vunpack.c.l.s4 1966171168
        %v5422 = vunpack.c.0.s8 %v5421
        %v5423 = vlaneseq
        %v5424 = vshrl.u32 %v5423, 7
        %v5425 = vsub.s32 %v5422, %v5424
        %v5426 = vrot.slane %v5412, %v5425
        %v5427 = vcombine.low %v5419, %v5426
        %v5429 = vunpack.c.l.s4 1966171168
        %v5430 = vunpack.c.0.s8 %v5429
        %v5431 = vlaneseq
        %v5432 = vshrl.u32 %v5431, 7
        %v5433 = vsub.s32 %v5430, %v5432
        %v5434 = vrot.slane %v5427, %v5433
        %v5436 = vadd.f32 %v4930, %v5434
        %s5437 = scalar_lea.vmem %s5, 1408
        %v5438 = vld [vmem:[%s5437] sm:$0xff]
        %v5439 = vld [vmem:[%s5437 + $0x8] sm:$0xff]
        %v5440 = vld [vmem:[%s5437 + $0x10] sm:$0xff]
        %v5441 = vld [vmem:[%s5437 + $0x18] sm:$0xff]
        %v5442 = vld [vmem:[%s5437 + $0x20] sm:$0xff]
        %v5443 = vld [vmem:[%s5437 + $0x28] sm:$0xff]
        %v5444 = vld [vmem:[%s5437 + $0x30] sm:$0xff]
        %v5445 = vld [vmem:[%s5437 + $0x38] sm:$0xff]
        %v5446 = vld [vmem:[%s5437 + $0x40] sm:$0xff]
        %v5447 = vld [vmem:[%s5437 + $0x48] sm:$0xff]
        %v5448 = vld [vmem:[%s5437 + $0x50] sm:$0xff]
        %v5449 = vld [vmem:[%s5437 + $0x58] sm:$0xff]
        %v5450 = vld [vmem:[%s5437 + $0x60] sm:$0xff]
        %v5451 = vld [vmem:[%s5437 + $0x68] sm:$0xff]
        %v5452 = vld [vmem:[%s5437 + $0x70] sm:$0xff]
        %v5453 = vld [vmem:[%s5437 + $0x78] sm:$0xff]
        %v5454 = vld [vmem:[%s5437 + $0x80] sm:$0xff]
        %v5455 = vld [vmem:[%s5437 + $0x88] sm:$0xff]
        %v5456 = vld [vmem:[%s5437 + $0x90] sm:$0xff]
        %v5457 = vld [vmem:[%s5437 + $0x98] sm:$0xff]
        %v5458 = vld [vmem:[%s5437 + $0xa0] sm:$0xff]
        %v5459 = vld [vmem:[%s5437 + $0xa8] sm:$0xff]
        %v5460 = vld [vmem:[%s5437 + $0xb0] sm:$0xff]
        %v5461 = vld [vmem:[%s5437 + $0xb8] sm:$0xff]
        %v5462 = vld [vmem:[%s5437 + $0xc0] sm:$0xff]
        %v5463 = vld [vmem:[%s5437 + $0xc8] sm:$0xff]
        %v5464 = vld [vmem:[%s5437 + $0xd0] sm:$0xff]
        %v5465 = vld [vmem:[%s5437 + $0xd8] sm:$0xff]
        %v5466 = vld [vmem:[%s5437 + $0xe0] sm:$0xff]
        %v5467 = vld [vmem:[%s5437 + $0xe8] sm:$0xff]
        %v5468 = vld [vmem:[%s5437 + $0xf0] sm:$0xff]
        %v5469 = vld [vmem:[%s5437 + $0xf8] sm:$0xff]
        %v5470 = vld [vmem:[%s5437 + $0x100] sm:$0xff]
        %v5471 = vld [vmem:[%s5437 + $0x108] sm:$0xff]
        %v5472 = vld [vmem:[%s5437 + $0x110] sm:$0xff]
        %v5473 = vld [vmem:[%s5437 + $0x118] sm:$0xff]
        %v5474 = vld [vmem:[%s5437 + $0x120] sm:$0xff]
        %v5475 = vld [vmem:[%s5437 + $0x128] sm:$0xff]
        %v5476 = vld [vmem:[%s5437 + $0x130] sm:$0xff]
        %v5477 = vld [vmem:[%s5437 + $0x138] sm:$0xff]
        %v5478 = vld [vmem:[%s5437 + $0x140] sm:$0xff]
        %v5479 = vld [vmem:[%s5437 + $0x148] sm:$0xff]
        %v5480 = vld [vmem:[%s5437 + $0x150] sm:$0xff]
        %v5481 = vld [vmem:[%s5437 + $0x158] sm:$0xff]
        %v5482 = vld [vmem:[%s5437 + $0x160] sm:$0xff]
        %v5483 = vld [vmem:[%s5437 + $0x168] sm:$0xff]
        %v5484 = vld [vmem:[%s5437 + $0x170] sm:$0xff]
        %v5485 = vld [vmem:[%s5437 + $0x178] sm:$0xff]
        %v5486 = vld [vmem:[%s5437 + $0x180] sm:$0xff]
        %v5487 = vld [vmem:[%s5437 + $0x188] sm:$0xff]
        %v5488 = vld [vmem:[%s5437 + $0x190] sm:$0xff]
        %v5489 = vld [vmem:[%s5437 + $0x198] sm:$0xff]
        %v5490 = vld [vmem:[%s5437 + $0x1a0] sm:$0xff]
        %v5491 = vld [vmem:[%s5437 + $0x1a8] sm:$0xff]
        %v5492 = vld [vmem:[%s5437 + $0x1b0] sm:$0xff]
        %v5493 = vld [vmem:[%s5437 + $0x1b8] sm:$0xff]
        %v5494 = vld [vmem:[%s5437 + $0x1c0] sm:$0xff]
        %v5495 = vld [vmem:[%s5437 + $0x1c8] sm:$0xff]
        %v5496 = vld [vmem:[%s5437 + $0x1d0] sm:$0xff]
        %v5497 = vld [vmem:[%s5437 + $0x1d8] sm:$0xff]
        %v5498 = vld [vmem:[%s5437 + $0x1e0] sm:$0xff]
        %v5499 = vld [vmem:[%s5437 + $0x1e8] sm:$0xff]
        %v5500 = vld [vmem:[%s5437 + $0x1f0] sm:$0xff]
        %v5501 = vld [vmem:[%s5437 + $0x1f8] sm:$0xff]
        %v5502 = vld [vmem:[%s5437 + $0x200] sm:$0xff]
        %v5503 = vld [vmem:[%s5437 + $0x208] sm:$0xff]
        %v5504 = vld [vmem:[%s5437 + $0x210] sm:$0xff]
        %v5505 = vld [vmem:[%s5437 + $0x218] sm:$0xff]
        %v5506 = vld [vmem:[%s5437 + $0x220] sm:$0xff]
        %v5507 = vld [vmem:[%s5437 + $0x228] sm:$0xff]
        %v5508 = vld [vmem:[%s5437 + $0x230] sm:$0xff]
        %v5509 = vld [vmem:[%s5437 + $0x238] sm:$0xff]
        %v5510 = vld [vmem:[%s5437 + $0x240] sm:$0xff]
        %v5511 = vld [vmem:[%s5437 + $0x248] sm:$0xff]
        %v5512 = vld [vmem:[%s5437 + $0x250] sm:$0xff]
        %v5513 = vld [vmem:[%s5437 + $0x258] sm:$0xff]
        %v5514 = vld [vmem:[%s5437 + $0x260] sm:$0xff]
        %v5515 = vld [vmem:[%s5437 + $0x268] sm:$0xff]
        %v5516 = vld [vmem:[%s5437 + $0x270] sm:$0xff]
        %v5517 = vld [vmem:[%s5437 + $0x278] sm:$0xff]
        %v5518 = vld [vmem:[%s5437 + $0x280] sm:$0xff]
        %v5519 = vld [vmem:[%s5437 + $0x288] sm:$0xff]
        %v5520 = vld [vmem:[%s5437 + $0x290] sm:$0xff]
        %v5521 = vld [vmem:[%s5437 + $0x298] sm:$0xff]
        %v5522 = vld [vmem:[%s5437 + $0x2a0] sm:$0xff]
        %v5523 = vld [vmem:[%s5437 + $0x2a8] sm:$0xff]
        %v5524 = vld [vmem:[%s5437 + $0x2b0] sm:$0xff]
        %v5525 = vld [vmem:[%s5437 + $0x2b8] sm:$0xff]
        %v5526 = vld [vmem:[%s5437 + $0x2c0] sm:$0xff]
        %v5527 = vld [vmem:[%s5437 + $0x2c8] sm:$0xff]
        %v5528 = vld [vmem:[%s5437 + $0x2d0] sm:$0xff]
        %v5529 = vld [vmem:[%s5437 + $0x2d8] sm:$0xff]
        %v5530 = vld [vmem:[%s5437 + $0x2e0] sm:$0xff]
        %v5531 = vld [vmem:[%s5437 + $0x2e8] sm:$0xff]
        %v5532 = vld [vmem:[%s5437 + $0x2f0] sm:$0xff]
        %v5533 = vld [vmem:[%s5437 + $0x2f8] sm:$0xff]
        %v5534 = vld [vmem:[%s5437 + $0x300] sm:$0xff]
        %v5535 = vld [vmem:[%s5437 + $0x308] sm:$0xff]
        %v5536 = vld [vmem:[%s5437 + $0x310] sm:$0xff]
        %v5537 = vld [vmem:[%s5437 + $0x318] sm:$0xff]
        %v5538 = vld [vmem:[%s5437 + $0x320] sm:$0xff]
        %v5539 = vld [vmem:[%s5437 + $0x328] sm:$0xff]
        %v5540 = vld [vmem:[%s5437 + $0x330] sm:$0xff]
        %v5541 = vld [vmem:[%s5437 + $0x338] sm:$0xff]
        %v5542 = vld [vmem:[%s5437 + $0x340] sm:$0xff]
        %v5543 = vld [vmem:[%s5437 + $0x348] sm:$0xff]
        %v5544 = vld [vmem:[%s5437 + $0x350] sm:$0xff]
        %v5545 = vld [vmem:[%s5437 + $0x358] sm:$0xff]
        %v5546 = vld [vmem:[%s5437 + $0x360] sm:$0xff]
        %v5547 = vld [vmem:[%s5437 + $0x368] sm:$0xff]
        %v5548 = vld [vmem:[%s5437 + $0x370] sm:$0xff]
        %v5549 = vld [vmem:[%s5437 + $0x378] sm:$0xff]
        %v5550 = vld [vmem:[%s5437 + $0x380] sm:$0xff]
        %v5551 = vld [vmem:[%s5437 + $0x388] sm:$0xff]
        %v5552 = vld [vmem:[%s5437 + $0x390] sm:$0xff]
        %v5553 = vld [vmem:[%s5437 + $0x398] sm:$0xff]
        %v5554 = vld [vmem:[%s5437 + $0x3a0] sm:$0xff]
        %v5555 = vld [vmem:[%s5437 + $0x3a8] sm:$0xff]
        %v5556 = vld [vmem:[%s5437 + $0x3b0] sm:$0xff]
        %v5557 = vld [vmem:[%s5437 + $0x3b8] sm:$0xff]
        %v5558 = vld [vmem:[%s5437 + $0x3c0] sm:$0xff]
        %v5559 = vld [vmem:[%s5437 + $0x3c8] sm:$0xff]
        %v5560 = vld [vmem:[%s5437 + $0x3d0] sm:$0xff]
        %v5561 = vld [vmem:[%s5437 + $0x3d8] sm:$0xff]
        %v5562 = vld [vmem:[%s5437 + $0x3e0] sm:$0xff]
        %v5563 = vld [vmem:[%s5437 + $0x3e8] sm:$0xff]
        %v5564 = vld [vmem:[%s5437 + $0x3f0] sm:$0xff]
        %v5565 = vld [vmem:[%s5437 + $0x3f8] sm:$0xff]
        %v5566 = vld [vmem:[%s5437 + $0x400] sm:$0xff]
        %v5567 = vld [vmem:[%s5437 + $0x408] sm:$0xff]
        %v5568 = vld [vmem:[%s5437 + $0x410] sm:$0xff]
        %v5569 = vld [vmem:[%s5437 + $0x418] sm:$0xff]
        %v5570 = vld [vmem:[%s5437 + $0x420] sm:$0xff]
        %v5571 = vld [vmem:[%s5437 + $0x428] sm:$0xff]
        %v5572 = vld [vmem:[%s5437 + $0x430] sm:$0xff]
        %v5573 = vld [vmem:[%s5437 + $0x438] sm:$0xff]
        %v5574 = vld [vmem:[%s5437 + $0x440] sm:$0xff]
        %v5575 = vld [vmem:[%s5437 + $0x448] sm:$0xff]
        %v5576 = vld [vmem:[%s5437 + $0x450] sm:$0xff]
        %v5577 = vld [vmem:[%s5437 + $0x458] sm:$0xff]
        %v5578 = vld [vmem:[%s5437 + $0x460] sm:$0xff]
        %v5579 = vld [vmem:[%s5437 + $0x468] sm:$0xff]
        %v5580 = vld [vmem:[%s5437 + $0x470] sm:$0xff]
        %v5581 = vld [vmem:[%s5437 + $0x478] sm:$0xff]
        %v5582 = vld [vmem:[%s5437 + $0x480] sm:$0xff]
        %v5583 = vld [vmem:[%s5437 + $0x488] sm:$0xff]
        %v5584 = vld [vmem:[%s5437 + $0x490] sm:$0xff]
        %v5585 = vld [vmem:[%s5437 + $0x498] sm:$0xff]
        %v5586 = vld [vmem:[%s5437 + $0x4a0] sm:$0xff]
        %v5587 = vld [vmem:[%s5437 + $0x4a8] sm:$0xff]
        %v5588 = vld [vmem:[%s5437 + $0x4b0] sm:$0xff]
        %v5589 = vld [vmem:[%s5437 + $0x4b8] sm:$0xff]
        %v5590 = vld [vmem:[%s5437 + $0x4c0] sm:$0xff]
        %v5591 = vld [vmem:[%s5437 + $0x4c8] sm:$0xff]
        %v5592 = vld [vmem:[%s5437 + $0x4d0] sm:$0xff]
        %v5593 = vld [vmem:[%s5437 + $0x4d8] sm:$0xff]
        %v5594 = vld [vmem:[%s5437 + $0x4e0] sm:$0xff]
        %v5595 = vld [vmem:[%s5437 + $0x4e8] sm:$0xff]
        %v5596 = vld [vmem:[%s5437 + $0x4f0] sm:$0xff]
        %v5597 = vld [vmem:[%s5437 + $0x4f8] sm:$0xff]
        %v5598 = vld [vmem:[%s5437 + $0x500] sm:$0xff]
        %v5599 = vld [vmem:[%s5437 + $0x508] sm:$0xff]
        %v5600 = vld [vmem:[%s5437 + $0x510] sm:$0xff]
        %v5601 = vld [vmem:[%s5437 + $0x518] sm:$0xff]
        %v5602 = vld [vmem:[%s5437 + $0x520] sm:$0xff]
        %v5603 = vld [vmem:[%s5437 + $0x528] sm:$0xff]
        %v5604 = vld [vmem:[%s5437 + $0x530] sm:$0xff]
        %v5605 = vld [vmem:[%s5437 + $0x538] sm:$0xff]
        %v5606 = vld [vmem:[%s5437 + $0x540] sm:$0xff]
        %v5607 = vld [vmem:[%s5437 + $0x548] sm:$0xff]
        %v5608 = vld [vmem:[%s5437 + $0x550] sm:$0xff]
        %v5609 = vld [vmem:[%s5437 + $0x558] sm:$0xff]
        %v5610 = vld [vmem:[%s5437 + $0x560] sm:$0x3f]
        %v5611 = vld [vmem:[%s5437 + $0x568] sm:$0x3f]
        %v5612 = vld [vmem:[%s5437 + $0x570] sm:$0x3f]
        %v5613 = vld [vmem:[%s5437 + $0x578] sm:$0x3f]
        %v5616 = vrot.slane %v4927, 1
        %v5617 = vrot.slane %v4928, 1
        %v5618 = vrot.slane %v4929, 1
        %v5621 = vsel %vm5107, %v5618, 0
        %v5624 = vsel %vm766, %v5610, 0
        %v5627 = vsel %vm766, %v5611, 0
        %v5630 = vsel %vm766, %v5612, 0
        %v5633 = vsel %vm766, %v5613, 0
        %5635 = vmatprep.subr.mxu0 %v5439
        %5636 = vmatpush1.msra.mxu0 %v5438
        %5637 = vmatprep.subr.mxu0 %v5443
        %5638 = vmatpush1.msra.mxu0 %v5442
        %5639 = vmatprep.subr.mxu0 %v5447
        %5640 = vmatpush1.msra.mxu0 %v5446
        %5641 = vmatprep.subr.mxu0 %v5451
        %5642 = vmatpush1.msra.mxu0 %v5450
        %5643 = vmatprep.subr.mxu0 %v5455
        %5644 = vmatpush1.msra.mxu0 %v5454
        %5645 = vmatprep.subr.mxu0 %v5459
        %5646 = vmatpush1.msra.mxu0 %v5458
        %5647 = vmatprep.subr.mxu0 %v5463
        %5648 = vmatpush1.msra.mxu0 %v5462
        %5649 = vmatprep.subr.mxu0 %v5467
        %5650 = vmatpush1.msra.mxu0 %v5466
        %5651 = vmatprep.subr.mxu0 %v5471
        %5652 = vmatpush1.msra.mxu0 %v5470
        %5653 = vmatprep.subr.mxu0 %v5475
        %5654 = vmatpush1.msra.mxu0 %v5474
        %5655 = vmatprep.subr.mxu0 %v5479
        %5656 = vmatpush1.msra.mxu0 %v5478
        %5657 = vmatprep.subr.mxu0 %v5483
        %5658 = vmatpush1.msra.mxu0 %v5482
        %5659 = vmatprep.subr.mxu0 %v5487
        %5660 = vmatpush1.msra.mxu0 %v5486
        %5661 = vmatprep.subr.mxu0 %v5491
        %5662 = vmatpush1.msra.mxu0 %v5490
        %5663 = vmatprep.subr.mxu0 %v5495
        %5664 = vmatpush1.msra.mxu0 %v5494
        %5665 = vmatprep.subr.mxu0 %v5499
        %5666 = vmatpush1.msra.mxu0 %v5498
        %5667 = vmatprep.subr.mxu0 %v5503
        %5668 = vmatpush1.msra.mxu0 %v5502
        %5669 = vmatprep.subr.mxu0 %v5507
        %5670 = vmatpush1.msra.mxu0 %v5506
        %5671 = vmatprep.subr.mxu0 %v5511
        %5672 = vmatpush1.msra.mxu0 %v5510
        %5673 = vmatprep.subr.mxu0 %v5515
        %5674 = vmatpush1.msra.mxu0 %v5514
        %5675 = vmatprep.subr.mxu0 %v5519
        %5676 = vmatpush1.msra.mxu0 %v5518
        %5677 = vmatprep.subr.mxu0 %v5523
        %5678 = vmatpush1.msra.mxu0 %v5522
        %5679 = vmatprep.subr.mxu0 %v5527
        %5680 = vmatpush1.msra.mxu0 %v5526
        %5681 = vmatprep.subr.mxu0 %v5531
        %5682 = vmatpush1.msra.mxu0 %v5530
        %5683 = vmatprep.subr.mxu0 %v5535
        %5684 = vmatpush1.msra.mxu0 %v5534
        %5685 = vmatprep.subr.mxu0 %v5539
        %5686 = vmatpush1.msra.mxu0 %v5538
        %5687 = vmatprep.subr.mxu0 %v5543
        %5688 = vmatpush1.msra.mxu0 %v5542
        %5689 = vmatprep.subr.mxu0 %v5547
        %5690 = vmatpush1.msra.mxu0 %v5546
        %5691 = vmatprep.subr.mxu0 %v5551
        %5692 = vmatpush1.msra.mxu0 %v5550
        %5693 = vmatprep.subr.mxu0 %v5555
        %5694 = vmatpush1.msra.mxu0 %v5554
        %5695 = vmatprep.subr.mxu0 %v5559
        %5696 = vmatpush1.msra.mxu0 %v5558
        %5697 = vmatprep.subr.mxu0 %v5563
        %5698 = vmatpush1.msra.mxu0 %v5562
        %5699 = vmatprep.mubr.f32.mxu0 %v5617
        %5700 = vmatmul.mubr.f32.gmra.mrb[0].mxu0 %v5616
        %v5701 = vpop.f32.mrb[0].mxu0
        %v5702 = vadd.f32 0.0, %v5701
        %v5703 = vpop.f32.mrb[0].mxu0
        %v5704 = vadd.f32 0.0, %v5703
        %5705 = vdwg.mxu0
        %5706 = vmatprep.subr.mxu0 %v5567
        %5707 = vmatpush1.msra.mxu0 %v5566
        %5708 = vmatprep.subr.mxu0 %v5571
        %5709 = vmatpush1.msra.mxu0 %v5570
        %5710 = vmatprep.subr.mxu0 %v5575
        %5711 = vmatpush1.msra.mxu0 %v5574
        %5712 = vmatprep.subr.mxu0 %v5579
        %5713 = vmatpush1.msra.mxu0 %v5578
        %5714 = vmatprep.subr.mxu0 %v5583
        %5715 = vmatpush1.msra.mxu0 %v5582
        %5716 = vmatprep.subr.mxu0 %v5587
        %5717 = vmatpush1.msra.mxu0 %v5586
        %5718 = vmatprep.subr.mxu0 %v5591
        %5719 = vmatpush1.msra.mxu0 %v5590
        %5720 = vmatprep.subr.mxu0 %v5595
        %5721 = vmatpush1.msra.mxu0 %v5594
        %5722 = vmatprep.subr.mxu0 %v5599
        %5723 = vmatpush1.msra.mxu0 %v5598
        %5724 = vmatprep.subr.mxu0 %v5603
        %5725 = vmatpush1.msra.mxu0 %v5602
        %5726 = vmatprep.subr.mxu0 %v5607
        %5727 = vmatpush1.msra.mxu0 %v5606
        %5728 = vmatprep.subr.mxu0 %v5627
        %5729 = vmatpush1.msra.mxu0 %v5624
        %5730 = vmatprep.subr.mxu0 0.0
        %5731 = vmatpush1.msra.mxu0 0.0
        %5732 = vmatprep.subr.mxu0 0.0
        %5733 = vmatpush1.msra.mxu0 0.0
        %5734 = vmatprep.subr.mxu0 0.0
        %5735 = vmatpush1.msra.mxu0 0.0
        %5736 = vmatprep.subr.mxu0 0.0
        %5737 = vmatpush1.msra.mxu0 0.0
        %5738 = vmatprep.subr.mxu0 0.0
        %5739 = vmatpush1.msra.mxu0 0.0
        %5740 = vmatprep.subr.mxu0 0.0
        %5741 = vmatpush1.msra.mxu0 0.0
        %5742 = vmatprep.subr.mxu0 0.0
        %5743 = vmatpush1.msra.mxu0 0.0
        %5744 = vmatprep.subr.mxu0 0.0
        %5745 = vmatpush1.msra.mxu0 0.0
        %5746 = vmatprep.subr.mxu0 0.0
        %5747 = vmatpush1.msra.mxu0 0.0
        %5748 = vmatprep.subr.mxu0 0.0
        %5749 = vmatpush1.msra.mxu0 0.0
        %5750 = vmatprep.subr.mxu0 0.0
        %5751 = vmatpush1.msra.mxu0 0.0
        %5752 = vmatprep.subr.mxu0 0.0
        %5753 = vmatpush1.msra.mxu0 0.0
        %5754 = vmatprep.subr.mxu0 0.0
        %5755 = vmatpush1.msra.mxu0 0.0
        %5756 = vmatprep.subr.mxu0 0.0
        %5757 = vmatpush1.msra.mxu0 0.0
        %5758 = vmatprep.subr.mxu0 0.0
        %5759 = vmatpush1.msra.mxu0 0.0
        %5760 = vmatprep.subr.mxu0 0.0
        %5761 = vmatpush1.msra.mxu0 0.0
        %5762 = vmatprep.subr.mxu0 0.0
        %5763 = vmatpush1.msra.mxu0 0.0
        %5764 = vmatprep.subr.mxu0 0.0
        %5765 = vmatpush1.msra.mxu0 0.0
        %5766 = vmatprep.subr.mxu0 0.0
        %5767 = vmatpush1.msra.mxu0 0.0
        %5768 = vmatprep.subr.mxu0 0.0
        %5769 = vmatpush1.msra.mxu0 0.0
        %5770 = vmatprep.mubr.f32.mxu0 0.0
        %5771 = vmatmul.mubr.f32.gmra.mrb[0].mxu0 %v5621
        %v5772 = vpop.f32.mrb[0].mxu0
        %v5773 = vadd.f32 %v5702, %v5772
        %v5774 = vpop.f32.mrb[0].mxu0
        %v5775 = vadd.f32 %v5704, %v5774
        %5776 = vdwg.mxu0
        %5777 = vmatprep.subr.mxu0 %v5441
        %5778 = vmatpush1.msra.mxu0 %v5440
        %5779 = vmatprep.subr.mxu0 %v5445
        %5780 = vmatpush1.msra.mxu0 %v5444
        %5781 = vmatprep.subr.mxu0 %v5449
        %5782 = vmatpush1.msra.mxu0 %v5448
        %5783 = vmatprep.subr.mxu0 %v5453
        %5784 = vmatpush1.msra.mxu0 %v5452
        %5785 = vmatprep.subr.mxu0 %v5457
        %5786 = vmatpush1.msra.mxu0 %v5456
        %5787 = vmatprep.subr.mxu0 %v5461
        %5788 = vmatpush1.msra.mxu0 %v5460
        %5789 = vmatprep.subr.mxu0 %v5465
        %5790 = vmatpush1.msra.mxu0 %v5464
        %5791 = vmatprep.subr.mxu0 %v5469
        %5792 = vmatpush1.msra.mxu0 %v5468
        %5793 = vmatprep.subr.mxu0 %v5473
        %5794 = vmatpush1.msra.mxu0 %v5472
        %5795 = vmatprep.subr.mxu0 %v5477
        %5796 = vmatpush1.msra.mxu0 %v5476
        %5797 = vmatprep.subr.mxu0 %v5481
        %5798 = vmatpush1.msra.mxu0 %v5480
        %5799 = vmatprep.subr.mxu0 %v5485
        %5800 = vmatpush1.msra.mxu0 %v5484
        %5801 = vmatprep.subr.mxu0 %v5489
        %5802 = vmatpush1.msra.mxu0 %v5488
        %5803 = vmatprep.subr.mxu0 %v5493
        %5804 = vmatpush1.msra.mxu0 %v5492
        %5805 = vmatprep.subr.mxu0 %v5497
        %5806 = vmatpush1.msra.mxu0 %v5496
        %5807 = vmatprep.subr.mxu0 %v5501
        %5808 = vmatpush1.msra.mxu0 %v5500
        %5809 = vmatprep.subr.mxu0 %v5505
        %5810 = vmatpush1.msra.mxu0 %v5504
        %5811 = vmatprep.subr.mxu0 %v5509
        %5812 = vmatpush1.msra.mxu0 %v5508
        %5813 = vmatprep.subr.mxu0 %v5513
        %5814 = vmatpush1.msra.mxu0 %v5512
        %5815 = vmatprep.subr.mxu0 %v5517
        %5816 = vmatpush1.msra.mxu0 %v5516
        %5817 = vmatprep.subr.mxu0 %v5521
        %5818 = vmatpush1.msra.mxu0 %v5520
        %5819 = vmatprep.subr.mxu0 %v5525
        %5820 = vmatpush1.msra.mxu0 %v5524
        %5821 = vmatprep.subr.mxu0 %v5529
        %5822 = vmatpush1.msra.mxu0 %v5528
        %5823 = vmatprep.subr.mxu0 %v5533
        %5824 = vmatpush1.msra.mxu0 %v5532
        %5825 = vmatprep.subr.mxu0 %v5537
        %5826 = vmatpush1.msra.mxu0 %v5536
        %5827 = vmatprep.subr.mxu0 %v5541
        %5828 = vmatpush1.msra.mxu0 %v5540
        %5829 = vmatprep.subr.mxu0 %v5545
        %5830 = vmatpush1.msra.mxu0 %v5544
        %5831 = vmatprep.subr.mxu0 %v5549
        %5832 = vmatpush1.msra.mxu0 %v5548
        %5833 = vmatprep.subr.mxu0 %v5553
        %5834 = vmatpush1.msra.mxu0 %v5552
        %5835 = vmatprep.subr.mxu0 %v5557
        %5836 = vmatpush1.msra.mxu0 %v5556
        %5837 = vmatprep.subr.mxu0 %v5561
        %5838 = vmatpush1.msra.mxu0 %v5560
        %5839 = vmatprep.subr.mxu0 %v5565
        %5840 = vmatpush1.msra.mxu0 %v5564
        %5841 = vmatprep.mubr.f32.mxu0 %v5617
        %5842 = vmatmul.mubr.f32.gmra.mrb[0].mxu0 %v5616
        %v5843 = vpop.f32.mrb[0].mxu0
        %v5844 = vadd.f32 0.0, %v5843
        %v5845 = vpop.f32.mrb[0].mxu0
        %v5846 = vadd.f32 0.0, %v5845
        %5847 = vdwg.mxu0
        %5848 = vmatprep.subr.mxu0 %v5569
        %5849 = vmatpush1.msra.mxu0 %v5568
        %5850 = vmatprep.subr.mxu0 %v5573
        %5851 = vmatpush1.msra.mxu0 %v5572
        %5852 = vmatprep.subr.mxu0 %v5577
        %5853 = vmatpush1.msra.mxu0 %v5576
        %5854 = vmatprep.subr.mxu0 %v5581
        %5855 = vmatpush1.msra.mxu0 %v5580
        %5856 = vmatprep.subr.mxu0 %v5585
        %5857 = vmatpush1.msra.mxu0 %v5584
        %5858 = vmatprep.subr.mxu0 %v5589
        %5859 = vmatpush1.msra.mxu0 %v5588
        %5860 = vmatprep.subr.mxu0 %v5593
        %5861 = vmatpush1.msra.mxu0 %v5592
        %5862 = vmatprep.subr.mxu0 %v5597
        %5863 = vmatpush1.msra.mxu0 %v5596
        %5864 = vmatprep.subr.mxu0 %v5601
        %5865 = vmatpush1.msra.mxu0 %v5600
        %5866 = vmatprep.subr.mxu0 %v5605
        %5867 = vmatpush1.msra.mxu0 %v5604
        %5868 = vmatprep.subr.mxu0 %v5609
        %5869 = vmatpush1.msra.mxu0 %v5608
        %5870 = vmatprep.subr.mxu0 %v5633
        %5871 = vmatpush1.msra.mxu0 %v5630
        %5872 = vmatprep.subr.mxu0 0.0
        %5873 = vmatpush1.msra.mxu0 0.0
        %5874 = vmatprep.subr.mxu0 0.0
        %5875 = vmatpush1.msra.mxu0 0.0
        %5876 = vmatprep.subr.mxu0 0.0
        %5877 = vmatpush1.msra.mxu0 0.0
        %5878 = vmatprep.subr.mxu0 0.0
        %5879 = vmatpush1.msra.mxu0 0.0
        %5880 = vmatprep.subr.mxu0 0.0
        %5881 = vmatpush1.msra.mxu0 0.0
        %5882 = vmatprep.subr.mxu0 0.0
        %5883 = vmatpush1.msra.mxu0 0.0
        %5884 = vmatprep.subr.mxu0 0.0
        %5885 = vmatpush1.msra.mxu0 0.0
        %5886 = vmatprep.subr.mxu0 0.0
        %5887 = vmatpush1.msra.mxu0 0.0
        %5888 = vmatprep.subr.mxu0 0.0
        %5889 = vmatpush1.msra.mxu0 0.0
        %5890 = vmatprep.subr.mxu0 0.0
        %5891 = vmatpush1.msra.mxu0 0.0
        %5892 = vmatprep.subr.mxu0 0.0
        %5893 = vmatpush1.msra.mxu0 0.0
        %5894 = vmatprep.subr.mxu0 0.0
        %5895 = vmatpush1.msra.mxu0 0.0
        %5896 = vmatprep.subr.mxu0 0.0
        %5897 = vmatpush1.msra.mxu0 0.0
        %5898 = vmatprep.subr.mxu0 0.0
        %5899 = vmatpush1.msra.mxu0 0.0
        %5900 = vmatprep.subr.mxu0 0.0
        %5901 = vmatpush1.msra.mxu0 0.0
        %5902 = vmatprep.subr.mxu0 0.0
        %5903 = vmatpush1.msra.mxu0 0.0
        %5904 = vmatprep.subr.mxu0 0.0
        %5905 = vmatpush1.msra.mxu0 0.0
        %5906 = vmatprep.subr.mxu0 0.0
        %5907 = vmatpush1.msra.mxu0 0.0
        %5908 = vmatprep.subr.mxu0 0.0
        %5909 = vmatpush1.msra.mxu0 0.0
        %5910 = vmatprep.subr.mxu0 0.0
        %5911 = vmatpush1.msra.mxu0 0.0
        %5912 = vmatprep.mubr.f32.mxu0 0.0
        %5913 = vmatmul.mubr.f32.gmra.mrb[0].mxu0 %v5621
        %v5914 = vpop.f32.mrb[0].mxu0
        %v5915 = vadd.f32 %v5844, %v5914
        %v5916 = vpop.f32.mrb[0].mxu0
        %v5917 = vadd.f32 %v5846, %v5916
        %5918 = vdwg.mxu0
        %v5923 = vcombine.low %v5773, %v5775
        %v5924 = vcombine.low %v5915, %v5917
        %v5926 = vunpack.c.l.s4 1966171168
        %v5927 = vunpack.c.0.s8 %v5926
        %v5928 = vlaneseq
        %v5929 = vshrl.u32 %v5928, 7
        %v5930 = vsub.s32 %v5927, %v5929
        %v5931 = vrot.slane %v5923, %v5930
        %v5933 = vunpack.c.l.s4 1966171168
        %v5934 = vunpack.c.0.s8 %v5933
        %v5935 = vlaneseq
        %v5936 = vshrl.u32 %v5935, 7
        %v5937 = vsub.s32 %v5934, %v5936
        %v5938 = vrot.slane %v5924, %v5937
        %v5939 = vcombine.low %v5931, %v5938
        %v5941 = vunpack.c.l.s4 1966171168
        %v5942 = vunpack.c.0.s8 %v5941
        %v5943 = vlaneseq
        %v5944 = vshrl.u32 %v5943, 7
        %v5945 = vsub.s32 %v5942, %v5944
        %v5946 = vrot.slane %v5939, %v5945
        %v5948 = vadd.f32 %v5436, %v5946
        %s5949 = scalar_lea.vmem %s5, 2816
        %v5950 = vld [vmem:[%s5949] sm:$0xff]
        %v5951 = vld [vmem:[%s5949 + $0x8] sm:$0xff]
        %v5952 = vld [vmem:[%s5949 + $0x10] sm:$0xff]
        %v5953 = vld [vmem:[%s5949 + $0x18] sm:$0xff]
        %v5954 = vld [vmem:[%s5949 + $0x20] sm:$0xff]
        %v5955 = vld [vmem:[%s5949 + $0x28] sm:$0xff]
        %v5956 = vld [vmem:[%s5949 + $0x30] sm:$0xff]
        %v5957 = vld [vmem:[%s5949 + $0x38] sm:$0xff]
        %v5958 = vld [vmem:[%s5949 + $0x40] sm:$0xff]
        %v5959 = vld [vmem:[%s5949 + $0x48] sm:$0xff]
        %v5960 = vld [vmem:[%s5949 + $0x50] sm:$0xff]
        %v5961 = vld [vmem:[%s5949 + $0x58] sm:$0xff]
        %v5962 = vld [vmem:[%s5949 + $0x60] sm:$0xff]
        %v5963 = vld [vmem:[%s5949 + $0x68] sm:$0xff]
        %v5964 = vld [vmem:[%s5949 + $0x70] sm:$0xff]
        %v5965 = vld [vmem:[%s5949 + $0x78] sm:$0xff]
        %v5966 = vld [vmem:[%s5949 + $0x80] sm:$0xff]
        %v5967 = vld [vmem:[%s5949 + $0x88] sm:$0xff]
        %v5968 = vld [vmem:[%s5949 + $0x90] sm:$0xff]
        %v5969 = vld [vmem:[%s5949 + $0x98] sm:$0xff]
        %v5970 = vld [vmem:[%s5949 + $0xa0] sm:$0xff]
        %v5971 = vld [vmem:[%s5949 + $0xa8] sm:$0xff]
        %v5972 = vld [vmem:[%s5949 + $0xb0] sm:$0xff]
        %v5973 = vld [vmem:[%s5949 + $0xb8] sm:$0xff]
        %v5974 = vld [vmem:[%s5949 + $0xc0] sm:$0xff]
        %v5975 = vld [vmem:[%s5949 + $0xc8] sm:$0xff]
        %v5976 = vld [vmem:[%s5949 + $0xd0] sm:$0xff]
        %v5977 = vld [vmem:[%s5949 + $0xd8] sm:$0xff]
        %v5978 = vld [vmem:[%s5949 + $0xe0] sm:$0xff]
        %v5979 = vld [vmem:[%s5949 + $0xe8] sm:$0xff]
        %v5980 = vld [vmem:[%s5949 + $0xf0] sm:$0xff]
        %v5981 = vld [vmem:[%s5949 + $0xf8] sm:$0xff]
        %v5982 = vld [vmem:[%s5949 + $0x100] sm:$0xff]
        %v5983 = vld [vmem:[%s5949 + $0x108] sm:$0xff]
        %v5984 = vld [vmem:[%s5949 + $0x110] sm:$0xff]
        %v5985 = vld [vmem:[%s5949 + $0x118] sm:$0xff]
        %v5986 = vld [vmem:[%s5949 + $0x120] sm:$0xff]
        %v5987 = vld [vmem:[%s5949 + $0x128] sm:$0xff]
        %v5988 = vld [vmem:[%s5949 + $0x130] sm:$0xff]
        %v5989 = vld [vmem:[%s5949 + $0x138] sm:$0xff]
        %v5990 = vld [vmem:[%s5949 + $0x140] sm:$0xff]
        %v5991 = vld [vmem:[%s5949 + $0x148] sm:$0xff]
        %v5992 = vld [vmem:[%s5949 + $0x150] sm:$0xff]
        %v5993 = vld [vmem:[%s5949 + $0x158] sm:$0xff]
        %v5994 = vld [vmem:[%s5949 + $0x160] sm:$0xff]
        %v5995 = vld [vmem:[%s5949 + $0x168] sm:$0xff]
        %v5996 = vld [vmem:[%s5949 + $0x170] sm:$0xff]
        %v5997 = vld [vmem:[%s5949 + $0x178] sm:$0xff]
        %v5998 = vld [vmem:[%s5949 + $0x180] sm:$0xff]
        %v5999 = vld [vmem:[%s5949 + $0x188] sm:$0xff]
        %v6000 = vld [vmem:[%s5949 + $0x190] sm:$0xff]
        %v6001 = vld [vmem:[%s5949 + $0x198] sm:$0xff]
        %v6002 = vld [vmem:[%s5949 + $0x1a0] sm:$0xff]
        %v6003 = vld [vmem:[%s5949 + $0x1a8] sm:$0xff]
        %v6004 = vld [vmem:[%s5949 + $0x1b0] sm:$0xff]
        %v6005 = vld [vmem:[%s5949 + $0x1b8] sm:$0xff]
        %v6006 = vld [vmem:[%s5949 + $0x1c0] sm:$0xff]
        %v6007 = vld [vmem:[%s5949 + $0x1c8] sm:$0xff]
        %v6008 = vld [vmem:[%s5949 + $0x1d0] sm:$0xff]
        %v6009 = vld [vmem:[%s5949 + $0x1d8] sm:$0xff]
        %v6010 = vld [vmem:[%s5949 + $0x1e0] sm:$0xff]
        %v6011 = vld [vmem:[%s5949 + $0x1e8] sm:$0xff]
        %v6012 = vld [vmem:[%s5949 + $0x1f0] sm:$0xff]
        %v6013 = vld [vmem:[%s5949 + $0x1f8] sm:$0xff]
        %v6014 = vld [vmem:[%s5949 + $0x200] sm:$0xff]
        %v6015 = vld [vmem:[%s5949 + $0x208] sm:$0xff]
        %v6016 = vld [vmem:[%s5949 + $0x210] sm:$0xff]
        %v6017 = vld [vmem:[%s5949 + $0x218] sm:$0xff]
        %v6018 = vld [vmem:[%s5949 + $0x220] sm:$0xff]
        %v6019 = vld [vmem:[%s5949 + $0x228] sm:$0xff]
        %v6020 = vld [vmem:[%s5949 + $0x230] sm:$0xff]
        %v6021 = vld [vmem:[%s5949 + $0x238] sm:$0xff]
        %v6022 = vld [vmem:[%s5949 + $0x240] sm:$0xff]
        %v6023 = vld [vmem:[%s5949 + $0x248] sm:$0xff]
        %v6024 = vld [vmem:[%s5949 + $0x250] sm:$0xff]
        %v6025 = vld [vmem:[%s5949 + $0x258] sm:$0xff]
        %v6026 = vld [vmem:[%s5949 + $0x260] sm:$0xff]
        %v6027 = vld [vmem:[%s5949 + $0x268] sm:$0xff]
        %v6028 = vld [vmem:[%s5949 + $0x270] sm:$0xff]
        %v6029 = vld [vmem:[%s5949 + $0x278] sm:$0xff]
        %v6030 = vld [vmem:[%s5949 + $0x280] sm:$0xff]
        %v6031 = vld [vmem:[%s5949 + $0x288] sm:$0xff]
        %v6032 = vld [vmem:[%s5949 + $0x290] sm:$0xff]
        %v6033 = vld [vmem:[%s5949 + $0x298] sm:$0xff]
        %v6034 = vld [vmem:[%s5949 + $0x2a0] sm:$0xff]
        %v6035 = vld [vmem:[%s5949 + $0x2a8] sm:$0xff]
        %v6036 = vld [vmem:[%s5949 + $0x2b0] sm:$0xff]
        %v6037 = vld [vmem:[%s5949 + $0x2b8] sm:$0xff]
        %v6038 = vld [vmem:[%s5949 + $0x2c0] sm:$0xff]
        %v6039 = vld [vmem:[%s5949 + $0x2c8] sm:$0xff]
        %v6040 = vld [vmem:[%s5949 + $0x2d0] sm:$0xff]
        %v6041 = vld [vmem:[%s5949 + $0x2d8] sm:$0xff]
        %v6042 = vld [vmem:[%s5949 + $0x2e0] sm:$0xff]
        %v6043 = vld [vmem:[%s5949 + $0x2e8] sm:$0xff]
        %v6044 = vld [vmem:[%s5949 + $0x2f0] sm:$0xff]
        %v6045 = vld [vmem:[%s5949 + $0x2f8] sm:$0xff]
        %v6046 = vld [vmem:[%s5949 + $0x300] sm:$0xff]
        %v6047 = vld [vmem:[%s5949 + $0x308] sm:$0xff]
        %v6048 = vld [vmem:[%s5949 + $0x310] sm:$0xff]
        %v6049 = vld [vmem:[%s5949 + $0x318] sm:$0xff]
        %v6050 = vld [vmem:[%s5949 + $0x320] sm:$0xff]
        %v6051 = vld [vmem:[%s5949 + $0x328] sm:$0xff]
        %v6052 = vld [vmem:[%s5949 + $0x330] sm:$0xff]
        %v6053 = vld [vmem:[%s5949 + $0x338] sm:$0xff]
        %v6054 = vld [vmem:[%s5949 + $0x340] sm:$0xff]
        %v6055 = vld [vmem:[%s5949 + $0x348] sm:$0xff]
        %v6056 = vld [vmem:[%s5949 + $0x350] sm:$0xff]
        %v6057 = vld [vmem:[%s5949 + $0x358] sm:$0xff]
        %v6058 = vld [vmem:[%s5949 + $0x360] sm:$0xff]
        %v6059 = vld [vmem:[%s5949 + $0x368] sm:$0xff]
        %v6060 = vld [vmem:[%s5949 + $0x370] sm:$0xff]
        %v6061 = vld [vmem:[%s5949 + $0x378] sm:$0xff]
        %v6062 = vld [vmem:[%s5949 + $0x380] sm:$0xff]
        %v6063 = vld [vmem:[%s5949 + $0x388] sm:$0xff]
        %v6064 = vld [vmem:[%s5949 + $0x390] sm:$0xff]
        %v6065 = vld [vmem:[%s5949 + $0x398] sm:$0xff]
        %v6066 = vld [vmem:[%s5949 + $0x3a0] sm:$0xff]
        %v6067 = vld [vmem:[%s5949 + $0x3a8] sm:$0xff]
        %v6068 = vld [vmem:[%s5949 + $0x3b0] sm:$0xff]
        %v6069 = vld [vmem:[%s5949 + $0x3b8] sm:$0xff]
        %v6070 = vld [vmem:[%s5949 + $0x3c0] sm:$0xff]
        %v6071 = vld [vmem:[%s5949 + $0x3c8] sm:$0xff]
        %v6072 = vld [vmem:[%s5949 + $0x3d0] sm:$0xff]
        %v6073 = vld [vmem:[%s5949 + $0x3d8] sm:$0xff]
        %v6074 = vld [vmem:[%s5949 + $0x3e0] sm:$0xff]
        %v6075 = vld [vmem:[%s5949 + $0x3e8] sm:$0xff]
        %v6076 = vld [vmem:[%s5949 + $0x3f0] sm:$0xff]
        %v6077 = vld [vmem:[%s5949 + $0x3f8] sm:$0xff]
        %v6078 = vld [vmem:[%s5949 + $0x400] sm:$0xff]
        %v6079 = vld [vmem:[%s5949 + $0x408] sm:$0xff]
        %v6080 = vld [vmem:[%s5949 + $0x410] sm:$0xff]
        %v6081 = vld [vmem:[%s5949 + $0x418] sm:$0xff]
        %v6082 = vld [vmem:[%s5949 + $0x420] sm:$0xff]
        %v6083 = vld [vmem:[%s5949 + $0x428] sm:$0xff]
        %v6084 = vld [vmem:[%s5949 + $0x430] sm:$0xff]
        %v6085 = vld [vmem:[%s5949 + $0x438] sm:$0xff]
        %v6086 = vld [vmem:[%s5949 + $0x440] sm:$0xff]
        %v6087 = vld [vmem:[%s5949 + $0x448] sm:$0xff]
        %v6088 = vld [vmem:[%s5949 + $0x450] sm:$0xff]
        %v6089 = vld [vmem:[%s5949 + $0x458] sm:$0xff]
        %v6090 = vld [vmem:[%s5949 + $0x460] sm:$0xff]
        %v6091 = vld [vmem:[%s5949 + $0x468] sm:$0xff]
        %v6092 = vld [vmem:[%s5949 + $0x470] sm:$0xff]
        %v6093 = vld [vmem:[%s5949 + $0x478] sm:$0xff]
        %v6094 = vld [vmem:[%s5949 + $0x480] sm:$0xff]
        %v6095 = vld [vmem:[%s5949 + $0x488] sm:$0xff]
        %v6096 = vld [vmem:[%s5949 + $0x490] sm:$0xff]
        %v6097 = vld [vmem:[%s5949 + $0x498] sm:$0xff]
        %v6098 = vld [vmem:[%s5949 + $0x4a0] sm:$0xff]
        %v6099 = vld [vmem:[%s5949 + $0x4a8] sm:$0xff]
        %v6100 = vld [vmem:[%s5949 + $0x4b0] sm:$0xff]
        %v6101 = vld [vmem:[%s5949 + $0x4b8] sm:$0xff]
        %v6102 = vld [vmem:[%s5949 + $0x4c0] sm:$0xff]
        %v6103 = vld [vmem:[%s5949 + $0x4c8] sm:$0xff]
        %v6104 = vld [vmem:[%s5949 + $0x4d0] sm:$0xff]
        %v6105 = vld [vmem:[%s5949 + $0x4d8] sm:$0xff]
        %v6106 = vld [vmem:[%s5949 + $0x4e0] sm:$0xff]
        %v6107 = vld [vmem:[%s5949 + $0x4e8] sm:$0xff]
        %v6108 = vld [vmem:[%s5949 + $0x4f0] sm:$0xff]
        %v6109 = vld [vmem:[%s5949 + $0x4f8] sm:$0xff]
        %v6110 = vld [vmem:[%s5949 + $0x500] sm:$0xff]
        %v6111 = vld [vmem:[%s5949 + $0x508] sm:$0xff]
        %v6112 = vld [vmem:[%s5949 + $0x510] sm:$0xff]
        %v6113 = vld [vmem:[%s5949 + $0x518] sm:$0xff]
        %v6114 = vld [vmem:[%s5949 + $0x520] sm:$0xff]
        %v6115 = vld [vmem:[%s5949 + $0x528] sm:$0xff]
        %v6116 = vld [vmem:[%s5949 + $0x530] sm:$0xff]
        %v6117 = vld [vmem:[%s5949 + $0x538] sm:$0xff]
        %v6118 = vld [vmem:[%s5949 + $0x540] sm:$0xff]
        %v6119 = vld [vmem:[%s5949 + $0x548] sm:$0xff]
        %v6120 = vld [vmem:[%s5949 + $0x550] sm:$0xff]
        %v6121 = vld [vmem:[%s5949 + $0x558] sm:$0xff]
        %v6122 = vld [vmem:[%s5949 + $0x560] sm:$0x3f]
        %v6123 = vld [vmem:[%s5949 + $0x568] sm:$0x3f]
        %v6124 = vld [vmem:[%s5949 + $0x570] sm:$0x3f]
        %v6125 = vld [vmem:[%s5949 + $0x578] sm:$0x3f]
        %v6126 = vrot.slane %v4927, 2
        %v6127 = vrot.slane %v4928, 2
        %v6128 = vrot.slane %v4929, 2
        %v6131 = vsel %vm5107, %v6128, 0
        %v6134 = vsel %vm766, %v6122, 0
        %v6137 = vsel %vm766, %v6123, 0
        %v6140 = vsel %vm766, %v6124, 0
        %v6143 = vsel %vm766, %v6125, 0
        %6145 = vmatprep.subr.mxu0 %v5951
        %6146 = vmatpush1.msra.mxu0 %v5950
        %6147 = vmatprep.subr.mxu0 %v5955
        %6148 = vmatpush1.msra.mxu0 %v5954
        %6149 = vmatprep.subr.mxu0 %v5959
        %6150 = vmatpush1.msra.mxu0 %v5958
        %6151 = vmatprep.subr.mxu0 %v5963
        %6152 = vmatpush1.msra.mxu0 %v5962
        %6153 = vmatprep.subr.mxu0 %v5967
        %6154 = vmatpush1.msra.mxu0 %v5966
        %6155 = vmatprep.subr.mxu0 %v5971
        %6156 = vmatpush1.msra.mxu0 %v5970
        %6157 = vmatprep.subr.mxu0 %v5975
        %6158 = vmatpush1.msra.mxu0 %v5974
        %6159 = vmatprep.subr.mxu0 %v5979
        %6160 = vmatpush1.msra.mxu0 %v5978
        %6161 = vmatprep.subr.mxu0 %v5983
        %6162 = vmatpush1.msra.mxu0 %v5982
        %6163 = vmatprep.subr.mxu0 %v5987
        %6164 = vmatpush1.msra.mxu0 %v5986
        %6165 = vmatprep.subr.mxu0 %v5991
        %6166 = vmatpush1.msra.mxu0 %v5990
        %6167 = vmatprep.subr.mxu0 %v5995
        %6168 = vmatpush1.msra.mxu0 %v5994
        %6169 = vmatprep.subr.mxu0 %v5999
        %6170 = vmatpush1.msra.mxu0 %v5998
        %6171 = vmatprep.subr.mxu0 %v6003
        %6172 = vmatpush1.msra.mxu0 %v6002
        %6173 = vmatprep.subr.mxu0 %v6007
        %6174 = vmatpush1.msra.mxu0 %v6006
        %6175 = vmatprep.subr.mxu0 %v6011
        %6176 = vmatpush1.msra.mxu0 %v6010
        %6177 = vmatprep.subr.mxu0 %v6015
        %6178 = vmatpush1.msra.mxu0 %v6014
        %6179 = vmatprep.subr.mxu0 %v6019
        %6180 = vmatpush1.msra.mxu0 %v6018
        %6181 = vmatprep.subr.mxu0 %v6023
        %6182 = vmatpush1.msra.mxu0 %v6022
        %6183 = vmatprep.subr.mxu0 %v6027
        %6184 = vmatpush1.msra.mxu0 %v6026
        %6185 = vmatprep.subr.mxu0 %v6031
        %6186 = vmatpush1.msra.mxu0 %v6030
        %6187 = vmatprep.subr.mxu0 %v6035
        %6188 = vmatpush1.msra.mxu0 %v6034
        %6189 = vmatprep.subr.mxu0 %v6039
        %6190 = vmatpush1.msra.mxu0 %v6038
        %6191 = vmatprep.subr.mxu0 %v6043
        %6192 = vmatpush1.msra.mxu0 %v6042
        %6193 = vmatprep.subr.mxu0 %v6047
        %6194 = vmatpush1.msra.mxu0 %v6046
        %6195 = vmatprep.subr.mxu0 %v6051
        %6196 = vmatpush1.msra.mxu0 %v6050
        %6197 = vmatprep.subr.mxu0 %v6055
        %6198 = vmatpush1.msra.mxu0 %v6054
        %6199 = vmatprep.subr.mxu0 %v6059
        %6200 = vmatpush1.msra.mxu0 %v6058
        %6201 = vmatprep.subr.mxu0 %v6063
        %6202 = vmatpush1.msra.mxu0 %v6062
        %6203 = vmatprep.subr.mxu0 %v6067
        %6204 = vmatpush1.msra.mxu0 %v6066
        %6205 = vmatprep.subr.mxu0 %v6071
        %6206 = vmatpush1.msra.mxu0 %v6070
        %6207 = vmatprep.subr.mxu0 %v6075
        %6208 = vmatpush1.msra.mxu0 %v6074
        %6209 = vmatprep.mubr.f32.mxu0 %v6127
        %6210 = vmatmul.mubr.f32.gmra.mrb[0].mxu0 %v6126
        %v6211 = vpop.f32.mrb[0].mxu0
        %v6212 = vadd.f32 0.0, %v6211
        %v6213 = vpop.f32.mrb[0].mxu0
        %v6214 = vadd.f32 0.0, %v6213
        %6215 = vdwg.mxu0
        %6216 = vmatprep.subr.mxu0 %v6079
        %6217 = vmatpush1.msra.mxu0 %v6078
        %6218 = vmatprep.subr.mxu0 %v6083
        %6219 = vmatpush1.msra.mxu0 %v6082
        %6220 = vmatprep.subr.mxu0 %v6087
        %6221 = vmatpush1.msra.mxu0 %v6086
        %6222 = vmatprep.subr.mxu0 %v6091
        %6223 = vmatpush1.msra.mxu0 %v6090
        %6224 = vmatprep.subr.mxu0 %v6095
        %6225 = vmatpush1.msra.mxu0 %v6094
        %6226 = vmatprep.subr.mxu0 %v6099
        %6227 = vmatpush1.msra.mxu0 %v6098
        %6228 = vmatprep.subr.mxu0 %v6103
        %6229 = vmatpush1.msra.mxu0 %v6102
        %6230 = vmatprep.subr.mxu0 %v6107
        %6231 = vmatpush1.msra.mxu0 %v6106
        %6232 = vmatprep.subr.mxu0 %v6111
        %6233 = vmatpush1.msra.mxu0 %v6110
        %6234 = vmatprep.subr.mxu0 %v6115
        %6235 = vmatpush1.msra.mxu0 %v6114
        %6236 = vmatprep.subr.mxu0 %v6119
        %6237 = vmatpush1.msra.mxu0 %v6118
        %6238 = vmatprep.subr.mxu0 %v6137
        %6239 = vmatpush1.msra.mxu0 %v6134
        %6240 = vmatprep.subr.mxu0 0.0
        %6241 = vmatpush1.msra.mxu0 0.0
        %6242 = vmatprep.subr.mxu0 0.0
        %6243 = vmatpush1.msra.mxu0 0.0
        %6244 = vmatprep.subr.mxu0 0.0
        %6245 = vmatpush1.msra.mxu0 0.0
        %6246 = vmatprep.subr.mxu0 0.0
        %6247 = vmatpush1.msra.mxu0 0.0
        %6248 = vmatprep.subr.mxu0 0.0
        %6249 = vmatpush1.msra.mxu0 0.0
        %6250 = vmatprep.subr.mxu0 0.0
        %6251 = vmatpush1.msra.mxu0 0.0
        %6252 = vmatprep.subr.mxu0 0.0
        %6253 = vmatpush1.msra.mxu0 0.0
        %6254 = vmatprep.subr.mxu0 0.0
        %6255 = vmatpush1.msra.mxu0 0.0
        %6256 = vmatprep.subr.mxu0 0.0
        %6257 = vmatpush1.msra.mxu0 0.0
        %6258 = vmatprep.subr.mxu0 0.0
        %6259 = vmatpush1.msra.mxu0 0.0
        %6260 = vmatprep.subr.mxu0 0.0
        %6261 = vmatpush1.msra.mxu0 0.0
        %6262 = vmatprep.subr.mxu0 0.0
        %6263 = vmatpush1.msra.mxu0 0.0
        %6264 = vmatprep.subr.mxu0 0.0
        %6265 = vmatpush1.msra.mxu0 0.0
        %6266 = vmatprep.subr.mxu0 0.0
        %6267 = vmatpush1.msra.mxu0 0.0
        %6268 = vmatprep.subr.mxu0 0.0
        %6269 = vmatpush1.msra.mxu0 0.0
        %6270 = vmatprep.subr.mxu0 0.0
        %6271 = vmatpush1.msra.mxu0 0.0
        %6272 = vmatprep.subr.mxu0 0.0
        %6273 = vmatpush1.msra.mxu0 0.0
        %6274 = vmatprep.subr.mxu0 0.0
        %6275 = vmatpush1.msra.mxu0 0.0
        %6276 = vmatprep.subr.mxu0 0.0
        %6277 = vmatpush1.msra.mxu0 0.0
        %6278 = vmatprep.subr.mxu0 0.0
        %6279 = vmatpush1.msra.mxu0 0.0
        %6280 = vmatprep.mubr.f32.mxu0 0.0
        %6281 = vmatmul.mubr.f32.gmra.mrb[0].mxu0 %v6131
        %v6282 = vpop.f32.mrb[0].mxu0
        %v6283 = vadd.f32 %v6212, %v6282
        %v6284 = vpop.f32.mrb[0].mxu0
        %v6285 = vadd.f32 %v6214, %v6284
        %6286 = vdwg.mxu0
        %6287 = vmatprep.subr.mxu0 %v5953
        %6288 = vmatpush1.msra.mxu0 %v5952
        %6289 = vmatprep.subr.mxu0 %v5957
        %6290 = vmatpush1.msra.mxu0 %v5956
        %6291 = vmatprep.subr.mxu0 %v5961
        %6292 = vmatpush1.msra.mxu0 %v5960
        %6293 = vmatprep.subr.mxu0 %v5965
        %6294 = vmatpush1.msra.mxu0 %v5964
        %6295 = vmatprep.subr.mxu0 %v5969
        %6296 = vmatpush1.msra.mxu0 %v5968
        %6297 = vmatprep.subr.mxu0 %v5973
        %6298 = vmatpush1.msra.mxu0 %v5972
        %6299 = vmatprep.subr.mxu0 %v5977
        %6300 = vmatpush1.msra.mxu0 %v5976
        %6301 = vmatprep.subr.mxu0 %v5981
        %6302 = vmatpush1.msra.mxu0 %v5980
        %6303 = vmatprep.subr.mxu0 %v5985
        %6304 = vmatpush1.msra.mxu0 %v5984
        %6305 = vmatprep.subr.mxu0 %v5989
        %6306 = vmatpush1.msra.mxu0 %v5988
        %6307 = vmatprep.subr.mxu0 %v5993
        %6308 = vmatpush1.msra.mxu0 %v5992
        %6309 = vmatprep.subr.mxu0 %v5997
        %6310 = vmatpush1.msra.mxu0 %v5996
        %6311 = vmatprep.subr.mxu0 %v6001
        %6312 = vmatpush1.msra.mxu0 %v6000
        %6313 = vmatprep.subr.mxu0 %v6005
        %6314 = vmatpush1.msra.mxu0 %v6004
        %6315 = vmatprep.subr.mxu0 %v6009
        %6316 = vmatpush1.msra.mxu0 %v6008
        %6317 = vmatprep.subr.mxu0 %v6013
        %6318 = vmatpush1.msra.mxu0 %v6012
        %6319 = vmatprep.subr.mxu0 %v6017
        %6320 = vmatpush1.msra.mxu0 %v6016
        %6321 = vmatprep.subr.mxu0 %v6021
        %6322 = vmatpush1.msra.mxu0 %v6020
        %6323 = vmatprep.subr.mxu0 %v6025
        %6324 = vmatpush1.msra.mxu0 %v6024
        %6325 = vmatprep.subr.mxu0 %v6029
        %6326 = vmatpush1.msra.mxu0 %v6028
        %6327 = vmatprep.subr.mxu0 %v6033
        %6328 = vmatpush1.msra.mxu0 %v6032
        %6329 = vmatprep.subr.mxu0 %v6037
        %6330 = vmatpush1.msra.mxu0 %v6036
        %6331 = vmatprep.subr.mxu0 %v6041
        %6332 = vmatpush1.msra.mxu0 %v6040
        %6333 = vmatprep.subr.mxu0 %v6045
        %6334 = vmatpush1.msra.mxu0 %v6044
        %6335 = vmatprep.subr.mxu0 %v6049
        %6336 = vmatpush1.msra.mxu0 %v6048
        %6337 = vmatprep.subr.mxu0 %v6053
        %6338 = vmatpush1.msra.mxu0 %v6052
        %6339 = vmatprep.subr.mxu0 %v6057
        %6340 = vmatpush1.msra.mxu0 %v6056
        %6341 = vmatprep.subr.mxu0 %v6061
        %6342 = vmatpush1.msra.mxu0 %v6060
        %6343 = vmatprep.subr.mxu0 %v6065
        %6344 = vmatpush1.msra.mxu0 %v6064
        %6345 = vmatprep.subr.mxu0 %v6069
        %6346 = vmatpush1.msra.mxu0 %v6068
        %6347 = vmatprep.subr.mxu0 %v6073
        %6348 = vmatpush1.msra.mxu0 %v6072
        %6349 = vmatprep.subr.mxu0 %v6077
        %6350 = vmatpush1.msra.mxu0 %v6076
        %6351 = vmatprep.mubr.f32.mxu0 %v6127
        %6352 = vmatmul.mubr.f32.gmra.mrb[0].mxu0 %v6126
        %v6353 = vpop.f32.mrb[0].mxu0
        %v6354 = vadd.f32 0.0, %v6353
        %v6355 = vpop.f32.mrb[0].mxu0
        %v6356 = vadd.f32 0.0, %v6355
        %6357 = vdwg.mxu0
        %6358 = vmatprep.subr.mxu0 %v6081
        %6359 = vmatpush1.msra.mxu0 %v6080
        %6360 = vmatprep.subr.mxu0 %v6085
        %6361 = vmatpush1.msra.mxu0 %v6084
        %6362 = vmatprep.subr.mxu0 %v6089
        %6363 = vmatpush1.msra.mxu0 %v6088
        %6364 = vmatprep.subr.mxu0 %v6093
        %6365 = vmatpush1.msra.mxu0 %v6092
        %6366 = vmatprep.subr.mxu0 %v6097
        %6367 = vmatpush1.msra.mxu0 %v6096
        %6368 = vmatprep.subr.mxu0 %v6101
        %6369 = vmatpush1.msra.mxu0 %v6100
        %6370 = vmatprep.subr.mxu0 %v6105
        %6371 = vmatpush1.msra.mxu0 %v6104
        %6372 = vmatprep.subr.mxu0 %v6109
        %6373 = vmatpush1.msra.mxu0 %v6108
        %6374 = vmatprep.subr.mxu0 %v6113
        %6375 = vmatpush1.msra.mxu0 %v6112
        %6376 = vmatprep.subr.mxu0 %v6117
        %6377 = vmatpush1.msra.mxu0 %v6116
        %6378 = vmatprep.subr.mxu0 %v6121
        %6379 = vmatpush1.msra.mxu0 %v6120
        %6380 = vmatprep.subr.mxu0 %v6143
        %6381 = vmatpush1.msra.mxu0 %v6140
        %6382 = vmatprep.subr.mxu0 0.0
        %6383 = vmatpush1.msra.mxu0 0.0
        %6384 = vmatprep.subr.mxu0 0.0
        %6385 = vmatpush1.msra.mxu0 0.0
        %6386 = vmatprep.subr.mxu0 0.0
        %6387 = vmatpush1.msra.mxu0 0.0
        %6388 = vmatprep.subr.mxu0 0.0
        %6389 = vmatpush1.msra.mxu0 0.0
        %6390 = vmatprep.subr.mxu0 0.0
        %6391 = vmatpush1.msra.mxu0 0.0
        %6392 = vmatprep.subr.mxu0 0.0
        %6393 = vmatpush1.msra.mxu0 0.0
        %6394 = vmatprep.subr.mxu0 0.0
        %6395 = vmatpush1.msra.mxu0 0.0
        %6396 = vmatprep.subr.mxu0 0.0
        %6397 = vmatpush1.msra.mxu0 0.0
        %6398 = vmatprep.subr.mxu0 0.0
        %6399 = vmatpush1.msra.mxu0 0.0
        %6400 = vmatprep.subr.mxu0 0.0
        %6401 = vmatpush1.msra.mxu0 0.0
        %6402 = vmatprep.subr.mxu0 0.0
        %6403 = vmatpush1.msra.mxu0 0.0
        %6404 = vmatprep.subr.mxu0 0.0
        %6405 = vmatpush1.msra.mxu0 0.0
        %6406 = vmatprep.subr.mxu0 0.0
        %6407 = vmatpush1.msra.mxu0 0.0
        %6408 = vmatprep.subr.mxu0 0.0
        %6409 = vmatpush1.msra.mxu0 0.0
        %6410 = vmatprep.subr.mxu0 0.0
        %6411 = vmatpush1.msra.mxu0 0.0
        %6412 = vmatprep.subr.mxu0 0.0
        %6413 = vmatpush1.msra.mxu0 0.0
        %6414 = vmatprep.subr.mxu0 0.0
        %6415 = vmatpush1.msra.mxu0 0.0
        %6416 = vmatprep.subr.mxu0 0.0
        %6417 = vmatpush1.msra.mxu0 0.0
        %6418 = vmatprep.subr.mxu0 0.0
        %6419 = vmatpush1.msra.mxu0 0.0
        %6420 = vmatprep.subr.mxu0 0.0
        %6421 = vmatpush1.msra.mxu0 0.0
        %6422 = vmatprep.mubr.f32.mxu0 0.0
        %6423 = vmatmul.mubr.f32.gmra.mrb[0].mxu0 %v6131
        %v6424 = vpop.f32.mrb[0].mxu0
        %v6425 = vadd.f32 %v6354, %v6424
        %v6426 = vpop.f32.mrb[0].mxu0
        %v6427 = vadd.f32 %v6356, %v6426
        %6428 = vdwg.mxu0
        %v6433 = vcombine.low %v6283, %v6285
        %v6434 = vcombine.low %v6425, %v6427
        %v6436 = vunpack.c.l.s4 1966171168
        %v6437 = vunpack.c.0.s8 %v6436
        %v6438 = vlaneseq
        %v6439 = vshrl.u32 %v6438, 7
        %v6440 = vsub.s32 %v6437, %v6439
        %v6441 = vrot.slane %v6433, %v6440
        %v6443 = vunpack.c.l.s4 1966171168
        %v6444 = vunpack.c.0.s8 %v6443
        %v6445 = vlaneseq
        %v6446 = vshrl.u32 %v6445, 7
        %v6447 = vsub.s32 %v6444, %v6446
        %v6448 = vrot.slane %v6434, %v6447
        %v6449 = vcombine.low %v6441, %v6448
        %v6451 = vunpack.c.l.s4 1966171168
        %v6452 = vunpack.c.0.s8 %v6451
        %v6453 = vlaneseq
        %v6454 = vshrl.u32 %v6453, 7
        %v6455 = vsub.s32 %v6452, %v6454
        %v6456 = vrot.slane %v6449, %v6455
        %v6458 = vadd.f32 %v5948, %v6456
        %s6459 = scalar_lea.vmem %s5, 4224
        %v6460 = vld [vmem:[%s6459] sm:$0xff]
        %v6461 = vld [vmem:[%s6459 + $0x8] sm:$0xff]
        %v6462 = vld [vmem:[%s6459 + $0x10] sm:$0xff]
        %v6463 = vld [vmem:[%s6459 + $0x18] sm:$0xff]
        %v6464 = vld [vmem:[%s6459 + $0x20] sm:$0xff]
        %v6465 = vld [vmem:[%s6459 + $0x28] sm:$0xff]
        %v6466 = vld [vmem:[%s6459 + $0x30] sm:$0xff]
        %v6467 = vld [vmem:[%s6459 + $0x38] sm:$0xff]
        %v6468 = vld [vmem:[%s6459 + $0x40] sm:$0xff]
        %v6469 = vld [vmem:[%s6459 + $0x48] sm:$0xff]
        %v6470 = vld [vmem:[%s6459 + $0x50] sm:$0xff]
        %v6471 = vld [vmem:[%s6459 + $0x58] sm:$0xff]
        %v6472 = vld [vmem:[%s6459 + $0x60] sm:$0xff]
        %v6473 = vld [vmem:[%s6459 + $0x68] sm:$0xff]
        %v6474 = vld [vmem:[%s6459 + $0x70] sm:$0xff]
        %v6475 = vld [vmem:[%s6459 + $0x78] sm:$0xff]
        %v6476 = vld [vmem:[%s6459 + $0x80] sm:$0xff]
        %v6477 = vld [vmem:[%s6459 + $0x88] sm:$0xff]
        %v6478 = vld [vmem:[%s6459 + $0x90] sm:$0xff]
        %v6479 = vld [vmem:[%s6459 + $0x98] sm:$0xff]
        %v6480 = vld [vmem:[%s6459 + $0xa0] sm:$0xff]
        %v6481 = vld [vmem:[%s6459 + $0xa8] sm:$0xff]
        %v6482 = vld [vmem:[%s6459 + $0xb0] sm:$0xff]
        %v6483 = vld [vmem:[%s6459 + $0xb8] sm:$0xff]
        %v6484 = vld [vmem:[%s6459 + $0xc0] sm:$0xff]
        %v6485 = vld [vmem:[%s6459 + $0xc8] sm:$0xff]
        %v6486 = vld [vmem:[%s6459 + $0xd0] sm:$0xff]
        %v6487 = vld [vmem:[%s6459 + $0xd8] sm:$0xff]
        %v6488 = vld [vmem:[%s6459 + $0xe0] sm:$0xff]
        %v6489 = vld [vmem:[%s6459 + $0xe8] sm:$0xff]
        %v6490 = vld [vmem:[%s6459 + $0xf0] sm:$0xff]
        %v6491 = vld [vmem:[%s6459 + $0xf8] sm:$0xff]
        %v6492 = vld [vmem:[%s6459 + $0x100] sm:$0xff]
        %v6493 = vld [vmem:[%s6459 + $0x108] sm:$0xff]
        %v6494 = vld [vmem:[%s6459 + $0x110] sm:$0xff]
        %v6495 = vld [vmem:[%s6459 + $0x118] sm:$0xff]
        %v6496 = vld [vmem:[%s6459 + $0x120] sm:$0xff]
        %v6497 = vld [vmem:[%s6459 + $0x128] sm:$0xff]
        %v6498 = vld [vmem:[%s6459 + $0x130] sm:$0xff]
        %v6499 = vld [vmem:[%s6459 + $0x138] sm:$0xff]
        %v6500 = vld [vmem:[%s6459 + $0x140] sm:$0xff]
        %v6501 = vld [vmem:[%s6459 + $0x148] sm:$0xff]
        %v6502 = vld [vmem:[%s6459 + $0x150] sm:$0xff]
        %v6503 = vld [vmem:[%s6459 + $0x158] sm:$0xff]
        %v6504 = vld [vmem:[%s6459 + $0x160] sm:$0xff]
        %v6505 = vld [vmem:[%s6459 + $0x168] sm:$0xff]
        %v6506 = vld [vmem:[%s6459 + $0x170] sm:$0xff]
        %v6507 = vld [vmem:[%s6459 + $0x178] sm:$0xff]
        %v6508 = vld [vmem:[%s6459 + $0x180] sm:$0xff]
        %v6509 = vld [vmem:[%s6459 + $0x188] sm:$0xff]
        %v6510 = vld [vmem:[%s6459 + $0x190] sm:$0xff]
        %v6511 = vld [vmem:[%s6459 + $0x198] sm:$0xff]
        %v6512 = vld [vmem:[%s6459 + $0x1a0] sm:$0xff]
        %v6513 = vld [vmem:[%s6459 + $0x1a8] sm:$0xff]
        %v6514 = vld [vmem:[%s6459 + $0x1b0] sm:$0xff]
        %v6515 = vld [vmem:[%s6459 + $0x1b8] sm:$0xff]
        %v6516 = vld [vmem:[%s6459 + $0x1c0] sm:$0xff]
        %v6517 = vld [vmem:[%s6459 + $0x1c8] sm:$0xff]
        %v6518 = vld [vmem:[%s6459 + $0x1d0] sm:$0xff]
        %v6519 = vld [vmem:[%s6459 + $0x1d8] sm:$0xff]
        %v6520 = vld [vmem:[%s6459 + $0x1e0] sm:$0xff]
        %v6521 = vld [vmem:[%s6459 + $0x1e8] sm:$0xff]
        %v6522 = vld [vmem:[%s6459 + $0x1f0] sm:$0xff]
        %v6523 = vld [vmem:[%s6459 + $0x1f8] sm:$0xff]
        %v6524 = vld [vmem:[%s6459 + $0x200] sm:$0xff]
        %v6525 = vld [vmem:[%s6459 + $0x208] sm:$0xff]
        %v6526 = vld [vmem:[%s6459 + $0x210] sm:$0xff]
        %v6527 = vld [vmem:[%s6459 + $0x218] sm:$0xff]
        %v6528 = vld [vmem:[%s6459 + $0x220] sm:$0xff]
        %v6529 = vld [vmem:[%s6459 + $0x228] sm:$0xff]
        %v6530 = vld [vmem:[%s6459 + $0x230] sm:$0xff]
        %v6531 = vld [vmem:[%s6459 + $0x238] sm:$0xff]
        %v6532 = vld [vmem:[%s6459 + $0x240] sm:$0xff]
        %v6533 = vld [vmem:[%s6459 + $0x248] sm:$0xff]
        %v6534 = vld [vmem:[%s6459 + $0x250] sm:$0xff]
        %v6535 = vld [vmem:[%s6459 + $0x258] sm:$0xff]
        %v6536 = vld [vmem:[%s6459 + $0x260] sm:$0xff]
        %v6537 = vld [vmem:[%s6459 + $0x268] sm:$0xff]
        %v6538 = vld [vmem:[%s6459 + $0x270] sm:$0xff]
        %v6539 = vld [vmem:[%s6459 + $0x278] sm:$0xff]
        %v6540 = vld [vmem:[%s6459 + $0x280] sm:$0xff]
        %v6541 = vld [vmem:[%s6459 + $0x288] sm:$0xff]
        %v6542 = vld [vmem:[%s6459 + $0x290] sm:$0xff]
        %v6543 = vld [vmem:[%s6459 + $0x298] sm:$0xff]
        %v6544 = vld [vmem:[%s6459 + $0x2a0] sm:$0xff]
        %v6545 = vld [vmem:[%s6459 + $0x2a8] sm:$0xff]
        %v6546 = vld [vmem:[%s6459 + $0x2b0] sm:$0xff]
        %v6547 = vld [vmem:[%s6459 + $0x2b8] sm:$0xff]
        %v6548 = vld [vmem:[%s6459 + $0x2c0] sm:$0xff]
        %v6549 = vld [vmem:[%s6459 + $0x2c8] sm:$0xff]
        %v6550 = vld [vmem:[%s6459 + $0x2d0] sm:$0xff]
        %v6551 = vld [vmem:[%s6459 + $0x2d8] sm:$0xff]
        %v6552 = vld [vmem:[%s6459 + $0x2e0] sm:$0xff]
        %v6553 = vld [vmem:[%s6459 + $0x2e8] sm:$0xff]
        %v6554 = vld [vmem:[%s6459 + $0x2f0] sm:$0xff]
        %v6555 = vld [vmem:[%s6459 + $0x2f8] sm:$0xff]
        %v6556 = vld [vmem:[%s6459 + $0x300] sm:$0xff]
        %v6557 = vld [vmem:[%s6459 + $0x308] sm:$0xff]
        %v6558 = vld [vmem:[%s6459 + $0x310] sm:$0xff]
        %v6559 = vld [vmem:[%s6459 + $0x318] sm:$0xff]
        %v6560 = vld [vmem:[%s6459 + $0x320] sm:$0xff]
        %v6561 = vld [vmem:[%s6459 + $0x328] sm:$0xff]
        %v6562 = vld [vmem:[%s6459 + $0x330] sm:$0xff]
        %v6563 = vld [vmem:[%s6459 + $0x338] sm:$0xff]
        %v6564 = vld [vmem:[%s6459 + $0x340] sm:$0xff]
        %v6565 = vld [vmem:[%s6459 + $0x348] sm:$0xff]
        %v6566 = vld [vmem:[%s6459 + $0x350] sm:$0xff]
        %v6567 = vld [vmem:[%s6459 + $0x358] sm:$0xff]
        %v6568 = vld [vmem:[%s6459 + $0x360] sm:$0xff]
        %v6569 = vld [vmem:[%s6459 + $0x368] sm:$0xff]
        %v6570 = vld [vmem:[%s6459 + $0x370] sm:$0xff]
        %v6571 = vld [vmem:[%s6459 + $0x378] sm:$0xff]
        %v6572 = vld [vmem:[%s6459 + $0x380] sm:$0xff]
        %v6573 = vld [vmem:[%s6459 + $0x388] sm:$0xff]
        %v6574 = vld [vmem:[%s6459 + $0x390] sm:$0xff]
        %v6575 = vld [vmem:[%s6459 + $0x398] sm:$0xff]
        %v6576 = vld [vmem:[%s6459 + $0x3a0] sm:$0xff]
        %v6577 = vld [vmem:[%s6459 + $0x3a8] sm:$0xff]
        %v6578 = vld [vmem:[%s6459 + $0x3b0] sm:$0xff]
        %v6579 = vld [vmem:[%s6459 + $0x3b8] sm:$0xff]
        %v6580 = vld [vmem:[%s6459 + $0x3c0] sm:$0xff]
        %v6581 = vld [vmem:[%s6459 + $0x3c8] sm:$0xff]
        %v6582 = vld [vmem:[%s6459 + $0x3d0] sm:$0xff]
        %v6583 = vld [vmem:[%s6459 + $0x3d8] sm:$0xff]
        %v6584 = vld [vmem:[%s6459 + $0x3e0] sm:$0xff]
        %v6585 = vld [vmem:[%s6459 + $0x3e8] sm:$0xff]
        %v6586 = vld [vmem:[%s6459 + $0x3f0] sm:$0xff]
        %v6587 = vld [vmem:[%s6459 + $0x3f8] sm:$0xff]
        %v6588 = vld [vmem:[%s6459 + $0x400] sm:$0xff]
        %v6589 = vld [vmem:[%s6459 + $0x408] sm:$0xff]
        %v6590 = vld [vmem:[%s6459 + $0x410] sm:$0xff]
        %v6591 = vld [vmem:[%s6459 + $0x418] sm:$0xff]
        %v6592 = vld [vmem:[%s6459 + $0x420] sm:$0xff]
        %v6593 = vld [vmem:[%s6459 + $0x428] sm:$0xff]
        %v6594 = vld [vmem:[%s6459 + $0x430] sm:$0xff]
        %v6595 = vld [vmem:[%s6459 + $0x438] sm:$0xff]
        %v6596 = vld [vmem:[%s6459 + $0x440] sm:$0xff]
        %v6597 = vld [vmem:[%s6459 + $0x448] sm:$0xff]
        %v6598 = vld [vmem:[%s6459 + $0x450] sm:$0xff]
        %v6599 = vld [vmem:[%s6459 + $0x458] sm:$0xff]
        %v6600 = vld [vmem:[%s6459 + $0x460] sm:$0xff]
        %v6601 = vld [vmem:[%s6459 + $0x468] sm:$0xff]
        %v6602 = vld [vmem:[%s6459 + $0x470] sm:$0xff]
        %v6603 = vld [vmem:[%s6459 + $0x478] sm:$0xff]
        %v6604 = vld [vmem:[%s6459 + $0x480] sm:$0xff]
        %v6605 = vld [vmem:[%s6459 + $0x488] sm:$0xff]
        %v6606 = vld [vmem:[%s6459 + $0x490] sm:$0xff]
        %v6607 = vld [vmem:[%s6459 + $0x498] sm:$0xff]
        %v6608 = vld [vmem:[%s6459 + $0x4a0] sm:$0xff]
        %v6609 = vld [vmem:[%s6459 + $0x4a8] sm:$0xff]
        %v6610 = vld [vmem:[%s6459 + $0x4b0] sm:$0xff]
        %v6611 = vld [vmem:[%s6459 + $0x4b8] sm:$0xff]
        %v6612 = vld [vmem:[%s6459 + $0x4c0] sm:$0xff]
        %v6613 = vld [vmem:[%s6459 + $0x4c8] sm:$0xff]
        %v6614 = vld [vmem:[%s6459 + $0x4d0] sm:$0xff]
        %v6615 = vld [vmem:[%s6459 + $0x4d8] sm:$0xff]
        %v6616 = vld [vmem:[%s6459 + $0x4e0] sm:$0xff]
        %v6617 = vld [vmem:[%s6459 + $0x4e8] sm:$0xff]
        %v6618 = vld [vmem:[%s6459 + $0x4f0] sm:$0xff]
        %v6619 = vld [vmem:[%s6459 + $0x4f8] sm:$0xff]
        %v6620 = vld [vmem:[%s6459 + $0x500] sm:$0xff]
        %v6621 = vld [vmem:[%s6459 + $0x508] sm:$0xff]
        %v6622 = vld [vmem:[%s6459 + $0x510] sm:$0xff]
        %v6623 = vld [vmem:[%s6459 + $0x518] sm:$0xff]
        %v6624 = vld [vmem:[%s6459 + $0x520] sm:$0xff]
        %v6625 = vld [vmem:[%s6459 + $0x528] sm:$0xff]
        %v6626 = vld [vmem:[%s6459 + $0x530] sm:$0xff]
        %v6627 = vld [vmem:[%s6459 + $0x538] sm:$0xff]
        %v6628 = vld [vmem:[%s6459 + $0x540] sm:$0xff]
        %v6629 = vld [vmem:[%s6459 + $0x548] sm:$0xff]
        %v6630 = vld [vmem:[%s6459 + $0x550] sm:$0xff]
        %v6631 = vld [vmem:[%s6459 + $0x558] sm:$0xff]
        %v6632 = vld [vmem:[%s6459 + $0x560] sm:$0x3f]
        %v6633 = vld [vmem:[%s6459 + $0x568] sm:$0x3f]
        %v6634 = vld [vmem:[%s6459 + $0x570] sm:$0x3f]
        %v6635 = vld [vmem:[%s6459 + $0x578] sm:$0x3f]
        %v6636 = vrot.slane %v4927, 3
        %v6637 = vrot.slane %v4928, 3
        %v6638 = vrot.slane %v4929, 3
        %v6641 = vsel %vm5107, %v6638, 0
        %v6644 = vsel %vm766, %v6632, 0
        %v6647 = vsel %vm766, %v6633, 0
        %v6650 = vsel %vm766, %v6634, 0
        %v6653 = vsel %vm766, %v6635, 0
        %6655 = vmatprep.subr.mxu0 %v6461
        %6656 = vmatpush1.msra.mxu0 %v6460
        %6657 = vmatprep.subr.mxu0 %v6465
        %6658 = vmatpush1.msra.mxu0 %v6464
        %6659 = vmatprep.subr.mxu0 %v6469
        %6660 = vmatpush1.msra.mxu0 %v6468
        %6661 = vmatprep.subr.mxu0 %v6473
        %6662 = vmatpush1.msra.mxu0 %v6472
        %6663 = vmatprep.subr.mxu0 %v6477
        %6664 = vmatpush1.msra.mxu0 %v6476
        %6665 = vmatprep.subr.mxu0 %v6481
        %6666 = vmatpush1.msra.mxu0 %v6480
        %6667 = vmatprep.subr.mxu0 %v6485
        %6668 = vmatpush1.msra.mxu0 %v6484
        %6669 = vmatprep.subr.mxu0 %v6489
        %6670 = vmatpush1.msra.mxu0 %v6488
        %6671 = vmatprep.subr.mxu0 %v6493
        %6672 = vmatpush1.msra.mxu0 %v6492
        %6673 = vmatprep.subr.mxu0 %v6497
        %6674 = vmatpush1.msra.mxu0 %v6496
        %6675 = vmatprep.subr.mxu0 %v6501
        %6676 = vmatpush1.msra.mxu0 %v6500
        %6677 = vmatprep.subr.mxu0 %v6505
        %6678 = vmatpush1.msra.mxu0 %v6504
        %6679 = vmatprep.subr.mxu0 %v6509
        %6680 = vmatpush1.msra.mxu0 %v6508
        %6681 = vmatprep.subr.mxu0 %v6513
        %6682 = vmatpush1.msra.mxu0 %v6512
        %6683 = vmatprep.subr.mxu0 %v6517
        %6684 = vmatpush1.msra.mxu0 %v6516
        %6685 = vmatprep.subr.mxu0 %v6521
        %6686 = vmatpush1.msra.mxu0 %v6520
        %6687 = vmatprep.subr.mxu0 %v6525
        %6688 = vmatpush1.msra.mxu0 %v6524
        %6689 = vmatprep.subr.mxu0 %v6529
        %6690 = vmatpush1.msra.mxu0 %v6528
        %6691 = vmatprep.subr.mxu0 %v6533
        %6692 = vmatpush1.msra.mxu0 %v6532
        %6693 = vmatprep.subr.mxu0 %v6537
        %6694 = vmatpush1.msra.mxu0 %v6536
        %6695 = vmatprep.subr.mxu0 %v6541
        %6696 = vmatpush1.msra.mxu0 %v6540
        %6697 = vmatprep.subr.mxu0 %v6545
        %6698 = vmatpush1.msra.mxu0 %v6544
        %6699 = vmatprep.subr.mxu0 %v6549
        %6700 = vmatpush1.msra.mxu0 %v6548
        %6701 = vmatprep.subr.mxu0 %v6553
        %6702 = vmatpush1.msra.mxu0 %v6552
        %6703 = vmatprep.subr.mxu0 %v6557
        %6704 = vmatpush1.msra.mxu0 %v6556
        %6705 = vmatprep.subr.mxu0 %v6561
        %6706 = vmatpush1.msra.mxu0 %v6560
        %6707 = vmatprep.subr.mxu0 %v6565
        %6708 = vmatpush1.msra.mxu0 %v6564
        %6709 = vmatprep.subr.mxu0 %v6569
        %6710 = vmatpush1.msra.mxu0 %v6568
        %6711 = vmatprep.subr.mxu0 %v6573
        %6712 = vmatpush1.msra.mxu0 %v6572
        %6713 = vmatprep.subr.mxu0 %v6577
        %6714 = vmatpush1.msra.mxu0 %v6576
        %6715 = vmatprep.subr.mxu0 %v6581
        %6716 = vmatpush1.msra.mxu0 %v6580
        %6717 = vmatprep.subr.mxu0 %v6585
        %6718 = vmatpush1.msra.mxu0 %v6584
        %6719 = vmatprep.mubr.f32.mxu0 %v6637
        %6720 = vmatmul.mubr.f32.gmra.mrb[0].mxu0 %v6636
        %v6721 = vpop.f32.mrb[0].mxu0
        %v6722 = vadd.f32 0.0, %v6721
        %v6723 = vpop.f32.mrb[0].mxu0
        %v6724 = vadd.f32 0.0, %v6723
        %6725 = vdwg.mxu0
        %6726 = vmatprep.subr.mxu0 %v6589
        %6727 = vmatpush1.msra.mxu0 %v6588
        %6728 = vmatprep.subr.mxu0 %v6593
        %6729 = vmatpush1.msra.mxu0 %v6592
        %6730 = vmatprep.subr.mxu0 %v6597
        %6731 = vmatpush1.msra.mxu0 %v6596
        %6732 = vmatprep.subr.mxu0 %v6601
        %6733 = vmatpush1.msra.mxu0 %v6600
        %6734 = vmatprep.subr.mxu0 %v6605
        %6735 = vmatpush1.msra.mxu0 %v6604
        %6736 = vmatprep.subr.mxu0 %v6609
        %6737 = vmatpush1.msra.mxu0 %v6608
        %6738 = vmatprep.subr.mxu0 %v6613
        %6739 = vmatpush1.msra.mxu0 %v6612
        %6740 = vmatprep.subr.mxu0 %v6617
        %6741 = vmatpush1.msra.mxu0 %v6616
        %6742 = vmatprep.subr.mxu0 %v6621
        %6743 = vmatpush1.msra.mxu0 %v6620
        %6744 = vmatprep.subr.mxu0 %v6625
        %6745 = vmatpush1.msra.mxu0 %v6624
        %6746 = vmatprep.subr.mxu0 %v6629
        %6747 = vmatpush1.msra.mxu0 %v6628
        %6748 = vmatprep.subr.mxu0 %v6647
        %6749 = vmatpush1.msra.mxu0 %v6644
        %6750 = vmatprep.subr.mxu0 0.0
        %6751 = vmatpush1.msra.mxu0 0.0
        %6752 = vmatprep.subr.mxu0 0.0
        %6753 = vmatpush1.msra.mxu0 0.0
        %6754 = vmatprep.subr.mxu0 0.0
        %6755 = vmatpush1.msra.mxu0 0.0
        %6756 = vmatprep.subr.mxu0 0.0
        %6757 = vmatpush1.msra.mxu0 0.0
        %6758 = vmatprep.subr.mxu0 0.0
        %6759 = vmatpush1.msra.mxu0 0.0
        %6760 = vmatprep.subr.mxu0 0.0
        %6761 = vmatpush1.msra.mxu0 0.0
        %6762 = vmatprep.subr.mxu0 0.0
        %6763 = vmatpush1.msra.mxu0 0.0
        %6764 = vmatprep.subr.mxu0 0.0
        %6765 = vmatpush1.msra.mxu0 0.0
        %6766 = vmatprep.subr.mxu0 0.0
        %6767 = vmatpush1.msra.mxu0 0.0
        %6768 = vmatprep.subr.mxu0 0.0
        %6769 = vmatpush1.msra.mxu0 0.0
        %6770 = vmatprep.subr.mxu0 0.0
        %6771 = vmatpush1.msra.mxu0 0.0
        %6772 = vmatprep.subr.mxu0 0.0
        %6773 = vmatpush1.msra.mxu0 0.0
        %6774 = vmatprep.subr.mxu0 0.0
        %6775 = vmatpush1.msra.mxu0 0.0
        %6776 = vmatprep.subr.mxu0 0.0
        %6777 = vmatpush1.msra.mxu0 0.0
        %6778 = vmatprep.subr.mxu0 0.0
        %6779 = vmatpush1.msra.mxu0 0.0
        %6780 = vmatprep.subr.mxu0 0.0
        %6781 = vmatpush1.msra.mxu0 0.0
        %6782 = vmatprep.subr.mxu0 0.0
        %6783 = vmatpush1.msra.mxu0 0.0
        %6784 = vmatprep.subr.mxu0 0.0
        %6785 = vmatpush1.msra.mxu0 0.0
        %6786 = vmatprep.subr.mxu0 0.0
        %6787 = vmatpush1.msra.mxu0 0.0
        %6788 = vmatprep.subr.mxu0 0.0
        %6789 = vmatpush1.msra.mxu0 0.0
        %6790 = vmatprep.mubr.f32.mxu0 0.0
        %6791 = vmatmul.mubr.f32.gmra.mrb[0].mxu0 %v6641
        %v6792 = vpop.f32.mrb[0].mxu0
        %v6793 = vadd.f32 %v6722, %v6792
        %v6794 = vpop.f32.mrb[0].mxu0
        %v6795 = vadd.f32 %v6724, %v6794
        %6796 = vdwg.mxu0
        %6797 = vmatprep.subr.mxu0 %v6463
        %6798 = vmatpush1.msra.mxu0 %v6462
        %6799 = vmatprep.subr.mxu0 %v6467
        %6800 = vmatpush1.msra.mxu0 %v6466
        %6801 = vmatprep.subr.mxu0 %v6471
        %6802 = vmatpush1.msra.mxu0 %v6470
        %6803 = vmatprep.subr.mxu0 %v6475
        %6804 = vmatpush1.msra.mxu0 %v6474
        %6805 = vmatprep.subr.mxu0 %v6479
        %6806 = vmatpush1.msra.mxu0 %v6478
        %6807 = vmatprep.subr.mxu0 %v6483
        %6808 = vmatpush1.msra.mxu0 %v6482
        %6809 = vmatprep.subr.mxu0 %v6487
        %6810 = vmatpush1.msra.mxu0 %v6486
        %6811 = vmatprep.subr.mxu0 %v6491
        %6812 = vmatpush1.msra.mxu0 %v6490
        %6813 = vmatprep.subr.mxu0 %v6495
        %6814 = vmatpush1.msra.mxu0 %v6494
        %6815 = vmatprep.subr.mxu0 %v6499
        %6816 = vmatpush1.msra.mxu0 %v6498
        %6817 = vmatprep.subr.mxu0 %v6503
        %6818 = vmatpush1.msra.mxu0 %v6502
        %6819 = vmatprep.subr.mxu0 %v6507
        %6820 = vmatpush1.msra.mxu0 %v6506
        %6821 = vmatprep.subr.mxu0 %v6511
        %6822 = vmatpush1.msra.mxu0 %v6510
        %6823 = vmatprep.subr.mxu0 %v6515
        %6824 = vmatpush1.msra.mxu0 %v6514
        %6825 = vmatprep.subr.mxu0 %v6519
        %6826 = vmatpush1.msra.mxu0 %v6518
        %6827 = vmatprep.subr.mxu0 %v6523
        %6828 = vmatpush1.msra.mxu0 %v6522
        %6829 = vmatprep.subr.mxu0 %v6527
        %6830 = vmatpush1.msra.mxu0 %v6526
        %6831 = vmatprep.subr.mxu0 %v6531
        %6832 = vmatpush1.msra.mxu0 %v6530
        %6833 = vmatprep.subr.mxu0 %v6535
        %6834 = vmatpush1.msra.mxu0 %v6534
        %6835 = vmatprep.subr.mxu0 %v6539
        %6836 = vmatpush1.msra.mxu0 %v6538
        %6837 = vmatprep.subr.mxu0 %v6543
        %6838 = vmatpush1.msra.mxu0 %v6542
        %6839 = vmatprep.subr.mxu0 %v6547
        %6840 = vmatpush1.msra.mxu0 %v6546
        %6841 = vmatprep.subr.mxu0 %v6551
        %6842 = vmatpush1.msra.mxu0 %v6550
        %6843 = vmatprep.subr.mxu0 %v6555
        %6844 = vmatpush1.msra.mxu0 %v6554
        %6845 = vmatprep.subr.mxu0 %v6559
        %6846 = vmatpush1.msra.mxu0 %v6558
        %6847 = vmatprep.subr.mxu0 %v6563
        %6848 = vmatpush1.msra.mxu0 %v6562
        %6849 = vmatprep.subr.mxu0 %v6567
        %6850 = vmatpush1.msra.mxu0 %v6566
        %6851 = vmatprep.subr.mxu0 %v6571
        %6852 = vmatpush1.msra.mxu0 %v6570
        %6853 = vmatprep.subr.mxu0 %v6575
        %6854 = vmatpush1.msra.mxu0 %v6574
        %6855 = vmatprep.subr.mxu0 %v6579
        %6856 = vmatpush1.msra.mxu0 %v6578
        %6857 = vmatprep.subr.mxu0 %v6583
        %6858 = vmatpush1.msra.mxu0 %v6582
        %6859 = vmatprep.subr.mxu0 %v6587
        %6860 = vmatpush1.msra.mxu0 %v6586
        %6861 = vmatprep.mubr.f32.mxu0 %v6637
        %6862 = vmatmul.mubr.f32.gmra.mrb[0].mxu0 %v6636
        %v6863 = vpop.f32.mrb[0].mxu0
        %v6864 = vadd.f32 0.0, %v6863
        %v6865 = vpop.f32.mrb[0].mxu0
        %v6866 = vadd.f32 0.0, %v6865
        %6867 = vdwg.mxu0
        %6868 = vmatprep.subr.mxu0 %v6591
        %6869 = vmatpush1.msra.mxu0 %v6590
        %6870 = vmatprep.subr.mxu0 %v6595
        %6871 = vmatpush1.msra.mxu0 %v6594
        %6872 = vmatprep.subr.mxu0 %v6599
        %6873 = vmatpush1.msra.mxu0 %v6598
        %6874 = vmatprep.subr.mxu0 %v6603
        %6875 = vmatpush1.msra.mxu0 %v6602
        %6876 = vmatprep.subr.mxu0 %v6607
        %6877 = vmatpush1.msra.mxu0 %v6606
        %6878 = vmatprep.subr.mxu0 %v6611
        %6879 = vmatpush1.msra.mxu0 %v6610
        %6880 = vmatprep.subr.mxu0 %v6615
        %6881 = vmatpush1.msra.mxu0 %v6614
        %6882 = vmatprep.subr.mxu0 %v6619
        %6883 = vmatpush1.msra.mxu0 %v6618
        %6884 = vmatprep.subr.mxu0 %v6623
        %6885 = vmatpush1.msra.mxu0 %v6622
        %6886 = vmatprep.subr.mxu0 %v6627
        %6887 = vmatpush1.msra.mxu0 %v6626
        %6888 = vmatprep.subr.mxu0 %v6631
        %6889 = vmatpush1.msra.mxu0 %v6630
        %6890 = vmatprep.subr.mxu0 %v6653
        %6891 = vmatpush1.msra.mxu0 %v6650
        %6892 = vmatprep.subr.mxu0 0.0
        %6893 = vmatpush1.msra.mxu0 0.0
        %6894 = vmatprep.subr.mxu0 0.0
        %6895 = vmatpush1.msra.mxu0 0.0
        %6896 = vmatprep.subr.mxu0 0.0
        %6897 = vmatpush1.msra.mxu0 0.0
        %6898 = vmatprep.subr.mxu0 0.0
        %6899 = vmatpush1.msra.mxu0 0.0
        %6900 = vmatprep.subr.mxu0 0.0
        %6901 = vmatpush1.msra.mxu0 0.0
        %6902 = vmatprep.subr.mxu0 0.0
        %6903 = vmatpush1.msra.mxu0 0.0
        %6904 = vmatprep.subr.mxu0 0.0
        %6905 = vmatpush1.msra.mxu0 0.0
        %6906 = vmatprep.subr.mxu0 0.0
        %6907 = vmatpush1.msra.mxu0 0.0
        %6908 = vmatprep.subr.mxu0 0.0
        %6909 = vmatpush1.msra.mxu0 0.0
        %6910 = vmatprep.subr.mxu0 0.0
        %6911 = vmatpush1.msra.mxu0 0.0
        %6912 = vmatprep.subr.mxu0 0.0
        %6913 = vmatpush1.msra.mxu0 0.0
        %6914 = vmatprep.subr.mxu0 0.0
        %6915 = vmatpush1.msra.mxu0 0.0
        %6916 = vmatprep.subr.mxu0 0.0
        %6917 = vmatpush1.msra.mxu0 0.0
        %6918 = vmatprep.subr.mxu0 0.0
        %6919 = vmatpush1.msra.mxu0 0.0
        %6920 = vmatprep.subr.mxu0 0.0
        %6921 = vmatpush1.msra.mxu0 0.0
        %6922 = vmatprep.subr.mxu0 0.0
        %6923 = vmatpush1.msra.mxu0 0.0
        %6924 = vmatprep.subr.mxu0 0.0
        %6925 = vmatpush1.msra.mxu0 0.0
        %6926 = vmatprep.subr.mxu0 0.0
        %6927 = vmatpush1.msra.mxu0 0.0
        %6928 = vmatprep.subr.mxu0 0.0
        %6929 = vmatpush1.msra.mxu0 0.0
        %6930 = vmatprep.subr.mxu0 0.0
        %6931 = vmatpush1.msra.mxu0 0.0
        %6932 = vmatprep.mubr.f32.mxu0 0.0
        %6933 = vmatmul.mubr.f32.gmra.mrb[0].mxu0 %v6641
        %v6934 = vpop.f32.mrb[0].mxu0
        %v6935 = vadd.f32 %v6864, %v6934
        %v6936 = vpop.f32.mrb[0].mxu0
        %v6937 = vadd.f32 %v6866, %v6936
        %6938 = vdwg.mxu0
        %v6943 = vcombine.low %v6793, %v6795
        %v6944 = vcombine.low %v6935, %v6937
        %v6946 = vunpack.c.l.s4 1966171168
        %v6947 = vunpack.c.0.s8 %v6946
        %v6948 = vlaneseq
        %v6949 = vshrl.u32 %v6948, 7
        %v6950 = vsub.s32 %v6947, %v6949
        %v6951 = vrot.slane %v6943, %v6950
        %v6953 = vunpack.c.l.s4 1966171168
        %v6954 = vunpack.c.0.s8 %v6953
        %v6955 = vlaneseq
        %v6956 = vshrl.u32 %v6955, 7
        %v6957 = vsub.s32 %v6954, %v6956
        %v6958 = vrot.slane %v6944, %v6957
        %v6959 = vcombine.low %v6951, %v6958
        %v6961 = vunpack.c.l.s4 1966171168
        %v6962 = vunpack.c.0.s8 %v6961
        %v6963 = vlaneseq
        %v6964 = vshrl.u32 %v6963, 7
        %v6965 = vsub.s32 %v6962, %v6964
        %v6966 = vrot.slane %v6959, %v6965
        %v6968 = vadd.f32 %v6458, %v6966
        %v6969 = vmax.f32 %v6968, 0.0
        %v6970 = vld [vmem:[%s7] sm:$0xff]
        %v6971 = vld [vmem:[%s7 + $0x8] sm:$0xff]
        %v6972 = vld [vmem:[%s7 + $0x10] sm:$0xff]
        %v6973 = vld [vmem:[%s7 + $0x18] sm:$0xff]
        %v6974 = vld [vmem:[%s7 + $0x20] sm:$0xff]
        %v6975 = vld [vmem:[%s7 + $0x28] sm:$0xff]
        %v6976 = vld [vmem:[%s7 + $0x30] sm:$0xff]
        %v6977 = vld [vmem:[%s7 + $0x38] sm:$0xff]
        %v6978 = vld [vmem:[%s7 + $0x40] sm:$0xff]
        %v6979 = vld [vmem:[%s7 + $0x48] sm:$0xff]
        %v6980 = vld [vmem:[%s7 + $0x50] sm:$0xff]
        %v6981 = vld [vmem:[%s7 + $0x58] sm:$0xff]
        %v6982 = vld [vmem:[%s7 + $0x60] sm:$0xff]
        %v6983 = vld [vmem:[%s7 + $0x68] sm:$0xff]
        %v6984 = vld [vmem:[%s7 + $0x70] sm:$0xff]
        %v6985 = vld [vmem:[%s7 + $0x78] sm:$0xff]
        %v6986 = vld [vmem:[%s7 + $0x80] sm:$0xff]
        %v6987 = vld [vmem:[%s7 + $0x88] sm:$0xff]
        %v6988 = vld [vmem:[%s7 + $0x90] sm:$0xff]
        %v6989 = vld [vmem:[%s7 + $0x98] sm:$0xff]
        %v6990 = vld [vmem:[%s7 + $0xa0] sm:$0xff]
        %v6991 = vld [vmem:[%s7 + $0xa8] sm:$0xff]
        %v6992 = vld [vmem:[%s7 + $0xb0] sm:$0xff]
        %v6993 = vld [vmem:[%s7 + $0xb8] sm:$0xff]
        %v6994 = vld [vmem:[%s7 + $0xc0] sm:$0xff]
        %v6995 = vld [vmem:[%s7 + $0xc8] sm:$0xff]
        %v6996 = vld [vmem:[%s7 + $0xd0] sm:$0xff]
        %v6997 = vld [vmem:[%s7 + $0xd8] sm:$0xff]
        %v6998 = vld [vmem:[%s7 + $0xe0] sm:$0xff]
        %v6999 = vld [vmem:[%s7 + $0xe8] sm:$0xff]
        %v7000 = vld [vmem:[%s7 + $0xf0] sm:$0xff]
        %v7001 = vld [vmem:[%s7 + $0xf8] sm:$0xff]
        %v7002 = vld [vmem:[%s7 + $0x100] sm:$0xff]
        %v7003 = vld [vmem:[%s7 + $0x108] sm:$0xff]
        %v7004 = vld [vmem:[%s7 + $0x110] sm:$0xff]
        %v7005 = vld [vmem:[%s7 + $0x118] sm:$0xff]
        %v7006 = vld [vmem:[%s7 + $0x120] sm:$0xff]
        %v7007 = vld [vmem:[%s7 + $0x128] sm:$0xff]
        %v7008 = vld [vmem:[%s7 + $0x130] sm:$0xff]
        %v7009 = vld [vmem:[%s7 + $0x138] sm:$0xff]
        %v7010 = vld [vmem:[%s7 + $0x140] sm:$0xff]
        %v7011 = vld [vmem:[%s7 + $0x148] sm:$0xff]
        %v7012 = vld [vmem:[%s7 + $0x150] sm:$0xff]
        %v7013 = vld [vmem:[%s7 + $0x158] sm:$0xff]
        %v7014 = vld [vmem:[%s7 + $0x160] sm:$0xff]
        %v7015 = vld [vmem:[%s7 + $0x168] sm:$0xff]
        %v7016 = vld [vmem:[%s7 + $0x170] sm:$0xff]
        %v7017 = vld [vmem:[%s7 + $0x178] sm:$0xff]
        %v7018 = vld [vmem:[%s7 + $0x180] sm:$0xff]
        %v7019 = vld [vmem:[%s7 + $0x188] sm:$0xff]
        %v7020 = vld [vmem:[%s7 + $0x190] sm:$0xff]
        %v7021 = vld [vmem:[%s7 + $0x198] sm:$0xff]
        %v7022 = vld [vmem:[%s7 + $0x1a0] sm:$0xff]
        %v7023 = vld [vmem:[%s7 + $0x1a8] sm:$0xff]
        %v7024 = vld [vmem:[%s7 + $0x1b0] sm:$0xff]
        %v7025 = vld [vmem:[%s7 + $0x1b8] sm:$0xff]
        %v7026 = vld [vmem:[%s7 + $0x1c0] sm:$0xff]
        %v7027 = vld [vmem:[%s7 + $0x1c8] sm:$0xff]
        %v7028 = vld [vmem:[%s7 + $0x1d0] sm:$0xff]
        %v7029 = vld [vmem:[%s7 + $0x1d8] sm:$0xff]
        %v7030 = vld [vmem:[%s7 + $0x1e0] sm:$0xff]
        %v7031 = vld [vmem:[%s7 + $0x1e8] sm:$0xff]
        %v7032 = vld [vmem:[%s7 + $0x1f0] sm:$0xf]
        %v7033 = vld [vmem:[%s8] sm:$0x1]
        %v7035 = vlaneseq
        %v7036 = vshrl.u32 %v7035, 7
        %v7037 = vsub.s32 0, %v7036
        %v7038 = vrot.slane %v6969, %v7037
        %v7039 = vlaneseq
        %v7040 = vshrl.u32 %v7039, 7
        %v7041 = vsub.s32 1, %v7040
        %v7042 = vrot.slane %v6969, %v7041
        %v7043 = vlaneseq
        %v7044 = vshrl.u32 %v7043, 7
        %v7045 = vsub.s32 2, %v7044
        %v7046 = vrot.slane %v6969, %v7045
        %v7047 = vlaneseq
        %v7048 = vshrl.u32 %v7047, 7
        %v7049 = vsub.s32 3, %v7048
        %v7050 = vrot.slane %v6969, %v7049
        %vm7054 = vcmask 949248
        %v7055 = vsel %vm7054, %v7050, 0
        %v7058 = vsel %vm386, %v7032, 0
        %7060 = vmatprep.subr.mxu0 0.0
        %7061 = vmatpush1.msra.mxu0 %v6970
        %7062 = vmatprep.subr.mxu0 0.0
        %7063 = vmatpush1.msra.mxu0 %v6971
        %7064 = vmatprep.subr.mxu0 0.0
        %7065 = vmatpush1.msra.mxu0 %v6972
        %7066 = vmatprep.subr.mxu0 0.0
        %7067 = vmatpush1.msra.mxu0 %v6973
        %7068 = vmatprep.subr.mxu0 0.0
        %7069 = vmatpush1.msra.mxu0 %v6974
        %7070 = vmatprep.subr.mxu0 0.0
        %7071 = vmatpush1.msra.mxu0 %v6975
        %7072 = vmatprep.subr.mxu0 0.0
        %7073 = vmatpush1.msra.mxu0 %v6976
        %7074 = vmatprep.subr.mxu0 0.0
        %7075 = vmatpush1.msra.mxu0 %v6977
        %7076 = vmatprep.subr.mxu0 0.0
        %7077 = vmatpush1.msra.mxu0 %v6978
        %7078 = vmatprep.subr.mxu0 0.0
        %7079 = vmatpush1.msra.mxu0 %v6979
        %7080 = vmatprep.subr.mxu0 0.0
        %7081 = vmatpush1.msra.mxu0 %v6980
        %7082 = vmatprep.subr.mxu0 0.0
        %7083 = vmatpush1.msra.mxu0 %v6981
        %7084 = vmatprep.subr.mxu0 0.0
        %7085 = vmatpush1.msra.mxu0 %v6982
        %7086 = vmatprep.subr.mxu0 0.0
        %7087 = vmatpush1.msra.mxu0 %v6983
        %7088 = vmatprep.subr.mxu0 0.0
        %7089 = vmatpush1.msra.mxu0 %v6984
        %7090 = vmatprep.subr.mxu0 0.0
        %7091 = vmatpush1.msra.mxu0 %v6985
        %7092 = vmatprep.subr.mxu0 0.0
        %7093 = vmatpush1.msra.mxu0 %v6986
        %7094 = vmatprep.subr.mxu0 0.0
        %7095 = vmatpush1.msra.mxu0 %v6987
        %7096 = vmatprep.subr.mxu0 0.0
        %7097 = vmatpush1.msra.mxu0 %v6988
        %7098 = vmatprep.subr.mxu0 0.0
        %7099 = vmatpush1.msra.mxu0 %v6989
        %7100 = vmatprep.subr.mxu0 0.0
        %7101 = vmatpush1.msra.mxu0 %v6990
        %7102 = vmatprep.subr.mxu0 0.0
        %7103 = vmatpush1.msra.mxu0 %v6991
        %7104 = vmatprep.subr.mxu0 0.0
        %7105 = vmatpush1.msra.mxu0 %v6992
        %7106 = vmatprep.subr.mxu0 0.0
        %7107 = vmatpush1.msra.mxu0 %v6993
        %7108 = vmatprep.subr.mxu0 0.0
        %7109 = vmatpush1.msra.mxu0 %v6994
        %7110 = vmatprep.subr.mxu0 0.0
        %7111 = vmatpush1.msra.mxu0 %v6995
        %7112 = vmatprep.subr.mxu0 0.0
        %7113 = vmatpush1.msra.mxu0 %v6996
        %7114 = vmatprep.subr.mxu0 0.0
        %7115 = vmatpush1.msra.mxu0 %v6997
        %7116 = vmatprep.subr.mxu0 0.0
        %7117 = vmatpush1.msra.mxu0 %v6998
        %7118 = vmatprep.subr.mxu0 0.0
        %7119 = vmatpush1.msra.mxu0 %v6999
        %7120 = vmatprep.subr.mxu0 0.0
        %7121 = vmatpush1.msra.mxu0 %v7000
        %7122 = vmatprep.subr.mxu0 0.0
        %7123 = vmatpush1.msra.mxu0 %v7001
        %7124 = vmatprep.mubr.f32.mxu0 %v7042
        %7125 = vmatmul.mubr.f32.gmra.mrb[0].mxu0 %v7038
        %v7126 = vpop.f32.mrb[0].mxu0
        %v7127 = vadd.f32 %v7033, %v7126
        %v7128 = vpop.f32.mrb[0].mxu0
        %7129 = vdwg.mxu0
        %7130 = vmatprep.subr.mxu0 0.0
        %7131 = vmatpush1.msra.mxu0 %v7002
        %7132 = vmatprep.subr.mxu0 0.0
        %7133 = vmatpush1.msra.mxu0 %v7003
        %7134 = vmatprep.subr.mxu0 0.0
        %7135 = vmatpush1.msra.mxu0 %v7004
        %7136 = vmatprep.subr.mxu0 0.0
        %7137 = vmatpush1.msra.mxu0 %v7005
        %7138 = vmatprep.subr.mxu0 0.0
        %7139 = vmatpush1.msra.mxu0 %v7006
        %7140 = vmatprep.subr.mxu0 0.0
        %7141 = vmatpush1.msra.mxu0 %v7007
        %7142 = vmatprep.subr.mxu0 0.0
        %7143 = vmatpush1.msra.mxu0 %v7008
        %7144 = vmatprep.subr.mxu0 0.0
        %7145 = vmatpush1.msra.mxu0 %v7009
        %7146 = vmatprep.subr.mxu0 0.0
        %7147 = vmatpush1.msra.mxu0 %v7010
        %7148 = vmatprep.subr.mxu0 0.0
        %7149 = vmatpush1.msra.mxu0 %v7011
        %7150 = vmatprep.subr.mxu0 0.0
        %7151 = vmatpush1.msra.mxu0 %v7012
        %7152 = vmatprep.subr.mxu0 0.0
        %7153 = vmatpush1.msra.mxu0 %v7013
        %7154 = vmatprep.subr.mxu0 0.0
        %7155 = vmatpush1.msra.mxu0 %v7014
        %7156 = vmatprep.subr.mxu0 0.0
        %7157 = vmatpush1.msra.mxu0 %v7015
        %7158 = vmatprep.subr.mxu0 0.0
        %7159 = vmatpush1.msra.mxu0 %v7016
        %7160 = vmatprep.subr.mxu0 0.0
        %7161 = vmatpush1.msra.mxu0 %v7017
        %7162 = vmatprep.subr.mxu0 0.0
        %7163 = vmatpush1.msra.mxu0 %v7018
        %7164 = vmatprep.subr.mxu0 0.0
        %7165 = vmatpush1.msra.mxu0 %v7019
        %7166 = vmatprep.subr.mxu0 0.0
        %7167 = vmatpush1.msra.mxu0 %v7020
        %7168 = vmatprep.subr.mxu0 0.0
        %7169 = vmatpush1.msra.mxu0 %v7021
        %7170 = vmatprep.subr.mxu0 0.0
        %7171 = vmatpush1.msra.mxu0 %v7022
        %7172 = vmatprep.subr.mxu0 0.0
        %7173 = vmatpush1.msra.mxu0 %v7023
        %7174 = vmatprep.subr.mxu0 0.0
        %7175 = vmatpush1.msra.mxu0 %v7024
        %7176 = vmatprep.subr.mxu0 0.0
        %7177 = vmatpush1.msra.mxu0 %v7025
        %7178 = vmatprep.subr.mxu0 0.0
        %7179 = vmatpush1.msra.mxu0 %v7026
        %7180 = vmatprep.subr.mxu0 0.0
        %7181 = vmatpush1.msra.mxu0 %v7027
        %7182 = vmatprep.subr.mxu0 0.0
        %7183 = vmatpush1.msra.mxu0 %v7028
        %7184 = vmatprep.subr.mxu0 0.0
        %7185 = vmatpush1.msra.mxu0 %v7029
        %7186 = vmatprep.subr.mxu0 0.0
        %7187 = vmatpush1.msra.mxu0 %v7030
        %7188 = vmatprep.subr.mxu0 0.0
        %7189 = vmatpush1.msra.mxu0 %v7031
        %7190 = vmatprep.subr.mxu0 0.0
        %7191 = vmatpush1.msra.mxu0 %v7058
        %7192 = vmatprep.subr.mxu0 0.0
        %7193 = vmatpush1.msra.mxu0 0.0
        %7194 = vmatprep.mubr.f32.mxu0 %v7055
        %7195 = vmatmul.mubr.f32.gmra.mrb[0].mxu0 %v7046
        %v7196 = vpop.f32.mrb[0].mxu0
        %v7197 = vadd.f32 %v7127, %v7196
        %v7198 = vpop.f32.mrb[0].mxu0
        %7199 = vdwg.mxu0
        %vm7200 = vcmask 73728
        %7201 = vst.msk [vmem:[%s324] sm:$0x1] %vm7200, %v7197
        %s7202 = sand.u32 %s225, 1
        %s7203 = scalar_lea.sflag [#allocation3], %s7202
        %s7204 = sand.u32 %s225, 1
        %s7205 = scalar_lea.vmem [#allocation2], %s7204
        // Predicated region
        $region57: #{lenet_forward.1} parent=55 // pred_check
          %p7206 = pneg %p235
        $region58: #{lenet_forward.1} parent=55 // pred_check_branch
          %7208 = sbr.rel (%p7206) target = $region60
        $region59: #{lenet_forward.1} parent=55 // pred_region
          %s7210 = ssub.s32 16, 16
          %7211 = vsyncadd %s7203, %s7210
          %s7212 = smul.addr %s23, 16
          %s7213 = scalar_lea.hbm %s9, %s7212
          %s7215 = sshll.u32 %s7205, 4
          %s7216 = int_to_ptr.vmem [resolvable:$true] %s7215
          %7218 = dma.vmem_to_hbm [thread:$0]  %s7216, 16, %s7213, %s7203
        $region60: #{lenet_forward.1} parent=55 // pred_fallthru
          _
      $region56: #{lenet_forward.1} parent=5 // pred_fallthru
        _
      %p7219 = scmp.le.s32.totalorder 2, %s18
      // Predicated region
      $region61: #{lenet_forward.1} parent=5 // pred_check
        %p7220 = pneg %p7219
      $region62: #{lenet_forward.1} parent=5 // pred_check_branch
        %7222 = sbr.rel (%p7220) target = $region64
      $region63: #{lenet_forward.1} parent=5 // pred_region
        %s7223 = ssub.s32 %s18, 2
        // Predicated region
        $region65: #{lenet_forward.1} parent=63 // pred_check
          %p7224 = pneg %p241
        $region66: #{lenet_forward.1} parent=63 // pred_check_branch
          %7226 = sbr.rel (%p7224) target = $region68
        $region67: #{lenet_forward.1} parent=63 // pred_region
          %s7227 = sand.u32 %s226, 1
          %s7228 = scalar_lea.sflag [#allocation3], %s7227
          %s7229 = sand.u32 %s226, 1
          %s7230 = scalar_lea.vmem [#allocation2], %s7229
          %7231 = dma.done %s7228, 16
        $region68: #{lenet_forward.1} parent=63 // pred_fallthru
          _
      $region64: #{lenet_forward.1} parent=5 // pred_fallthru
        _
    $region6: #{lenet_forward.1} parent=1 // loop_footer
      %s22 = sadd.s32 1, %s18
    $region7: #{lenet_forward.1} parent=1 // loop_footer_branch
      %17 = sbr.rel target = $region3
    $region8: #{lenet_forward.1} parent=1 // loop_exit
      _
    %7232 = vsyncpa [#allocation3], 1
    %s7233 = scalar_lea.sflag [#allocation3], 1
    %7234 = vsyncpa %s7233, 1

</llo_original>
